<compile_context>
chip_gen: v5e
topology: v5e:2x2
jax: 0.10.0
libtpu: 0.0.40
codegen_flags: <defaults>
</compile_context>

<pallas_src>
import functools

import jax
import jax.numpy as jnp
from jax.experimental import pallas as pl
from jax.experimental.pallas import tpu as pltpu

EPS = 1e-5
LANES = 128

VMEM_LIMIT_BYTES = 32 * 1024 * 1024   # scoped limit, safe on v7x (64 MiB / TC)
CONV_TILE_BUDGET = 20 * 1024 * 1024   # per-tile footprint budget for the conv
ELEM_TILE_BUDGET = 8 * 1024 * 1024    # per-tile budget for the BN+ReLU epilogue


def _round_up(x, m):
    return (x + m - 1) // m * m


def _divisors(n):
    return [d for d in range(1, n + 1) if n % d == 0]


def _conv_tile_vmem_bytes(th, w, cpi, cpo):
    xbuf = (th + 2) * w * 3 * cpi * 2          # bf16 kw-folded im2col scratch
    acc = th * w * cpo * 4                     # f32 accumulator
    xin = 2 * (th + 2) * w * cpi * 2           # double-buffered input (+halo)
    yout = 2 * (th * w * cpo * 2 + 2 * cpo * 4)  # double-buffered y + stats
    wts = 2 * 9 * cpi * cpo * 2 + 6 * (cpi + cpo) * 4  # weights + affine vecs
    return xbuf + acc + xin + yout + wts


def _select_conv_tile_h(h, w, cpi, cpo, target_th=32):
    # Largest divisor of H <= target rows (>=512 MXU rows when W allows) whose
    # VMEM footprint fits the budget; never falls back to a full-H tile.
    target = max(target_th, -(-512 // max(w, 1)))
    best = 1
    for d in _divisors(h):
        if d <= target and _conv_tile_vmem_bytes(d, w, cpi, cpo) <= CONV_TILE_BUDGET:
            best = d
    return best


def _select_elem_tile_h(h, w, c, in_bytes, out_bytes):
    best = 1
    for d in _divisors(h):
        if 2 * d * w * c * (in_bytes + out_bytes) <= ELEM_TILE_BUDGET:
            best = d
    return best


# -----------------------------------------------------------------------------
# Kernel 1: [optional fused BN+ReLU of the previous stage] -> 3x3 conv + bias.
# Outputs the pre-BN activation tile (bf16) and per-tile partial BN statistics
# (sum, sum-of-squares) computed from the f32 accumulator.
# -----------------------------------------------------------------------------
def conv3x3_bias_stats_kernel(x_mid_ref, x_top_ref, x_bot_ref, w_ref, b_ref,
                              scale_ref, shift_ref, y_ref, stats_ref,
                              xbuf_ref, acc_ref, *, preact):
    t = pl.program_id(1)
    nt = pl.num_programs(1)
    TH = y_ref.shape[1]
    W = y_ref.shape[2]
    Cpo = y_ref.shape[3]
    Cpi = x_mid_ref.shape[3]

    def act(v):
        # Previous stage's BatchNorm+ReLU epilogue fused into the load so the
        # normalized activation never round-trips through HBM.
        if preact:
            v = v.astype(jnp.float32) * scale_ref[...] + shift_ref[...]
            v = jnp.maximum(v, 0.0)
        return v.astype(xbuf_ref.dtype)

    # --- center (kw=1) K-slice: tile body + 1-row halo above / below ---------
    xbuf_ref[1:TH + 1, :, Cpi:2 * Cpi] = act(x_mid_ref[...]).reshape(TH, W, Cpi)
    xbuf_ref[0:1, :, Cpi:2 * Cpi] = act(x_top_ref[...]).reshape(1, W, Cpi)
    xbuf_ref[TH + 1:TH + 2, :, Cpi:2 * Cpi] = act(x_bot_ref[...]).reshape(1, W, Cpi)

    # Zero-pad halo rows at the true image top/bottom, written directly into
    # the scratch (padding=1 applies to the *activation*, i.e. post BN+ReLU).
    zrow = jnp.zeros((1, W, Cpi), xbuf_ref.dtype)

    @pl.when(t == 0)
    def _():
        xbuf_ref[0:1, :, Cpi:2 * Cpi] = zrow

    @pl.when(t == nt - 1)
    def _():
        xbuf_ref[TH + 1:TH + 2, :, Cpi:2 * Cpi] = zrow

    # --- kw=0 / kw=2 K-slices: W-shifted copies of the (already zero-row-
    # padded) center slice.  The shift happens in the value domain and the
    # stores are lane-aligned full planes (robust lowering for packed bf16).
    base = xbuf_ref[:, :, Cpi:2 * Cpi]                       # (TH+2, W, Cpi)
    zcol = jnp.zeros((TH + 2, 1, Cpi), xbuf_ref.dtype)
    xbuf_ref[:, :, 0:Cpi] = jnp.concatenate([zcol, base[:, :W - 1, :]], axis=1)
    xbuf_ref[:, :, 2 * Cpi:3 * Cpi] = jnp.concatenate([base[:, 1:, :], zcol], axis=1)

    # --- 3x3 conv as 3 lane-dense bf16 MXU matmuls with K = 3*Cpi ------------
    for kh in range(3):
        xs = xbuf_ref[kh:kh + TH].reshape(TH * W, 3 * Cpi)
        contrib = jnp.dot(xs, w_ref[kh], preferred_element_type=jnp.float32)
        if kh == 0:
            acc_ref[...] = contrib
        else:
            acc_ref[...] += contrib

    yb = acc_ref[...] + b_ref[...]                           # + conv bias, f32
    y_ref[...] = yb.reshape(1, TH, W, Cpo).astype(y_ref.dtype)

    # Per-tile partial BatchNorm statistics from the f32 accumulator.
    # (Note: stage 2 normalizes the bf16-rounded y it reloads; the tiny
    # mean/var mismatch vs a pure-f32 reference is covered by the tolerance.)
    s1 = jnp.sum(yb, axis=0, keepdims=True)                  # (1, Cpo)
    s2 = jnp.sum(yb * yb, axis=0, keepdims=True)             # (1, Cpo)
    stats_ref[...] = jnp.concatenate([s1, s2], axis=0).reshape(1, 1, 2, Cpo)


def conv_bias_stats(x, w3, bias, scale, shift, *, preact, tile_h):
    """One tiled conv stage: (optional fused pre-activation) + conv3x3 + bias.

    x:     (N, H, W, Cpi)    bf16, channels padded to LANES
    w3:    (3, 3*Cpi, Cpo)   bf16, kw folded into K ([kw=0 | kw=1 | kw=2])
    bias:  (1, Cpo)          f32
    scale, shift: (1, Cpi)   f32  (previous stage's BN affine; unused if not preact)
    Returns pre-BN activation (N, H, W, Cpo) bf16 and partial stats
    (N, n_tiles, 2, Cpo) f32.
    """
    N, H, W, Cpi = x.shape
    Cpo = w3.shape[-1]
    TH = tile_h
    assert H % TH == 0, (H, TH)
    nt = H // TH

    kernel = functools.partial(conv3x3_bias_stats_kernel, preact=preact)

    flops = 2 * 9 * N * H * W * Cpi * Cpo
    bytes_accessed = (3 * x.size * x.dtype.itemsize           # x passed 3x (+halo)
                      + w3.size * w3.dtype.itemsize
                      + N * H * W * Cpo * 2                   # pre-BN output (bf16)
                      + N * nt * 2 * Cpo * 4)                 # partial stats (f32)

    y, stats = pl.pallas_call(
        kernel,
        out_shape=(jax.ShapeDtypeStruct((N, H, W, Cpo), jnp.bfloat16),
                   jax.ShapeDtypeStruct((N, nt, 2, Cpo), jnp.float32)),
        grid=(N, nt),
        in_specs=[
            # tile body
            pl.BlockSpec((1, TH, W, Cpi), lambda n, t: (n, t, 0, 0)),
            # 1-row halo above / below (clamped at the image edge, zeroed in-kernel)
            pl.BlockSpec((1, 1, W, Cpi),
                         lambda n, t: (n, jnp.maximum(t * TH - 1, 0), 0, 0)),
            pl.BlockSpec((1, 1, W, Cpi),
                         lambda n, t: (n, jnp.minimum(t * TH + TH, H - 1), 0, 0)),
            # constant-index operands (see TODO about pl.Buffered(1))
            pl.BlockSpec((3, 3 * Cpi, Cpo), lambda n, t: (0, 0, 0)),
            pl.BlockSpec((1, Cpo), lambda n, t: (0, 0)),
            pl.BlockSpec((1, Cpi), lambda n, t: (0, 0)),
            pl.BlockSpec((1, Cpi), lambda n, t: (0, 0)),
        ],
        out_specs=(
            pl.BlockSpec((1, TH, W, Cpo), lambda n, t: (n, t, 0, 0)),
            pl.BlockSpec((1, 1, 2, Cpo), lambda n, t: (n, t, 0, 0)),
        ),
        scratch_shapes=[
            pltpu.VMEM((TH + 2, W, 3 * Cpi), jnp.bfloat16),   # kw-folded im2col
            pltpu.VMEM((TH * W, Cpo), jnp.float32),           # f32 accumulator
        ],
        compiler_params=pltpu.CompilerParams(
            dimension_semantics=("parallel", "parallel"),
            vmem_limit_bytes=VMEM_LIMIT_BYTES),
        cost_estimate=pl.CostEstimate(flops=flops, transcendentals=0,
                                      bytes_accessed=bytes_accessed),
    )(x, x, x, w3, bias, scale, shift)
    return y, stats


# -----------------------------------------------------------------------------
# Kernel 2: final BN (precomputed affine) + ReLU.  Mem-bound: bf16 output and a
# large tile decoupled from the conv tile size.
# -----------------------------------------------------------------------------
def bn_relu_kernel(y_ref, scale_ref, shift_ref, o_ref):
    y = y_ref[...].astype(jnp.float32)
    o_ref[...] = jnp.maximum(y * scale_ref[...] + shift_ref[...],
                             0.0).astype(o_ref.dtype)


def bn_relu_apply(y, scale, shift, *, out_dtype=jnp.bfloat16):
    N, H, W, Cpo = y.shape
    TH = _select_elem_tile_h(H, W, Cpo,
                             in_bytes=y.dtype.itemsize,
                             out_bytes=jnp.dtype(out_dtype).itemsize)
    nt = H // TH
    return pl.pallas_call(
        bn_relu_kernel,
        out_shape=jax.ShapeDtypeStruct((N, H, W, Cpo), out_dtype),
        grid=(N, nt),
        in_specs=[
            pl.BlockSpec((1, TH, W, Cpo), lambda n, t: (n, t, 0, 0)),
            pl.BlockSpec((1, Cpo), lambda n, t: (0, 0)),
            pl.BlockSpec((1, Cpo), lambda n, t: (0, 0)),
        ],
        out_specs=pl.BlockSpec((1, TH, W, Cpo), lambda n, t: (n, t, 0, 0)),
        compiler_params=pltpu.CompilerParams(
            dimension_semantics=("parallel", "parallel"),
            vmem_limit_bytes=VMEM_LIMIT_BYTES),
    )(y, scale, shift)


# -----------------------------------------------------------------------------
# Tiny O(C) helpers (run in XLA between pallas_calls).
# -----------------------------------------------------------------------------
def bn_affine_from_stats(stats, gamma_p, beta_p, count):
    """Reduce per-tile (sum, sum_sq) -> per-channel BN affine (scale, shift)."""
    s = jnp.sum(stats, axis=(0, 1))                           # (2, Cpo) f32
    mean = s[0] / count
    var = jnp.maximum(s[1] / count - mean * mean, 0.0)        # biased var
    inv_std = jax.lax.rsqrt(var + EPS)
    scale = gamma_p * inv_std
    shift = beta_p - mean * scale
    return scale.reshape(1, -1), shift.reshape(1, -1)


def _pad_last(a, n):
    c = a.shape[-1]
    if c == n:
        return a
    return jnp.pad(a, [(0, 0)] * (a.ndim - 1) + [(0, n - c)])


def _pad_vec(v, n, pad_value=0.0):
    v = v.astype(jnp.float32)
    if v.shape[0] == n:
        return v
    return jnp.concatenate([v, jnp.full((n - v.shape[0],), pad_value, jnp.float32)])


def _pad_weight_kfold(w, cpi, cpo):
    # (3, 3, Cin, Cout) HWIO -> (3, 3*cpi, cpo): rows of w[kh] are ordered as
    # [kw=0 | kw=1 | kw=2] channel blocks, matching the im2col K-slices.
    w = jnp.pad(w, ((0, 0), (0, 0), (0, cpi - w.shape[2]), (0, cpo - w.shape[3])))
    return w.reshape(3, 3 * cpi, cpo).astype(jnp.bfloat16)


# -----------------------------------------------------------------------------
# Full block forward (PyTorch NCHW in/out).
# -----------------------------------------------------------------------------
def unet_down_block(x_nchw, params, *, tile_h=None, out_dtype=jnp.float32):
    N, Cin, H, W = x_nchw.shape
    Cout = params["w1"].shape[-1]
    Cpi = _round_up(Cin, LANES)
    Cpo = _round_up(Cout, LANES)

    th_auto = _select_conv_tile_h(H, W, max(Cpi, Cpo), Cpo)
    th = tile_h if (tile_h is not None and H % tile_h == 0) else th_auto

    # NCHW -> NHWC only at the block boundary; channels padded to lane width.
    x = jnp.transpose(x_nchw, (0, 2, 3, 1))
    x = _pad_last(x, Cpi).astype(jnp.bfloat16)

    w1 = _pad_weight_kfold(params["w1"], Cpi, Cpo)
    w2 = _pad_weight_kfold(params["w2"], Cpo, Cpo)
    b1 = _pad_vec(params["b1"], Cpo).reshape(1, Cpo)
    b2 = _pad_vec(params["b2"], Cpo).reshape(1, Cpo)
    g1 = _pad_vec(params["g1"], Cpo, pad_value=1.0)
    g2 = _pad_vec(params["g2"], Cpo, pad_value=1.0)
    bt1 = _pad_vec(params["bt1"], Cpo)
    bt2 = _pad_vec(params["bt2"], Cpo)

    ident_scale = jnp.ones((1, Cpi), jnp.float32)
    ident_shift = jnp.zeros((1, Cpi), jnp.float32)
    count = float(N * H * W)

    # Stage 1: conv1 + bias, per-tile partial BN1 stats.
    y1, st1 = conv_bias_stats(x, w1, b1, ident_scale, ident_shift,
                              preact=False, tile_h=th)
    sc1, sh1 = bn_affine_from_stats(st1, g1, bt1, count)

    # Stage 2: BN1+ReLU fused into the load, conv2 + bias, partial BN2 stats.
    y2, st2 = conv_bias_stats(y1, w2, b2, sc1, sh1, preact=True, tile_h=th)
    sc2, sh2 = bn_affine_from_stats(st2, g2, bt2, count)

    # Final BN2 + ReLU (bf16 HBM writeback; upcast after the cheap transpose).
    out = bn_relu_apply(y2, sc2, sh2, out_dtype=jnp.bfloat16)  # (N,H,W,Cpo)
    out = out[..., :Cout]
    return jnp.transpose(out, (0, 3, 1, 2)).astype(out_dtype)  # NHWC -> NCHW


# ---------------------- pure-JAX reference (for checking) ---------------------
def _ref_stage(x_nhwc, w, b, gamma, beta):
    y = jax.lax.conv_general_dilated(
        x_nhwc, w, window_strides=(1, 1), padding="SAME",
        dimension_numbers=("NHWC", "HWIO", "NHWC"))
    y = y + b.reshape(1, 1, 1, -1)
    mean = jnp.mean(y, axis=(0, 1, 2), keepdims=True)
    var = jnp.mean((y - mean) ** 2, axis=(0, 1, 2), keepdims=True)
    y = (y - mean) * jax.lax.rsqrt(var + EPS) * gamma.reshape(1, 1, 1, -1) \
        + beta.reshape(1, 1, 1, -1)
    return jnp.maximum(y, 0.0)


def unet_down_block_ref(x_nchw, params):
    x = jnp.transpose(x_nchw, (0, 2, 3, 1))
    x = _ref_stage(x, params["w1"], params["b1"], params["g1"], params["bt1"])
    x = _ref_stage(x, params["w2"], params["b2"], params["g2"], params["bt2"])
    return jnp.transpose(x, (0, 3, 1, 2))


if __name__ == "__main__":
    # Small shapes consistent with the module: batch=2, Cin=4, Cout=8, 16x16.
    N, C_IN, C_OUT, H, W = 2, 4, 8, 16, 16

    key = jax.random.PRNGKey(0)
    k_x, k_w1, k_b1, k_w2, k_b2, k_g1, k_bt1, k_g2, k_bt2 = jax.random.split(key, 9)

    x = jax.random.normal(k_x, (N, C_IN, H, W), dtype=jnp.float32)

    def conv_init(k, cin, cout):
        fan_in = cin * 3 * 3
        return jax.random.normal(k, (3, 3, cin, cout), jnp.float32) / jnp.sqrt(fan_in)

    params = {
        "w1": conv_init(k_w1, C_IN, C_OUT),
        "b1": 0.1 * jax.random.normal(k_b1, (C_OUT,), jnp.float32),
        "g1": 1.0 + 0.1 * jax.random.normal(k_g1, (C_OUT,), jnp.float32),
        "bt1": 0.1 * jax.random.normal(k_bt1, (C_OUT,), jnp.float32),
        "w2": conv_init(k_w2, C_OUT, C_OUT),
        "b2": 0.1 * jax.random.normal(k_b2, (C_OUT,), jnp.float32),
        "g2": 1.0 + 0.1 * jax.random.normal(k_g2, (C_OUT,), jnp.float32),
        "bt2": 0.1 * jax.random.normal(k_bt2, (C_OUT,), jnp.float32),
    }

    ref = jax.block_until_ready(unet_down_block_ref(x, params))

    # Default path: auto-selected tile (TH=16 here -> one row-tile per image).
    out = jax.block_until_ready(jax.jit(unet_down_block)(x, params))
    assert out.shape == (N, C_OUT, H, W), out.shape
    assert jnp.allclose(out, ref, atol=5e-2, rtol=5e-2), \
        f"max abs diff {jnp.max(jnp.abs(out - ref))}"

    # Multi-tile path: 2 row-tiles per image exercises the inter-tile halo,
    # clamped halo loads and boundary zeroing.
    out2 = jax.block_until_ready(
        jax.jit(functools.partial(unet_down_block, tile_h=8))(x, params))
    assert jnp.allclose(out2, ref, atol=5e-2, rtol=5e-2), \
        f"max abs diff {jnp.max(jnp.abs(out2 - ref))}"

    print("KERNEL_OK")
</pallas_src>

<mosaic_0001>
module attributes {stable_mosaic.version = 11 : i64} {
  func.func @conv3x3_bias_stats_kernel(%arg0: i32, %arg1: i32, %arg2: memref<1x16x16x128xbf16, #tpu.memory_space<vmem>>, %arg3: memref<1x1x16x128xbf16, #tpu.memory_space<vmem>>, %arg4: memref<1x1x16x128xbf16, #tpu.memory_space<vmem>>, %arg5: memref<3x384x128xbf16, #tpu.memory_space<vmem>>, %arg6: memref<1x128xf32, #tpu.memory_space<vmem>>, %arg7: memref<1x128xf32, #tpu.memory_space<vmem>>, %arg8: memref<1x128xf32, #tpu.memory_space<vmem>>, %arg9: memref<1x16x16x128xbf16, #tpu.memory_space<vmem>>, %arg10: memref<1x1x2x128xf32, #tpu.memory_space<vmem>>, %arg11: memref<18x16x384xbf16, #tpu.memory_space<vmem>>, %arg12: memref<256x128xf32, #tpu.memory_space<vmem>>) attributes {dimension_semantics = [#tpu.dimension_semantics<parallel>, #tpu.dimension_semantics<parallel>], iteration_bounds = array<i64: 2, 1>, scalar_prefetch = 0 : i64, scratch_operands = 2 : i64, tpu.core_type = #tpu.core_type<tc>, window_params = [{transform_indices = @transform_0, window_bounds = array<i64: 1, 16, 16, 128>}, {transform_indices = @transform_1, window_bounds = array<i64: 1, 1, 16, 128>}, {transform_indices = @transform_2, window_bounds = array<i64: 1, 1, 16, 128>}, {pipeline_mode = #tpu.pipeline_mode<synchronous>, transform_indices = @transform_3, window_bounds = array<i64: 3, 384, 128>}, {pipeline_mode = #tpu.pipeline_mode<synchronous>, transform_indices = @transform_4, window_bounds = array<i64: 1, 128>}, {pipeline_mode = #tpu.pipeline_mode<synchronous>, transform_indices = @transform_5, window_bounds = array<i64: 1, 128>}, {pipeline_mode = #tpu.pipeline_mode<synchronous>, transform_indices = @transform_6, window_bounds = array<i64: 1, 128>}, {transform_indices = @transform_7, window_bounds = array<i64: 1, 16, 16, 128>}, {transform_indices = @transform_8, window_bounds = array<i64: 1, 1, 2, 128>}]} {
    %c0 = arith.constant 0 : index
    %c0_0 = arith.constant 0 : index
    %c0_1 = arith.constant 0 : index
    %c0_2 = arith.constant 0 : index
    %0 = vector.load %arg2[%c0, %c0_0, %c0_1, %c0_2] : memref<1x16x16x128xbf16, #tpu.memory_space<vmem>>, vector<1x16x16x128xbf16>
    %1 = arith.extf %0 : vector<1x16x16x128xbf16> to vector<1x16x16x128xf32>
    %c0_3 = arith.constant 0 : index
    %c0_4 = arith.constant 0 : index
    %2 = vector.load %arg7[%c0_3, %c0_4] : memref<1x128xf32, #tpu.memory_space<vmem>>, vector<1x128xf32>
    %3 = vector.shape_cast %2 : vector<1x128xf32> to vector<1x1x1x128xf32>
    %4 = vector.broadcast %3 : vector<1x1x1x128xf32> to vector<1x16x16x128xf32>
    %5 = arith.mulf %1, %4 : vector<1x16x16x128xf32>
    %c0_5 = arith.constant 0 : index
    %c0_6 = arith.constant 0 : index
    %6 = vector.load %arg8[%c0_5, %c0_6] : memref<1x128xf32, #tpu.memory_space<vmem>>, vector<1x128xf32>
    %7 = vector.shape_cast %6 : vector<1x128xf32> to vector<1x1x1x128xf32>
    %8 = vector.broadcast %7 : vector<1x1x1x128xf32> to vector<1x16x16x128xf32>
    %9 = arith.addf %5, %8 : vector<1x16x16x128xf32>
    %cst = arith.constant 0.000000e+00 : f32
    %10 = vector.broadcast %cst : f32 to vector<1x16x16x128xf32>
    %11 = arith.maximumf %9, %10 : vector<1x16x16x128xf32>
    %12 = arith.truncf %11 : vector<1x16x16x128xf32> to vector<1x16x16x128xbf16>
    %13 = vector.shape_cast %12 : vector<1x16x16x128xbf16> to vector<16x16x128xbf16>
    %c1 = arith.constant 1 : index
    %c0_7 = arith.constant 0 : index
    %c128 = arith.constant 128 : index
    %14 = vector.load %arg11[%c1, %c0_7, %c128] : memref<18x16x384xbf16, #tpu.memory_space<vmem>>, vector<16x16x128xbf16>
    tpu.vector_store %arg11[%c1, %c0_7, %c128], %13 {strides = array<i32>} : memref<18x16x384xbf16, #tpu.memory_space<vmem>>, vector<16x16x128xbf16>,
    %c0_8 = arith.constant 0 : index
    %c0_9 = arith.constant 0 : index
    %c0_10 = arith.constant 0 : index
    %c0_11 = arith.constant 0 : index
    %15 = vector.load %arg3[%c0_8, %c0_9, %c0_10, %c0_11] : memref<1x1x16x128xbf16, #tpu.memory_space<vmem>>, vector<1x1x16x128xbf16>
    %16 = arith.extf %15 : vector<1x1x16x128xbf16> to vector<1x1x16x128xf32>
    %c0_12 = arith.constant 0 : index
    %c0_13 = arith.constant 0 : index
    %17 = vector.load %arg7[%c0_12, %c0_13] : memref<1x128xf32, #tpu.memory_space<vmem>>, vector<1x128xf32>
    %18 = vector.shape_cast %17 : vector<1x128xf32> to vector<1x1x1x128xf32>
    %19 = vector.broadcast %18 : vector<1x1x1x128xf32> to vector<1x1x16x128xf32>
    %20 = arith.mulf %16, %19 : vector<1x1x16x128xf32>
    %c0_14 = arith.constant 0 : index
    %c0_15 = arith.constant 0 : index
    %21 = vector.load %arg8[%c0_14, %c0_15] : memref<1x128xf32, #tpu.memory_space<vmem>>, vector<1x128xf32>
    %22 = vector.shape_cast %21 : vector<1x128xf32> to vector<1x1x1x128xf32>
    %23 = vector.broadcast %22 : vector<1x1x1x128xf32> to vector<1x1x16x128xf32>
    %24 = arith.addf %20, %23 : vector<1x1x16x128xf32>
    %cst_16 = arith.constant 0.000000e+00 : f32
    %25 = vector.broadcast %cst_16 : f32 to vector<1x1x16x128xf32>
    %26 = arith.maximumf %24, %25 : vector<1x1x16x128xf32>
    %27 = arith.truncf %26 : vector<1x1x16x128xf32> to vector<1x1x16x128xbf16>
    %28 = vector.shape_cast %27 : vector<1x1x16x128xbf16> to vector<1x16x128xbf16>
    %c0_17 = arith.constant 0 : index
    %c0_18 = arith.constant 0 : index
    %c128_19 = arith.constant 128 : index
    %29 = vector.load %arg11[%c0_17, %c0_18, %c128_19] : memref<18x16x384xbf16, #tpu.memory_space<vmem>>, vector<1x16x128xbf16>
    tpu.vector_store %arg11[%c0_17, %c0_18, %c128_19], %28 {strides = array<i32>} : memref<18x16x384xbf16, #tpu.memory_space<vmem>>, vector<1x16x128xbf16>,
    %c0_20 = arith.constant 0 : index
    %c0_21 = arith.constant 0 : index
    %c0_22 = arith.constant 0 : index
    %c0_23 = arith.constant 0 : index
    %30 = vector.load %arg4[%c0_20, %c0_21, %c0_22, %c0_23] : memref<1x1x16x128xbf16, #tpu.memory_space<vmem>>, vector<1x1x16x128xbf16>
    %31 = arith.extf %30 : vector<1x1x16x128xbf16> to vector<1x1x16x128xf32>
    %c0_24 = arith.constant 0 : index
    %c0_25 = arith.constant 0 : index
    %32 = vector.load %arg7[%c0_24, %c0_25] : memref<1x128xf32, #tpu.memory_space<vmem>>, vector<1x128xf32>
    %33 = vector.shape_cast %32 : vector<1x128xf32> to vector<1x1x1x128xf32>
    %34 = vector.broadcast %33 : vector<1x1x1x128xf32> to vector<1x1x16x128xf32>
    %35 = arith.mulf %31, %34 : vector<1x1x16x128xf32>
    %c0_26 = arith.constant 0 : index
    %c0_27 = arith.constant 0 : index
    %36 = vector.load %arg8[%c0_26, %c0_27] : memref<1x128xf32, #tpu.memory_space<vmem>>, vector<1x128xf32>
    %37 = vector.shape_cast %36 : vector<1x128xf32> to vector<1x1x1x128xf32>
    %38 = vector.broadcast %37 : vector<1x1x1x128xf32> to vector<1x1x16x128xf32>
    %39 = arith.addf %35, %38 : vector<1x1x16x128xf32>
    %cst_28 = arith.constant 0.000000e+00 : f32
    %40 = vector.broadcast %cst_28 : f32 to vector<1x1x16x128xf32>
    %41 = arith.maximumf %39, %40 : vector<1x1x16x128xf32>
    %42 = arith.truncf %41 : vector<1x1x16x128xf32> to vector<1x1x16x128xbf16>
    %43 = vector.shape_cast %42 : vector<1x1x16x128xbf16> to vector<1x16x128xbf16>
    %c17 = arith.constant 17 : index
    %c0_29 = arith.constant 0 : index
    %c128_30 = arith.constant 128 : index
    %44 = vector.load %arg11[%c17, %c0_29, %c128_30] : memref<18x16x384xbf16, #tpu.memory_space<vmem>>, vector<1x16x128xbf16>
    tpu.vector_store %arg11[%c17, %c0_29, %c128_30], %43 {strides = array<i32>} : memref<18x16x384xbf16, #tpu.memory_space<vmem>>, vector<1x16x128xbf16>,
    %cst_31 = arith.constant 0.000000e+00 : bf16
    %45 = vector.broadcast %cst_31 : bf16 to vector<1x16x128xbf16>
    %c0_i32 = arith.constant 0 : i32
    %46 = arith.cmpi eq, %arg1, %c0_i32 : i32
    %47 = arith.extui %46 : i1 to i32
    %c0_i32_32 = arith.constant 0 : i32
    %48 = arith.cmpi ne, %47, %c0_i32_32 : i32
    scf.if %48 {
      %c0_88 = arith.constant 0 : index
      %c0_89 = arith.constant 0 : index
      %c128_90 = arith.constant 128 : index
      %97 = vector.load %arg11[%c0_88, %c0_89, %c128_90] : memref<18x16x384xbf16, #tpu.memory_space<vmem>>, vector<1x16x128xbf16>
      tpu.vector_store %arg11[%c0_88, %c0_89, %c128_90], %45 {strides = array<i32>} : memref<18x16x384xbf16, #tpu.memory_space<vmem>>, vector<1x16x128xbf16>,
    } else {
    }
    %c0_i32_33 = arith.constant 0 : i32
    %49 = arith.cmpi eq, %arg1, %c0_i32_33 : i32
    %50 = arith.extui %49 : i1 to i32
    %c0_i32_34 = arith.constant 0 : i32
    %51 = arith.cmpi ne, %50, %c0_i32_34 : i32
    scf.if %51 {
      %c17_88 = arith.constant 17 : index
      %c0_89 = arith.constant 0 : index
      %c128_90 = arith.constant 128 : index
      %97 = vector.load %arg11[%c17_88, %c0_89, %c128_90] : memref<18x16x384xbf16, #tpu.memory_space<vmem>>, vector<1x16x128xbf16>
      tpu.vector_store %arg11[%c17_88, %c0_89, %c128_90], %45 {strides = array<i32>} : memref<18x16x384xbf16, #tpu.memory_space<vmem>>, vector<1x16x128xbf16>,
    } else {
    }
    %c0_35 = arith.constant 0 : index
    %c0_36 = arith.constant 0 : index
    %c128_37 = arith.constant 128 : index
    %52 = vector.load %arg11[%c0_35, %c0_36, %c128_37] : memref<18x16x384xbf16, #tpu.memory_space<vmem>>, vector<18x16x128xbf16>
    %cst_38 = arith.constant 0.000000e+00 : bf16
    %53 = vector.broadcast %cst_38 : bf16 to vector<18x1x128xbf16>
    %54 = vector.extract_strided_slice %52 {offsets = [0, 0, 0], sizes = [18, 15, 128], strides = [1, 1, 1]} : vector<18x16x128xbf16> to vector<18x15x128xbf16>
    %55 = tpu.concatenate %53, %54 in 1 : vector<18x1x128xbf16>, vector<18x15x128xbf16> -> vector<18x16x128xbf16>
    %c0_39 = arith.constant 0 : index
    %c0_40 = arith.constant 0 : index
    %c0_41 = arith.constant 0 : index
    %56 = vector.load %arg11[%c0_39, %c0_40, %c0_41] : memref<18x16x384xbf16, #tpu.memory_space<vmem>>, vector<18x16x128xbf16>
    tpu.vector_store %arg11[%c0_39, %c0_40, %c0_41], %55 {strides = array<i32>} : memref<18x16x384xbf16, #tpu.memory_space<vmem>>, vector<18x16x128xbf16>,
    %57 = vector.extract_strided_slice %52 {offsets = [0, 1, 0], sizes = [18, 15, 128], strides = [1, 1, 1]} : vector<18x16x128xbf16> to vector<18x15x128xbf16>
    %58 = tpu.concatenate %57, %53 in 1 : vector<18x15x128xbf16>, vector<18x1x128xbf16> -> vector<18x16x128xbf16>
    %c0_42 = arith.constant 0 : index
    %c0_43 = arith.constant 0 : index
    %c256 = arith.constant 256 : index
    %59 = vector.load %arg11[%c0_42, %c0_43, %c256] : memref<18x16x384xbf16, #tpu.memory_space<vmem>>, vector<18x16x128xbf16>
    tpu.vector_store %arg11[%c0_42, %c0_43, %c256], %58 {strides = array<i32>} : memref<18x16x384xbf16, #tpu.memory_space<vmem>>, vector<18x16x128xbf16>,
    %c0_44 = arith.constant 0 : index
    %c0_45 = arith.constant 0 : index
    %c0_46 = arith.constant 0 : index
    %60 = vector.load %arg11[%c0_44, %c0_45, %c0_46] : memref<18x16x384xbf16, #tpu.memory_space<vmem>>, vector<16x16x384xbf16>
    %61 = vector.shape_cast %60 : vector<16x16x384xbf16> to vector<256x384xbf16>
    %c0_47 = arith.constant 0 : index
    %c0_48 = arith.constant 0 : index
    %c0_49 = arith.constant 0 : index
    %62 = vector.load %arg5[%c0_47, %c0_48, %c0_49] : memref<3x384x128xbf16, #tpu.memory_space<vmem>>, vector<1x384x128xbf16>
    %63 = vector.shape_cast %62 : vector<1x384x128xbf16> to vector<384x128xbf16>
    %cst_50 = arith.constant dense<0.000000e+00> : vector<256x128xf32>
    %64 = tpu.matmul %61, %63, %cst_50 {dimension_numbers = #tpu.dot_dimension_numbers<[1], [0], [0], [1], [0, 0, 1, 1], [], []>} : vector<256x384xbf16>, vector<384x128xbf16>, vector<256x128xf32> -> vector<256x128xf32>
    %c0_51 = arith.constant 0 : index
    %c0_52 = arith.constant 0 : index
    %65 = vector.load %arg12[%c0_51, %c0_52] : memref<256x128xf32, #tpu.memory_space<vmem>>, vector<256x128xf32>
    tpu.vector_store %arg12[%c0_51, %c0_52], %64 {strides = array<i32>} : memref<256x128xf32, #tpu.memory_space<vmem>>, vector<256x128xf32>,
    %c1_53 = arith.constant 1 : index
    %c0_54 = arith.constant 0 : index
    %c0_55 = arith.constant 0 : index
    %66 = vector.load %arg11[%c1_53, %c0_54, %c0_55] : memref<18x16x384xbf16, #tpu.memory_space<vmem>>, vector<16x16x384xbf16>
    %67 = vector.shape_cast %66 : vector<16x16x384xbf16> to vector<256x384xbf16>
    %c1_56 = arith.constant 1 : index
    %c0_57 = arith.constant 0 : index
    %c0_58 = arith.constant 0 : index
    %68 = vector.load %arg5[%c1_56, %c0_57, %c0_58] : memref<3x384x128xbf16, #tpu.memory_space<vmem>>, vector<1x384x128xbf16>
    %69 = vector.shape_cast %68 : vector<1x384x128xbf16> to vector<384x128xbf16>
    %cst_59 = arith.constant dense<0.000000e+00> : vector<256x128xf32>
    %70 = tpu.matmul %67, %69, %cst_59 {dimension_numbers = #tpu.dot_dimension_numbers<[1], [0], [0], [1], [0, 0, 1, 1], [], []>} : vector<256x384xbf16>, vector<384x128xbf16>, vector<256x128xf32> -> vector<256x128xf32>
    %c0_60 = arith.constant 0 : index
    %c0_61 = arith.constant 0 : index
    %71 = vector.load %arg12[%c0_60, %c0_61] : memref<256x128xf32, #tpu.memory_space<vmem>>, vector<256x128xf32>
    %72 = arith.addf %71, %70 : vector<256x128xf32>
    %c0_62 = arith.constant 0 : index
    %c0_63 = arith.constant 0 : index
    %73 = vector.load %arg12[%c0_62, %c0_63] : memref<256x128xf32, #tpu.memory_space<vmem>>, vector<256x128xf32>
    tpu.vector_store %arg12[%c0_62, %c0_63], %72 {strides = array<i32>} : memref<256x128xf32, #tpu.memory_space<vmem>>, vector<256x128xf32>,
    %c2 = arith.constant 2 : index
    %c0_64 = arith.constant 0 : index
    %c0_65 = arith.constant 0 : index
    %74 = vector.load %arg11[%c2, %c0_64, %c0_65] : memref<18x16x384xbf16, #tpu.memory_space<vmem>>, vector<16x16x384xbf16>
    %75 = vector.shape_cast %74 : vector<16x16x384xbf16> to vector<256x384xbf16>
    %c2_66 = arith.constant 2 : index
    %c0_67 = arith.constant 0 : index
    %c0_68 = arith.constant 0 : index
    %76 = vector.load %arg5[%c2_66, %c0_67, %c0_68] : memref<3x384x128xbf16, #tpu.memory_space<vmem>>, vector<1x384x128xbf16>
    %77 = vector.shape_cast %76 : vector<1x384x128xbf16> to vector<384x128xbf16>
    %cst_69 = arith.constant dense<0.000000e+00> : vector<256x128xf32>
    %78 = tpu.matmul %75, %77, %cst_69 {dimension_numbers = #tpu.dot_dimension_numbers<[1], [0], [0], [1], [0, 0, 1, 1], [], []>} : vector<256x384xbf16>, vector<384x128xbf16>, vector<256x128xf32> -> vector<256x128xf32>
    %c0_70 = arith.constant 0 : index
    %c0_71 = arith.constant 0 : index
    %79 = vector.load %arg12[%c0_70, %c0_71] : memref<256x128xf32, #tpu.memory_space<vmem>>, vector<256x128xf32>
    %80 = arith.addf %79, %78 : vector<256x128xf32>
    %c0_72 = arith.constant 0 : index
    %c0_73 = arith.constant 0 : index
    %81 = vector.load %arg12[%c0_72, %c0_73] : memref<256x128xf32, #tpu.memory_space<vmem>>, vector<256x128xf32>
    tpu.vector_store %arg12[%c0_72, %c0_73], %80 {strides = array<i32>} : memref<256x128xf32, #tpu.memory_space<vmem>>, vector<256x128xf32>,
    %c0_74 = arith.constant 0 : index
    %c0_75 = arith.constant 0 : index
    %82 = vector.load %arg12[%c0_74, %c0_75] : memref<256x128xf32, #tpu.memory_space<vmem>>, vector<256x128xf32>
    %c0_76 = arith.constant 0 : index
    %c0_77 = arith.constant 0 : index
    %83 = vector.load %arg6[%c0_76, %c0_77] : memref<1x128xf32, #tpu.memory_space<vmem>>, vector<1x128xf32>
    %84 = vector.broadcast %83 : vector<1x128xf32> to vector<256x128xf32>
    %85 = arith.addf %82, %84 : vector<256x128xf32>
    %86 = vector.shape_cast %85 : vector<256x128xf32> to vector<1x16x16x128xf32>
    %87 = arith.truncf %86 : vector<1x16x16x128xf32> to vector<1x16x16x128xbf16>
    %c0_78 = arith.constant 0 : index
    %c0_79 = arith.constant 0 : index
    %c0_80 = arith.constant 0 : index
    %c0_81 = arith.constant 0 : index
    %88 = vector.load %arg9[%c0_78, %c0_79, %c0_80, %c0_81] : memref<1x16x16x128xbf16, #tpu.memory_space<vmem>>, vector<1x16x16x128xbf16>
    tpu.vector_store %arg9[%c0_78, %c0_79, %c0_80, %c0_81], %87 {strides = array<i32>} : memref<1x16x16x128xbf16, #tpu.memory_space<vmem>>, vector<1x16x16x128xbf16>,
    %cst_82 = arith.constant dense<0.000000e+00> : vector<128xf32>
    %89 = vector.multi_reduction <add>, %85, %cst_82 [0] : vector<256x128xf32> to vector<128xf32>
    %90 = vector.shape_cast %89 : vector<128xf32> to vector<1x128xf32>
    %91 = arith.mulf %85, %85 : vector<256x128xf32>
    %cst_83 = arith.constant dense<0.000000e+00> : vector<128xf32>
    %92 = vector.multi_reduction <add>, %91, %cst_83 [0] : vector<256x128xf32> to vector<128xf32>
    %93 = vector.shape_cast %92 : vector<128xf32> to vector<1x128xf32>
    %94 = tpu.concatenate %90, %93 in 0 : vector<1x128xf32>, vector<1x128xf32> -> vector<2x128xf32>
    %95 = vector.shape_cast %94 : vector<2x128xf32> to vector<1x1x2x128xf32>
    %c0_84 = arith.constant 0 : index
    %c0_85 = arith.constant 0 : index
    %c0_86 = arith.constant 0 : index
    %c0_87 = arith.constant 0 : index
    %96 = vector.load %arg10[%c0_84, %c0_85, %c0_86, %c0_87] : memref<1x1x2x128xf32, #tpu.memory_space<vmem>>, vector<1x1x2x128xf32>
    tpu.vector_store %arg10[%c0_84, %c0_85, %c0_86, %c0_87], %95 {strides = array<i32>} : memref<1x1x2x128xf32, #tpu.memory_space<vmem>>, vector<1x1x2x128xf32>,
    return
  }
  func.func @transform_0(%arg0: i32, %arg1: i32) -> (i32, i32, i32, i32) {
    %c0_i32 = arith.constant 0 : i32
    %c0_i32_0 = arith.constant 0 : i32
    %c0_i32_1 = arith.constant 0 : i32
    return %arg0, %arg1, %c0_i32, %c0_i32_0 : i32, i32, i32, i32
  }
  func.func @transform_1(%arg0: i32, %arg1: i32) -> (i32, i32, i32, i32) {
    %c16_i32 = arith.constant 16 : i32
    %0 = arith.muli %arg1, %c16_i32 : i32
    %c1_i32 = arith.constant 1 : i32
    %1 = arith.subi %0, %c1_i32 : i32
    %c0_i32 = arith.constant 0 : i32
    %2 = arith.maxsi %1, %c0_i32 : i32
    %c0_i32_0 = arith.constant 0 : i32
    %c0_i32_1 = arith.constant 0 : i32
    %c0_i32_2 = arith.constant 0 : i32
    return %arg0, %2, %c0_i32_0, %c0_i32_1 : i32, i32, i32, i32
  }
  func.func @transform_2(%arg0: i32, %arg1: i32) -> (i32, i32, i32, i32) {
    %c16_i32 = arith.constant 16 : i32
    %0 = arith.muli %arg1, %c16_i32 : i32
    %c16_i32_0 = arith.constant 16 : i32
    %1 = arith.addi %0, %c16_i32_0 : i32
    %c15_i32 = arith.constant 15 : i32
    %2 = arith.minsi %1, %c15_i32 : i32
    %c0_i32 = arith.constant 0 : i32
    %c0_i32_1 = arith.constant 0 : i32
    %c0_i32_2 = arith.constant 0 : i32
    return %arg0, %2, %c0_i32, %c0_i32_1 : i32, i32, i32, i32
  }
  func.func @transform_3(%arg0: i32, %arg1: i32) -> (i32, i32, i32) {
    %c0_i32 = arith.constant 0 : i32
    %c0_i32_0 = arith.constant 0 : i32
    %c0_i32_1 = arith.constant 0 : i32
    %c0_i32_2 = arith.constant 0 : i32
    return %c0_i32, %c0_i32_0, %c0_i32_1 : i32, i32, i32
  }
  func.func @transform_4(%arg0: i32, %arg1: i32) -> (i32, i32) {
    %c0_i32 = arith.constant 0 : i32
    %c0_i32_0 = arith.constant 0 : i32
    %c0_i32_1 = arith.constant 0 : i32
    return %c0_i32, %c0_i32_0 : i32, i32
  }
  func.func @transform_5(%arg0: i32, %arg1: i32) -> (i32, i32) {
    %c0_i32 = arith.constant 0 : i32
    %c0_i32_0 = arith.constant 0 : i32
    %c0_i32_1 = arith.constant 0 : i32
    return %c0_i32, %c0_i32_0 : i32, i32
  }
  func.func @transform_6(%arg0: i32, %arg1: i32) -> (i32, i32) {
    %c0_i32 = arith.constant 0 : i32
    %c0_i32_0 = arith.constant 0 : i32
    %c0_i32_1 = arith.constant 0 : i32
    return %c0_i32, %c0_i32_0 : i32, i32
  }
  func.func @transform_7(%arg0: i32, %arg1: i32) -> (i32, i32, i32, i32) {
    %c0_i32 = arith.constant 0 : i32
    %c0_i32_0 = arith.constant 0 : i32
    %c0_i32_1 = arith.constant 0 : i32
    return %arg0, %arg1, %c0_i32, %c0_i32_0 : i32, i32, i32, i32
  }
  func.func @transform_8(%arg0: i32, %arg1: i32) -> (i32, i32, i32, i32) {
    %c0_i32 = arith.constant 0 : i32
    %c0_i32_0 = arith.constant 0 : i32
    %c0_i32_1 = arith.constant 0 : i32
    return %arg0, %arg1, %c0_i32, %c0_i32_0 : i32, i32, i32, i32
  }
}

module attributes {stable_mosaic.version = 11 : i64} {
  func.func @bn_relu_kernel(%arg0: i32, %arg1: i32, %arg2: memref<1x16x16x128xbf16, #tpu.memory_space<vmem>>, %arg3: memref<1x128xf32, #tpu.memory_space<vmem>>, %arg4: memref<1x128xf32, #tpu.memory_space<vmem>>, %arg5: memref<1x16x16x128xbf16, #tpu.memory_space<vmem>>) attributes {dimension_semantics = [#tpu.dimension_semantics<parallel>, #tpu.dimension_semantics<parallel>], iteration_bounds = array<i64: 2, 1>, scalar_prefetch = 0 : i64, scratch_operands = 0 : i64, tpu.core_type = #tpu.core_type<tc>, window_params = [{transform_indices = @transform_0, window_bounds = array<i64: 1, 16, 16, 128>}, {pipeline_mode = #tpu.pipeline_mode<synchronous>, transform_indices = @transform_1, window_bounds = array<i64: 1, 128>}, {pipeline_mode = #tpu.pipeline_mode<synchronous>, transform_indices = @transform_2, window_bounds = array<i64: 1, 128>}, {transform_indices = @transform_3, window_bounds = array<i64: 1, 16, 16, 128>}]} {
    %c0 = arith.constant 0 : index
    %c0_0 = arith.constant 0 : index
    %c0_1 = arith.constant 0 : index
    %c0_2 = arith.constant 0 : index
    %0 = vector.load %arg2[%c0, %c0_0, %c0_1, %c0_2] : memref<1x16x16x128xbf16, #tpu.memory_space<vmem>>, vector<1x16x16x128xbf16>
    %1 = arith.extf %0 : vector<1x16x16x128xbf16> to vector<1x16x16x128xf32>
    %c0_3 = arith.constant 0 : index
    %c0_4 = arith.constant 0 : index
    %2 = vector.load %arg3[%c0_3, %c0_4] : memref<1x128xf32, #tpu.memory_space<vmem>>, vector<1x128xf32>
    %3 = vector.shape_cast %2 : vector<1x128xf32> to vector<1x1x1x128xf32>
    %4 = vector.broadcast %3 : vector<1x1x1x128xf32> to vector<1x16x16x128xf32>
    %5 = arith.mulf %1, %4 : vector<1x16x16x128xf32>
    %c0_5 = arith.constant 0 : index
    %c0_6 = arith.constant 0 : index
    %6 = vector.load %arg4[%c0_5, %c0_6] : memref<1x128xf32, #tpu.memory_space<vmem>>, vector<1x128xf32>
    %7 = vector.shape_cast %6 : vector<1x128xf32> to vector<1x1x1x128xf32>
    %8 = vector.broadcast %7 : vector<1x1x1x128xf32> to vector<1x16x16x128xf32>
    %9 = arith.addf %5, %8 : vector<1x16x16x128xf32>
    %cst = arith.constant 0.000000e+00 : f32
    %10 = vector.broadcast %cst : f32 to vector<1x16x16x128xf32>
    %11 = arith.maximumf %9, %10 : vector<1x16x16x128xf32>
    %12 = arith.truncf %11 : vector<1x16x16x128xf32> to vector<1x16x16x128xbf16>
    %c0_7 = arith.constant 0 : index
    %c0_8 = arith.constant 0 : index
    %c0_9 = arith.constant 0 : index
    %c0_10 = arith.constant 0 : index
    %13 = vector.load %arg5[%c0_7, %c0_8, %c0_9, %c0_10] : memref<1x16x16x128xbf16, #tpu.memory_space<vmem>>, vector<1x16x16x128xbf16>
    tpu.vector_store %arg5[%c0_7, %c0_8, %c0_9, %c0_10], %12 {strides = array<i32>} : memref<1x16x16x128xbf16, #tpu.memory_space<vmem>>, vector<1x16x16x128xbf16>,
    return
  }
  func.func @transform_0(%arg0: i32, %arg1: i32) -> (i32, i32, i32, i32) {
    %c0_i32 = arith.constant 0 : i32
    %c0_i32_0 = arith.constant 0 : i32
    %c0_i32_1 = arith.constant 0 : i32
    return %arg0, %arg1, %c0_i32, %c0_i32_0 : i32, i32, i32, i32
  }
  func.func @transform_1(%arg0: i32, %arg1: i32) -> (i32, i32) {
    %c0_i32 = arith.constant 0 : i32
    %c0_i32_0 = arith.constant 0 : i32
    %c0_i32_1 = arith.constant 0 : i32
    return %c0_i32, %c0_i32_0 : i32, i32
  }
  func.func @transform_2(%arg0: i32, %arg1: i32) -> (i32, i32) {
    %c0_i32 = arith.constant 0 : i32
    %c0_i32_0 = arith.constant 0 : i32
    %c0_i32_1 = arith.constant 0 : i32
    return %c0_i32, %c0_i32_0 : i32, i32
  }
  func.func @transform_3(%arg0: i32, %arg1: i32) -> (i32, i32, i32, i32) {
    %c0_i32 = arith.constant 0 : i32
    %c0_i32_0 = arith.constant 0 : i32
    %c0_i32_1 = arith.constant 0 : i32
    return %arg0, %arg1, %c0_i32, %c0_i32_0 : i32, i32, i32, i32
  }
}

module attributes {stable_mosaic.version = 11 : i64} {
  func.func @conv3x3_bias_stats_kernel(%arg0: i32, %arg1: i32, %arg2: memref<1x16x16x128xbf16, #tpu.memory_space<vmem>>, %arg3: memref<1x1x16x128xbf16, #tpu.memory_space<vmem>>, %arg4: memref<1x1x16x128xbf16, #tpu.memory_space<vmem>>, %arg5: memref<3x384x128xbf16, #tpu.memory_space<vmem>>, %arg6: memref<1x128xf32, #tpu.memory_space<vmem>>, %arg7: memref<1x128xf32, #tpu.memory_space<vmem>>, %arg8: memref<1x128xf32, #tpu.memory_space<vmem>>, %arg9: memref<1x16x16x128xbf16, #tpu.memory_space<vmem>>, %arg10: memref<1x1x2x128xf32, #tpu.memory_space<vmem>>, %arg11: memref<18x16x384xbf16, #tpu.memory_space<vmem>>, %arg12: memref<256x128xf32, #tpu.memory_space<vmem>>) attributes {dimension_semantics = [#tpu.dimension_semantics<parallel>, #tpu.dimension_semantics<parallel>], iteration_bounds = array<i64: 2, 1>, scalar_prefetch = 0 : i64, scratch_operands = 2 : i64, tpu.core_type = #tpu.core_type<tc>, window_params = [{transform_indices = @transform_0, window_bounds = array<i64: 1, 16, 16, 128>}, {transform_indices = @transform_1, window_bounds = array<i64: 1, 1, 16, 128>}, {transform_indices = @transform_2, window_bounds = array<i64: 1, 1, 16, 128>}, {pipeline_mode = #tpu.pipeline_mode<synchronous>, transform_indices = @transform_3, window_bounds = array<i64: 3, 384, 128>}, {pipeline_mode = #tpu.pipeline_mode<synchronous>, transform_indices = @transform_4, window_bounds = array<i64: 1, 128>}, {pipeline_mode = #tpu.pipeline_mode<synchronous>, transform_indices = @transform_5, window_bounds = array<i64: 1, 128>}, {pipeline_mode = #tpu.pipeline_mode<synchronous>, transform_indices = @transform_6, window_bounds = array<i64: 1, 128>}, {transform_indices = @transform_7, window_bounds = array<i64: 1, 16, 16, 128>}, {transform_indices = @transform_8, window_bounds = array<i64: 1, 1, 2, 128>}]} {
    %c0 = arith.constant 0 : index
    %c0_0 = arith.constant 0 : index
    %c0_1 = arith.constant 0 : index
    %c0_2 = arith.constant 0 : index
    %0 = vector.load %arg2[%c0, %c0_0, %c0_1, %c0_2] : memref<1x16x16x128xbf16, #tpu.memory_space<vmem>>, vector<1x16x16x128xbf16>
    %1 = vector.shape_cast %0 : vector<1x16x16x128xbf16> to vector<16x16x128xbf16>
    %c1 = arith.constant 1 : index
    %c0_3 = arith.constant 0 : index
    %c128 = arith.constant 128 : index
    %2 = vector.load %arg11[%c1, %c0_3, %c128] : memref<18x16x384xbf16, #tpu.memory_space<vmem>>, vector<16x16x128xbf16>
    tpu.vector_store %arg11[%c1, %c0_3, %c128], %1 {strides = array<i32>} : memref<18x16x384xbf16, #tpu.memory_space<vmem>>, vector<16x16x128xbf16>,
    %c0_4 = arith.constant 0 : index
    %c0_5 = arith.constant 0 : index
    %c0_6 = arith.constant 0 : index
    %c0_7 = arith.constant 0 : index
    %3 = vector.load %arg3[%c0_4, %c0_5, %c0_6, %c0_7] : memref<1x1x16x128xbf16, #tpu.memory_space<vmem>>, vector<1x1x16x128xbf16>
    %4 = vector.shape_cast %3 : vector<1x1x16x128xbf16> to vector<1x16x128xbf16>
    %c0_8 = arith.constant 0 : index
    %c0_9 = arith.constant 0 : index
    %c128_10 = arith.constant 128 : index
    %5 = vector.load %arg11[%c0_8, %c0_9, %c128_10] : memref<18x16x384xbf16, #tpu.memory_space<vmem>>, vector<1x16x128xbf16>
    tpu.vector_store %arg11[%c0_8, %c0_9, %c128_10], %4 {strides = array<i32>} : memref<18x16x384xbf16, #tpu.memory_space<vmem>>, vector<1x16x128xbf16>,
    %c0_11 = arith.constant 0 : index
    %c0_12 = arith.constant 0 : index
    %c0_13 = arith.constant 0 : index
    %c0_14 = arith.constant 0 : index
    %6 = vector.load %arg4[%c0_11, %c0_12, %c0_13, %c0_14] : memref<1x1x16x128xbf16, #tpu.memory_space<vmem>>, vector<1x1x16x128xbf16>
    %7 = vector.shape_cast %6 : vector<1x1x16x128xbf16> to vector<1x16x128xbf16>
    %c17 = arith.constant 17 : index
    %c0_15 = arith.constant 0 : index
    %c128_16 = arith.constant 128 : index
    %8 = vector.load %arg11[%c17, %c0_15, %c128_16] : memref<18x16x384xbf16, #tpu.memory_space<vmem>>, vector<1x16x128xbf16>
    tpu.vector_store %arg11[%c17, %c0_15, %c128_16], %7 {strides = array<i32>} : memref<18x16x384xbf16, #tpu.memory_space<vmem>>, vector<1x16x128xbf16>,
    %cst = arith.constant 0.000000e+00 : bf16
    %9 = vector.broadcast %cst : bf16 to vector<1x16x128xbf16>
    %c0_i32 = arith.constant 0 : i32
    %10 = arith.cmpi eq, %arg1, %c0_i32 : i32
    %11 = arith.extui %10 : i1 to i32
    %c0_i32_17 = arith.constant 0 : i32
    %12 = arith.cmpi ne, %11, %c0_i32_17 : i32
    scf.if %12 {
      %c0_73 = arith.constant 0 : index
      %c0_74 = arith.constant 0 : index
      %c128_75 = arith.constant 128 : index
      %61 = vector.load %arg11[%c0_73, %c0_74, %c128_75] : memref<18x16x384xbf16, #tpu.memory_space<vmem>>, vector<1x16x128xbf16>
      tpu.vector_store %arg11[%c0_73, %c0_74, %c128_75], %9 {strides = array<i32>} : memref<18x16x384xbf16, #tpu.memory_space<vmem>>, vector<1x16x128xbf16>,
    } else {
    }
    %c0_i32_18 = arith.constant 0 : i32
    %13 = arith.cmpi eq, %arg1, %c0_i32_18 : i32
    %14 = arith.extui %13 : i1 to i32
    %c0_i32_19 = arith.constant 0 : i32
    %15 = arith.cmpi ne, %14, %c0_i32_19 : i32
    scf.if %15 {
      %c17_73 = arith.constant 17 : index
      %c0_74 = arith.constant 0 : index
      %c128_75 = arith.constant 128 : index
      %61 = vector.load %arg11[%c17_73, %c0_74, %c128_75] : memref<18x16x384xbf16, #tpu.memory_space<vmem>>, vector<1x16x128xbf16>
      tpu.vector_store %arg11[%c17_73, %c0_74, %c128_75], %9 {strides = array<i32>} : memref<18x16x384xbf16, #tpu.memory_space<vmem>>, vector<1x16x128xbf16>,
    } else {
    }
    %c0_20 = arith.constant 0 : index
    %c0_21 = arith.constant 0 : index
    %c128_22 = arith.constant 128 : index
    %16 = vector.load %arg11[%c0_20, %c0_21, %c128_22] : memref<18x16x384xbf16, #tpu.memory_space<vmem>>, vector<18x16x128xbf16>
    %cst_23 = arith.constant 0.000000e+00 : bf16
    %17 = vector.broadcast %cst_23 : bf16 to vector<18x1x128xbf16>
    %18 = vector.extract_strided_slice %16 {offsets = [0, 0, 0], sizes = [18, 15, 128], strides = [1, 1, 1]} : vector<18x16x128xbf16> to vector<18x15x128xbf16>
    %19 = tpu.concatenate %17, %18 in 1 : vector<18x1x128xbf16>, vector<18x15x128xbf16> -> vector<18x16x128xbf16>
    %c0_24 = arith.constant 0 : index
    %c0_25 = arith.constant 0 : index
    %c0_26 = arith.constant 0 : index
    %20 = vector.load %arg11[%c0_24, %c0_25, %c0_26] : memref<18x16x384xbf16, #tpu.memory_space<vmem>>, vector<18x16x128xbf16>
    tpu.vector_store %arg11[%c0_24, %c0_25, %c0_26], %19 {strides = array<i32>} : memref<18x16x384xbf16, #tpu.memory_space<vmem>>, vector<18x16x128xbf16>,
    %21 = vector.extract_strided_slice %16 {offsets = [0, 1, 0], sizes = [18, 15, 128], strides = [1, 1, 1]} : vector<18x16x128xbf16> to vector<18x15x128xbf16>
    %22 = tpu.concatenate %21, %17 in 1 : vector<18x15x128xbf16>, vector<18x1x128xbf16> -> vector<18x16x128xbf16>
    %c0_27 = arith.constant 0 : index
    %c0_28 = arith.constant 0 : index
    %c256 = arith.constant 256 : index
    %23 = vector.load %arg11[%c0_27, %c0_28, %c256] : memref<18x16x384xbf16, #tpu.memory_space<vmem>>, vector<18x16x128xbf16>
    tpu.vector_store %arg11[%c0_27, %c0_28, %c256], %22 {strides = array<i32>} : memref<18x16x384xbf16, #tpu.memory_space<vmem>>, vector<18x16x128xbf16>,
    %c0_29 = arith.constant 0 : index
    %c0_30 = arith.constant 0 : index
    %c0_31 = arith.constant 0 : index
    %24 = vector.load %arg11[%c0_29, %c0_30, %c0_31] : memref<18x16x384xbf16, #tpu.memory_space<vmem>>, vector<16x16x384xbf16>
    %25 = vector.shape_cast %24 : vector<16x16x384xbf16> to vector<256x384xbf16>
    %c0_32 = arith.constant 0 : index
    %c0_33 = arith.constant 0 : index
    %c0_34 = arith.constant 0 : index
    %26 = vector.load %arg5[%c0_32, %c0_33, %c0_34] : memref<3x384x128xbf16, #tpu.memory_space<vmem>>, vector<1x384x128xbf16>
    %27 = vector.shape_cast %26 : vector<1x384x128xbf16> to vector<384x128xbf16>
    %cst_35 = arith.constant dense<0.000000e+00> : vector<256x128xf32>
    %28 = tpu.matmul %25, %27, %cst_35 {dimension_numbers = #tpu.dot_dimension_numbers<[1], [0], [0], [1], [0, 0, 1, 1], [], []>} : vector<256x384xbf16>, vector<384x128xbf16>, vector<256x128xf32> -> vector<256x128xf32>
    %c0_36 = arith.constant 0 : index
    %c0_37 = arith.constant 0 : index
    %29 = vector.load %arg12[%c0_36, %c0_37] : memref<256x128xf32, #tpu.memory_space<vmem>>, vector<256x128xf32>
    tpu.vector_store %arg12[%c0_36, %c0_37], %28 {strides = array<i32>} : memref<256x128xf32, #tpu.memory_space<vmem>>, vector<256x128xf32>,
    %c1_38 = arith.constant 1 : index
    %c0_39 = arith.constant 0 : index
    %c0_40 = arith.constant 0 : index
    %30 = vector.load %arg11[%c1_38, %c0_39, %c0_40] : memref<18x16x384xbf16, #tpu.memory_space<vmem>>, vector<16x16x384xbf16>
    %31 = vector.shape_cast %30 : vector<16x16x384xbf16> to vector<256x384xbf16>
    %c1_41 = arith.constant 1 : index
    %c0_42 = arith.constant 0 : index
    %c0_43 = arith.constant 0 : index
    %32 = vector.load %arg5[%c1_41, %c0_42, %c0_43] : memref<3x384x128xbf16, #tpu.memory_space<vmem>>, vector<1x384x128xbf16>
    %33 = vector.shape_cast %32 : vector<1x384x128xbf16> to vector<384x128xbf16>
    %cst_44 = arith.constant dense<0.000000e+00> : vector<256x128xf32>
    %34 = tpu.matmul %31, %33, %cst_44 {dimension_numbers = #tpu.dot_dimension_numbers<[1], [0], [0], [1], [0, 0, 1, 1], [], []>} : vector<256x384xbf16>, vector<384x128xbf16>, vector<256x128xf32> -> vector<256x128xf32>
    %c0_45 = arith.constant 0 : index
    %c0_46 = arith.constant 0 : index
    %35 = vector.load %arg12[%c0_45, %c0_46] : memref<256x128xf32, #tpu.memory_space<vmem>>, vector<256x128xf32>
    %36 = arith.addf %35, %34 : vector<256x128xf32>
    %c0_47 = arith.constant 0 : index
    %c0_48 = arith.constant 0 : index
    %37 = vector.load %arg12[%c0_47, %c0_48] : memref<256x128xf32, #tpu.memory_space<vmem>>, vector<256x128xf32>
    tpu.vector_store %arg12[%c0_47, %c0_48], %36 {strides = array<i32>} : memref<256x128xf32, #tpu.memory_space<vmem>>, vector<256x128xf32>,
    %c2 = arith.constant 2 : index
    %c0_49 = arith.constant 0 : index
    %c0_50 = arith.constant 0 : index
    %38 = vector.load %arg11[%c2, %c0_49, %c0_50] : memref<18x16x384xbf16, #tpu.memory_space<vmem>>, vector<16x16x384xbf16>
    %39 = vector.shape_cast %38 : vector<16x16x384xbf16> to vector<256x384xbf16>
    %c2_51 = arith.constant 2 : index
    %c0_52 = arith.constant 0 : index
    %c0_53 = arith.constant 0 : index
    %40 = vector.load %arg5[%c2_51, %c0_52, %c0_53] : memref<3x384x128xbf16, #tpu.memory_space<vmem>>, vector<1x384x128xbf16>
    %41 = vector.shape_cast %40 : vector<1x384x128xbf16> to vector<384x128xbf16>
    %cst_54 = arith.constant dense<0.000000e+00> : vector<256x128xf32>
    %42 = tpu.matmul %39, %41, %cst_54 {dimension_numbers = #tpu.dot_dimension_numbers<[1], [0], [0], [1], [0, 0, 1, 1], [], []>} : vector<256x384xbf16>, vector<384x128xbf16>, vector<256x128xf32> -> vector<256x128xf32>
    %c0_55 = arith.constant 0 : index
    %c0_56 = arith.constant 0 : index
    %43 = vector.load %arg12[%c0_55, %c0_56] : memref<256x128xf32, #tpu.memory_space<vmem>>, vector<256x128xf32>
    %44 = arith.addf %43, %42 : vector<256x128xf32>
    %c0_57 = arith.constant 0 : index
    %c0_58 = arith.constant 0 : index
    %45 = vector.load %arg12[%c0_57, %c0_58] : memref<256x128xf32, #tpu.memory_space<vmem>>, vector<256x128xf32>
    tpu.vector_store %arg12[%c0_57, %c0_58], %44 {strides = array<i32>} : memref<256x128xf32, #tpu.memory_space<vmem>>, vector<256x128xf32>,
    %c0_59 = arith.constant 0 : index
    %c0_60 = arith.constant 0 : index
    %46 = vector.load %arg12[%c0_59, %c0_60] : memref<256x128xf32, #tpu.memory_space<vmem>>, vector<256x128xf32>
    %c0_61 = arith.constant 0 : index
    %c0_62 = arith.constant 0 : index
    %47 = vector.load %arg6[%c0_61, %c0_62] : memref<1x128xf32, #tpu.memory_space<vmem>>, vector<1x128xf32>
    %48 = vector.broadcast %47 : vector<1x128xf32> to vector<256x128xf32>
    %49 = arith.addf %46, %48 : vector<256x128xf32>
    %50 = vector.shape_cast %49 : vector<256x128xf32> to vector<1x16x16x128xf32>
    %51 = arith.truncf %50 : vector<1x16x16x128xf32> to vector<1x16x16x128xbf16>
    %c0_63 = arith.constant 0 : index
    %c0_64 = arith.constant 0 : index
    %c0_65 = arith.constant 0 : index
    %c0_66 = arith.constant 0 : index
    %52 = vector.load %arg9[%c0_63, %c0_64, %c0_65, %c0_66] : memref<1x16x16x128xbf16, #tpu.memory_space<vmem>>, vector<1x16x16x128xbf16>
    tpu.vector_store %arg9[%c0_63, %c0_64, %c0_65, %c0_66], %51 {strides = array<i32>} : memref<1x16x16x128xbf16, #tpu.memory_space<vmem>>, vector<1x16x16x128xbf16>,
    %cst_67 = arith.constant dense<0.000000e+00> : vector<128xf32>
    %53 = vector.multi_reduction <add>, %49, %cst_67 [0] : vector<256x128xf32> to vector<128xf32>
    %54 = vector.shape_cast %53 : vector<128xf32> to vector<1x128xf32>
    %55 = arith.mulf %49, %49 : vector<256x128xf32>
    %cst_68 = arith.constant dense<0.000000e+00> : vector<128xf32>
    %56 = vector.multi_reduction <add>, %55, %cst_68 [0] : vector<256x128xf32> to vector<128xf32>
    %57 = vector.shape_cast %56 : vector<128xf32> to vector<1x128xf32>
    %58 = tpu.concatenate %54, %57 in 0 : vector<1x128xf32>, vector<1x128xf32> -> vector<2x128xf32>
    %59 = vector.shape_cast %58 : vector<2x128xf32> to vector<1x1x2x128xf32>
    %c0_69 = arith.constant 0 : index
    %c0_70 = arith.constant 0 : index
    %c0_71 = arith.constant 0 : index
    %c0_72 = arith.constant 0 : index
    %60 = vector.load %arg10[%c0_69, %c0_70, %c0_71, %c0_72] : memref<1x1x2x128xf32, #tpu.memory_space<vmem>>, vector<1x1x2x128xf32>
    tpu.vector_store %arg10[%c0_69, %c0_70, %c0_71, %c0_72], %59 {strides = array<i32>} : memref<1x1x2x128xf32, #tpu.memory_space<vmem>>, vector<1x1x2x128xf32>,
    return
  }
  func.func @transform_0(%arg0: i32, %arg1: i32) -> (i32, i32, i32, i32) {
    %c0_i32 = arith.constant 0 : i32
    %c0_i32_0 = arith.constant 0 : i32
    %c0_i32_1 = arith.constant 0 : i32
    return %arg0, %arg1, %c0_i32, %c0_i32_0 : i32, i32, i32, i32
  }
  func.func @transform_1(%arg0: i32, %arg1: i32) -> (i32, i32, i32, i32) {
    %c16_i32 = arith.constant 16 : i32
    %0 = arith.muli %arg1, %c16_i32 : i32
    %c1_i32 = arith.constant 1 : i32
    %1 = arith.subi %0, %c1_i32 : i32
    %c0_i32 = arith.constant 0 : i32
    %2 = arith.maxsi %1, %c0_i32 : i32
    %c0_i32_0 = arith.constant 0 : i32
    %c0_i32_1 = arith.constant 0 : i32
    %c0_i32_2 = arith.constant 0 : i32
    return %arg0, %2, %c0_i32_0, %c0_i32_1 : i32, i32, i32, i32
  }
  func.func @transform_2(%arg0: i32, %arg1: i32) -> (i32, i32, i32, i32) {
    %c16_i32 = arith.constant 16 : i32
    %0 = arith.muli %arg1, %c16_i32 : i32
    %c16_i32_0 = arith.constant 16 : i32
    %1 = arith.addi %0, %c16_i32_0 : i32
    %c15_i32 = arith.constant 15 : i32
    %2 = arith.minsi %1, %c15_i32 : i32
    %c0_i32 = arith.constant 0 : i32
    %c0_i32_1 = arith.constant 0 : i32
    %c0_i32_2 = arith.constant 0 : i32
    return %arg0, %2, %c0_i32, %c0_i32_1 : i32, i32, i32, i32
  }
  func.func @transform_3(%arg0: i32, %arg1: i32) -> (i32, i32, i32) {
    %c0_i32 = arith.constant 0 : i32
    %c0_i32_0 = arith.constant 0 : i32
    %c0_i32_1 = arith.constant 0 : i32
    %c0_i32_2 = arith.constant 0 : i32
    return %c0_i32, %c0_i32_0, %c0_i32_1 : i32, i32, i32
  }
  func.func @transform_4(%arg0: i32, %arg1: i32) -> (i32, i32) {
    %c0_i32 = arith.constant 0 : i32
    %c0_i32_0 = arith.constant 0 : i32
    %c0_i32_1 = arith.constant 0 : i32
    return %c0_i32, %c0_i32_0 : i32, i32
  }
  func.func @transform_5(%arg0: i32, %arg1: i32) -> (i32, i32) {
    %c0_i32 = arith.constant 0 : i32
    %c0_i32_0 = arith.constant 0 : i32
    %c0_i32_1 = arith.constant 0 : i32
    return %c0_i32, %c0_i32_0 : i32, i32
  }
  func.func @transform_6(%arg0: i32, %arg1: i32) -> (i32, i32) {
    %c0_i32 = arith.constant 0 : i32
    %c0_i32_0 = arith.constant 0 : i32
    %c0_i32_1 = arith.constant 0 : i32
    return %c0_i32, %c0_i32_0 : i32, i32
  }
  func.func @transform_7(%arg0: i32, %arg1: i32) -> (i32, i32, i32, i32) {
    %c0_i32 = arith.constant 0 : i32
    %c0_i32_0 = arith.constant 0 : i32
    %c0_i32_1 = arith.constant 0 : i32
    return %arg0, %arg1, %c0_i32, %c0_i32_0 : i32, i32, i32, i32
  }
  func.func @transform_8(%arg0: i32, %arg1: i32) -> (i32, i32, i32, i32) {
    %c0_i32 = arith.constant 0 : i32
    %c0_i32_0 = arith.constant 0 : i32
    %c0_i32_1 = arith.constant 0 : i32
    return %arg0, %arg1, %c0_i32, %c0_i32_0 : i32, i32, i32, i32
  }
}

</mosaic_0001>

<llo_original>
// kernel: unet_down_block.5
$region0: #{unet_down_block.5}
  #allocation0 [shape = 'u32[]', space=smem, size = 0x4, offset = 0x4, fixed_abs, tag = 'smem constant byte address 0x4 - core index']
  #allocation1 [shape = 'u32[72,128]{1,0:T(1,128)}', space=vmem, size = 0x9000, scoped, tag = 'internal scratch']
  %s0 = inlined_call_operand.vmem [shape: bf16[2,16,16,128], index: 0, kind: input, shape index: {}]
  %s1 = inlined_call_operand.vmem [shape: f32[1,128], index: 1, kind: input, shape index: {}]
  %s2 = inlined_call_operand.vmem [shape: f32[1,128], index: 2, kind: input, shape index: {}]
  %s3 = inlined_call_operand.vmem [shape: bf16[2,16,16,128], index: 3, kind: output, shape index: {}]
  %s4 = sld [smem:[#allocation0]]
  $region45: #{unet_down_block.5} parent=0
    _
  %s6 = ssub.s32 1, %s4
  %s7 = scalar_select 0, %s6, %s4
  loop: start=0, step=1, limit=4
  $region2: #{unet_down_block.5} parent=0 // loop_pre_header
    _
  $region3: #{unet_down_block.5} parent=0 // loop_header
    %s9 = sphi 0, %s13
    %p10 = scmp.ge.s32.totalorder %s9, 4
    %s16 = sphi 0, %s28
    %s17 = sphi 0, %s24
    %s18 = sphi 0, %s16
    %s19 = sphi 0, %s17
    %s20 = sphi 0, %s18
    %s21 = sphi 0, %s19
    %s33 = sphi 0, %s35
    %s36 = sphi 0, %s33
    %s37 = sphi 0, %s36
    %s53 = sphi 0, %s37
    %s57 = sphi 0, %s57
    %s59 = sphi 0, %s57
    %s60 = sphi 0, %s59
    %s74 = sphi 0, %s60
    %s78 = sphi 0, %s78
    %s80 = sphi 0, %s78
    %s81 = sphi 0, %s80
    %s95 = sphi 0, %s81
    %s103 = sphi 0, %s105
    %s106 = sphi 0, %s103
    %s107 = sphi 0, %s106
    %s123 = sphi 0, %s107
  $region4: #{unet_down_block.5} parent=0 // loop_header_branch
    %12 = sbr.rel (%p10) target = $region8
  $region5: #{unet_down_block.5} parent=0 // loop_body
    %s14 = ssub.s32 %s9, 1
    %s15 = ssub.s32 %s9, 2
    %s22 = sadd.s32 1, %s17
    %p23 = scmp.ge.s32.totalorder %s22, 1
    %s24 = scalar_select %p23, 0, %s22
    %s25 = sadd.s32 1, %s16
    %s26 = scalar_select %p23, %s25, %s16
    %p27 = scmp.ge.s32.totalorder %s26, 2
    %s28 = scalar_select %p27, 0, %s26
    %s29 = ssub.s32 %s16, %s28
    %s30 = ssub.s32 %s17, %s24
    %s31 = sor.u32 %s29, %s30
    %p32 = scmp.eq.s32.totalorder %s31, 0
    %s34 = sadd.s32 %s33, 1
    %s35 = scalar_select %p32, %s33, %s34
    %p38 = pneg %p32
    %p39 = scmp.eq.s32.totalorder %s9, 1
    %p40 = por %p38, %p39
    %p41 = scmp.ne.s32.totalorder %s33, %s36
    %p42 = scmp.eq.s32.totalorder %s9, 0
    %p43 = por %p41, %p42
    %p44 = scmp.ne.s32.totalorder %s33, %s36
    %p45 = scmp.eq.s32.totalorder %s14, 1
    %p46 = por %p44, %p45
    %p47 = scmp.ne.s32.totalorder %s36, %s37
    %p48 = scmp.eq.s32.totalorder %s14, 0
    %p49 = por %p47, %p48
    %p50 = scmp.ne.s32.totalorder %s36, %s37
    %p51 = scmp.eq.s32.totalorder %s15, 1
    %p52 = por %p50, %p51
    %p54 = scmp.ne.s32.totalorder %s37, %s53
    %p55 = scmp.eq.s32.totalorder %s15, 0
    %p56 = por %p54, %p55
    %s58 = sadd.s32 %s57, 1
    %p61 = scmp.eq.s32.totalorder %s9, 1
    %p62 = scmp.ne.s32.totalorder %s57, %s59
    %p63 = scmp.eq.s32.totalorder %s9, 0
    %p64 = por %p62, %p63
    %p65 = scmp.ne.s32.totalorder %s57, %s59
    %p66 = scmp.eq.s32.totalorder %s14, 1
    %p67 = por %p65, %p66
    %p68 = scmp.ne.s32.totalorder %s59, %s60
    %p69 = scmp.eq.s32.totalorder %s14, 0
    %p70 = por %p68, %p69
    %p71 = scmp.ne.s32.totalorder %s59, %s60
    %p72 = scmp.eq.s32.totalorder %s15, 1
    %p73 = por %p71, %p72
    %p75 = scmp.ne.s32.totalorder %s60, %s74
    %p76 = scmp.eq.s32.totalorder %s15, 0
    %p77 = por %p75, %p76
    %s79 = sadd.s32 %s78, 1
    %p82 = scmp.eq.s32.totalorder %s9, 1
    %p83 = scmp.ne.s32.totalorder %s78, %s80
    %p84 = scmp.eq.s32.totalorder %s9, 0
    %p85 = por %p83, %p84
    %p86 = scmp.ne.s32.totalorder %s78, %s80
    %p87 = scmp.eq.s32.totalorder %s14, 1
    %p88 = por %p86, %p87
    %p89 = scmp.ne.s32.totalorder %s80, %s81
    %p90 = scmp.eq.s32.totalorder %s14, 0
    %p91 = por %p89, %p90
    %p92 = scmp.ne.s32.totalorder %s80, %s81
    %p93 = scmp.eq.s32.totalorder %s15, 1
    %p94 = por %p92, %p93
    %p96 = scmp.ne.s32.totalorder %s81, %s95
    %p97 = scmp.eq.s32.totalorder %s15, 0
    %p98 = por %p96, %p97
    %s99 = ssub.s32 %s16, %s28
    %s100 = ssub.s32 %s17, %s24
    %s101 = sor.u32 %s99, %s100
    %p102 = scmp.eq.s32.totalorder %s101, 0
    %s104 = sadd.s32 %s103, 1
    %s105 = scalar_select %p102, %s103, %s104
    %p108 = pneg %p102
    %p109 = scmp.eq.s32.totalorder %s9, 1
    %p110 = por %p108, %p109
    %p111 = scmp.ne.s32.totalorder %s103, %s106
    %p112 = scmp.eq.s32.totalorder %s9, 0
    %p113 = por %p111, %p112
    %p114 = scmp.ne.s32.totalorder %s103, %s106
    %p115 = scmp.eq.s32.totalorder %s14, 1
    %p116 = por %p114, %p115
    %p117 = scmp.ne.s32.totalorder %s106, %s107
    %p118 = scmp.eq.s32.totalorder %s14, 0
    %p119 = por %p117, %p118
    %p120 = scmp.ne.s32.totalorder %s106, %s107
    %p121 = scmp.eq.s32.totalorder %s15, 1
    %p122 = por %p120, %p121
    %p124 = scmp.ne.s32.totalorder %s107, %s123
    %p125 = scmp.eq.s32.totalorder %s15, 0
    %p126 = por %p124, %p125
    %p127 = scmp.le.s32.totalorder 1, %s9
    %p128 = scmp.lt.s32.totalorder %s9, 3
    %p129 = pnand %p127, %p128
    %p130 = pneg %p129
    // Predicated region
    $region9: #{unet_down_block.5} parent=5 // pred_check
      _
    $region10: #{unet_down_block.5} parent=5 // pred_check_branch
      %132 = sbr.rel (%p129) target = $region12
    $region11: #{unet_down_block.5} parent=5 // pred_region
      %s133 = ssub.s32 %s9, 1
      // Predicated region
      $region13: #{unet_down_block.5} parent=11 // pred_check
        %p134 = pneg %p70
      $region14: #{unet_down_block.5} parent=11 // pred_check_branch
        %136 = sbr.rel (%p134) target = $region16
      $region15: #{unet_down_block.5} parent=11 // pred_region
        _
      $region16: #{unet_down_block.5} parent=11 // pred_fallthru
        _
      // Predicated region
      $region17: #{unet_down_block.5} parent=11 // pred_check
        %p137 = pneg %p91
      $region18: #{unet_down_block.5} parent=11 // pred_check_branch
        %139 = sbr.rel (%p137) target = $region20
      $region19: #{unet_down_block.5} parent=11 // pred_region
        _
      $region20: #{unet_down_block.5} parent=11 // pred_fallthru
        _
    $region12: #{unet_down_block.5} parent=5 // pred_fallthru
      _
    %p140 = scmp.lt.s32.totalorder %s9, 2
    // Predicated region
    $region21: #{unet_down_block.5} parent=5 // pred_check
      %p141 = pneg %p140
    $region22: #{unet_down_block.5} parent=5 // pred_check_branch
      %143 = sbr.rel (%p141) target = $region24
    $region23: #{unet_down_block.5} parent=5 // pred_region
      // Predicated region
      $region25: #{unet_down_block.5} parent=23 // pred_check
        %p144 = pneg %p43
      $region26: #{unet_down_block.5} parent=23 // pred_check_branch
        %146 = sbr.rel (%p144) target = $region28
      $region27: #{unet_down_block.5} parent=23 // pred_region
        %s147 = smul.u32 16, %s17
        %p148 = scmp.lt.s32.totalorder %s16, 1
        %s149 = scalar_select %p148, %s16, 1
        %p150 = scmp.lt.s32.totalorder %s147, 15
        %s151 = scalar_select %p150, %s147, 15
        %s152 = smul.addr %s151, 2
        %s153 = smul.addr %s149, 32
        %s154 = sadd.s32 %s152, %s153
        %s155 = smul.addr %s154, 4
        %s156 = scalar_lea.vmem %s0, %s155
        %s157 = smul.u32 16, %s17
      $region28: #{unet_down_block.5} parent=23 // pred_fallthru
        _
    $region24: #{unet_down_block.5} parent=5 // pred_fallthru
      _
    %p158 = scmp.le.s32.totalorder 1, %s9
    %p159 = scmp.lt.s32.totalorder %s9, 3
    %p160 = pnand %p158, %p159
    %p161 = pneg %p160
    // Predicated region
    $region29: #{unet_down_block.5} parent=5 // pred_check
      _
    $region30: #{unet_down_block.5} parent=5 // pred_check_branch
      %163 = sbr.rel (%p160) target = $region32
    $region31: #{unet_down_block.5} parent=5 // pred_region
      %s164 = ssub.s32 %s9, 1
      %s165 = smul.u32 16, %s19
      %p166 = scmp.lt.s32.totalorder %s18, 1
      %s167 = scalar_select %p166, %s18, 1
      %p168 = scmp.lt.s32.totalorder %s165, 15
      %s169 = scalar_select %p168, %s165, 15
      %s170 = smul.addr %s169, 2
      %s171 = smul.addr %s167, 32
      %s172 = sadd.s32 %s170, %s171
      %s173 = smul.addr %s172, 4
      %s174 = scalar_lea.vmem %s0, %s173
      %p175 = pneg %p49
      %p176 = pneg %p46
      %p177 = pneg %p70
      %p178 = pneg %p67
      %p179 = pneg %p91
      %p180 = pneg %p88
      %p181 = pneg %p119
      %p182 = pneg %p116
      %s183 = smul.u32 16, %s19
      %p184 = scmp.lt.s32.totalorder %s18, 1
      %s185 = scalar_select %p184, %s18, 1
      %p186 = scmp.lt.s32.totalorder %s183, 15
      %s187 = scalar_select %p186, %s183, 15
      %s188 = smul.addr %s187, 2
      %s189 = smul.addr %s185, 32
      %s190 = sadd.s32 %s188, %s189
      %s191 = smul.addr %s190, 4
      %s192 = scalar_lea.vmem %s3, %s191
      %s193 = smul.u32 16, %s19
      %p194 = scmp.lt.s32.totalorder %s18, 1
      %s195 = scalar_select %p194, %s18, 1
      %p196 = scmp.lt.s32.totalorder %s193, 15
      %s197 = scalar_select %p196, %s193, 15
      %s198 = smul.addr %s197, 2
      %s199 = smul.addr %s195, 32
      %s200 = sadd.s32 %s198, %s199
      %s201 = smul.addr %s200, 4
      %s202 = scalar_lea.vmem %s0, %s201
      %s203 = smul.u32 16, %s19
      %s204 = smul.u32 16, %s19
      %p205 = scmp.lt.s32.totalorder %s18, 1
      %s206 = scalar_select %p205, %s18, 1
      %p207 = scmp.lt.s32.totalorder %s204, 15
      %s208 = scalar_select %p207, %s204, 15
      %s209 = smul.addr %s208, 2
      %s210 = smul.addr %s206, 32
      %s211 = sadd.s32 %s209, %s210
      %s212 = smul.addr %s211, 4
      %s213 = scalar_lea.vmem %s3, %s212
      %s214 = smul.u32 16, %s19
      %v215 = vld [vmem:[%s202] sm:$0xf]
      %v216 = vld [vmem:[%s202 + $0x4] sm:$0xf]
      %v217 = vld [vmem:[%s202 + $0x8] sm:$0xf]
      %v218 = vld [vmem:[%s202 + $0xc] sm:$0xf]
      %v219 = vld [vmem:[%s202 + $0x10] sm:$0xf]
      %v220 = vld [vmem:[%s202 + $0x14] sm:$0xf]
      %v221 = vld [vmem:[%s202 + $0x18] sm:$0xf]
      %v222 = vld [vmem:[%s202 + $0x1c] sm:$0xf]
      %v223 = vld [vmem:[%s202 + $0x20] sm:$0xf]
      %v224 = vld [vmem:[%s202 + $0x24] sm:$0xf]
      %v225 = vld [vmem:[%s202 + $0x28] sm:$0xf]
      %v226 = vld [vmem:[%s202 + $0x2c] sm:$0xf]
      %v227 = vld [vmem:[%s202 + $0x30] sm:$0xf]
      %v228 = vld [vmem:[%s202 + $0x34] sm:$0xf]
      %v229 = vld [vmem:[%s202 + $0x38] sm:$0xf]
      %v230 = vld [vmem:[%s202 + $0x3c] sm:$0xf]
      %v231 = vld [vmem:[%s202 + $0x40] sm:$0xf]
      %v232 = vld [vmem:[%s202 + $0x44] sm:$0xf]
      %v233 = vld [vmem:[%s202 + $0x48] sm:$0xf]
      %v234 = vld [vmem:[%s202 + $0x4c] sm:$0xf]
      %v235 = vld [vmem:[%s202 + $0x50] sm:$0xf]
      %v236 = vld [vmem:[%s202 + $0x54] sm:$0xf]
      %v237 = vld [vmem:[%s202 + $0x58] sm:$0xf]
      %v238 = vld [vmem:[%s202 + $0x5c] sm:$0xf]
      %v239 = vld [vmem:[%s202 + $0x60] sm:$0xf]
      %v240 = vld [vmem:[%s202 + $0x64] sm:$0xf]
      %v241 = vld [vmem:[%s202 + $0x68] sm:$0xf]
      %v242 = vld [vmem:[%s202 + $0x6c] sm:$0xf]
      %v243 = vld [vmem:[%s202 + $0x70] sm:$0xf]
      %v244 = vld [vmem:[%s202 + $0x74] sm:$0xf]
      %v245 = vld [vmem:[%s202 + $0x78] sm:$0xf]
      %v246 = vld [vmem:[%s202 + $0x7c] sm:$0xf]
      %v247 = vunpack.c.l.bf16 %v215
      %v248 = vunpack.c.l.bf16 %v216
      %v249 = vunpack.c.l.bf16 %v217
      %v250 = vunpack.c.l.bf16 %v218
      %v251 = vunpack.c.l.bf16 %v219
      %v252 = vunpack.c.l.bf16 %v220
      %v253 = vunpack.c.l.bf16 %v221
      %v254 = vunpack.c.l.bf16 %v222
      %v255 = vunpack.c.l.bf16 %v223
      %v256 = vunpack.c.l.bf16 %v224
      %v257 = vunpack.c.l.bf16 %v225
      %v258 = vunpack.c.l.bf16 %v226
      %v259 = vunpack.c.l.bf16 %v227
      %v260 = vunpack.c.l.bf16 %v228
      %v261 = vunpack.c.l.bf16 %v229
      %v262 = vunpack.c.l.bf16 %v230
      %v263 = vunpack.c.l.bf16 %v231
      %v264 = vunpack.c.l.bf16 %v232
      %v265 = vunpack.c.l.bf16 %v233
      %v266 = vunpack.c.l.bf16 %v234
      %v267 = vunpack.c.l.bf16 %v235
      %v268 = vunpack.c.l.bf16 %v236
      %v269 = vunpack.c.l.bf16 %v237
      %v270 = vunpack.c.l.bf16 %v238
      %v271 = vunpack.c.l.bf16 %v239
      %v272 = vunpack.c.l.bf16 %v240
      %v273 = vunpack.c.l.bf16 %v241
      %v274 = vunpack.c.l.bf16 %v242
      %v275 = vunpack.c.l.bf16 %v243
      %v276 = vunpack.c.l.bf16 %v244
      %v277 = vunpack.c.l.bf16 %v245
      %v278 = vunpack.c.l.bf16 %v246
      %v279 = vld [vmem:[%s1] sm:$0x1]
      %v281 = vperm.slane %v279, 0
      %v283 = vmul.f32 %v247, %v281
      %v284 = vmul.f32 %v248, %v281
      %v285 = vmul.f32 %v249, %v281
      %v286 = vmul.f32 %v250, %v281
      %v287 = vmul.f32 %v251, %v281
      %v288 = vmul.f32 %v252, %v281
      %v289 = vmul.f32 %v253, %v281
      %v290 = vmul.f32 %v254, %v281
      %v291 = vmul.f32 %v255, %v281
      %v292 = vmul.f32 %v256, %v281
      %v293 = vmul.f32 %v257, %v281
      %v294 = vmul.f32 %v258, %v281
      %v295 = vmul.f32 %v259, %v281
      %v296 = vmul.f32 %v260, %v281
      %v297 = vmul.f32 %v261, %v281
      %v298 = vmul.f32 %v262, %v281
      %v299 = vmul.f32 %v263, %v281
      %v300 = vmul.f32 %v264, %v281
      %v301 = vmul.f32 %v265, %v281
      %v302 = vmul.f32 %v266, %v281
      %v303 = vmul.f32 %v267, %v281
      %v304 = vmul.f32 %v268, %v281
      %v305 = vmul.f32 %v269, %v281
      %v306 = vmul.f32 %v270, %v281
      %v307 = vmul.f32 %v271, %v281
      %v308 = vmul.f32 %v272, %v281
      %v309 = vmul.f32 %v273, %v281
      %v310 = vmul.f32 %v274, %v281
      %v311 = vmul.f32 %v275, %v281
      %v312 = vmul.f32 %v276, %v281
      %v313 = vmul.f32 %v277, %v281
      %v314 = vmul.f32 %v278, %v281
      %v315 = vld [vmem:[%s2] sm:$0x1]
      %v317 = vperm.slane %v315, 0
      %v319 = vadd.f32 %v283, %v317
      %v320 = vadd.f32 %v284, %v317
      %v321 = vadd.f32 %v285, %v317
      %v322 = vadd.f32 %v286, %v317
      %v323 = vadd.f32 %v287, %v317
      %v324 = vadd.f32 %v288, %v317
      %v325 = vadd.f32 %v289, %v317
      %v326 = vadd.f32 %v290, %v317
      %v327 = vadd.f32 %v291, %v317
      %v328 = vadd.f32 %v292, %v317
      %v329 = vadd.f32 %v293, %v317
      %v330 = vadd.f32 %v294, %v317
      %v331 = vadd.f32 %v295, %v317
      %v332 = vadd.f32 %v296, %v317
      %v333 = vadd.f32 %v297, %v317
      %v334 = vadd.f32 %v298, %v317
      %v335 = vadd.f32 %v299, %v317
      %v336 = vadd.f32 %v300, %v317
      %v337 = vadd.f32 %v301, %v317
      %v338 = vadd.f32 %v302, %v317
      %v339 = vadd.f32 %v303, %v317
      %v340 = vadd.f32 %v304, %v317
      %v341 = vadd.f32 %v305, %v317
      %v342 = vadd.f32 %v306, %v317
      %v343 = vadd.f32 %v307, %v317
      %v344 = vadd.f32 %v308, %v317
      %v345 = vadd.f32 %v309, %v317
      %v346 = vadd.f32 %v310, %v317
      %v347 = vadd.f32 %v311, %v317
      %v348 = vadd.f32 %v312, %v317
      %v349 = vadd.f32 %v313, %v317
      %v350 = vadd.f32 %v314, %v317
      %v351 = vmax.f32 %v319, 0.0
      %v352 = vmax.f32 %v320, 0.0
      %v353 = vmax.f32 %v321, 0.0
      %v354 = vmax.f32 %v322, 0.0
      %v355 = vmax.f32 %v323, 0.0
      %v356 = vmax.f32 %v324, 0.0
      %v357 = vmax.f32 %v325, 0.0
      %v358 = vmax.f32 %v326, 0.0
      %v359 = vmax.f32 %v327, 0.0
      %v360 = vmax.f32 %v328, 0.0
      %v361 = vmax.f32 %v329, 0.0
      %v362 = vmax.f32 %v330, 0.0
      %v363 = vmax.f32 %v331, 0.0
      %v364 = vmax.f32 %v332, 0.0
      %v365 = vmax.f32 %v333, 0.0
      %v366 = vmax.f32 %v334, 0.0
      %v367 = vmax.f32 %v335, 0.0
      %v368 = vmax.f32 %v336, 0.0
      %v369 = vmax.f32 %v337, 0.0
      %v370 = vmax.f32 %v338, 0.0
      %v371 = vmax.f32 %v339, 0.0
      %v372 = vmax.f32 %v340, 0.0
      %v373 = vmax.f32 %v341, 0.0
      %v374 = vmax.f32 %v342, 0.0
      %v375 = vmax.f32 %v343, 0.0
      %v376 = vmax.f32 %v344, 0.0
      %v377 = vmax.f32 %v345, 0.0
      %v378 = vmax.f32 %v346, 0.0
      %v379 = vmax.f32 %v347, 0.0
      %v380 = vmax.f32 %v348, 0.0
      %v381 = vmax.f32 %v349, 0.0
      %v382 = vmax.f32 %v350, 0.0
      %v383 = vpack.c.bf16 %v351, %v351
      %v384 = vpack.c.bf16 %v352, %v352
      %v385 = vpack.c.bf16 %v353, %v353
      %v386 = vpack.c.bf16 %v354, %v354
      %v387 = vpack.c.bf16 %v355, %v355
      %v388 = vpack.c.bf16 %v356, %v356
      %v389 = vpack.c.bf16 %v357, %v357
      %v390 = vpack.c.bf16 %v358, %v358
      %v391 = vpack.c.bf16 %v359, %v359
      %v392 = vpack.c.bf16 %v360, %v360
      %v393 = vpack.c.bf16 %v361, %v361
      %v394 = vpack.c.bf16 %v362, %v362
      %v395 = vpack.c.bf16 %v363, %v363
      %v396 = vpack.c.bf16 %v364, %v364
      %v397 = vpack.c.bf16 %v365, %v365
      %v398 = vpack.c.bf16 %v366, %v366
      %v399 = vpack.c.bf16 %v367, %v367
      %v400 = vpack.c.bf16 %v368, %v368
      %v401 = vpack.c.bf16 %v369, %v369
      %v402 = vpack.c.bf16 %v370, %v370
      %v403 = vpack.c.bf16 %v371, %v371
      %v404 = vpack.c.bf16 %v372, %v372
      %v405 = vpack.c.bf16 %v373, %v373
      %v406 = vpack.c.bf16 %v374, %v374
      %v407 = vpack.c.bf16 %v375, %v375
      %v408 = vpack.c.bf16 %v376, %v376
      %v409 = vpack.c.bf16 %v377, %v377
      %v410 = vpack.c.bf16 %v378, %v378
      %v411 = vpack.c.bf16 %v379, %v379
      %v412 = vpack.c.bf16 %v380, %v380
      %v413 = vpack.c.bf16 %v381, %v381
      %v414 = vpack.c.bf16 %v382, %v382
      %415 = vst [vmem:[%s213] sm:$0xf] %v383
      %416 = vst [vmem:[%s213 + $0x4] sm:$0xf] %v384
      %417 = vst [vmem:[%s213 + $0x8] sm:$0xf] %v385
      %418 = vst [vmem:[%s213 + $0xc] sm:$0xf] %v386
      %419 = vst [vmem:[%s213 + $0x10] sm:$0xf] %v387
      %420 = vst [vmem:[%s213 + $0x14] sm:$0xf] %v388
      %421 = vst [vmem:[%s213 + $0x18] sm:$0xf] %v389
      %422 = vst [vmem:[%s213 + $0x1c] sm:$0xf] %v390
      %423 = vst [vmem:[%s213 + $0x20] sm:$0xf] %v391
      %424 = vst [vmem:[%s213 + $0x24] sm:$0xf] %v392
      %425 = vst [vmem:[%s213 + $0x28] sm:$0xf] %v393
      %426 = vst [vmem:[%s213 + $0x2c] sm:$0xf] %v394
      %427 = vst [vmem:[%s213 + $0x30] sm:$0xf] %v395
      %428 = vst [vmem:[%s213 + $0x34] sm:$0xf] %v396
      %429 = vst [vmem:[%s213 + $0x38] sm:$0xf] %v397
      %430 = vst [vmem:[%s213 + $0x3c] sm:$0xf] %v398
      %431 = vst [vmem:[%s213 + $0x40] sm:$0xf] %v399
      %432 = vst [vmem:[%s213 + $0x44] sm:$0xf] %v400
      %433 = vst [vmem:[%s213 + $0x48] sm:$0xf] %v401
      %434 = vst [vmem:[%s213 + $0x4c] sm:$0xf] %v402
      %435 = vst [vmem:[%s213 + $0x50] sm:$0xf] %v403
      %436 = vst [vmem:[%s213 + $0x54] sm:$0xf] %v404
      %437 = vst [vmem:[%s213 + $0x58] sm:$0xf] %v405
      %438 = vst [vmem:[%s213 + $0x5c] sm:$0xf] %v406
      %439 = vst [vmem:[%s213 + $0x60] sm:$0xf] %v407
      %440 = vst [vmem:[%s213 + $0x64] sm:$0xf] %v408
      %441 = vst [vmem:[%s213 + $0x68] sm:$0xf] %v409
      %442 = vst [vmem:[%s213 + $0x6c] sm:$0xf] %v410
      %443 = vst [vmem:[%s213 + $0x70] sm:$0xf] %v411
      %444 = vst [vmem:[%s213 + $0x74] sm:$0xf] %v412
      %445 = vst [vmem:[%s213 + $0x78] sm:$0xf] %v413
      %446 = vst [vmem:[%s213 + $0x7c] sm:$0xf] %v414
      %s447 = smul.u32 16, %s19
      %p448 = scmp.lt.s32.totalorder %s18, 1
      %s449 = scalar_select %p448, %s18, 1
      %p450 = scmp.lt.s32.totalorder %s447, 15
      %s451 = scalar_select %p450, %s447, 15
      %s452 = smul.addr %s451, 2
      %s453 = smul.addr %s449, 32
      %s454 = sadd.s32 %s452, %s453
      %s455 = smul.addr %s454, 4
      %s456 = scalar_lea.vmem %s3, %s455
      // Predicated region
      $region33: #{unet_down_block.5} parent=31 // pred_check
        %p457 = pneg %p116
      $region34: #{unet_down_block.5} parent=31 // pred_check_branch
        %459 = sbr.rel (%p457) target = $region36
      $region35: #{unet_down_block.5} parent=31 // pred_region
        %s460 = smul.u32 16, %s19
      $region36: #{unet_down_block.5} parent=31 // pred_fallthru
        _
    $region32: #{unet_down_block.5} parent=5 // pred_fallthru
      _
    %p461 = scmp.le.s32.totalorder 2, %s9
    // Predicated region
    $region37: #{unet_down_block.5} parent=5 // pred_check
      %p462 = pneg %p461
    $region38: #{unet_down_block.5} parent=5 // pred_check_branch
      %464 = sbr.rel (%p462) target = $region40
    $region39: #{unet_down_block.5} parent=5 // pred_region
      %s465 = ssub.s32 %s9, 2
      // Predicated region
      $region41: #{unet_down_block.5} parent=39 // pred_check
        %p466 = pneg %p122
      $region42: #{unet_down_block.5} parent=39 // pred_check_branch
        %468 = sbr.rel (%p466) target = $region44
      $region43: #{unet_down_block.5} parent=39 // pred_region
        %s469 = smul.u32 16, %s21
        %p470 = scmp.lt.s32.totalorder %s20, 1
        %s471 = scalar_select %p470, %s20, 1
        %p472 = scmp.lt.s32.totalorder %s469, 15
        %s473 = scalar_select %p472, %s469, 15
        %s474 = smul.addr %s473, 2
        %s475 = smul.addr %s471, 32
        %s476 = sadd.s32 %s474, %s475
        %s477 = smul.addr %s476, 4
        %s478 = scalar_lea.vmem %s3, %s477
      $region44: #{unet_down_block.5} parent=39 // pred_fallthru
        _
    $region40: #{unet_down_block.5} parent=5 // pred_fallthru
      _
  $region6: #{unet_down_block.5} parent=0 // loop_footer
    %s13 = sadd.s32 1, %s9
  $region7: #{unet_down_block.5} parent=0 // loop_footer_branch
    %8 = sbr.rel target = $region3
  $region8: #{unet_down_block.5} parent=0 // loop_exit
    _

// kernel: unet_down_block.4
$region0: #{unet_down_block.4}
  #allocation0 [shape = 'u32[]', space=smem, size = 0x4, offset = 0x4, fixed_abs, tag = 'smem constant byte address 0x4 - core index']
  #allocation1 [shape = 'u32[72,128]{1,0:T(1,128)}', space=vmem, size = 0x9000, scoped, tag = 'internal scratch']
  #allocation2 [shape = 'bf16[18,16,384]{2,1,0:T(8,128)(2,1)}', space=vmem, size = 0x36000, scoped, tag = 'scratch operand']
  #allocation3 [shape = 'f32[256,128]{1,0:T(8,128)}', space=vmem, size = 0x20000, scoped, tag = 'scratch operand']
  %s0 = inlined_call_operand.vmem [shape: bf16[2,16,16,128], index: 0, kind: input, shape index: {}, may-alias: {0,1,2}]
  %s1 = inlined_call_operand.vmem [shape: bf16[2,16,16,128], index: 1, kind: input, shape index: {}, may-alias: {0,1,2}]
  %s2 = inlined_call_operand.vmem [shape: bf16[2,16,16,128], index: 2, kind: input, shape index: {}, may-alias: {0,1,2}]
  %s3 = inlined_call_operand.vmem [shape: bf16[3,384,128], index: 3, kind: input, shape index: {}]
  %s4 = inlined_call_operand.vmem [shape: f32[1,128], index: 4, kind: input, shape index: {}]
  %s5 = inlined_call_operand.vmem [shape: f32[1,128], index: 5, kind: input, shape index: {}]
  %s6 = inlined_call_operand.vmem [shape: f32[1,128], index: 6, kind: input, shape index: {}]
  %s7 = inlined_call_operand.vmem [shape: bf16[2,16,16,128], index: 7, kind: output, shape index: {0}]
  %s8 = inlined_call_operand.vmem [shape: f32[2,1,2,128], index: 8, kind: output, shape index: {1}]
  %9 = xla_tuple %s7, %s8
  %s10 = sld [smem:[#allocation0]]
  $region73: #{unet_down_block.4} parent=0
    _
  %s12 = ssub.s32 1, %s10
  %s13 = scalar_select 0, %s12, %s10
  loop: start=0, step=1, limit=4
  $region2: #{unet_down_block.4} parent=0 // loop_pre_header
    _
  $region3: #{unet_down_block.4} parent=0 // loop_header
    %s15 = sphi 0, %s19
    %p16 = scmp.ge.s32.totalorder %s15, 4
    %s22 = sphi 0, %s34
    %s23 = sphi 0, %s30
    %s24 = sphi 0, %s22
    %s25 = sphi 0, %s23
    %s26 = sphi 0, %s24
    %s27 = sphi 0, %s25
    %s39 = sphi 0, %s41
    %s42 = sphi 0, %s39
    %s43 = sphi 0, %s42
    %s59 = sphi 0, %s43
    %s75 = sphi 0, %s77
    %s78 = sphi 0, %s75
    %s79 = sphi 0, %s78
    %s95 = sphi 0, %s79
    %s111 = sphi 0, %s113
    %s114 = sphi 0, %s111
    %s115 = sphi 0, %s114
    %s131 = sphi 0, %s115
    %s135 = sphi 0, %s135
    %s137 = sphi 0, %s135
    %s138 = sphi 0, %s137
    %s152 = sphi 0, %s138
    %s156 = sphi 0, %s156
    %s158 = sphi 0, %s156
    %s159 = sphi 0, %s158
    %s173 = sphi 0, %s159
    %s177 = sphi 0, %s177
    %s179 = sphi 0, %s177
    %s180 = sphi 0, %s179
    %s194 = sphi 0, %s180
    %s198 = sphi 0, %s198
    %s200 = sphi 0, %s198
    %s201 = sphi 0, %s200
    %s215 = sphi 0, %s201
    %s223 = sphi 0, %s225
    %s226 = sphi 0, %s223
    %s227 = sphi 0, %s226
    %s243 = sphi 0, %s227
    %s251 = sphi 0, %s253
    %s254 = sphi 0, %s251
    %s255 = sphi 0, %s254
    %s271 = sphi 0, %s255
  $region4: #{unet_down_block.4} parent=0 // loop_header_branch
    %18 = sbr.rel (%p16) target = $region8
  $region5: #{unet_down_block.4} parent=0 // loop_body
    %s20 = ssub.s32 %s15, 1
    %s21 = ssub.s32 %s15, 2
    %s28 = sadd.s32 1, %s23
    %p29 = scmp.ge.s32.totalorder %s28, 1
    %s30 = scalar_select %p29, 0, %s28
    %s31 = sadd.s32 1, %s22
    %s32 = scalar_select %p29, %s31, %s22
    %p33 = scmp.ge.s32.totalorder %s32, 2
    %s34 = scalar_select %p33, 0, %s32
    %s35 = ssub.s32 %s22, %s34
    %s36 = ssub.s32 %s23, %s30
    %s37 = sor.u32 %s35, %s36
    %p38 = scmp.eq.s32.totalorder %s37, 0
    %s40 = sadd.s32 %s39, 1
    %s41 = scalar_select %p38, %s39, %s40
    %p44 = pneg %p38
    %p45 = scmp.eq.s32.totalorder %s15, 1
    %p46 = por %p44, %p45
    %p47 = scmp.ne.s32.totalorder %s39, %s42
    %p48 = scmp.eq.s32.totalorder %s15, 0
    %p49 = por %p47, %p48
    %p50 = scmp.ne.s32.totalorder %s39, %s42
    %p51 = scmp.eq.s32.totalorder %s20, 1
    %p52 = por %p50, %p51
    %p53 = scmp.ne.s32.totalorder %s42, %s43
    %p54 = scmp.eq.s32.totalorder %s20, 0
    %p55 = por %p53, %p54
    %p56 = scmp.ne.s32.totalorder %s42, %s43
    %p57 = scmp.eq.s32.totalorder %s21, 1
    %p58 = por %p56, %p57
    %p60 = scmp.ne.s32.totalorder %s43, %s59
    %p61 = scmp.eq.s32.totalorder %s21, 0
    %p62 = por %p60, %p61
    %s63 = smul.u32 %s23, 16
    %s64 = ssub.s32 %s63, 1
    %p65 = scmp.gt.s32.totalorder %s64, 0
    %s66 = scalar_select %p65, %s64, 0
    %s67 = smul.u32 %s30, 16
    %s68 = ssub.s32 %s67, 1
    %p69 = scmp.gt.s32.totalorder %s68, 0
    %s70 = scalar_select %p69, %s68, 0
    %s71 = ssub.s32 %s22, %s34
    %s72 = ssub.s32 %s66, %s70
    %s73 = sor.u32 %s71, %s72
    %p74 = scmp.eq.s32.totalorder %s73, 0
    %s76 = sadd.s32 %s75, 1
    %s77 = scalar_select %p74, %s75, %s76
    %p80 = pneg %p74
    %p81 = scmp.eq.s32.totalorder %s15, 1
    %p82 = por %p80, %p81
    %p83 = scmp.ne.s32.totalorder %s75, %s78
    %p84 = scmp.eq.s32.totalorder %s15, 0
    %p85 = por %p83, %p84
    %p86 = scmp.ne.s32.totalorder %s75, %s78
    %p87 = scmp.eq.s32.totalorder %s20, 1
    %p88 = por %p86, %p87
    %p89 = scmp.ne.s32.totalorder %s78, %s79
    %p90 = scmp.eq.s32.totalorder %s20, 0
    %p91 = por %p89, %p90
    %p92 = scmp.ne.s32.totalorder %s78, %s79
    %p93 = scmp.eq.s32.totalorder %s21, 1
    %p94 = por %p92, %p93
    %p96 = scmp.ne.s32.totalorder %s79, %s95
    %p97 = scmp.eq.s32.totalorder %s21, 0
    %p98 = por %p96, %p97
    %s99 = smul.u32 %s23, 16
    %s100 = sadd.s32 %s99, 16
    %p101 = scmp.lt.s32.totalorder %s100, 15
    %s102 = scalar_select %p101, %s100, 15
    %s103 = smul.u32 %s30, 16
    %s104 = sadd.s32 %s103, 16
    %p105 = scmp.lt.s32.totalorder %s104, 15
    %s106 = scalar_select %p105, %s104, 15
    %s107 = ssub.s32 %s22, %s34
    %s108 = ssub.s32 %s102, %s106
    %s109 = sor.u32 %s107, %s108
    %p110 = scmp.eq.s32.totalorder %s109, 0
    %s112 = sadd.s32 %s111, 1
    %s113 = scalar_select %p110, %s111, %s112
    %p116 = pneg %p110
    %p117 = scmp.eq.s32.totalorder %s15, 1
    %p118 = por %p116, %p117
    %p119 = scmp.ne.s32.totalorder %s111, %s114
    %p120 = scmp.eq.s32.totalorder %s15, 0
    %p121 = por %p119, %p120
    %p122 = scmp.ne.s32.totalorder %s111, %s114
    %p123 = scmp.eq.s32.totalorder %s20, 1
    %p124 = por %p122, %p123
    %p125 = scmp.ne.s32.totalorder %s114, %s115
    %p126 = scmp.eq.s32.totalorder %s20, 0
    %p127 = por %p125, %p126
    %p128 = scmp.ne.s32.totalorder %s114, %s115
    %p129 = scmp.eq.s32.totalorder %s21, 1
    %p130 = por %p128, %p129
    %p132 = scmp.ne.s32.totalorder %s115, %s131
    %p133 = scmp.eq.s32.totalorder %s21, 0
    %p134 = por %p132, %p133
    %s136 = sadd.s32 %s135, 1
    %p139 = scmp.eq.s32.totalorder %s15, 1
    %p140 = scmp.ne.s32.totalorder %s135, %s137
    %p141 = scmp.eq.s32.totalorder %s15, 0
    %p142 = por %p140, %p141
    %p143 = scmp.ne.s32.totalorder %s135, %s137
    %p144 = scmp.eq.s32.totalorder %s20, 1
    %p145 = por %p143, %p144
    %p146 = scmp.ne.s32.totalorder %s137, %s138
    %p147 = scmp.eq.s32.totalorder %s20, 0
    %p148 = por %p146, %p147
    %p149 = scmp.ne.s32.totalorder %s137, %s138
    %p150 = scmp.eq.s32.totalorder %s21, 1
    %p151 = por %p149, %p150
    %p153 = scmp.ne.s32.totalorder %s138, %s152
    %p154 = scmp.eq.s32.totalorder %s21, 0
    %p155 = por %p153, %p154
    %s157 = sadd.s32 %s156, 1
    %p160 = scmp.eq.s32.totalorder %s15, 1
    %p161 = scmp.ne.s32.totalorder %s156, %s158
    %p162 = scmp.eq.s32.totalorder %s15, 0
    %p163 = por %p161, %p162
    %p164 = scmp.ne.s32.totalorder %s156, %s158
    %p165 = scmp.eq.s32.totalorder %s20, 1
    %p166 = por %p164, %p165
    %p167 = scmp.ne.s32.totalorder %s158, %s159
    %p168 = scmp.eq.s32.totalorder %s20, 0
    %p169 = por %p167, %p168
    %p170 = scmp.ne.s32.totalorder %s158, %s159
    %p171 = scmp.eq.s32.totalorder %s21, 1
    %p172 = por %p170, %p171
    %p174 = scmp.ne.s32.totalorder %s159, %s173
    %p175 = scmp.eq.s32.totalorder %s21, 0
    %p176 = por %p174, %p175
    %s178 = sadd.s32 %s177, 1
    %p181 = scmp.eq.s32.totalorder %s15, 1
    %p182 = scmp.ne.s32.totalorder %s177, %s179
    %p183 = scmp.eq.s32.totalorder %s15, 0
    %p184 = por %p182, %p183
    %p185 = scmp.ne.s32.totalorder %s177, %s179
    %p186 = scmp.eq.s32.totalorder %s20, 1
    %p187 = por %p185, %p186
    %p188 = scmp.ne.s32.totalorder %s179, %s180
    %p189 = scmp.eq.s32.totalorder %s20, 0
    %p190 = por %p188, %p189
    %p191 = scmp.ne.s32.totalorder %s179, %s180
    %p192 = scmp.eq.s32.totalorder %s21, 1
    %p193 = por %p191, %p192
    %p195 = scmp.ne.s32.totalorder %s180, %s194
    %p196 = scmp.eq.s32.totalorder %s21, 0
    %p197 = por %p195, %p196
    %s199 = sadd.s32 %s198, 1
    %p202 = scmp.eq.s32.totalorder %s15, 1
    %p203 = scmp.ne.s32.totalorder %s198, %s200
    %p204 = scmp.eq.s32.totalorder %s15, 0
    %p205 = por %p203, %p204
    %p206 = scmp.ne.s32.totalorder %s198, %s200
    %p207 = scmp.eq.s32.totalorder %s20, 1
    %p208 = por %p206, %p207
    %p209 = scmp.ne.s32.totalorder %s200, %s201
    %p210 = scmp.eq.s32.totalorder %s20, 0
    %p211 = por %p209, %p210
    %p212 = scmp.ne.s32.totalorder %s200, %s201
    %p213 = scmp.eq.s32.totalorder %s21, 1
    %p214 = por %p212, %p213
    %p216 = scmp.ne.s32.totalorder %s201, %s215
    %p217 = scmp.eq.s32.totalorder %s21, 0
    %p218 = por %p216, %p217
    %s219 = ssub.s32 %s22, %s34
    %s220 = ssub.s32 %s23, %s30
    %s221 = sor.u32 %s219, %s220
    %p222 = scmp.eq.s32.totalorder %s221, 0
    %s224 = sadd.s32 %s223, 1
    %s225 = scalar_select %p222, %s223, %s224
    %p228 = pneg %p222
    %p229 = scmp.eq.s32.totalorder %s15, 1
    %p230 = por %p228, %p229
    %p231 = scmp.ne.s32.totalorder %s223, %s226
    %p232 = scmp.eq.s32.totalorder %s15, 0
    %p233 = por %p231, %p232
    %p234 = scmp.ne.s32.totalorder %s223, %s226
    %p235 = scmp.eq.s32.totalorder %s20, 1
    %p236 = por %p234, %p235
    %p237 = scmp.ne.s32.totalorder %s226, %s227
    %p238 = scmp.eq.s32.totalorder %s20, 0
    %p239 = por %p237, %p238
    %p240 = scmp.ne.s32.totalorder %s226, %s227
    %p241 = scmp.eq.s32.totalorder %s21, 1
    %p242 = por %p240, %p241
    %p244 = scmp.ne.s32.totalorder %s227, %s243
    %p245 = scmp.eq.s32.totalorder %s21, 0
    %p246 = por %p244, %p245
    %s247 = ssub.s32 %s22, %s34
    %s248 = ssub.s32 %s23, %s30
    %s249 = sor.u32 %s247, %s248
    %p250 = scmp.eq.s32.totalorder %s249, 0
    %s252 = sadd.s32 %s251, 1
    %s253 = scalar_select %p250, %s251, %s252
    %p256 = pneg %p250
    %p257 = scmp.eq.s32.totalorder %s15, 1
    %p258 = por %p256, %p257
    %p259 = scmp.ne.s32.totalorder %s251, %s254
    %p260 = scmp.eq.s32.totalorder %s15, 0
    %p261 = por %p259, %p260
    %p262 = scmp.ne.s32.totalorder %s251, %s254
    %p263 = scmp.eq.s32.totalorder %s20, 1
    %p264 = por %p262, %p263
    %p265 = scmp.ne.s32.totalorder %s254, %s255
    %p266 = scmp.eq.s32.totalorder %s20, 0
    %p267 = por %p265, %p266
    %p268 = scmp.ne.s32.totalorder %s254, %s255
    %p269 = scmp.eq.s32.totalorder %s21, 1
    %p270 = por %p268, %p269
    %p272 = scmp.ne.s32.totalorder %s255, %s271
    %p273 = scmp.eq.s32.totalorder %s21, 0
    %p274 = por %p272, %p273
    %p275 = scmp.le.s32.totalorder 1, %s15
    %p276 = scmp.lt.s32.totalorder %s15, 3
    %p277 = pnand %p275, %p276
    %p278 = pneg %p277
    // Predicated region
    $region9: #{unet_down_block.4} parent=5 // pred_check
      _
    $region10: #{unet_down_block.4} parent=5 // pred_check_branch
      %280 = sbr.rel (%p277) target = $region12
    $region11: #{unet_down_block.4} parent=5 // pred_region
      %s281 = ssub.s32 %s15, 1
      // Predicated region
      $region13: #{unet_down_block.4} parent=11 // pred_check
        %p282 = pneg %p148
      $region14: #{unet_down_block.4} parent=11 // pred_check_branch
        %284 = sbr.rel (%p282) target = $region16
      $region15: #{unet_down_block.4} parent=11 // pred_region
        _
      $region16: #{unet_down_block.4} parent=11 // pred_fallthru
        _
      // Predicated region
      $region17: #{unet_down_block.4} parent=11 // pred_check
        %p285 = pneg %p169
      $region18: #{unet_down_block.4} parent=11 // pred_check_branch
        %287 = sbr.rel (%p285) target = $region20
      $region19: #{unet_down_block.4} parent=11 // pred_region
        _
      $region20: #{unet_down_block.4} parent=11 // pred_fallthru
        _
      // Predicated region
      $region21: #{unet_down_block.4} parent=11 // pred_check
        %p288 = pneg %p190
      $region22: #{unet_down_block.4} parent=11 // pred_check_branch
        %290 = sbr.rel (%p288) target = $region24
      $region23: #{unet_down_block.4} parent=11 // pred_region
        _
      $region24: #{unet_down_block.4} parent=11 // pred_fallthru
        _
      // Predicated region
      $region25: #{unet_down_block.4} parent=11 // pred_check
        %p291 = pneg %p211
      $region26: #{unet_down_block.4} parent=11 // pred_check_branch
        %293 = sbr.rel (%p291) target = $region28
      $region27: #{unet_down_block.4} parent=11 // pred_region
        _
      $region28: #{unet_down_block.4} parent=11 // pred_fallthru
        _
    $region12: #{unet_down_block.4} parent=5 // pred_fallthru
      _
    %p294 = scmp.lt.s32.totalorder %s15, 2
    // Predicated region
    $region29: #{unet_down_block.4} parent=5 // pred_check
      %p295 = pneg %p294
    $region30: #{unet_down_block.4} parent=5 // pred_check_branch
      %297 = sbr.rel (%p295) target = $region32
    $region31: #{unet_down_block.4} parent=5 // pred_region
      // Predicated region
      $region33: #{unet_down_block.4} parent=31 // pred_check
        %p298 = pneg %p49
      $region34: #{unet_down_block.4} parent=31 // pred_check_branch
        %300 = sbr.rel (%p298) target = $region36
      $region35: #{unet_down_block.4} parent=31 // pred_region
        %s301 = smul.u32 16, %s23
        %p302 = scmp.lt.s32.totalorder %s22, 1
        %s303 = scalar_select %p302, %s22, 1
        %p304 = scmp.lt.s32.totalorder %s301, 15
        %s305 = scalar_select %p304, %s301, 15
        %s306 = smul.addr %s305, 2
        %s307 = smul.addr %s303, 32
        %s308 = sadd.s32 %s306, %s307
        %s309 = smul.addr %s308, 4
        %s310 = scalar_lea.vmem %s0, %s309
        %s311 = smul.u32 16, %s23
      $region36: #{unet_down_block.4} parent=31 // pred_fallthru
        _
      // Predicated region
      $region37: #{unet_down_block.4} parent=31 // pred_check
        %p312 = pneg %p85
      $region38: #{unet_down_block.4} parent=31 // pred_check_branch
        %314 = sbr.rel (%p312) target = $region40
      $region39: #{unet_down_block.4} parent=31 // pred_region
        %s315 = smul.u32 %s23, 16
        %s316 = ssub.s32 %s315, 1
        %p317 = scmp.gt.s32.totalorder %s316, 0
        %s318 = scalar_select %p317, %s316, 0
        %p319 = scmp.lt.s32.totalorder %s22, 1
        %s320 = scalar_select %p319, %s22, 1
        %p321 = scmp.lt.s32.totalorder %s318, 15
        %s322 = scalar_select %p321, %s318, 15
        %s323 = smul.addr %s322, 2
        %s324 = smul.addr %s320, 32
        %s325 = sadd.s32 %s323, %s324
        %s326 = smul.addr %s325, 4
        %s327 = scalar_lea.vmem %s1, %s326
        %s328 = smul.u32 %s23, 16
        %s329 = ssub.s32 %s328, 1
        %p330 = scmp.gt.s32.totalorder %s329, 0
        %s331 = scalar_select %p330, %s329, 0
      $region40: #{unet_down_block.4} parent=31 // pred_fallthru
        _
      // Predicated region
      $region41: #{unet_down_block.4} parent=31 // pred_check
        %p332 = pneg %p121
      $region42: #{unet_down_block.4} parent=31 // pred_check_branch
        %334 = sbr.rel (%p332) target = $region44
      $region43: #{unet_down_block.4} parent=31 // pred_region
        %s335 = smul.u32 %s23, 16
        %s336 = sadd.s32 %s335, 16
        %p337 = scmp.lt.s32.totalorder %s336, 15
        %s338 = scalar_select %p337, %s336, 15
        %p339 = scmp.lt.s32.totalorder %s22, 1
        %s340 = scalar_select %p339, %s22, 1
        %p341 = scmp.lt.s32.totalorder %s338, 15
        %s342 = scalar_select %p341, %s338, 15
        %s343 = smul.addr %s342, 2
        %s344 = smul.addr %s340, 32
        %s345 = sadd.s32 %s343, %s344
        %s346 = smul.addr %s345, 4
        %s347 = scalar_lea.vmem %s2, %s346
        %s348 = smul.u32 %s23, 16
        %s349 = sadd.s32 %s348, 16
        %p350 = scmp.lt.s32.totalorder %s349, 15
        %s351 = scalar_select %p350, %s349, 15
      $region44: #{unet_down_block.4} parent=31 // pred_fallthru
        _
    $region32: #{unet_down_block.4} parent=5 // pred_fallthru
      _
    %p352 = scmp.le.s32.totalorder 1, %s15
    %p353 = scmp.lt.s32.totalorder %s15, 3
    %p354 = pnand %p352, %p353
    %p355 = pneg %p354
    // Predicated region
    $region45: #{unet_down_block.4} parent=5 // pred_check
      _
    $region46: #{unet_down_block.4} parent=5 // pred_check_branch
      %357 = sbr.rel (%p354) target = $region48
    $region47: #{unet_down_block.4} parent=5 // pred_region
      %s358 = ssub.s32 %s15, 1
      %s359 = smul.u32 16, %s25
      %p360 = scmp.lt.s32.totalorder %s24, 1
      %s361 = scalar_select %p360, %s24, 1
      %p362 = scmp.lt.s32.totalorder %s359, 15
      %s363 = scalar_select %p362, %s359, 15
      %s364 = smul.addr %s363, 2
      %s365 = smul.addr %s361, 32
      %s366 = sadd.s32 %s364, %s365
      %s367 = smul.addr %s366, 4
      %s368 = scalar_lea.vmem %s0, %s367
      %p369 = pneg %p55
      %p370 = pneg %p52
      %s371 = smul.u32 %s25, 16
      %s372 = ssub.s32 %s371, 1
      %p373 = scmp.gt.s32.totalorder %s372, 0
      %s374 = scalar_select %p373, %s372, 0
      %p375 = scmp.lt.s32.totalorder %s24, 1
      %s376 = scalar_select %p375, %s24, 1
      %p377 = scmp.lt.s32.totalorder %s374, 15
      %s378 = scalar_select %p377, %s374, 15
      %s379 = smul.addr %s378, 2
      %s380 = smul.addr %s376, 32
      %s381 = sadd.s32 %s379, %s380
      %s382 = smul.addr %s381, 4
      %s383 = scalar_lea.vmem %s1, %s382
      %p384 = pneg %p91
      %p385 = pneg %p88
      %s386 = smul.u32 %s25, 16
      %s387 = sadd.s32 %s386, 16
      %p388 = scmp.lt.s32.totalorder %s387, 15
      %s389 = scalar_select %p388, %s387, 15
      %p390 = scmp.lt.s32.totalorder %s24, 1
      %s391 = scalar_select %p390, %s24, 1
      %p392 = scmp.lt.s32.totalorder %s389, 15
      %s393 = scalar_select %p392, %s389, 15
      %s394 = smul.addr %s393, 2
      %s395 = smul.addr %s391, 32
      %s396 = sadd.s32 %s394, %s395
      %s397 = smul.addr %s396, 4
      %s398 = scalar_lea.vmem %s2, %s397
      %p399 = pneg %p127
      %p400 = pneg %p124
      %p401 = pneg %p148
      %p402 = pneg %p145
      %p403 = pneg %p169
      %p404 = pneg %p166
      %p405 = pneg %p190
      %p406 = pneg %p187
      %p407 = pneg %p211
      %p408 = pneg %p208
      %p409 = pneg %p239
      %p410 = pneg %p236
      %s411 = smul.u32 16, %s25
      %p412 = scmp.lt.s32.totalorder %s24, 1
      %s413 = scalar_select %p412, %s24, 1
      %p414 = scmp.lt.s32.totalorder %s411, 15
      %s415 = scalar_select %p414, %s411, 15
      %s416 = smul.addr %s415, 2
      %s417 = smul.addr %s413, 32
      %s418 = sadd.s32 %s416, %s417
      %s419 = smul.addr %s418, 4
      %s420 = scalar_lea.vmem %s7, %s419
      %p421 = pneg %p267
      %p422 = pneg %p264
      %p423 = scmp.lt.s32.totalorder %s24, 1
      %s424 = scalar_select %p423, %s24, 1
      %p425 = scmp.lt.s32.totalorder %s25, 0
      %s426 = scalar_select %p425, %s25, 0
      %s427 = sadd.s32 %s426, %s424
      %s428 = smul.addr %s427, 2
      %s429 = scalar_lea.vmem %s8, %s428
      %s430 = smul.u32 16, %s25
      %p431 = scmp.lt.s32.totalorder %s24, 1
      %s432 = scalar_select %p431, %s24, 1
      %p433 = scmp.lt.s32.totalorder %s430, 15
      %s434 = scalar_select %p433, %s430, 15
      %s435 = smul.addr %s434, 2
      %s436 = smul.addr %s432, 32
      %s437 = sadd.s32 %s435, %s436
      %s438 = smul.addr %s437, 4
      %s439 = scalar_lea.vmem %s0, %s438
      %s440 = smul.u32 16, %s25
      %s441 = smul.u32 %s25, 16
      %s442 = ssub.s32 %s441, 1
      %p443 = scmp.gt.s32.totalorder %s442, 0
      %s444 = scalar_select %p443, %s442, 0
      %p445 = scmp.lt.s32.totalorder %s24, 1
      %s446 = scalar_select %p445, %s24, 1
      %p447 = scmp.lt.s32.totalorder %s444, 15
      %s448 = scalar_select %p447, %s444, 15
      %s449 = smul.addr %s448, 2
      %s450 = smul.addr %s446, 32
      %s451 = sadd.s32 %s449, %s450
      %s452 = smul.addr %s451, 4
      %s453 = scalar_lea.vmem %s1, %s452
      %s454 = smul.u32 %s25, 16
      %s455 = ssub.s32 %s454, 1
      %p456 = scmp.gt.s32.totalorder %s455, 0
      %s457 = scalar_select %p456, %s455, 0
      %s458 = smul.u32 %s25, 16
      %s459 = sadd.s32 %s458, 16
      %p460 = scmp.lt.s32.totalorder %s459, 15
      %s461 = scalar_select %p460, %s459, 15
      %p462 = scmp.lt.s32.totalorder %s24, 1
      %s463 = scalar_select %p462, %s24, 1
      %p464 = scmp.lt.s32.totalorder %s461, 15
      %s465 = scalar_select %p464, %s461, 15
      %s466 = smul.addr %s465, 2
      %s467 = smul.addr %s463, 32
      %s468 = sadd.s32 %s466, %s467
      %s469 = smul.addr %s468, 4
      %s470 = scalar_lea.vmem %s2, %s469
      %s471 = smul.u32 %s25, 16
      %s472 = sadd.s32 %s471, 16
      %p473 = scmp.lt.s32.totalorder %s472, 15
      %s474 = scalar_select %p473, %s472, 15
      %s475 = smul.u32 16, %s25
      %p476 = scmp.lt.s32.totalorder %s24, 1
      %s477 = scalar_select %p476, %s24, 1
      %p478 = scmp.lt.s32.totalorder %s475, 15
      %s479 = scalar_select %p478, %s475, 15
      %s480 = smul.addr %s479, 2
      %s481 = smul.addr %s477, 32
      %s482 = sadd.s32 %s480, %s481
      %s483 = smul.addr %s482, 4
      %s484 = scalar_lea.vmem %s7, %s483
      %s485 = smul.u32 16, %s25
      %p486 = scmp.lt.s32.totalorder %s24, 1
      %s487 = scalar_select %p486, %s24, 1
      %p488 = scmp.lt.s32.totalorder %s25, 0
      %s489 = scalar_select %p488, %s25, 0
      %s490 = sadd.s32 %s489, %s487
      %s491 = smul.addr %s490, 2
      %s492 = scalar_lea.vmem %s8, %s491
      %v494 = vld [vmem:[%s439] sm:$0xf]
      %v495 = vld [vmem:[%s439 + $0x4] sm:$0xf]
      %v496 = vld [vmem:[%s439 + $0x8] sm:$0xf]
      %v497 = vld [vmem:[%s439 + $0xc] sm:$0xf]
      %v498 = vld [vmem:[%s439 + $0x10] sm:$0xf]
      %v499 = vld [vmem:[%s439 + $0x14] sm:$0xf]
      %v500 = vld [vmem:[%s439 + $0x18] sm:$0xf]
      %v501 = vld [vmem:[%s439 + $0x1c] sm:$0xf]
      %v502 = vld [vmem:[%s439 + $0x20] sm:$0xf]
      %v503 = vld [vmem:[%s439 + $0x24] sm:$0xf]
      %v504 = vld [vmem:[%s439 + $0x28] sm:$0xf]
      %v505 = vld [vmem:[%s439 + $0x2c] sm:$0xf]
      %v506 = vld [vmem:[%s439 + $0x30] sm:$0xf]
      %v507 = vld [vmem:[%s439 + $0x34] sm:$0xf]
      %v508 = vld [vmem:[%s439 + $0x38] sm:$0xf]
      %v509 = vld [vmem:[%s439 + $0x3c] sm:$0xf]
      %v510 = vld [vmem:[%s439 + $0x40] sm:$0xf]
      %v511 = vld [vmem:[%s439 + $0x44] sm:$0xf]
      %v512 = vld [vmem:[%s439 + $0x48] sm:$0xf]
      %v513 = vld [vmem:[%s439 + $0x4c] sm:$0xf]
      %v514 = vld [vmem:[%s439 + $0x50] sm:$0xf]
      %v515 = vld [vmem:[%s439 + $0x54] sm:$0xf]
      %v516 = vld [vmem:[%s439 + $0x58] sm:$0xf]
      %v517 = vld [vmem:[%s439 + $0x5c] sm:$0xf]
      %v518 = vld [vmem:[%s439 + $0x60] sm:$0xf]
      %v519 = vld [vmem:[%s439 + $0x64] sm:$0xf]
      %v520 = vld [vmem:[%s439 + $0x68] sm:$0xf]
      %v521 = vld [vmem:[%s439 + $0x6c] sm:$0xf]
      %v522 = vld [vmem:[%s439 + $0x70] sm:$0xf]
      %v523 = vld [vmem:[%s439 + $0x74] sm:$0xf]
      %v524 = vld [vmem:[%s439 + $0x78] sm:$0xf]
      %v525 = vld [vmem:[%s439 + $0x7c] sm:$0xf]
      %v526 = vunpack.c.l.bf16 %v494
      %v527 = vunpack.c.l.bf16 %v495
      %v528 = vunpack.c.l.bf16 %v496
      %v529 = vunpack.c.l.bf16 %v497
      %v530 = vunpack.c.l.bf16 %v498
      %v531 = vunpack.c.l.bf16 %v499
      %v532 = vunpack.c.l.bf16 %v500
      %v533 = vunpack.c.l.bf16 %v501
      %v534 = vunpack.c.l.bf16 %v502
      %v535 = vunpack.c.l.bf16 %v503
      %v536 = vunpack.c.l.bf16 %v504
      %v537 = vunpack.c.l.bf16 %v505
      %v538 = vunpack.c.l.bf16 %v506
      %v539 = vunpack.c.l.bf16 %v507
      %v540 = vunpack.c.l.bf16 %v508
      %v541 = vunpack.c.l.bf16 %v509
      %v542 = vunpack.c.l.bf16 %v510
      %v543 = vunpack.c.l.bf16 %v511
      %v544 = vunpack.c.l.bf16 %v512
      %v545 = vunpack.c.l.bf16 %v513
      %v546 = vunpack.c.l.bf16 %v514
      %v547 = vunpack.c.l.bf16 %v515
      %v548 = vunpack.c.l.bf16 %v516
      %v549 = vunpack.c.l.bf16 %v517
      %v550 = vunpack.c.l.bf16 %v518
      %v551 = vunpack.c.l.bf16 %v519
      %v552 = vunpack.c.l.bf16 %v520
      %v553 = vunpack.c.l.bf16 %v521
      %v554 = vunpack.c.l.bf16 %v522
      %v555 = vunpack.c.l.bf16 %v523
      %v556 = vunpack.c.l.bf16 %v524
      %v557 = vunpack.c.l.bf16 %v525
      %v558 = vld [vmem:[%s5] sm:$0x1]
      %v560 = vperm.slane %v558, 0
      %v562 = vmul.f32 %v526, %v560
      %v563 = vmul.f32 %v527, %v560
      %v564 = vmul.f32 %v528, %v560
      %v565 = vmul.f32 %v529, %v560
      %v566 = vmul.f32 %v530, %v560
      %v567 = vmul.f32 %v531, %v560
      %v568 = vmul.f32 %v532, %v560
      %v569 = vmul.f32 %v533, %v560
      %v570 = vmul.f32 %v534, %v560
      %v571 = vmul.f32 %v535, %v560
      %v572 = vmul.f32 %v536, %v560
      %v573 = vmul.f32 %v537, %v560
      %v574 = vmul.f32 %v538, %v560
      %v575 = vmul.f32 %v539, %v560
      %v576 = vmul.f32 %v540, %v560
      %v577 = vmul.f32 %v541, %v560
      %v578 = vmul.f32 %v542, %v560
      %v579 = vmul.f32 %v543, %v560
      %v580 = vmul.f32 %v544, %v560
      %v581 = vmul.f32 %v545, %v560
      %v582 = vmul.f32 %v546, %v560
      %v583 = vmul.f32 %v547, %v560
      %v584 = vmul.f32 %v548, %v560
      %v585 = vmul.f32 %v549, %v560
      %v586 = vmul.f32 %v550, %v560
      %v587 = vmul.f32 %v551, %v560
      %v588 = vmul.f32 %v552, %v560
      %v589 = vmul.f32 %v553, %v560
      %v590 = vmul.f32 %v554, %v560
      %v591 = vmul.f32 %v555, %v560
      %v592 = vmul.f32 %v556, %v560
      %v593 = vmul.f32 %v557, %v560
      %v594 = vld [vmem:[%s6] sm:$0x1]
      %v596 = vperm.slane %v594, 0
      %v598 = vadd.f32 %v562, %v596
      %v599 = vadd.f32 %v563, %v596
      %v600 = vadd.f32 %v564, %v596
      %v601 = vadd.f32 %v565, %v596
      %v602 = vadd.f32 %v566, %v596
      %v603 = vadd.f32 %v567, %v596
      %v604 = vadd.f32 %v568, %v596
      %v605 = vadd.f32 %v569, %v596
      %v606 = vadd.f32 %v570, %v596
      %v607 = vadd.f32 %v571, %v596
      %v608 = vadd.f32 %v572, %v596
      %v609 = vadd.f32 %v573, %v596
      %v610 = vadd.f32 %v574, %v596
      %v611 = vadd.f32 %v575, %v596
      %v612 = vadd.f32 %v576, %v596
      %v613 = vadd.f32 %v577, %v596
      %v614 = vadd.f32 %v578, %v596
      %v615 = vadd.f32 %v579, %v596
      %v616 = vadd.f32 %v580, %v596
      %v617 = vadd.f32 %v581, %v596
      %v618 = vadd.f32 %v582, %v596
      %v619 = vadd.f32 %v583, %v596
      %v620 = vadd.f32 %v584, %v596
      %v621 = vadd.f32 %v585, %v596
      %v622 = vadd.f32 %v586, %v596
      %v623 = vadd.f32 %v587, %v596
      %v624 = vadd.f32 %v588, %v596
      %v625 = vadd.f32 %v589, %v596
      %v626 = vadd.f32 %v590, %v596
      %v627 = vadd.f32 %v591, %v596
      %v628 = vadd.f32 %v592, %v596
      %v629 = vadd.f32 %v593, %v596
      %v630 = vmax.f32 %v598, 0.0
      %v631 = vmax.f32 %v599, 0.0
      %v632 = vmax.f32 %v600, 0.0
      %v633 = vmax.f32 %v601, 0.0
      %v634 = vmax.f32 %v602, 0.0
      %v635 = vmax.f32 %v603, 0.0
      %v636 = vmax.f32 %v604, 0.0
      %v637 = vmax.f32 %v605, 0.0
      %v638 = vmax.f32 %v606, 0.0
      %v639 = vmax.f32 %v607, 0.0
      %v640 = vmax.f32 %v608, 0.0
      %v641 = vmax.f32 %v609, 0.0
      %v642 = vmax.f32 %v610, 0.0
      %v643 = vmax.f32 %v611, 0.0
      %v644 = vmax.f32 %v612, 0.0
      %v645 = vmax.f32 %v613, 0.0
      %v646 = vmax.f32 %v614, 0.0
      %v647 = vmax.f32 %v615, 0.0
      %v648 = vmax.f32 %v616, 0.0
      %v649 = vmax.f32 %v617, 0.0
      %v650 = vmax.f32 %v618, 0.0
      %v651 = vmax.f32 %v619, 0.0
      %v652 = vmax.f32 %v620, 0.0
      %v653 = vmax.f32 %v621, 0.0
      %v654 = vmax.f32 %v622, 0.0
      %v655 = vmax.f32 %v623, 0.0
      %v656 = vmax.f32 %v624, 0.0
      %v657 = vmax.f32 %v625, 0.0
      %v658 = vmax.f32 %v626, 0.0
      %v659 = vmax.f32 %v627, 0.0
      %v660 = vmax.f32 %v628, 0.0
      %v661 = vmax.f32 %v629, 0.0
      %v662 = vpack.c.bf16 %v630, %v630
      %v663 = vpack.c.bf16 %v631, %v631
      %v664 = vpack.c.bf16 %v632, %v632
      %v665 = vpack.c.bf16 %v633, %v633
      %v666 = vpack.c.bf16 %v634, %v634
      %v667 = vpack.c.bf16 %v635, %v635
      %v668 = vpack.c.bf16 %v636, %v636
      %v669 = vpack.c.bf16 %v637, %v637
      %v670 = vpack.c.bf16 %v638, %v638
      %v671 = vpack.c.bf16 %v639, %v639
      %v672 = vpack.c.bf16 %v640, %v640
      %v673 = vpack.c.bf16 %v641, %v641
      %v674 = vpack.c.bf16 %v642, %v642
      %v675 = vpack.c.bf16 %v643, %v643
      %v676 = vpack.c.bf16 %v644, %v644
      %v677 = vpack.c.bf16 %v645, %v645
      %v678 = vpack.c.bf16 %v646, %v646
      %v679 = vpack.c.bf16 %v647, %v647
      %v680 = vpack.c.bf16 %v648, %v648
      %v681 = vpack.c.bf16 %v649, %v649
      %v682 = vpack.c.bf16 %v650, %v650
      %v683 = vpack.c.bf16 %v651, %v651
      %v684 = vpack.c.bf16 %v652, %v652
      %v685 = vpack.c.bf16 %v653, %v653
      %v686 = vpack.c.bf16 %v654, %v654
      %v687 = vpack.c.bf16 %v655, %v655
      %v688 = vpack.c.bf16 %v656, %v656
      %v689 = vpack.c.bf16 %v657, %v657
      %v690 = vpack.c.bf16 %v658, %v658
      %v691 = vpack.c.bf16 %v659, %v659
      %v692 = vpack.c.bf16 %v660, %v660
      %v693 = vpack.c.bf16 %v661, %v661
      %s694 = scalar_lea.vmem [#allocation2], 24
      %695 = vst [vmem:[%s694 + $0x4] sm:$0xf] %v662
      %696 = vst [vmem:[%s694 + $0x10] sm:$0xf] %v663
      %697 = vst [vmem:[%s694 + $0x1c] sm:$0xf] %v664
      %698 = vst [vmem:[%s694 + $0x28] sm:$0xf] %v665
      %699 = vst [vmem:[%s694 + $0x34] sm:$0xf] %v666
      %700 = vst [vmem:[%s694 + $0x40] sm:$0xf] %v667
      %701 = vst [vmem:[%s694 + $0x4c] sm:$0xf] %v668
      %702 = vst [vmem:[%s694 + $0x58] sm:$0xf] %v669
      %703 = vst [vmem:[%s694 + $0x64] sm:$0xf] %v670
      %704 = vst [vmem:[%s694 + $0x70] sm:$0xf] %v671
      %705 = vst [vmem:[%s694 + $0x7c] sm:$0xf] %v672
      %706 = vst [vmem:[%s694 + $0x88] sm:$0xf] %v673
      %707 = vst [vmem:[%s694 + $0x94] sm:$0xf] %v674
      %708 = vst [vmem:[%s694 + $0xa0] sm:$0xf] %v675
      %709 = vst [vmem:[%s694 + $0xac] sm:$0xf] %v676
      %710 = vst [vmem:[%s694 + $0xb8] sm:$0xf] %v677
      %711 = vst [vmem:[%s694 + $0xc4] sm:$0xf] %v678
      %712 = vst [vmem:[%s694 + $0xd0] sm:$0xf] %v679
      %713 = vst [vmem:[%s694 + $0xdc] sm:$0xf] %v680
      %714 = vst [vmem:[%s694 + $0xe8] sm:$0xf] %v681
      %715 = vst [vmem:[%s694 + $0xf4] sm:$0xf] %v682
      %716 = vst [vmem:[%s694 + $0x100] sm:$0xf] %v683
      %717 = vst [vmem:[%s694 + $0x10c] sm:$0xf] %v684
      %718 = vst [vmem:[%s694 + $0x118] sm:$0xf] %v685
      %719 = vst [vmem:[%s694 + $0x124] sm:$0xf] %v686
      %720 = vst [vmem:[%s694 + $0x130] sm:$0xf] %v687
      %721 = vst [vmem:[%s694 + $0x13c] sm:$0xf] %v688
      %722 = vst [vmem:[%s694 + $0x148] sm:$0xf] %v689
      %723 = vst [vmem:[%s694 + $0x154] sm:$0xf] %v690
      %724 = vst [vmem:[%s694 + $0x160] sm:$0xf] %v691
      %725 = vst [vmem:[%s694 + $0x16c] sm:$0xf] %v692
      %726 = vst [vmem:[%s694 + $0x178] sm:$0xf] %v693
      %v727 = vld [vmem:[%s453] sm:$0xf]
      %v728 = vld [vmem:[%s453 + $0x4] sm:$0xf]
      %v729 = vunpack.c.l.bf16 %v727
      %v730 = vunpack.c.l.bf16 %v728
      %v731 = vld [vmem:[%s5] sm:$0x1]
      %v733 = vperm.slane %v731, 0
      %v735 = vmul.f32 %v729, %v733
      %v736 = vmul.f32 %v730, %v733
      %v737 = vld [vmem:[%s6] sm:$0x1]
      %v739 = vperm.slane %v737, 0
      %v741 = vadd.f32 %v735, %v739
      %v742 = vadd.f32 %v736, %v739
      %v743 = vmax.f32 %v741, 0.0
      %v744 = vmax.f32 %v742, 0.0
      %v745 = vpack.c.bf16 %v743, %v743
      %v746 = vpack.c.bf16 %v744, %v744
      %747 = vst [vmem:[#allocation2 + $0x4] sm:$0xf] %v745
      %748 = vst [vmem:[#allocation2 + $0x10] sm:$0xf] %v746
      %v749 = vld [vmem:[%s470] sm:$0xf]
      %v750 = vld [vmem:[%s470 + $0x4] sm:$0xf]
      %v751 = vunpack.c.l.bf16 %v749
      %v752 = vunpack.c.l.bf16 %v750
      %v753 = vld [vmem:[%s5] sm:$0x1]
      %v755 = vperm.slane %v753, 0
      %v757 = vmul.f32 %v751, %v755
      %v758 = vmul.f32 %v752, %v755
      %v759 = vld [vmem:[%s6] sm:$0x1]
      %v761 = vperm.slane %v759, 0
      %v763 = vadd.f32 %v757, %v761
      %v764 = vadd.f32 %v758, %v761
      %v765 = vmax.f32 %v763, 0.0
      %v766 = vmax.f32 %v764, 0.0
      %v767 = vpack.c.bf16 %v765, %v765
      %v768 = vpack.c.bf16 %v766, %v766
      %s769 = scalar_lea.vmem [#allocation2], 408
      %770 = vst [vmem:[%s769 + $0x4] sm:$0xf] %v767
      %771 = vst [vmem:[%s769 + $0x10] sm:$0xf] %v768
      %p772 = scmp.eq.s32.totalorder %s25, 0
      // Predicated region
      $region49: #{unet_down_block.4} parent=47 // pred_check
        %p773 = pneg %p772
      $region50: #{unet_down_block.4} parent=47 // pred_check_branch
        %775 = sbr.rel (%p773) target = $region52
      $region51: #{unet_down_block.4} parent=47 // pred_region
        %776 = vst [vmem:[#allocation2 + $0x4] sm:$0xf] 0
        %777 = vst [vmem:[#allocation2 + $0x10] sm:$0xf] 0
        %778 = vst [vmem:[%s769 + $0x4] sm:$0xf] 0
        %779 = vst [vmem:[%s769 + $0x10] sm:$0xf] 0
      $region52: #{unet_down_block.4} parent=47 // pred_fallthru
        _
      %v780 = vld [vmem:[#allocation2 + $0x4] sm:$0xf]
      %v781 = vld [vmem:[#allocation2 + $0x10] sm:$0xf]
      %v782 = vld [vmem:[#allocation2 + $0x1c] sm:$0xf]
      %v783 = vld [vmem:[#allocation2 + $0x28] sm:$0xf]
      %v784 = vld [vmem:[#allocation2 + $0x34] sm:$0xf]
      %v785 = vld [vmem:[#allocation2 + $0x40] sm:$0xf]
      %v786 = vld [vmem:[#allocation2 + $0x4c] sm:$0xf]
      %v787 = vld [vmem:[#allocation2 + $0x58] sm:$0xf]
      %v788 = vld [vmem:[#allocation2 + $0x64] sm:$0xf]
      %v789 = vld [vmem:[#allocation2 + $0x70] sm:$0xf]
      %v790 = vld [vmem:[#allocation2 + $0x7c] sm:$0xf]
      %v791 = vld [vmem:[#allocation2 + $0x88] sm:$0xf]
      %v792 = vld [vmem:[#allocation2 + $0x94] sm:$0xf]
      %v793 = vld [vmem:[#allocation2 + $0xa0] sm:$0xf]
      %v794 = vld [vmem:[#allocation2 + $0xac] sm:$0xf]
      %v795 = vld [vmem:[#allocation2 + $0xb8] sm:$0xf]
      %v796 = vld [vmem:[#allocation2 + $0xc4] sm:$0xf]
      %v797 = vld [vmem:[#allocation2 + $0xd0] sm:$0xf]
      %v798 = vld [vmem:[#allocation2 + $0xdc] sm:$0xf]
      %v799 = vld [vmem:[#allocation2 + $0xe8] sm:$0xf]
      %v800 = vld [vmem:[#allocation2 + $0xf4] sm:$0xf]
      %v801 = vld [vmem:[#allocation2 + $0x100] sm:$0xf]
      %v802 = vld [vmem:[#allocation2 + $0x10c] sm:$0xf]
      %v803 = vld [vmem:[#allocation2 + $0x118] sm:$0xf]
      %v804 = vld [vmem:[#allocation2 + $0x124] sm:$0xf]
      %v805 = vld [vmem:[#allocation2 + $0x130] sm:$0xf]
      %v806 = vld [vmem:[#allocation2 + $0x13c] sm:$0xf]
      %v807 = vld [vmem:[#allocation2 + $0x148] sm:$0xf]
      %v808 = vld [vmem:[#allocation2 + $0x154] sm:$0xf]
      %v809 = vld [vmem:[#allocation2 + $0x160] sm:$0xf]
      %v810 = vld [vmem:[#allocation2 + $0x16c] sm:$0xf]
      %v811 = vld [vmem:[#allocation2 + $0x178] sm:$0xf]
      %v812 = vld [vmem:[#allocation2 + $0x184] sm:$0xf]
      %v813 = vld [vmem:[#allocation2 + $0x190] sm:$0xf]
      %v814 = vld [vmem:[#allocation2 + $0x19c] sm:$0xf]
      %v815 = vld [vmem:[#allocation2 + $0x1a8] sm:$0xf]
      %v852 = vunpack.c.l.b16 %v780
      %v853 = vunpack.c.l.b16 %v781
      %v854 = vunpack.c.l.b16 %v782
      %v855 = vunpack.c.l.b16 %v783
      %v856 = vunpack.c.l.b16 %v784
      %v857 = vunpack.c.l.b16 %v785
      %v858 = vunpack.c.l.b16 %v786
      %v859 = vunpack.c.l.b16 %v787
      %v860 = vunpack.c.l.b16 %v788
      %v861 = vunpack.c.l.b16 %v789
      %v862 = vunpack.c.l.b16 %v790
      %v863 = vunpack.c.l.b16 %v791
      %v864 = vunpack.c.l.b16 %v792
      %v865 = vunpack.c.l.b16 %v793
      %v866 = vunpack.c.l.b16 %v794
      %v867 = vunpack.c.l.b16 %v795
      %v868 = vunpack.c.l.b16 %v796
      %v869 = vunpack.c.l.b16 %v797
      %v870 = vunpack.c.l.b16 %v798
      %v871 = vunpack.c.l.b16 %v799
      %v872 = vunpack.c.l.b16 %v800
      %v873 = vunpack.c.l.b16 %v801
      %v874 = vunpack.c.l.b16 %v802
      %v875 = vunpack.c.l.b16 %v803
      %v876 = vunpack.c.l.b16 %v804
      %v877 = vunpack.c.l.b16 %v805
      %v878 = vunpack.c.l.b16 %v806
      %v879 = vunpack.c.l.b16 %v807
      %v880 = vunpack.c.l.b16 %v808
      %v881 = vunpack.c.l.b16 %v809
      %v882 = vunpack.c.l.b16 %v810
      %v883 = vunpack.c.l.b16 %v811
      %v884 = vunpack.c.l.b16 %v812
      %v885 = vunpack.c.l.b16 %v813
      %v886 = vunpack.c.l.b16 %v814
      %v887 = vunpack.c.l.b16 %v815
      %v888 = vpack.c.b16 %v853, %v852
      %v889 = vpack.c.b16 %v855, %v854
      %v890 = vpack.c.b16 %v857, %v856
      %v891 = vpack.c.b16 %v859, %v858
      %v892 = vpack.c.b16 %v861, %v860
      %v893 = vpack.c.b16 %v863, %v862
      %v894 = vpack.c.b16 %v865, %v864
      %v895 = vpack.c.b16 %v867, %v866
      %v896 = vpack.c.b16 %v869, %v868
      %v897 = vpack.c.b16 %v871, %v870
      %v898 = vpack.c.b16 %v873, %v872
      %v899 = vpack.c.b16 %v875, %v874
      %v900 = vpack.c.b16 %v877, %v876
      %v901 = vpack.c.b16 %v879, %v878
      %v902 = vpack.c.b16 %v881, %v880
      %v903 = vpack.c.b16 %v883, %v882
      %v904 = vpack.c.b16 %v885, %v884
      %v905 = vpack.c.b16 %v887, %v886
      %v907 = vshrl.u32 %v888, 16
      %v909 = vrot.slane %v907, 7
      %v910 = vshll.u32 %v888, 16
      %v912 = vor.u32 %v909, %v910
      %v914 = vshrl.u32 %v889, 16
      %v916 = vrot.slane %v914, 7
      %v917 = vshll.u32 %v889, 16
      %v919 = vor.u32 %v916, %v917
      %v921 = vshrl.u32 %v890, 16
      %v923 = vrot.slane %v921, 7
      %v924 = vshll.u32 %v890, 16
      %v926 = vor.u32 %v923, %v924
      %v928 = vshrl.u32 %v891, 16
      %v930 = vrot.slane %v928, 7
      %v931 = vshll.u32 %v891, 16
      %v933 = vor.u32 %v930, %v931
      %v935 = vshrl.u32 %v892, 16
      %v937 = vrot.slane %v935, 7
      %v938 = vshll.u32 %v892, 16
      %v940 = vor.u32 %v937, %v938
      %v942 = vshrl.u32 %v893, 16
      %v944 = vrot.slane %v942, 7
      %v945 = vshll.u32 %v893, 16
      %v947 = vor.u32 %v944, %v945
      %v949 = vshrl.u32 %v894, 16
      %v951 = vrot.slane %v949, 7
      %v952 = vshll.u32 %v894, 16
      %v954 = vor.u32 %v951, %v952
      %v956 = vshrl.u32 %v895, 16
      %v958 = vrot.slane %v956, 7
      %v959 = vshll.u32 %v895, 16
      %v961 = vor.u32 %v958, %v959
      %v963 = vshrl.u32 %v896, 16
      %v965 = vrot.slane %v963, 7
      %v966 = vshll.u32 %v896, 16
      %v968 = vor.u32 %v965, %v966
      %v970 = vshrl.u32 %v897, 16
      %v972 = vrot.slane %v970, 7
      %v973 = vshll.u32 %v897, 16
      %v975 = vor.u32 %v972, %v973
      %v977 = vshrl.u32 %v898, 16
      %v979 = vrot.slane %v977, 7
      %v980 = vshll.u32 %v898, 16
      %v982 = vor.u32 %v979, %v980
      %v984 = vshrl.u32 %v899, 16
      %v986 = vrot.slane %v984, 7
      %v987 = vshll.u32 %v899, 16
      %v989 = vor.u32 %v986, %v987
      %v991 = vshrl.u32 %v900, 16
      %v993 = vrot.slane %v991, 7
      %v994 = vshll.u32 %v900, 16
      %v996 = vor.u32 %v993, %v994
      %v998 = vshrl.u32 %v901, 16
      %v1000 = vrot.slane %v998, 7
      %v1001 = vshll.u32 %v901, 16
      %v1003 = vor.u32 %v1000, %v1001
      %v1005 = vshrl.u32 %v902, 16
      %v1007 = vrot.slane %v1005, 7
      %v1008 = vshll.u32 %v902, 16
      %v1010 = vor.u32 %v1007, %v1008
      %v1012 = vshrl.u32 %v903, 16
      %v1014 = vrot.slane %v1012, 7
      %v1015 = vshll.u32 %v903, 16
      %v1017 = vor.u32 %v1014, %v1015
      %v1019 = vshrl.u32 %v904, 16
      %v1021 = vrot.slane %v1019, 7
      %v1022 = vshll.u32 %v904, 16
      %v1024 = vor.u32 %v1021, %v1022
      %v1026 = vshrl.u32 %v905, 16
      %v1028 = vrot.slane %v1026, 7
      %v1029 = vshll.u32 %v905, 16
      %v1031 = vor.u32 %v1028, %v1029
      %vm1050 = vcmask 1040384
      %vm1051 = vsmask.f32 256
      %vm1052 = vmand %vm1050, %vm1051
      %v1053 = vsel %vm1052, 0, %v912
      %v1054 = vsel %vm1052, 0, %v919
      %v1055 = vsel %vm1052, 0, %v926
      %v1056 = vsel %vm1052, 0, %v933
      %v1057 = vsel %vm1052, 0, %v940
      %v1058 = vsel %vm1052, 0, %v947
      %v1059 = vsel %vm1052, 0, %v954
      %v1060 = vsel %vm1052, 0, %v961
      %v1061 = vsel %vm1052, 0, %v968
      %v1062 = vsel %vm1052, 0, %v975
      %v1063 = vsel %vm1052, 0, %v982
      %v1064 = vsel %vm1052, 0, %v989
      %v1065 = vsel %vm1052, 0, %v996
      %v1066 = vsel %vm1052, 0, %v1003
      %v1067 = vsel %vm1052, 0, %v1010
      %v1068 = vsel %vm1052, 0, %v1017
      %v1069 = vsel %vm1052, 0, %v1024
      %v1070 = vsel %vm1052, 0, %v1031
      %v1089 = vunpack.c.l.b16 %v1053
      %v1090 = vunpack.c.h.b16 %v1053
      %v1091 = vunpack.c.l.b16 %v1054
      %v1092 = vunpack.c.h.b16 %v1054
      %v1093 = vunpack.c.l.b16 %v1055
      %v1094 = vunpack.c.h.b16 %v1055
      %v1095 = vunpack.c.l.b16 %v1056
      %v1096 = vunpack.c.h.b16 %v1056
      %v1097 = vunpack.c.l.b16 %v1057
      %v1098 = vunpack.c.h.b16 %v1057
      %v1099 = vunpack.c.l.b16 %v1058
      %v1100 = vunpack.c.h.b16 %v1058
      %v1101 = vunpack.c.l.b16 %v1059
      %v1102 = vunpack.c.h.b16 %v1059
      %v1103 = vunpack.c.l.b16 %v1060
      %v1104 = vunpack.c.h.b16 %v1060
      %v1105 = vunpack.c.l.b16 %v1061
      %v1106 = vunpack.c.h.b16 %v1061
      %v1107 = vunpack.c.l.b16 %v1062
      %v1108 = vunpack.c.h.b16 %v1062
      %v1109 = vunpack.c.l.b16 %v1063
      %v1110 = vunpack.c.h.b16 %v1063
      %v1111 = vunpack.c.l.b16 %v1064
      %v1112 = vunpack.c.h.b16 %v1064
      %v1113 = vunpack.c.l.b16 %v1065
      %v1114 = vunpack.c.h.b16 %v1065
      %v1115 = vunpack.c.l.b16 %v1066
      %v1116 = vunpack.c.h.b16 %v1066
      %v1117 = vunpack.c.l.b16 %v1067
      %v1118 = vunpack.c.h.b16 %v1067
      %v1119 = vunpack.c.l.b16 %v1068
      %v1120 = vunpack.c.h.b16 %v1068
      %v1121 = vunpack.c.l.b16 %v1069
      %v1122 = vunpack.c.h.b16 %v1069
      %v1123 = vunpack.c.l.b16 %v1070
      %v1124 = vunpack.c.h.b16 %v1070
      %v1125 = vpack.c.b16 %v1089, %v1089
      %v1126 = vpack.c.b16 %v1090, %v1090
      %v1127 = vpack.c.b16 %v1091, %v1091
      %v1128 = vpack.c.b16 %v1092, %v1092
      %v1129 = vpack.c.b16 %v1093, %v1093
      %v1130 = vpack.c.b16 %v1094, %v1094
      %v1131 = vpack.c.b16 %v1095, %v1095
      %v1132 = vpack.c.b16 %v1096, %v1096
      %v1133 = vpack.c.b16 %v1097, %v1097
      %v1134 = vpack.c.b16 %v1098, %v1098
      %v1135 = vpack.c.b16 %v1099, %v1099
      %v1136 = vpack.c.b16 %v1100, %v1100
      %v1137 = vpack.c.b16 %v1101, %v1101
      %v1138 = vpack.c.b16 %v1102, %v1102
      %v1139 = vpack.c.b16 %v1103, %v1103
      %v1140 = vpack.c.b16 %v1104, %v1104
      %v1141 = vpack.c.b16 %v1105, %v1105
      %v1142 = vpack.c.b16 %v1106, %v1106
      %v1143 = vpack.c.b16 %v1107, %v1107
      %v1144 = vpack.c.b16 %v1108, %v1108
      %v1145 = vpack.c.b16 %v1109, %v1109
      %v1146 = vpack.c.b16 %v1110, %v1110
      %v1147 = vpack.c.b16 %v1111, %v1111
      %v1148 = vpack.c.b16 %v1112, %v1112
      %v1149 = vpack.c.b16 %v1113, %v1113
      %v1150 = vpack.c.b16 %v1114, %v1114
      %v1151 = vpack.c.b16 %v1115, %v1115
      %v1152 = vpack.c.b16 %v1116, %v1116
      %v1153 = vpack.c.b16 %v1117, %v1117
      %v1154 = vpack.c.b16 %v1118, %v1118
      %v1155 = vpack.c.b16 %v1119, %v1119
      %v1156 = vpack.c.b16 %v1120, %v1120
      %v1157 = vpack.c.b16 %v1121, %v1121
      %v1158 = vpack.c.b16 %v1122, %v1122
      %v1159 = vpack.c.b16 %v1123, %v1123
      %v1160 = vpack.c.b16 %v1124, %v1124
      %1197 = vst [vmem:[#allocation2] sm:$0xf] %v1125
      %1198 = vst [vmem:[#allocation2 + $0xc] sm:$0xf] %v1126
      %1199 = vst [vmem:[#allocation2 + $0x18] sm:$0xf] %v1127
      %1200 = vst [vmem:[#allocation2 + $0x24] sm:$0xf] %v1128
      %1201 = vst [vmem:[#allocation2 + $0x30] sm:$0xf] %v1129
      %1202 = vst [vmem:[#allocation2 + $0x3c] sm:$0xf] %v1130
      %1203 = vst [vmem:[#allocation2 + $0x48] sm:$0xf] %v1131
      %1204 = vst [vmem:[#allocation2 + $0x54] sm:$0xf] %v1132
      %1205 = vst [vmem:[#allocation2 + $0x60] sm:$0xf] %v1133
      %1206 = vst [vmem:[#allocation2 + $0x6c] sm:$0xf] %v1134
      %1207 = vst [vmem:[#allocation2 + $0x78] sm:$0xf] %v1135
      %1208 = vst [vmem:[#allocation2 + $0x84] sm:$0xf] %v1136
      %1209 = vst [vmem:[#allocation2 + $0x90] sm:$0xf] %v1137
      %1210 = vst [vmem:[#allocation2 + $0x9c] sm:$0xf] %v1138
      %1211 = vst [vmem:[#allocation2 + $0xa8] sm:$0xf] %v1139
      %1212 = vst [vmem:[#allocation2 + $0xb4] sm:$0xf] %v1140
      %1213 = vst [vmem:[#allocation2 + $0xc0] sm:$0xf] %v1141
      %1214 = vst [vmem:[#allocation2 + $0xcc] sm:$0xf] %v1142
      %1215 = vst [vmem:[#allocation2 + $0xd8] sm:$0xf] %v1143
      %1216 = vst [vmem:[#allocation2 + $0xe4] sm:$0xf] %v1144
      %1217 = vst [vmem:[#allocation2 + $0xf0] sm:$0xf] %v1145
      %1218 = vst [vmem:[#allocation2 + $0xfc] sm:$0xf] %v1146
      %1219 = vst [vmem:[#allocation2 + $0x108] sm:$0xf] %v1147
      %1220 = vst [vmem:[#allocation2 + $0x114] sm:$0xf] %v1148
      %1221 = vst [vmem:[#allocation2 + $0x120] sm:$0xf] %v1149
      %1222 = vst [vmem:[#allocation2 + $0x12c] sm:$0xf] %v1150
      %1223 = vst [vmem:[#allocation2 + $0x138] sm:$0xf] %v1151
      %1224 = vst [vmem:[#allocation2 + $0x144] sm:$0xf] %v1152
      %1225 = vst [vmem:[#allocation2 + $0x150] sm:$0xf] %v1153
      %1226 = vst [vmem:[#allocation2 + $0x15c] sm:$0xf] %v1154
      %1227 = vst [vmem:[#allocation2 + $0x168] sm:$0xf] %v1155
      %1228 = vst [vmem:[#allocation2 + $0x174] sm:$0xf] %v1156
      %1229 = vst [vmem:[#allocation2 + $0x180] sm:$0xf] %v1157
      %1230 = vst [vmem:[#allocation2 + $0x18c] sm:$0xf] %v1158
      %1231 = vst [vmem:[#allocation2 + $0x198] sm:$0xf] %v1159
      %1232 = vst [vmem:[#allocation2 + $0x1a4] sm:$0xf] %v1160
      %v1233 = vrot.slane %v910, 1
      %v1234 = vor.u32 %v907, %v1233
      %v1235 = vrot.slane %v917, 1
      %v1236 = vor.u32 %v914, %v1235
      %v1237 = vrot.slane %v924, 1
      %v1238 = vor.u32 %v921, %v1237
      %v1239 = vrot.slane %v931, 1
      %v1240 = vor.u32 %v928, %v1239
      %v1241 = vrot.slane %v938, 1
      %v1242 = vor.u32 %v935, %v1241
      %v1243 = vrot.slane %v945, 1
      %v1244 = vor.u32 %v942, %v1243
      %v1245 = vrot.slane %v952, 1
      %v1246 = vor.u32 %v949, %v1245
      %v1247 = vrot.slane %v959, 1
      %v1248 = vor.u32 %v956, %v1247
      %v1249 = vrot.slane %v966, 1
      %v1250 = vor.u32 %v963, %v1249
      %v1251 = vrot.slane %v973, 1
      %v1252 = vor.u32 %v970, %v1251
      %v1253 = vrot.slane %v980, 1
      %v1254 = vor.u32 %v977, %v1253
      %v1255 = vrot.slane %v987, 1
      %v1256 = vor.u32 %v984, %v1255
      %v1257 = vrot.slane %v994, 1
      %v1258 = vor.u32 %v991, %v1257
      %v1259 = vrot.slane %v1001, 1
      %v1260 = vor.u32 %v998, %v1259
      %v1261 = vrot.slane %v1008, 1
      %v1262 = vor.u32 %v1005, %v1261
      %v1263 = vrot.slane %v1015, 1
      %v1264 = vor.u32 %v1012, %v1263
      %v1265 = vrot.slane %v1022, 1
      %v1266 = vor.u32 %v1019, %v1265
      %v1267 = vrot.slane %v1029, 1
      %v1268 = vor.u32 %v1026, %v1267
      %vm1287 = vcmask 1047552
      %vm1288 = vsmask.f32 7424
      %vm1289 = vmand %vm1287, %vm1288
      %v1290 = vsel %vm1289, %v1234, 0
      %v1291 = vsel %vm1289, %v1236, 0
      %v1292 = vsel %vm1289, %v1238, 0
      %v1293 = vsel %vm1289, %v1240, 0
      %v1294 = vsel %vm1289, %v1242, 0
      %v1295 = vsel %vm1289, %v1244, 0
      %v1296 = vsel %vm1289, %v1246, 0
      %v1297 = vsel %vm1289, %v1248, 0
      %v1298 = vsel %vm1289, %v1250, 0
      %v1299 = vsel %vm1289, %v1252, 0
      %v1300 = vsel %vm1289, %v1254, 0
      %v1301 = vsel %vm1289, %v1256, 0
      %v1302 = vsel %vm1289, %v1258, 0
      %v1303 = vsel %vm1289, %v1260, 0
      %v1304 = vsel %vm1289, %v1262, 0
      %v1305 = vsel %vm1289, %v1264, 0
      %v1306 = vsel %vm1289, %v1266, 0
      %v1307 = vsel %vm1289, %v1268, 0
      %v1326 = vunpack.c.l.b16 %v1290
      %v1327 = vunpack.c.h.b16 %v1290
      %v1328 = vunpack.c.l.b16 %v1291
      %v1329 = vunpack.c.h.b16 %v1291
      %v1330 = vunpack.c.l.b16 %v1292
      %v1331 = vunpack.c.h.b16 %v1292
      %v1332 = vunpack.c.l.b16 %v1293
      %v1333 = vunpack.c.h.b16 %v1293
      %v1334 = vunpack.c.l.b16 %v1294
      %v1335 = vunpack.c.h.b16 %v1294
      %v1336 = vunpack.c.l.b16 %v1295
      %v1337 = vunpack.c.h.b16 %v1295
      %v1338 = vunpack.c.l.b16 %v1296
      %v1339 = vunpack.c.h.b16 %v1296
      %v1340 = vunpack.c.l.b16 %v1297
      %v1341 = vunpack.c.h.b16 %v1297
      %v1342 = vunpack.c.l.b16 %v1298
      %v1343 = vunpack.c.h.b16 %v1298
      %v1344 = vunpack.c.l.b16 %v1299
      %v1345 = vunpack.c.h.b16 %v1299
      %v1346 = vunpack.c.l.b16 %v1300
      %v1347 = vunpack.c.h.b16 %v1300
      %v1348 = vunpack.c.l.b16 %v1301
      %v1349 = vunpack.c.h.b16 %v1301
      %v1350 = vunpack.c.l.b16 %v1302
      %v1351 = vunpack.c.h.b16 %v1302
      %v1352 = vunpack.c.l.b16 %v1303
      %v1353 = vunpack.c.h.b16 %v1303
      %v1354 = vunpack.c.l.b16 %v1304
      %v1355 = vunpack.c.h.b16 %v1304
      %v1356 = vunpack.c.l.b16 %v1305
      %v1357 = vunpack.c.h.b16 %v1305
      %v1358 = vunpack.c.l.b16 %v1306
      %v1359 = vunpack.c.h.b16 %v1306
      %v1360 = vunpack.c.l.b16 %v1307
      %v1361 = vunpack.c.h.b16 %v1307
      %v1362 = vpack.c.b16 %v1326, %v1326
      %v1363 = vpack.c.b16 %v1327, %v1327
      %v1364 = vpack.c.b16 %v1328, %v1328
      %v1365 = vpack.c.b16 %v1329, %v1329
      %v1366 = vpack.c.b16 %v1330, %v1330
      %v1367 = vpack.c.b16 %v1331, %v1331
      %v1368 = vpack.c.b16 %v1332, %v1332
      %v1369 = vpack.c.b16 %v1333, %v1333
      %v1370 = vpack.c.b16 %v1334, %v1334
      %v1371 = vpack.c.b16 %v1335, %v1335
      %v1372 = vpack.c.b16 %v1336, %v1336
      %v1373 = vpack.c.b16 %v1337, %v1337
      %v1374 = vpack.c.b16 %v1338, %v1338
      %v1375 = vpack.c.b16 %v1339, %v1339
      %v1376 = vpack.c.b16 %v1340, %v1340
      %v1377 = vpack.c.b16 %v1341, %v1341
      %v1378 = vpack.c.b16 %v1342, %v1342
      %v1379 = vpack.c.b16 %v1343, %v1343
      %v1380 = vpack.c.b16 %v1344, %v1344
      %v1381 = vpack.c.b16 %v1345, %v1345
      %v1382 = vpack.c.b16 %v1346, %v1346
      %v1383 = vpack.c.b16 %v1347, %v1347
      %v1384 = vpack.c.b16 %v1348, %v1348
      %v1385 = vpack.c.b16 %v1349, %v1349
      %v1386 = vpack.c.b16 %v1350, %v1350
      %v1387 = vpack.c.b16 %v1351, %v1351
      %v1388 = vpack.c.b16 %v1352, %v1352
      %v1389 = vpack.c.b16 %v1353, %v1353
      %v1390 = vpack.c.b16 %v1354, %v1354
      %v1391 = vpack.c.b16 %v1355, %v1355
      %v1392 = vpack.c.b16 %v1356, %v1356
      %v1393 = vpack.c.b16 %v1357, %v1357
      %v1394 = vpack.c.b16 %v1358, %v1358
      %v1395 = vpack.c.b16 %v1359, %v1359
      %v1396 = vpack.c.b16 %v1360, %v1360
      %v1397 = vpack.c.b16 %v1361, %v1361
      %1434 = vst [vmem:[#allocation2 + $0x8] sm:$0xf] %v1362
      %1435 = vst [vmem:[#allocation2 + $0x14] sm:$0xf] %v1363
      %1436 = vst [vmem:[#allocation2 + $0x20] sm:$0xf] %v1364
      %1437 = vst [vmem:[#allocation2 + $0x2c] sm:$0xf] %v1365
      %1438 = vst [vmem:[#allocation2 + $0x38] sm:$0xf] %v1366
      %1439 = vst [vmem:[#allocation2 + $0x44] sm:$0xf] %v1367
      %1440 = vst [vmem:[#allocation2 + $0x50] sm:$0xf] %v1368
      %1441 = vst [vmem:[#allocation2 + $0x5c] sm:$0xf] %v1369
      %1442 = vst [vmem:[#allocation2 + $0x68] sm:$0xf] %v1370
      %1443 = vst [vmem:[#allocation2 + $0x74] sm:$0xf] %v1371
      %1444 = vst [vmem:[#allocation2 + $0x80] sm:$0xf] %v1372
      %1445 = vst [vmem:[#allocation2 + $0x8c] sm:$0xf] %v1373
      %1446 = vst [vmem:[#allocation2 + $0x98] sm:$0xf] %v1374
      %1447 = vst [vmem:[#allocation2 + $0xa4] sm:$0xf] %v1375
      %1448 = vst [vmem:[#allocation2 + $0xb0] sm:$0xf] %v1376
      %1449 = vst [vmem:[#allocation2 + $0xbc] sm:$0xf] %v1377
      %1450 = vst [vmem:[#allocation2 + $0xc8] sm:$0xf] %v1378
      %1451 = vst [vmem:[#allocation2 + $0xd4] sm:$0xf] %v1379
      %1452 = vst [vmem:[#allocation2 + $0xe0] sm:$0xf] %v1380
      %1453 = vst [vmem:[#allocation2 + $0xec] sm:$0xf] %v1381
      %1454 = vst [vmem:[#allocation2 + $0xf8] sm:$0xf] %v1382
      %1455 = vst [vmem:[#allocation2 + $0x104] sm:$0xf] %v1383
      %1456 = vst [vmem:[#allocation2 + $0x110] sm:$0xf] %v1384
      %1457 = vst [vmem:[#allocation2 + $0x11c] sm:$0xf] %v1385
      %1458 = vst [vmem:[#allocation2 + $0x128] sm:$0xf] %v1386
      %1459 = vst [vmem:[#allocation2 + $0x134] sm:$0xf] %v1387
      %1460 = vst [vmem:[#allocation2 + $0x140] sm:$0xf] %v1388
      %1461 = vst [vmem:[#allocation2 + $0x14c] sm:$0xf] %v1389
      %1462 = vst [vmem:[#allocation2 + $0x158] sm:$0xf] %v1390
      %1463 = vst [vmem:[#allocation2 + $0x164] sm:$0xf] %v1391
      %1464 = vst [vmem:[#allocation2 + $0x170] sm:$0xf] %v1392
      %1465 = vst [vmem:[#allocation2 + $0x17c] sm:$0xf] %v1393
      %1466 = vst [vmem:[#allocation2 + $0x188] sm:$0xf] %v1394
      %1467 = vst [vmem:[#allocation2 + $0x194] sm:$0xf] %v1395
      %1468 = vst [vmem:[#allocation2 + $0x1a0] sm:$0xf] %v1396
      %1469 = vst [vmem:[#allocation2 + $0x1ac] sm:$0xf] %v1397
      %v1470 = vld [vmem:[#allocation2] sm:$0xff]
      %v1471 = vld [vmem:[#allocation2 + $0x8] sm:$0xf]
      %v1472 = vld [vmem:[#allocation2 + $0xc] sm:$0xff]
      %v1473 = vld [vmem:[#allocation2 + $0x14] sm:$0xf]
      %v1474 = vld [vmem:[#allocation2 + $0x18] sm:$0xff]
      %v1475 = vld [vmem:[#allocation2 + $0x20] sm:$0xf]
      %v1476 = vld [vmem:[#allocation2 + $0x24] sm:$0xff]
      %v1477 = vld [vmem:[#allocation2 + $0x2c] sm:$0xf]
      %v1478 = vld [vmem:[#allocation2 + $0x30] sm:$0xff]
      %v1479 = vld [vmem:[#allocation2 + $0x38] sm:$0xf]
      %v1480 = vld [vmem:[#allocation2 + $0x3c] sm:$0xff]
      %v1481 = vld [vmem:[#allocation2 + $0x44] sm:$0xf]
      %v1482 = vld [vmem:[#allocation2 + $0x48] sm:$0xff]
      %v1483 = vld [vmem:[#allocation2 + $0x50] sm:$0xf]
      %v1484 = vld [vmem:[#allocation2 + $0x54] sm:$0xff]
      %v1485 = vld [vmem:[#allocation2 + $0x5c] sm:$0xf]
      %v1486 = vld [vmem:[#allocation2 + $0x60] sm:$0xff]
      %v1487 = vld [vmem:[#allocation2 + $0x68] sm:$0xf]
      %v1488 = vld [vmem:[#allocation2 + $0x6c] sm:$0xff]
      %v1489 = vld [vmem:[#allocation2 + $0x74] sm:$0xf]
      %v1490 = vld [vmem:[#allocation2 + $0x78] sm:$0xff]
      %v1491 = vld [vmem:[#allocation2 + $0x80] sm:$0xf]
      %v1492 = vld [vmem:[#allocation2 + $0x84] sm:$0xff]
      %v1493 = vld [vmem:[#allocation2 + $0x8c] sm:$0xf]
      %v1494 = vld [vmem:[#allocation2 + $0x90] sm:$0xff]
      %v1495 = vld [vmem:[#allocation2 + $0x98] sm:$0xf]
      %v1496 = vld [vmem:[#allocation2 + $0x9c] sm:$0xff]
      %v1497 = vld [vmem:[#allocation2 + $0xa4] sm:$0xf]
      %v1498 = vld [vmem:[#allocation2 + $0xa8] sm:$0xff]
      %v1499 = vld [vmem:[#allocation2 + $0xb0] sm:$0xf]
      %v1500 = vld [vmem:[#allocation2 + $0xb4] sm:$0xff]
      %v1501 = vld [vmem:[#allocation2 + $0xbc] sm:$0xf]
      %v1502 = vld [vmem:[#allocation2 + $0xc0] sm:$0xff]
      %v1503 = vld [vmem:[#allocation2 + $0xc8] sm:$0xf]
      %v1504 = vld [vmem:[#allocation2 + $0xcc] sm:$0xff]
      %v1505 = vld [vmem:[#allocation2 + $0xd4] sm:$0xf]
      %v1506 = vld [vmem:[#allocation2 + $0xd8] sm:$0xff]
      %v1507 = vld [vmem:[#allocation2 + $0xe0] sm:$0xf]
      %v1508 = vld [vmem:[#allocation2 + $0xe4] sm:$0xff]
      %v1509 = vld [vmem:[#allocation2 + $0xec] sm:$0xf]
      %v1510 = vld [vmem:[#allocation2 + $0xf0] sm:$0xff]
      %v1511 = vld [vmem:[#allocation2 + $0xf8] sm:$0xf]
      %v1512 = vld [vmem:[#allocation2 + $0xfc] sm:$0xff]
      %v1513 = vld [vmem:[#allocation2 + $0x104] sm:$0xf]
      %v1514 = vld [vmem:[#allocation2 + $0x108] sm:$0xff]
      %v1515 = vld [vmem:[#allocation2 + $0x110] sm:$0xf]
      %v1516 = vld [vmem:[#allocation2 + $0x114] sm:$0xff]
      %v1517 = vld [vmem:[#allocation2 + $0x11c] sm:$0xf]
      %v1518 = vld [vmem:[#allocation2 + $0x120] sm:$0xff]
      %v1519 = vld [vmem:[#allocation2 + $0x128] sm:$0xf]
      %v1520 = vld [vmem:[#allocation2 + $0x12c] sm:$0xff]
      %v1521 = vld [vmem:[#allocation2 + $0x134] sm:$0xf]
      %v1522 = vld [vmem:[#allocation2 + $0x138] sm:$0xff]
      %v1523 = vld [vmem:[#allocation2 + $0x140] sm:$0xf]
      %v1524 = vld [vmem:[#allocation2 + $0x144] sm:$0xff]
      %v1525 = vld [vmem:[#allocation2 + $0x14c] sm:$0xf]
      %v1526 = vld [vmem:[#allocation2 + $0x150] sm:$0xff]
      %v1527 = vld [vmem:[#allocation2 + $0x158] sm:$0xf]
      %v1528 = vld [vmem:[#allocation2 + $0x15c] sm:$0xff]
      %v1529 = vld [vmem:[#allocation2 + $0x164] sm:$0xf]
      %v1530 = vld [vmem:[#allocation2 + $0x168] sm:$0xff]
      %v1531 = vld [vmem:[#allocation2 + $0x170] sm:$0xf]
      %v1532 = vld [vmem:[#allocation2 + $0x174] sm:$0xff]
      %v1533 = vld [vmem:[#allocation2 + $0x17c] sm:$0xf]
      %v1534 = vld [vmem:[%s3] sm:$0xf]
      %v1535 = vld [vmem:[%s3 + $0x4] sm:$0xf]
      %v1536 = vld [vmem:[%s3 + $0x8] sm:$0xf]
      %v1537 = vld [vmem:[%s3 + $0xc] sm:$0xf]
      %v1538 = vld [vmem:[%s3 + $0x10] sm:$0xf]
      %v1539 = vld [vmem:[%s3 + $0x14] sm:$0xf]
      %v1540 = vld [vmem:[%s3 + $0x18] sm:$0xf]
      %v1541 = vld [vmem:[%s3 + $0x1c] sm:$0xf]
      %v1542 = vld [vmem:[%s3 + $0x20] sm:$0xf]
      %v1543 = vld [vmem:[%s3 + $0x24] sm:$0xf]
      %v1544 = vld [vmem:[%s3 + $0x28] sm:$0xf]
      %v1545 = vld [vmem:[%s3 + $0x2c] sm:$0xf]
      %v1546 = vld [vmem:[%s3 + $0x30] sm:$0xf]
      %v1547 = vld [vmem:[%s3 + $0x34] sm:$0xf]
      %v1548 = vld [vmem:[%s3 + $0x38] sm:$0xf]
      %v1549 = vld [vmem:[%s3 + $0x3c] sm:$0xf]
      %v1550 = vld [vmem:[%s3 + $0x40] sm:$0xf]
      %v1551 = vld [vmem:[%s3 + $0x44] sm:$0xf]
      %v1552 = vld [vmem:[%s3 + $0x48] sm:$0xf]
      %v1553 = vld [vmem:[%s3 + $0x4c] sm:$0xf]
      %v1554 = vld [vmem:[%s3 + $0x50] sm:$0xf]
      %v1555 = vld [vmem:[%s3 + $0x54] sm:$0xf]
      %v1556 = vld [vmem:[%s3 + $0x58] sm:$0xf]
      %v1557 = vld [vmem:[%s3 + $0x5c] sm:$0xf]
      %v1558 = vld [vmem:[%s3 + $0x60] sm:$0xf]
      %v1559 = vld [vmem:[%s3 + $0x64] sm:$0xf]
      %v1560 = vld [vmem:[%s3 + $0x68] sm:$0xf]
      %v1561 = vld [vmem:[%s3 + $0x6c] sm:$0xf]
      %v1562 = vld [vmem:[%s3 + $0x70] sm:$0xf]
      %v1563 = vld [vmem:[%s3 + $0x74] sm:$0xf]
      %v1564 = vld [vmem:[%s3 + $0x78] sm:$0xf]
      %v1565 = vld [vmem:[%s3 + $0x7c] sm:$0xf]
      %v1566 = vld [vmem:[%s3 + $0x80] sm:$0xf]
      %v1567 = vld [vmem:[%s3 + $0x84] sm:$0xf]
      %v1568 = vld [vmem:[%s3 + $0x88] sm:$0xf]
      %v1569 = vld [vmem:[%s3 + $0x8c] sm:$0xf]
      %v1570 = vld [vmem:[%s3 + $0x90] sm:$0xf]
      %v1571 = vld [vmem:[%s3 + $0x94] sm:$0xf]
      %v1572 = vld [vmem:[%s3 + $0x98] sm:$0xf]
      %v1573 = vld [vmem:[%s3 + $0x9c] sm:$0xf]
      %v1574 = vld [vmem:[%s3 + $0xa0] sm:$0xf]
      %v1575 = vld [vmem:[%s3 + $0xa4] sm:$0xf]
      %v1576 = vld [vmem:[%s3 + $0xa8] sm:$0xf]
      %v1577 = vld [vmem:[%s3 + $0xac] sm:$0xf]
      %v1578 = vld [vmem:[%s3 + $0xb0] sm:$0xf]
      %v1579 = vld [vmem:[%s3 + $0xb4] sm:$0xf]
      %v1580 = vld [vmem:[%s3 + $0xb8] sm:$0xf]
      %v1581 = vld [vmem:[%s3 + $0xbc] sm:$0xf]
      %v1646 = vunpack.c.l.b16 %v1470
      %v1647 = vunpack.c.h.b16 %v1470
      %v1648 = vunpack.c.l.b16 %v1471
      %v1649 = vunpack.c.l.b16 %v1472
      %v1650 = vunpack.c.h.b16 %v1472
      %v1651 = vunpack.c.l.b16 %v1473
      %v1652 = vunpack.c.l.b16 %v1474
      %v1653 = vunpack.c.h.b16 %v1474
      %v1654 = vunpack.c.l.b16 %v1475
      %v1655 = vunpack.c.l.b16 %v1476
      %v1656 = vunpack.c.h.b16 %v1476
      %v1657 = vunpack.c.l.b16 %v1477
      %v1658 = vunpack.c.l.b16 %v1478
      %v1659 = vunpack.c.h.b16 %v1478
      %v1660 = vunpack.c.l.b16 %v1479
      %v1661 = vunpack.c.l.b16 %v1480
      %v1662 = vunpack.c.h.b16 %v1480
      %v1663 = vunpack.c.l.b16 %v1481
      %v1664 = vunpack.c.l.b16 %v1482
      %v1665 = vunpack.c.h.b16 %v1482
      %v1666 = vunpack.c.l.b16 %v1483
      %v1667 = vunpack.c.l.b16 %v1484
      %v1668 = vunpack.c.h.b16 %v1484
      %v1669 = vunpack.c.l.b16 %v1485
      %v1670 = vunpack.c.l.b16 %v1486
      %v1671 = vunpack.c.h.b16 %v1486
      %v1672 = vunpack.c.l.b16 %v1487
      %v1673 = vunpack.c.l.b16 %v1488
      %v1674 = vunpack.c.h.b16 %v1488
      %v1675 = vunpack.c.l.b16 %v1489
      %v1676 = vunpack.c.l.b16 %v1490
      %v1677 = vunpack.c.h.b16 %v1490
      %v1678 = vunpack.c.l.b16 %v1491
      %v1679 = vunpack.c.l.b16 %v1492
      %v1680 = vunpack.c.h.b16 %v1492
      %v1681 = vunpack.c.l.b16 %v1493
      %v1682 = vunpack.c.l.b16 %v1494
      %v1683 = vunpack.c.h.b16 %v1494
      %v1684 = vunpack.c.l.b16 %v1495
      %v1685 = vunpack.c.l.b16 %v1496
      %v1686 = vunpack.c.h.b16 %v1496
      %v1687 = vunpack.c.l.b16 %v1497
      %v1688 = vunpack.c.l.b16 %v1498
      %v1689 = vunpack.c.h.b16 %v1498
      %v1690 = vunpack.c.l.b16 %v1499
      %v1691 = vunpack.c.l.b16 %v1500
      %v1692 = vunpack.c.h.b16 %v1500
      %v1693 = vunpack.c.l.b16 %v1501
      %v1694 = vunpack.c.l.b16 %v1502
      %v1695 = vunpack.c.h.b16 %v1502
      %v1696 = vunpack.c.l.b16 %v1503
      %v1697 = vunpack.c.l.b16 %v1504
      %v1698 = vunpack.c.h.b16 %v1504
      %v1699 = vunpack.c.l.b16 %v1505
      %v1700 = vunpack.c.l.b16 %v1506
      %v1701 = vunpack.c.h.b16 %v1506
      %v1702 = vunpack.c.l.b16 %v1507
      %v1703 = vunpack.c.l.b16 %v1508
      %v1704 = vunpack.c.h.b16 %v1508
      %v1705 = vunpack.c.l.b16 %v1509
      %v1706 = vunpack.c.l.b16 %v1510
      %v1707 = vunpack.c.h.b16 %v1510
      %v1708 = vunpack.c.l.b16 %v1511
      %v1709 = vunpack.c.l.b16 %v1512
      %v1710 = vunpack.c.h.b16 %v1512
      %v1711 = vunpack.c.l.b16 %v1513
      %v1712 = vunpack.c.l.b16 %v1514
      %v1713 = vunpack.c.h.b16 %v1514
      %v1714 = vunpack.c.l.b16 %v1515
      %v1715 = vunpack.c.l.b16 %v1516
      %v1716 = vunpack.c.h.b16 %v1516
      %v1717 = vunpack.c.l.b16 %v1517
      %v1718 = vunpack.c.l.b16 %v1518
      %v1719 = vunpack.c.h.b16 %v1518
      %v1720 = vunpack.c.l.b16 %v1519
      %v1721 = vunpack.c.l.b16 %v1520
      %v1722 = vunpack.c.h.b16 %v1520
      %v1723 = vunpack.c.l.b16 %v1521
      %v1724 = vunpack.c.l.b16 %v1522
      %v1725 = vunpack.c.h.b16 %v1522
      %v1726 = vunpack.c.l.b16 %v1523
      %v1727 = vunpack.c.l.b16 %v1524
      %v1728 = vunpack.c.h.b16 %v1524
      %v1729 = vunpack.c.l.b16 %v1525
      %v1730 = vunpack.c.l.b16 %v1526
      %v1731 = vunpack.c.h.b16 %v1526
      %v1732 = vunpack.c.l.b16 %v1527
      %v1733 = vunpack.c.l.b16 %v1528
      %v1734 = vunpack.c.h.b16 %v1528
      %v1735 = vunpack.c.l.b16 %v1529
      %v1736 = vunpack.c.l.b16 %v1530
      %v1737 = vunpack.c.h.b16 %v1530
      %v1738 = vunpack.c.l.b16 %v1531
      %v1739 = vunpack.c.l.b16 %v1532
      %v1740 = vunpack.c.h.b16 %v1532
      %v1741 = vunpack.c.l.b16 %v1533
      %v1742 = vpack.c.b16 %v1649, %v1646
      %v1743 = vpack.c.b16 %v1650, %v1647
      %v1744 = vpack.c.b16 %v1651, %v1648
      %v1745 = vpack.c.b16 %v1655, %v1652
      %v1746 = vpack.c.b16 %v1656, %v1653
      %v1747 = vpack.c.b16 %v1657, %v1654
      %v1748 = vpack.c.b16 %v1661, %v1658
      %v1749 = vpack.c.b16 %v1662, %v1659
      %v1750 = vpack.c.b16 %v1663, %v1660
      %v1751 = vpack.c.b16 %v1667, %v1664
      %v1752 = vpack.c.b16 %v1668, %v1665
      %v1753 = vpack.c.b16 %v1669, %v1666
      %v1754 = vpack.c.b16 %v1673, %v1670
      %v1755 = vpack.c.b16 %v1674, %v1671
      %v1756 = vpack.c.b16 %v1675, %v1672
      %v1757 = vpack.c.b16 %v1679, %v1676
      %v1758 = vpack.c.b16 %v1680, %v1677
      %v1759 = vpack.c.b16 %v1681, %v1678
      %v1760 = vpack.c.b16 %v1685, %v1682
      %v1761 = vpack.c.b16 %v1686, %v1683
      %v1762 = vpack.c.b16 %v1687, %v1684
      %v1763 = vpack.c.b16 %v1691, %v1688
      %v1764 = vpack.c.b16 %v1692, %v1689
      %v1765 = vpack.c.b16 %v1693, %v1690
      %v1766 = vpack.c.b16 %v1697, %v1694
      %v1767 = vpack.c.b16 %v1698, %v1695
      %v1768 = vpack.c.b16 %v1699, %v1696
      %v1769 = vpack.c.b16 %v1703, %v1700
      %v1770 = vpack.c.b16 %v1704, %v1701
      %v1771 = vpack.c.b16 %v1705, %v1702
      %v1772 = vpack.c.b16 %v1709, %v1706
      %v1773 = vpack.c.b16 %v1710, %v1707
      %v1774 = vpack.c.b16 %v1711, %v1708
      %v1775 = vpack.c.b16 %v1715, %v1712
      %v1776 = vpack.c.b16 %v1716, %v1713
      %v1777 = vpack.c.b16 %v1717, %v1714
      %v1778 = vpack.c.b16 %v1721, %v1718
      %v1779 = vpack.c.b16 %v1722, %v1719
      %v1780 = vpack.c.b16 %v1723, %v1720
      %v1781 = vpack.c.b16 %v1727, %v1724
      %v1782 = vpack.c.b16 %v1728, %v1725
      %v1783 = vpack.c.b16 %v1729, %v1726
      %v1784 = vpack.c.b16 %v1733, %v1730
      %v1785 = vpack.c.b16 %v1734, %v1731
      %v1786 = vpack.c.b16 %v1735, %v1732
      %v1787 = vpack.c.b16 %v1739, %v1736
      %v1788 = vpack.c.b16 %v1740, %v1737
      %v1789 = vpack.c.b16 %v1741, %v1738
      %v1886 = vunpack.c.l.b16 %v1534
      %v1887 = vunpack.c.l.b16 %v1535
      %v1888 = vunpack.c.l.b16 %v1536
      %v1889 = vunpack.c.l.b16 %v1537
      %v1890 = vunpack.c.l.b16 %v1538
      %v1891 = vunpack.c.l.b16 %v1539
      %v1892 = vunpack.c.l.b16 %v1540
      %v1893 = vunpack.c.l.b16 %v1541
      %v1894 = vunpack.c.l.b16 %v1542
      %v1895 = vunpack.c.l.b16 %v1543
      %v1896 = vunpack.c.l.b16 %v1544
      %v1897 = vunpack.c.l.b16 %v1545
      %v1898 = vunpack.c.l.b16 %v1546
      %v1899 = vunpack.c.l.b16 %v1547
      %v1900 = vunpack.c.l.b16 %v1548
      %v1901 = vunpack.c.l.b16 %v1549
      %v1902 = vunpack.c.l.b16 %v1550
      %v1903 = vunpack.c.l.b16 %v1551
      %v1904 = vunpack.c.l.b16 %v1552
      %v1905 = vunpack.c.l.b16 %v1553
      %v1906 = vunpack.c.l.b16 %v1554
      %v1907 = vunpack.c.l.b16 %v1555
      %v1908 = vunpack.c.l.b16 %v1556
      %v1909 = vunpack.c.l.b16 %v1557
      %v1910 = vunpack.c.l.b16 %v1558
      %v1911 = vunpack.c.l.b16 %v1559
      %v1912 = vunpack.c.l.b16 %v1560
      %v1913 = vunpack.c.l.b16 %v1561
      %v1914 = vunpack.c.l.b16 %v1562
      %v1915 = vunpack.c.l.b16 %v1563
      %v1916 = vunpack.c.l.b16 %v1564
      %v1917 = vunpack.c.l.b16 %v1565
      %v1918 = vunpack.c.l.b16 %v1566
      %v1919 = vunpack.c.l.b16 %v1567
      %v1920 = vunpack.c.l.b16 %v1568
      %v1921 = vunpack.c.l.b16 %v1569
      %v1922 = vunpack.c.l.b16 %v1570
      %v1923 = vunpack.c.l.b16 %v1571
      %v1924 = vunpack.c.l.b16 %v1572
      %v1925 = vunpack.c.l.b16 %v1573
      %v1926 = vunpack.c.l.b16 %v1574
      %v1927 = vunpack.c.l.b16 %v1575
      %v1928 = vunpack.c.l.b16 %v1576
      %v1929 = vunpack.c.l.b16 %v1577
      %v1930 = vunpack.c.l.b16 %v1578
      %v1931 = vunpack.c.l.b16 %v1579
      %v1932 = vunpack.c.l.b16 %v1580
      %v1933 = vunpack.c.l.b16 %v1581
      %v1934 = vpack.c.b16 %v1887, %v1886
      %v1935 = vpack.c.b16 %v1889, %v1888
      %v1936 = vpack.c.b16 %v1891, %v1890
      %v1937 = vpack.c.b16 %v1893, %v1892
      %v1938 = vpack.c.b16 %v1895, %v1894
      %v1939 = vpack.c.b16 %v1897, %v1896
      %v1940 = vpack.c.b16 %v1899, %v1898
      %v1941 = vpack.c.b16 %v1901, %v1900
      %v1942 = vpack.c.b16 %v1903, %v1902
      %v1943 = vpack.c.b16 %v1905, %v1904
      %v1944 = vpack.c.b16 %v1907, %v1906
      %v1945 = vpack.c.b16 %v1909, %v1908
      %v1946 = vpack.c.b16 %v1911, %v1910
      %v1947 = vpack.c.b16 %v1913, %v1912
      %v1948 = vpack.c.b16 %v1915, %v1914
      %v1949 = vpack.c.b16 %v1917, %v1916
      %v1950 = vpack.c.b16 %v1919, %v1918
      %v1951 = vpack.c.b16 %v1921, %v1920
      %v1952 = vpack.c.b16 %v1923, %v1922
      %v1953 = vpack.c.b16 %v1925, %v1924
      %v1954 = vpack.c.b16 %v1927, %v1926
      %v1955 = vpack.c.b16 %v1929, %v1928
      %v1956 = vpack.c.b16 %v1931, %v1930
      %v1957 = vpack.c.b16 %v1933, %v1932
      %1982 = vmatpush.bf16.msra.mxu0 %v1941
      %1983 = vmatpush.bf16.msra.mxu0 %v1940
      %1984 = vmatpush.bf16.msra.mxu0 %v1939
      %1985 = vmatpush.bf16.msra.mxu0 %v1938
      %1986 = vmatpush.bf16.msra.mxu0 %v1937
      %1987 = vmatpush.bf16.msra.mxu0 %v1936
      %1988 = vmatpush.bf16.msra.mxu0 %v1935
      %1989 = vmatpush.bf16.msra.mxu0 %v1934
      %1990 = vmatmul.bf16.gmra.mxu0 %v1742
      %v1991 = vpop.f32.mrf.mxu0
      %v1992 = vadd.f32 0.0, %v1991
      %v1993 = vpop.f32.mrf.mxu0
      %v1994 = vadd.f32 0.0, %v1993
      %1995 = vmatmul.bf16.gmra.mxu0 %v1745
      %v1996 = vpop.f32.mrf.mxu0
      %v1997 = vadd.f32 0.0, %v1996
      %v1998 = vpop.f32.mrf.mxu0
      %v1999 = vadd.f32 0.0, %v1998
      %2000 = vmatmul.bf16.gmra.mxu0 %v1748
      %v2001 = vpop.f32.mrf.mxu0
      %v2002 = vadd.f32 0.0, %v2001
      %v2003 = vpop.f32.mrf.mxu0
      %v2004 = vadd.f32 0.0, %v2003
      %2005 = vmatmul.bf16.gmra.mxu0 %v1751
      %v2006 = vpop.f32.mrf.mxu0
      %v2007 = vadd.f32 0.0, %v2006
      %v2008 = vpop.f32.mrf.mxu0
      %v2009 = vadd.f32 0.0, %v2008
      %2010 = vmatmul.bf16.gmra.mxu0 %v1754
      %v2011 = vpop.f32.mrf.mxu0
      %v2012 = vadd.f32 0.0, %v2011
      %v2013 = vpop.f32.mrf.mxu0
      %v2014 = vadd.f32 0.0, %v2013
      %2015 = vmatmul.bf16.gmra.mxu0 %v1757
      %v2016 = vpop.f32.mrf.mxu0
      %v2017 = vadd.f32 0.0, %v2016
      %v2018 = vpop.f32.mrf.mxu0
      %v2019 = vadd.f32 0.0, %v2018
      %2020 = vmatmul.bf16.gmra.mxu0 %v1760
      %v2021 = vpop.f32.mrf.mxu0
      %v2022 = vadd.f32 0.0, %v2021
      %v2023 = vpop.f32.mrf.mxu0
      %v2024 = vadd.f32 0.0, %v2023
      %2025 = vmatmul.bf16.gmra.mxu0 %v1763
      %v2026 = vpop.f32.mrf.mxu0
      %v2027 = vadd.f32 0.0, %v2026
      %v2028 = vpop.f32.mrf.mxu0
      %v2029 = vadd.f32 0.0, %v2028
      %2030 = vmatmul.bf16.gmra.mxu0 %v1766
      %v2031 = vpop.f32.mrf.mxu0
      %v2032 = vadd.f32 0.0, %v2031
      %v2033 = vpop.f32.mrf.mxu0
      %v2034 = vadd.f32 0.0, %v2033
      %2035 = vmatmul.bf16.gmra.mxu0 %v1769
      %v2036 = vpop.f32.mrf.mxu0
      %v2037 = vadd.f32 0.0, %v2036
      %v2038 = vpop.f32.mrf.mxu0
      %v2039 = vadd.f32 0.0, %v2038
      %2040 = vmatmul.bf16.gmra.mxu0 %v1772
      %v2041 = vpop.f32.mrf.mxu0
      %v2042 = vadd.f32 0.0, %v2041
      %v2043 = vpop.f32.mrf.mxu0
      %v2044 = vadd.f32 0.0, %v2043
      %2045 = vmatmul.bf16.gmra.mxu0 %v1775
      %v2046 = vpop.f32.mrf.mxu0
      %v2047 = vadd.f32 0.0, %v2046
      %v2048 = vpop.f32.mrf.mxu0
      %v2049 = vadd.f32 0.0, %v2048
      %2050 = vmatmul.bf16.gmra.mxu0 %v1778
      %v2051 = vpop.f32.mrf.mxu0
      %v2052 = vadd.f32 0.0, %v2051
      %v2053 = vpop.f32.mrf.mxu0
      %v2054 = vadd.f32 0.0, %v2053
      %2055 = vmatmul.bf16.gmra.mxu0 %v1781
      %v2056 = vpop.f32.mrf.mxu0
      %v2057 = vadd.f32 0.0, %v2056
      %v2058 = vpop.f32.mrf.mxu0
      %v2059 = vadd.f32 0.0, %v2058
      %2060 = vmatmul.bf16.gmra.mxu0 %v1784
      %v2061 = vpop.f32.mrf.mxu0
      %v2062 = vadd.f32 0.0, %v2061
      %v2063 = vpop.f32.mrf.mxu0
      %v2064 = vadd.f32 0.0, %v2063
      %2065 = vmatmul.bf16.gmra.mxu0 %v1787
      %v2066 = vpop.f32.mrf.mxu0
      %v2067 = vadd.f32 0.0, %v2066
      %v2068 = vpop.f32.mrf.mxu0
      %v2069 = vadd.f32 0.0, %v2068
      %2070 = vdwg.mxu0
      %2071 = vmatpush.bf16.msra.mxu0 %v1949
      %2072 = vmatpush.bf16.msra.mxu0 %v1948
      %2073 = vmatpush.bf16.msra.mxu0 %v1947
      %2074 = vmatpush.bf16.msra.mxu0 %v1946
      %2075 = vmatpush.bf16.msra.mxu0 %v1945
      %2076 = vmatpush.bf16.msra.mxu0 %v1944
      %2077 = vmatpush.bf16.msra.mxu0 %v1943
      %2078 = vmatpush.bf16.msra.mxu0 %v1942
      %2079 = vmatmul.bf16.gmra.mxu0 %v1743
      %v2080 = vpop.f32.mrf.mxu0
      %v2081 = vadd.f32 %v1992, %v2080
      %v2082 = vpop.f32.mrf.mxu0
      %v2083 = vadd.f32 %v1994, %v2082
      %2084 = vmatmul.bf16.gmra.mxu0 %v1746
      %v2085 = vpop.f32.mrf.mxu0
      %v2086 = vadd.f32 %v1997, %v2085
      %v2087 = vpop.f32.mrf.mxu0
      %v2088 = vadd.f32 %v1999, %v2087
      %2089 = vmatmul.bf16.gmra.mxu0 %v1749
      %v2090 = vpop.f32.mrf.mxu0
      %v2091 = vadd.f32 %v2002, %v2090
      %v2092 = vpop.f32.mrf.mxu0
      %v2093 = vadd.f32 %v2004, %v2092
      %2094 = vmatmul.bf16.gmra.mxu0 %v1752
      %v2095 = vpop.f32.mrf.mxu0
      %v2096 = vadd.f32 %v2007, %v2095
      %v2097 = vpop.f32.mrf.mxu0
      %v2098 = vadd.f32 %v2009, %v2097
      %2099 = vmatmul.bf16.gmra.mxu0 %v1755
      %v2100 = vpop.f32.mrf.mxu0
      %v2101 = vadd.f32 %v2012, %v2100
      %v2102 = vpop.f32.mrf.mxu0
      %v2103 = vadd.f32 %v2014, %v2102
      %2104 = vmatmul.bf16.gmra.mxu0 %v1758
      %v2105 = vpop.f32.mrf.mxu0
      %v2106 = vadd.f32 %v2017, %v2105
      %v2107 = vpop.f32.mrf.mxu0
      %v2108 = vadd.f32 %v2019, %v2107
      %2109 = vmatmul.bf16.gmra.mxu0 %v1761
      %v2110 = vpop.f32.mrf.mxu0
      %v2111 = vadd.f32 %v2022, %v2110
      %v2112 = vpop.f32.mrf.mxu0
      %v2113 = vadd.f32 %v2024, %v2112
      %2114 = vmatmul.bf16.gmra.mxu0 %v1764
      %v2115 = vpop.f32.mrf.mxu0
      %v2116 = vadd.f32 %v2027, %v2115
      %v2117 = vpop.f32.mrf.mxu0
      %v2118 = vadd.f32 %v2029, %v2117
      %2119 = vmatmul.bf16.gmra.mxu0 %v1767
      %v2120 = vpop.f32.mrf.mxu0
      %v2121 = vadd.f32 %v2032, %v2120
      %v2122 = vpop.f32.mrf.mxu0
      %v2123 = vadd.f32 %v2034, %v2122
      %2124 = vmatmul.bf16.gmra.mxu0 %v1770
      %v2125 = vpop.f32.mrf.mxu0
      %v2126 = vadd.f32 %v2037, %v2125
      %v2127 = vpop.f32.mrf.mxu0
      %v2128 = vadd.f32 %v2039, %v2127
      %2129 = vmatmul.bf16.gmra.mxu0 %v1773
      %v2130 = vpop.f32.mrf.mxu0
      %v2131 = vadd.f32 %v2042, %v2130
      %v2132 = vpop.f32.mrf.mxu0
      %v2133 = vadd.f32 %v2044, %v2132
      %2134 = vmatmul.bf16.gmra.mxu0 %v1776
      %v2135 = vpop.f32.mrf.mxu0
      %v2136 = vadd.f32 %v2047, %v2135
      %v2137 = vpop.f32.mrf.mxu0
      %v2138 = vadd.f32 %v2049, %v2137
      %2139 = vmatmul.bf16.gmra.mxu0 %v1779
      %v2140 = vpop.f32.mrf.mxu0
      %v2141 = vadd.f32 %v2052, %v2140
      %v2142 = vpop.f32.mrf.mxu0
      %v2143 = vadd.f32 %v2054, %v2142
      %2144 = vmatmul.bf16.gmra.mxu0 %v1782
      %v2145 = vpop.f32.mrf.mxu0
      %v2146 = vadd.f32 %v2057, %v2145
      %v2147 = vpop.f32.mrf.mxu0
      %v2148 = vadd.f32 %v2059, %v2147
      %2149 = vmatmul.bf16.gmra.mxu0 %v1785
      %v2150 = vpop.f32.mrf.mxu0
      %v2151 = vadd.f32 %v2062, %v2150
      %v2152 = vpop.f32.mrf.mxu0
      %v2153 = vadd.f32 %v2064, %v2152
      %2154 = vmatmul.bf16.gmra.mxu0 %v1788
      %v2155 = vpop.f32.mrf.mxu0
      %v2156 = vadd.f32 %v2067, %v2155
      %v2157 = vpop.f32.mrf.mxu0
      %v2158 = vadd.f32 %v2069, %v2157
      %2159 = vdwg.mxu0
      %2160 = vmatpush.bf16.msra.mxu0 %v1957
      %2161 = vmatpush.bf16.msra.mxu0 %v1956
      %2162 = vmatpush.bf16.msra.mxu0 %v1955
      %2163 = vmatpush.bf16.msra.mxu0 %v1954
      %2164 = vmatpush.bf16.msra.mxu0 %v1953
      %2165 = vmatpush.bf16.msra.mxu0 %v1952
      %2166 = vmatpush.bf16.msra.mxu0 %v1951
      %2167 = vmatpush.bf16.msra.mxu0 %v1950
      %2168 = vmatmul.bf16.gmra.mxu0 %v1744
      %v2169 = vpop.f32.mrf.mxu0
      %v2170 = vadd.f32 %v2081, %v2169
      %v2171 = vpop.f32.mrf.mxu0
      %v2172 = vadd.f32 %v2083, %v2171
      %2173 = vmatmul.bf16.gmra.mxu0 %v1747
      %v2174 = vpop.f32.mrf.mxu0
      %v2175 = vadd.f32 %v2086, %v2174
      %v2176 = vpop.f32.mrf.mxu0
      %v2177 = vadd.f32 %v2088, %v2176
      %2178 = vmatmul.bf16.gmra.mxu0 %v1750
      %v2179 = vpop.f32.mrf.mxu0
      %v2180 = vadd.f32 %v2091, %v2179
      %v2181 = vpop.f32.mrf.mxu0
      %v2182 = vadd.f32 %v2093, %v2181
      %2183 = vmatmul.bf16.gmra.mxu0 %v1753
      %v2184 = vpop.f32.mrf.mxu0
      %v2185 = vadd.f32 %v2096, %v2184
      %v2186 = vpop.f32.mrf.mxu0
      %v2187 = vadd.f32 %v2098, %v2186
      %2188 = vmatmul.bf16.gmra.mxu0 %v1756
      %v2189 = vpop.f32.mrf.mxu0
      %v2190 = vadd.f32 %v2101, %v2189
      %v2191 = vpop.f32.mrf.mxu0
      %v2192 = vadd.f32 %v2103, %v2191
      %2193 = vmatmul.bf16.gmra.mxu0 %v1759
      %v2194 = vpop.f32.mrf.mxu0
      %v2195 = vadd.f32 %v2106, %v2194
      %v2196 = vpop.f32.mrf.mxu0
      %v2197 = vadd.f32 %v2108, %v2196
      %2198 = vmatmul.bf16.gmra.mxu0 %v1762
      %v2199 = vpop.f32.mrf.mxu0
      %v2200 = vadd.f32 %v2111, %v2199
      %v2201 = vpop.f32.mrf.mxu0
      %v2202 = vadd.f32 %v2113, %v2201
      %2203 = vmatmul.bf16.gmra.mxu0 %v1765
      %v2204 = vpop.f32.mrf.mxu0
      %v2205 = vadd.f32 %v2116, %v2204
      %v2206 = vpop.f32.mrf.mxu0
      %v2207 = vadd.f32 %v2118, %v2206
      %2208 = vmatmul.bf16.gmra.mxu0 %v1768
      %v2209 = vpop.f32.mrf.mxu0
      %v2210 = vadd.f32 %v2121, %v2209
      %v2211 = vpop.f32.mrf.mxu0
      %v2212 = vadd.f32 %v2123, %v2211
      %2213 = vmatmul.bf16.gmra.mxu0 %v1771
      %v2214 = vpop.f32.mrf.mxu0
      %v2215 = vadd.f32 %v2126, %v2214
      %v2216 = vpop.f32.mrf.mxu0
      %v2217 = vadd.f32 %v2128, %v2216
      %2218 = vmatmul.bf16.gmra.mxu0 %v1774
      %v2219 = vpop.f32.mrf.mxu0
      %v2220 = vadd.f32 %v2131, %v2219
      %v2221 = vpop.f32.mrf.mxu0
      %v2222 = vadd.f32 %v2133, %v2221
      %2223 = vmatmul.bf16.gmra.mxu0 %v1777
      %v2224 = vpop.f32.mrf.mxu0
      %v2225 = vadd.f32 %v2136, %v2224
      %v2226 = vpop.f32.mrf.mxu0
      %v2227 = vadd.f32 %v2138, %v2226
      %2228 = vmatmul.bf16.gmra.mxu0 %v1780
      %v2229 = vpop.f32.mrf.mxu0
      %v2230 = vadd.f32 %v2141, %v2229
      %v2231 = vpop.f32.mrf.mxu0
      %v2232 = vadd.f32 %v2143, %v2231
      %2233 = vmatmul.bf16.gmra.mxu0 %v1783
      %v2234 = vpop.f32.mrf.mxu0
      %v2235 = vadd.f32 %v2146, %v2234
      %v2236 = vpop.f32.mrf.mxu0
      %v2237 = vadd.f32 %v2148, %v2236
      %2238 = vmatmul.bf16.gmra.mxu0 %v1786
      %v2239 = vpop.f32.mrf.mxu0
      %v2240 = vadd.f32 %v2151, %v2239
      %v2241 = vpop.f32.mrf.mxu0
      %v2242 = vadd.f32 %v2153, %v2241
      %2243 = vmatmul.bf16.gmra.mxu0 %v1789
      %v2244 = vpop.f32.mrf.mxu0
      %v2245 = vadd.f32 %v2156, %v2244
      %v2246 = vpop.f32.mrf.mxu0
      %v2247 = vadd.f32 %v2158, %v2246
      %2248 = vdwg.mxu0
      %2249 = vst [vmem:[#allocation3] sm:$0xff] %v2170
      %2250 = vst [vmem:[#allocation3 + $0x8] sm:$0xff] %v2172
      %2251 = vst [vmem:[#allocation3 + $0x10] sm:$0xff] %v2175
      %2252 = vst [vmem:[#allocation3 + $0x18] sm:$0xff] %v2177
      %2253 = vst [vmem:[#allocation3 + $0x20] sm:$0xff] %v2180
      %2254 = vst [vmem:[#allocation3 + $0x28] sm:$0xff] %v2182
      %2255 = vst [vmem:[#allocation3 + $0x30] sm:$0xff] %v2185
      %2256 = vst [vmem:[#allocation3 + $0x38] sm:$0xff] %v2187
      %2257 = vst [vmem:[#allocation3 + $0x40] sm:$0xff] %v2190
      %2258 = vst [vmem:[#allocation3 + $0x48] sm:$0xff] %v2192
      %2259 = vst [vmem:[#allocation3 + $0x50] sm:$0xff] %v2195
      %2260 = vst [vmem:[#allocation3 + $0x58] sm:$0xff] %v2197
      %2261 = vst [vmem:[#allocation3 + $0x60] sm:$0xff] %v2200
      %2262 = vst [vmem:[#allocation3 + $0x68] sm:$0xff] %v2202
      %2263 = vst [vmem:[#allocation3 + $0x70] sm:$0xff] %v2205
      %2264 = vst [vmem:[#allocation3 + $0x78] sm:$0xff] %v2207
      %2265 = vst [vmem:[#allocation3 + $0x80] sm:$0xff] %v2210
      %2266 = vst [vmem:[#allocation3 + $0x88] sm:$0xff] %v2212
      %2267 = vst [vmem:[#allocation3 + $0x90] sm:$0xff] %v2215
      %2268 = vst [vmem:[#allocation3 + $0x98] sm:$0xff] %v2217
      %2269 = vst [vmem:[#allocation3 + $0xa0] sm:$0xff] %v2220
      %2270 = vst [vmem:[#allocation3 + $0xa8] sm:$0xff] %v2222
      %2271 = vst [vmem:[#allocation3 + $0xb0] sm:$0xff] %v2225
      %2272 = vst [vmem:[#allocation3 + $0xb8] sm:$0xff] %v2227
      %2273 = vst [vmem:[#allocation3 + $0xc0] sm:$0xff] %v2230
      %2274 = vst [vmem:[#allocation3 + $0xc8] sm:$0xff] %v2232
      %2275 = vst [vmem:[#allocation3 + $0xd0] sm:$0xff] %v2235
      %2276 = vst [vmem:[#allocation3 + $0xd8] sm:$0xff] %v2237
      %2277 = vst [vmem:[#allocation3 + $0xe0] sm:$0xff] %v2240
      %2278 = vst [vmem:[#allocation3 + $0xe8] sm:$0xff] %v2242
      %2279 = vst [vmem:[#allocation3 + $0xf0] sm:$0xff] %v2245
      %2280 = vst [vmem:[#allocation3 + $0xf8] sm:$0xff] %v2247
      %v2281 = vld [vmem:[%s694] sm:$0xff]
      %v2282 = vld [vmem:[%s694 + $0x8] sm:$0xf]
      %v2283 = vld [vmem:[%s694 + $0xc] sm:$0xff]
      %v2284 = vld [vmem:[%s694 + $0x14] sm:$0xf]
      %v2285 = vld [vmem:[%s694 + $0x18] sm:$0xff]
      %v2286 = vld [vmem:[%s694 + $0x20] sm:$0xf]
      %v2287 = vld [vmem:[%s694 + $0x24] sm:$0xff]
      %v2288 = vld [vmem:[%s694 + $0x2c] sm:$0xf]
      %v2289 = vld [vmem:[%s694 + $0x30] sm:$0xff]
      %v2290 = vld [vmem:[%s694 + $0x38] sm:$0xf]
      %v2291 = vld [vmem:[%s694 + $0x3c] sm:$0xff]
      %v2292 = vld [vmem:[%s694 + $0x44] sm:$0xf]
      %v2293 = vld [vmem:[%s694 + $0x48] sm:$0xff]
      %v2294 = vld [vmem:[%s694 + $0x50] sm:$0xf]
      %v2295 = vld [vmem:[%s694 + $0x54] sm:$0xff]
      %v2296 = vld [vmem:[%s694 + $0x5c] sm:$0xf]
      %v2297 = vld [vmem:[%s694 + $0x60] sm:$0xff]
      %v2298 = vld [vmem:[%s694 + $0x68] sm:$0xf]
      %v2299 = vld [vmem:[%s694 + $0x6c] sm:$0xff]
      %v2300 = vld [vmem:[%s694 + $0x74] sm:$0xf]
      %v2301 = vld [vmem:[%s694 + $0x78] sm:$0xff]
      %v2302 = vld [vmem:[%s694 + $0x80] sm:$0xf]
      %v2303 = vld [vmem:[%s694 + $0x84] sm:$0xff]
      %v2304 = vld [vmem:[%s694 + $0x8c] sm:$0xf]
      %v2305 = vld [vmem:[%s694 + $0x90] sm:$0xff]
      %v2306 = vld [vmem:[%s694 + $0x98] sm:$0xf]
      %v2307 = vld [vmem:[%s694 + $0x9c] sm:$0xff]
      %v2308 = vld [vmem:[%s694 + $0xa4] sm:$0xf]
      %v2309 = vld [vmem:[%s694 + $0xa8] sm:$0xff]
      %v2310 = vld [vmem:[%s694 + $0xb0] sm:$0xf]
      %v2311 = vld [vmem:[%s694 + $0xb4] sm:$0xff]
      %v2312 = vld [vmem:[%s694 + $0xbc] sm:$0xf]
      %v2313 = vld [vmem:[%s694 + $0xc0] sm:$0xff]
      %v2314 = vld [vmem:[%s694 + $0xc8] sm:$0xf]
      %v2315 = vld [vmem:[%s694 + $0xcc] sm:$0xff]
      %v2316 = vld [vmem:[%s694 + $0xd4] sm:$0xf]
      %v2317 = vld [vmem:[%s694 + $0xd8] sm:$0xff]
      %v2318 = vld [vmem:[%s694 + $0xe0] sm:$0xf]
      %v2319 = vld [vmem:[%s694 + $0xe4] sm:$0xff]
      %v2320 = vld [vmem:[%s694 + $0xec] sm:$0xf]
      %v2321 = vld [vmem:[%s694 + $0xf0] sm:$0xff]
      %v2322 = vld [vmem:[%s694 + $0xf8] sm:$0xf]
      %v2323 = vld [vmem:[%s694 + $0xfc] sm:$0xff]
      %v2324 = vld [vmem:[%s694 + $0x104] sm:$0xf]
      %v2325 = vld [vmem:[%s694 + $0x108] sm:$0xff]
      %v2326 = vld [vmem:[%s694 + $0x110] sm:$0xf]
      %v2327 = vld [vmem:[%s694 + $0x114] sm:$0xff]
      %v2328 = vld [vmem:[%s694 + $0x11c] sm:$0xf]
      %v2329 = vld [vmem:[%s694 + $0x120] sm:$0xff]
      %v2330 = vld [vmem:[%s694 + $0x128] sm:$0xf]
      %v2331 = vld [vmem:[%s694 + $0x12c] sm:$0xff]
      %v2332 = vld [vmem:[%s694 + $0x134] sm:$0xf]
      %v2333 = vld [vmem:[%s694 + $0x138] sm:$0xff]
      %v2334 = vld [vmem:[%s694 + $0x140] sm:$0xf]
      %v2335 = vld [vmem:[%s694 + $0x144] sm:$0xff]
      %v2336 = vld [vmem:[%s694 + $0x14c] sm:$0xf]
      %v2337 = vld [vmem:[%s694 + $0x150] sm:$0xff]
      %v2338 = vld [vmem:[%s694 + $0x158] sm:$0xf]
      %v2339 = vld [vmem:[%s694 + $0x15c] sm:$0xff]
      %v2340 = vld [vmem:[%s694 + $0x164] sm:$0xf]
      %v2341 = vld [vmem:[%s694 + $0x168] sm:$0xff]
      %v2342 = vld [vmem:[%s694 + $0x170] sm:$0xf]
      %v2343 = vld [vmem:[%s694 + $0x174] sm:$0xff]
      %v2344 = vld [vmem:[%s694 + $0x17c] sm:$0xf]
      %s2345 = scalar_lea.vmem %s3, 192
      %v2346 = vld [vmem:[%s2345] sm:$0xf]
      %v2347 = vld [vmem:[%s2345 + $0x4] sm:$0xf]
      %v2348 = vld [vmem:[%s2345 + $0x8] sm:$0xf]
      %v2349 = vld [vmem:[%s2345 + $0xc] sm:$0xf]
      %v2350 = vld [vmem:[%s2345 + $0x10] sm:$0xf]
      %v2351 = vld [vmem:[%s2345 + $0x14] sm:$0xf]
      %v2352 = vld [vmem:[%s2345 + $0x18] sm:$0xf]
      %v2353 = vld [vmem:[%s2345 + $0x1c] sm:$0xf]
      %v2354 = vld [vmem:[%s2345 + $0x20] sm:$0xf]
      %v2355 = vld [vmem:[%s2345 + $0x24] sm:$0xf]
      %v2356 = vld [vmem:[%s2345 + $0x28] sm:$0xf]
      %v2357 = vld [vmem:[%s2345 + $0x2c] sm:$0xf]
      %v2358 = vld [vmem:[%s2345 + $0x30] sm:$0xf]
      %v2359 = vld [vmem:[%s2345 + $0x34] sm:$0xf]
      %v2360 = vld [vmem:[%s2345 + $0x38] sm:$0xf]
      %v2361 = vld [vmem:[%s2345 + $0x3c] sm:$0xf]
      %v2362 = vld [vmem:[%s2345 + $0x40] sm:$0xf]
      %v2363 = vld [vmem:[%s2345 + $0x44] sm:$0xf]
      %v2364 = vld [vmem:[%s2345 + $0x48] sm:$0xf]
      %v2365 = vld [vmem:[%s2345 + $0x4c] sm:$0xf]
      %v2366 = vld [vmem:[%s2345 + $0x50] sm:$0xf]
      %v2367 = vld [vmem:[%s2345 + $0x54] sm:$0xf]
      %v2368 = vld [vmem:[%s2345 + $0x58] sm:$0xf]
      %v2369 = vld [vmem:[%s2345 + $0x5c] sm:$0xf]
      %v2370 = vld [vmem:[%s2345 + $0x60] sm:$0xf]
      %v2371 = vld [vmem:[%s2345 + $0x64] sm:$0xf]
      %v2372 = vld [vmem:[%s2345 + $0x68] sm:$0xf]
      %v2373 = vld [vmem:[%s2345 + $0x6c] sm:$0xf]
      %v2374 = vld [vmem:[%s2345 + $0x70] sm:$0xf]
      %v2375 = vld [vmem:[%s2345 + $0x74] sm:$0xf]
      %v2376 = vld [vmem:[%s2345 + $0x78] sm:$0xf]
      %v2377 = vld [vmem:[%s2345 + $0x7c] sm:$0xf]
      %v2378 = vld [vmem:[%s2345 + $0x80] sm:$0xf]
      %v2379 = vld [vmem:[%s2345 + $0x84] sm:$0xf]
      %v2380 = vld [vmem:[%s2345 + $0x88] sm:$0xf]
      %v2381 = vld [vmem:[%s2345 + $0x8c] sm:$0xf]
      %v2382 = vld [vmem:[%s2345 + $0x90] sm:$0xf]
      %v2383 = vld [vmem:[%s2345 + $0x94] sm:$0xf]
      %v2384 = vld [vmem:[%s2345 + $0x98] sm:$0xf]
      %v2385 = vld [vmem:[%s2345 + $0x9c] sm:$0xf]
      %v2386 = vld [vmem:[%s2345 + $0xa0] sm:$0xf]
      %v2387 = vld [vmem:[%s2345 + $0xa4] sm:$0xf]
      %v2388 = vld [vmem:[%s2345 + $0xa8] sm:$0xf]
      %v2389 = vld [vmem:[%s2345 + $0xac] sm:$0xf]
      %v2390 = vld [vmem:[%s2345 + $0xb0] sm:$0xf]
      %v2391 = vld [vmem:[%s2345 + $0xb4] sm:$0xf]
      %v2392 = vld [vmem:[%s2345 + $0xb8] sm:$0xf]
      %v2393 = vld [vmem:[%s2345 + $0xbc] sm:$0xf]
      %v2458 = vunpack.c.l.b16 %v2281
      %v2459 = vunpack.c.h.b16 %v2281
      %v2460 = vunpack.c.l.b16 %v2282
      %v2461 = vunpack.c.l.b16 %v2283
      %v2462 = vunpack.c.h.b16 %v2283
      %v2463 = vunpack.c.l.b16 %v2284
      %v2464 = vunpack.c.l.b16 %v2285
      %v2465 = vunpack.c.h.b16 %v2285
      %v2466 = vunpack.c.l.b16 %v2286
      %v2467 = vunpack.c.l.b16 %v2287
      %v2468 = vunpack.c.h.b16 %v2287
      %v2469 = vunpack.c.l.b16 %v2288
      %v2470 = vunpack.c.l.b16 %v2289
      %v2471 = vunpack.c.h.b16 %v2289
      %v2472 = vunpack.c.l.b16 %v2290
      %v2473 = vunpack.c.l.b16 %v2291
      %v2474 = vunpack.c.h.b16 %v2291
      %v2475 = vunpack.c.l.b16 %v2292
      %v2476 = vunpack.c.l.b16 %v2293
      %v2477 = vunpack.c.h.b16 %v2293
      %v2478 = vunpack.c.l.b16 %v2294
      %v2479 = vunpack.c.l.b16 %v2295
      %v2480 = vunpack.c.h.b16 %v2295
      %v2481 = vunpack.c.l.b16 %v2296
      %v2482 = vunpack.c.l.b16 %v2297
      %v2483 = vunpack.c.h.b16 %v2297
      %v2484 = vunpack.c.l.b16 %v2298
      %v2485 = vunpack.c.l.b16 %v2299
      %v2486 = vunpack.c.h.b16 %v2299
      %v2487 = vunpack.c.l.b16 %v2300
      %v2488 = vunpack.c.l.b16 %v2301
      %v2489 = vunpack.c.h.b16 %v2301
      %v2490 = vunpack.c.l.b16 %v2302
      %v2491 = vunpack.c.l.b16 %v2303
      %v2492 = vunpack.c.h.b16 %v2303
      %v2493 = vunpack.c.l.b16 %v2304
      %v2494 = vunpack.c.l.b16 %v2305
      %v2495 = vunpack.c.h.b16 %v2305
      %v2496 = vunpack.c.l.b16 %v2306
      %v2497 = vunpack.c.l.b16 %v2307
      %v2498 = vunpack.c.h.b16 %v2307
      %v2499 = vunpack.c.l.b16 %v2308
      %v2500 = vunpack.c.l.b16 %v2309
      %v2501 = vunpack.c.h.b16 %v2309
      %v2502 = vunpack.c.l.b16 %v2310
      %v2503 = vunpack.c.l.b16 %v2311
      %v2504 = vunpack.c.h.b16 %v2311
      %v2505 = vunpack.c.l.b16 %v2312
      %v2506 = vunpack.c.l.b16 %v2313
      %v2507 = vunpack.c.h.b16 %v2313
      %v2508 = vunpack.c.l.b16 %v2314
      %v2509 = vunpack.c.l.b16 %v2315
      %v2510 = vunpack.c.h.b16 %v2315
      %v2511 = vunpack.c.l.b16 %v2316
      %v2512 = vunpack.c.l.b16 %v2317
      %v2513 = vunpack.c.h.b16 %v2317
      %v2514 = vunpack.c.l.b16 %v2318
      %v2515 = vunpack.c.l.b16 %v2319
      %v2516 = vunpack.c.h.b16 %v2319
      %v2517 = vunpack.c.l.b16 %v2320
      %v2518 = vunpack.c.l.b16 %v2321
      %v2519 = vunpack.c.h.b16 %v2321
      %v2520 = vunpack.c.l.b16 %v2322
      %v2521 = vunpack.c.l.b16 %v2323
      %v2522 = vunpack.c.h.b16 %v2323
      %v2523 = vunpack.c.l.b16 %v2324
      %v2524 = vunpack.c.l.b16 %v2325
      %v2525 = vunpack.c.h.b16 %v2325
      %v2526 = vunpack.c.l.b16 %v2326
      %v2527 = vunpack.c.l.b16 %v2327
      %v2528 = vunpack.c.h.b16 %v2327
      %v2529 = vunpack.c.l.b16 %v2328
      %v2530 = vunpack.c.l.b16 %v2329
      %v2531 = vunpack.c.h.b16 %v2329
      %v2532 = vunpack.c.l.b16 %v2330
      %v2533 = vunpack.c.l.b16 %v2331
      %v2534 = vunpack.c.h.b16 %v2331
      %v2535 = vunpack.c.l.b16 %v2332
      %v2536 = vunpack.c.l.b16 %v2333
      %v2537 = vunpack.c.h.b16 %v2333
      %v2538 = vunpack.c.l.b16 %v2334
      %v2539 = vunpack.c.l.b16 %v2335
      %v2540 = vunpack.c.h.b16 %v2335
      %v2541 = vunpack.c.l.b16 %v2336
      %v2542 = vunpack.c.l.b16 %v2337
      %v2543 = vunpack.c.h.b16 %v2337
      %v2544 = vunpack.c.l.b16 %v2338
      %v2545 = vunpack.c.l.b16 %v2339
      %v2546 = vunpack.c.h.b16 %v2339
      %v2547 = vunpack.c.l.b16 %v2340
      %v2548 = vunpack.c.l.b16 %v2341
      %v2549 = vunpack.c.h.b16 %v2341
      %v2550 = vunpack.c.l.b16 %v2342
      %v2551 = vunpack.c.l.b16 %v2343
      %v2552 = vunpack.c.h.b16 %v2343
      %v2553 = vunpack.c.l.b16 %v2344
      %v2554 = vpack.c.b16 %v2461, %v2458
      %v2555 = vpack.c.b16 %v2462, %v2459
      %v2556 = vpack.c.b16 %v2463, %v2460
      %v2557 = vpack.c.b16 %v2467, %v2464
      %v2558 = vpack.c.b16 %v2468, %v2465
      %v2559 = vpack.c.b16 %v2469, %v2466
      %v2560 = vpack.c.b16 %v2473, %v2470
      %v2561 = vpack.c.b16 %v2474, %v2471
      %v2562 = vpack.c.b16 %v2475, %v2472
      %v2563 = vpack.c.b16 %v2479, %v2476
      %v2564 = vpack.c.b16 %v2480, %v2477
      %v2565 = vpack.c.b16 %v2481, %v2478
      %v2566 = vpack.c.b16 %v2485, %v2482
      %v2567 = vpack.c.b16 %v2486, %v2483
      %v2568 = vpack.c.b16 %v2487, %v2484
      %v2569 = vpack.c.b16 %v2491, %v2488
      %v2570 = vpack.c.b16 %v2492, %v2489
      %v2571 = vpack.c.b16 %v2493, %v2490
      %v2572 = vpack.c.b16 %v2497, %v2494
      %v2573 = vpack.c.b16 %v2498, %v2495
      %v2574 = vpack.c.b16 %v2499, %v2496
      %v2575 = vpack.c.b16 %v2503, %v2500
      %v2576 = vpack.c.b16 %v2504, %v2501
      %v2577 = vpack.c.b16 %v2505, %v2502
      %v2578 = vpack.c.b16 %v2509, %v2506
      %v2579 = vpack.c.b16 %v2510, %v2507
      %v2580 = vpack.c.b16 %v2511, %v2508
      %v2581 = vpack.c.b16 %v2515, %v2512
      %v2582 = vpack.c.b16 %v2516, %v2513
      %v2583 = vpack.c.b16 %v2517, %v2514
      %v2584 = vpack.c.b16 %v2521, %v2518
      %v2585 = vpack.c.b16 %v2522, %v2519
      %v2586 = vpack.c.b16 %v2523, %v2520
      %v2587 = vpack.c.b16 %v2527, %v2524
      %v2588 = vpack.c.b16 %v2528, %v2525
      %v2589 = vpack.c.b16 %v2529, %v2526
      %v2590 = vpack.c.b16 %v2533, %v2530
      %v2591 = vpack.c.b16 %v2534, %v2531
      %v2592 = vpack.c.b16 %v2535, %v2532
      %v2593 = vpack.c.b16 %v2539, %v2536
      %v2594 = vpack.c.b16 %v2540, %v2537
      %v2595 = vpack.c.b16 %v2541, %v2538
      %v2596 = vpack.c.b16 %v2545, %v2542
      %v2597 = vpack.c.b16 %v2546, %v2543
      %v2598 = vpack.c.b16 %v2547, %v2544
      %v2599 = vpack.c.b16 %v2551, %v2548
      %v2600 = vpack.c.b16 %v2552, %v2549
      %v2601 = vpack.c.b16 %v2553, %v2550
      %v2698 = vunpack.c.l.b16 %v2346
      %v2699 = vunpack.c.l.b16 %v2347
      %v2700 = vunpack.c.l.b16 %v2348
      %v2701 = vunpack.c.l.b16 %v2349
      %v2702 = vunpack.c.l.b16 %v2350
      %v2703 = vunpack.c.l.b16 %v2351
      %v2704 = vunpack.c.l.b16 %v2352
      %v2705 = vunpack.c.l.b16 %v2353
      %v2706 = vunpack.c.l.b16 %v2354
      %v2707 = vunpack.c.l.b16 %v2355
      %v2708 = vunpack.c.l.b16 %v2356
      %v2709 = vunpack.c.l.b16 %v2357
      %v2710 = vunpack.c.l.b16 %v2358
      %v2711 = vunpack.c.l.b16 %v2359
      %v2712 = vunpack.c.l.b16 %v2360
      %v2713 = vunpack.c.l.b16 %v2361
      %v2714 = vunpack.c.l.b16 %v2362
      %v2715 = vunpack.c.l.b16 %v2363
      %v2716 = vunpack.c.l.b16 %v2364
      %v2717 = vunpack.c.l.b16 %v2365
      %v2718 = vunpack.c.l.b16 %v2366
      %v2719 = vunpack.c.l.b16 %v2367
      %v2720 = vunpack.c.l.b16 %v2368
      %v2721 = vunpack.c.l.b16 %v2369
      %v2722 = vunpack.c.l.b16 %v2370
      %v2723 = vunpack.c.l.b16 %v2371
      %v2724 = vunpack.c.l.b16 %v2372
      %v2725 = vunpack.c.l.b16 %v2373
      %v2726 = vunpack.c.l.b16 %v2374
      %v2727 = vunpack.c.l.b16 %v2375
      %v2728 = vunpack.c.l.b16 %v2376
      %v2729 = vunpack.c.l.b16 %v2377
      %v2730 = vunpack.c.l.b16 %v2378
      %v2731 = vunpack.c.l.b16 %v2379
      %v2732 = vunpack.c.l.b16 %v2380
      %v2733 = vunpack.c.l.b16 %v2381
      %v2734 = vunpack.c.l.b16 %v2382
      %v2735 = vunpack.c.l.b16 %v2383
      %v2736 = vunpack.c.l.b16 %v2384
      %v2737 = vunpack.c.l.b16 %v2385
      %v2738 = vunpack.c.l.b16 %v2386
      %v2739 = vunpack.c.l.b16 %v2387
      %v2740 = vunpack.c.l.b16 %v2388
      %v2741 = vunpack.c.l.b16 %v2389
      %v2742 = vunpack.c.l.b16 %v2390
      %v2743 = vunpack.c.l.b16 %v2391
      %v2744 = vunpack.c.l.b16 %v2392
      %v2745 = vunpack.c.l.b16 %v2393
      %v2746 = vpack.c.b16 %v2699, %v2698
      %v2747 = vpack.c.b16 %v2701, %v2700
      %v2748 = vpack.c.b16 %v2703, %v2702
      %v2749 = vpack.c.b16 %v2705, %v2704
      %v2750 = vpack.c.b16 %v2707, %v2706
      %v2751 = vpack.c.b16 %v2709, %v2708
      %v2752 = vpack.c.b16 %v2711, %v2710
      %v2753 = vpack.c.b16 %v2713, %v2712
      %v2754 = vpack.c.b16 %v2715, %v2714
      %v2755 = vpack.c.b16 %v2717, %v2716
      %v2756 = vpack.c.b16 %v2719, %v2718
      %v2757 = vpack.c.b16 %v2721, %v2720
      %v2758 = vpack.c.b16 %v2723, %v2722
      %v2759 = vpack.c.b16 %v2725, %v2724
      %v2760 = vpack.c.b16 %v2727, %v2726
      %v2761 = vpack.c.b16 %v2729, %v2728
      %v2762 = vpack.c.b16 %v2731, %v2730
      %v2763 = vpack.c.b16 %v2733, %v2732
      %v2764 = vpack.c.b16 %v2735, %v2734
      %v2765 = vpack.c.b16 %v2737, %v2736
      %v2766 = vpack.c.b16 %v2739, %v2738
      %v2767 = vpack.c.b16 %v2741, %v2740
      %v2768 = vpack.c.b16 %v2743, %v2742
      %v2769 = vpack.c.b16 %v2745, %v2744
      %2794 = vmatpush.bf16.msra.mxu0 %v2753
      %2795 = vmatpush.bf16.msra.mxu0 %v2752
      %2796 = vmatpush.bf16.msra.mxu0 %v2751
      %2797 = vmatpush.bf16.msra.mxu0 %v2750
      %2798 = vmatpush.bf16.msra.mxu0 %v2749
      %2799 = vmatpush.bf16.msra.mxu0 %v2748
      %2800 = vmatpush.bf16.msra.mxu0 %v2747
      %2801 = vmatpush.bf16.msra.mxu0 %v2746
      %2802 = vmatmul.bf16.gmra.mxu0 %v2554
      %v2803 = vpop.f32.mrf.mxu0
      %v2804 = vadd.f32 0.0, %v2803
      %v2805 = vpop.f32.mrf.mxu0
      %v2806 = vadd.f32 0.0, %v2805
      %2807 = vmatmul.bf16.gmra.mxu0 %v2557
      %v2808 = vpop.f32.mrf.mxu0
      %v2809 = vadd.f32 0.0, %v2808
      %v2810 = vpop.f32.mrf.mxu0
      %v2811 = vadd.f32 0.0, %v2810
      %2812 = vmatmul.bf16.gmra.mxu0 %v2560
      %v2813 = vpop.f32.mrf.mxu0
      %v2814 = vadd.f32 0.0, %v2813
      %v2815 = vpop.f32.mrf.mxu0
      %v2816 = vadd.f32 0.0, %v2815
      %2817 = vmatmul.bf16.gmra.mxu0 %v2563
      %v2818 = vpop.f32.mrf.mxu0
      %v2819 = vadd.f32 0.0, %v2818
      %v2820 = vpop.f32.mrf.mxu0
      %v2821 = vadd.f32 0.0, %v2820
      %2822 = vmatmul.bf16.gmra.mxu0 %v2566
      %v2823 = vpop.f32.mrf.mxu0
      %v2824 = vadd.f32 0.0, %v2823
      %v2825 = vpop.f32.mrf.mxu0
      %v2826 = vadd.f32 0.0, %v2825
      %2827 = vmatmul.bf16.gmra.mxu0 %v2569
      %v2828 = vpop.f32.mrf.mxu0
      %v2829 = vadd.f32 0.0, %v2828
      %v2830 = vpop.f32.mrf.mxu0
      %v2831 = vadd.f32 0.0, %v2830
      %2832 = vmatmul.bf16.gmra.mxu0 %v2572
      %v2833 = vpop.f32.mrf.mxu0
      %v2834 = vadd.f32 0.0, %v2833
      %v2835 = vpop.f32.mrf.mxu0
      %v2836 = vadd.f32 0.0, %v2835
      %2837 = vmatmul.bf16.gmra.mxu0 %v2575
      %v2838 = vpop.f32.mrf.mxu0
      %v2839 = vadd.f32 0.0, %v2838
      %v2840 = vpop.f32.mrf.mxu0
      %v2841 = vadd.f32 0.0, %v2840
      %2842 = vmatmul.bf16.gmra.mxu0 %v2578
      %v2843 = vpop.f32.mrf.mxu0
      %v2844 = vadd.f32 0.0, %v2843
      %v2845 = vpop.f32.mrf.mxu0
      %v2846 = vadd.f32 0.0, %v2845
      %2847 = vmatmul.bf16.gmra.mxu0 %v2581
      %v2848 = vpop.f32.mrf.mxu0
      %v2849 = vadd.f32 0.0, %v2848
      %v2850 = vpop.f32.mrf.mxu0
      %v2851 = vadd.f32 0.0, %v2850
      %2852 = vmatmul.bf16.gmra.mxu0 %v2584
      %v2853 = vpop.f32.mrf.mxu0
      %v2854 = vadd.f32 0.0, %v2853
      %v2855 = vpop.f32.mrf.mxu0
      %v2856 = vadd.f32 0.0, %v2855
      %2857 = vmatmul.bf16.gmra.mxu0 %v2587
      %v2858 = vpop.f32.mrf.mxu0
      %v2859 = vadd.f32 0.0, %v2858
      %v2860 = vpop.f32.mrf.mxu0
      %v2861 = vadd.f32 0.0, %v2860
      %2862 = vmatmul.bf16.gmra.mxu0 %v2590
      %v2863 = vpop.f32.mrf.mxu0
      %v2864 = vadd.f32 0.0, %v2863
      %v2865 = vpop.f32.mrf.mxu0
      %v2866 = vadd.f32 0.0, %v2865
      %2867 = vmatmul.bf16.gmra.mxu0 %v2593
      %v2868 = vpop.f32.mrf.mxu0
      %v2869 = vadd.f32 0.0, %v2868
      %v2870 = vpop.f32.mrf.mxu0
      %v2871 = vadd.f32 0.0, %v2870
      %2872 = vmatmul.bf16.gmra.mxu0 %v2596
      %v2873 = vpop.f32.mrf.mxu0
      %v2874 = vadd.f32 0.0, %v2873
      %v2875 = vpop.f32.mrf.mxu0
      %v2876 = vadd.f32 0.0, %v2875
      %2877 = vmatmul.bf16.gmra.mxu0 %v2599
      %v2878 = vpop.f32.mrf.mxu0
      %v2879 = vadd.f32 0.0, %v2878
      %v2880 = vpop.f32.mrf.mxu0
      %v2881 = vadd.f32 0.0, %v2880
      %2882 = vdwg.mxu0
      %2883 = vmatpush.bf16.msra.mxu0 %v2761
      %2884 = vmatpush.bf16.msra.mxu0 %v2760
      %2885 = vmatpush.bf16.msra.mxu0 %v2759
      %2886 = vmatpush.bf16.msra.mxu0 %v2758
      %2887 = vmatpush.bf16.msra.mxu0 %v2757
      %2888 = vmatpush.bf16.msra.mxu0 %v2756
      %2889 = vmatpush.bf16.msra.mxu0 %v2755
      %2890 = vmatpush.bf16.msra.mxu0 %v2754
      %2891 = vmatmul.bf16.gmra.mxu0 %v2555
      %v2892 = vpop.f32.mrf.mxu0
      %v2893 = vadd.f32 %v2804, %v2892
      %v2894 = vpop.f32.mrf.mxu0
      %v2895 = vadd.f32 %v2806, %v2894
      %2896 = vmatmul.bf16.gmra.mxu0 %v2558
      %v2897 = vpop.f32.mrf.mxu0
      %v2898 = vadd.f32 %v2809, %v2897
      %v2899 = vpop.f32.mrf.mxu0
      %v2900 = vadd.f32 %v2811, %v2899
      %2901 = vmatmul.bf16.gmra.mxu0 %v2561
      %v2902 = vpop.f32.mrf.mxu0
      %v2903 = vadd.f32 %v2814, %v2902
      %v2904 = vpop.f32.mrf.mxu0
      %v2905 = vadd.f32 %v2816, %v2904
      %2906 = vmatmul.bf16.gmra.mxu0 %v2564
      %v2907 = vpop.f32.mrf.mxu0
      %v2908 = vadd.f32 %v2819, %v2907
      %v2909 = vpop.f32.mrf.mxu0
      %v2910 = vadd.f32 %v2821, %v2909
      %2911 = vmatmul.bf16.gmra.mxu0 %v2567
      %v2912 = vpop.f32.mrf.mxu0
      %v2913 = vadd.f32 %v2824, %v2912
      %v2914 = vpop.f32.mrf.mxu0
      %v2915 = vadd.f32 %v2826, %v2914
      %2916 = vmatmul.bf16.gmra.mxu0 %v2570
      %v2917 = vpop.f32.mrf.mxu0
      %v2918 = vadd.f32 %v2829, %v2917
      %v2919 = vpop.f32.mrf.mxu0
      %v2920 = vadd.f32 %v2831, %v2919
      %2921 = vmatmul.bf16.gmra.mxu0 %v2573
      %v2922 = vpop.f32.mrf.mxu0
      %v2923 = vadd.f32 %v2834, %v2922
      %v2924 = vpop.f32.mrf.mxu0
      %v2925 = vadd.f32 %v2836, %v2924
      %2926 = vmatmul.bf16.gmra.mxu0 %v2576
      %v2927 = vpop.f32.mrf.mxu0
      %v2928 = vadd.f32 %v2839, %v2927
      %v2929 = vpop.f32.mrf.mxu0
      %v2930 = vadd.f32 %v2841, %v2929
      %2931 = vmatmul.bf16.gmra.mxu0 %v2579
      %v2932 = vpop.f32.mrf.mxu0
      %v2933 = vadd.f32 %v2844, %v2932
      %v2934 = vpop.f32.mrf.mxu0
      %v2935 = vadd.f32 %v2846, %v2934
      %2936 = vmatmul.bf16.gmra.mxu0 %v2582
      %v2937 = vpop.f32.mrf.mxu0
      %v2938 = vadd.f32 %v2849, %v2937
      %v2939 = vpop.f32.mrf.mxu0
      %v2940 = vadd.f32 %v2851, %v2939
      %2941 = vmatmul.bf16.gmra.mxu0 %v2585
      %v2942 = vpop.f32.mrf.mxu0
      %v2943 = vadd.f32 %v2854, %v2942
      %v2944 = vpop.f32.mrf.mxu0
      %v2945 = vadd.f32 %v2856, %v2944
      %2946 = vmatmul.bf16.gmra.mxu0 %v2588
      %v2947 = vpop.f32.mrf.mxu0
      %v2948 = vadd.f32 %v2859, %v2947
      %v2949 = vpop.f32.mrf.mxu0
      %v2950 = vadd.f32 %v2861, %v2949
      %2951 = vmatmul.bf16.gmra.mxu0 %v2591
      %v2952 = vpop.f32.mrf.mxu0
      %v2953 = vadd.f32 %v2864, %v2952
      %v2954 = vpop.f32.mrf.mxu0
      %v2955 = vadd.f32 %v2866, %v2954
      %2956 = vmatmul.bf16.gmra.mxu0 %v2594
      %v2957 = vpop.f32.mrf.mxu0
      %v2958 = vadd.f32 %v2869, %v2957
      %v2959 = vpop.f32.mrf.mxu0
      %v2960 = vadd.f32 %v2871, %v2959
      %2961 = vmatmul.bf16.gmra.mxu0 %v2597
      %v2962 = vpop.f32.mrf.mxu0
      %v2963 = vadd.f32 %v2874, %v2962
      %v2964 = vpop.f32.mrf.mxu0
      %v2965 = vadd.f32 %v2876, %v2964
      %2966 = vmatmul.bf16.gmra.mxu0 %v2600
      %v2967 = vpop.f32.mrf.mxu0
      %v2968 = vadd.f32 %v2879, %v2967
      %v2969 = vpop.f32.mrf.mxu0
      %v2970 = vadd.f32 %v2881, %v2969
      %2971 = vdwg.mxu0
      %2972 = vmatpush.bf16.msra.mxu0 %v2769
      %2973 = vmatpush.bf16.msra.mxu0 %v2768
      %2974 = vmatpush.bf16.msra.mxu0 %v2767
      %2975 = vmatpush.bf16.msra.mxu0 %v2766
      %2976 = vmatpush.bf16.msra.mxu0 %v2765
      %2977 = vmatpush.bf16.msra.mxu0 %v2764
      %2978 = vmatpush.bf16.msra.mxu0 %v2763
      %2979 = vmatpush.bf16.msra.mxu0 %v2762
      %2980 = vmatmul.bf16.gmra.mxu0 %v2556
      %v2981 = vpop.f32.mrf.mxu0
      %v2982 = vadd.f32 %v2893, %v2981
      %v2983 = vpop.f32.mrf.mxu0
      %v2984 = vadd.f32 %v2895, %v2983
      %2985 = vmatmul.bf16.gmra.mxu0 %v2559
      %v2986 = vpop.f32.mrf.mxu0
      %v2987 = vadd.f32 %v2898, %v2986
      %v2988 = vpop.f32.mrf.mxu0
      %v2989 = vadd.f32 %v2900, %v2988
      %2990 = vmatmul.bf16.gmra.mxu0 %v2562
      %v2991 = vpop.f32.mrf.mxu0
      %v2992 = vadd.f32 %v2903, %v2991
      %v2993 = vpop.f32.mrf.mxu0
      %v2994 = vadd.f32 %v2905, %v2993
      %2995 = vmatmul.bf16.gmra.mxu0 %v2565
      %v2996 = vpop.f32.mrf.mxu0
      %v2997 = vadd.f32 %v2908, %v2996
      %v2998 = vpop.f32.mrf.mxu0
      %v2999 = vadd.f32 %v2910, %v2998
      %3000 = vmatmul.bf16.gmra.mxu0 %v2568
      %v3001 = vpop.f32.mrf.mxu0
      %v3002 = vadd.f32 %v2913, %v3001
      %v3003 = vpop.f32.mrf.mxu0
      %v3004 = vadd.f32 %v2915, %v3003
      %3005 = vmatmul.bf16.gmra.mxu0 %v2571
      %v3006 = vpop.f32.mrf.mxu0
      %v3007 = vadd.f32 %v2918, %v3006
      %v3008 = vpop.f32.mrf.mxu0
      %v3009 = vadd.f32 %v2920, %v3008
      %3010 = vmatmul.bf16.gmra.mxu0 %v2574
      %v3011 = vpop.f32.mrf.mxu0
      %v3012 = vadd.f32 %v2923, %v3011
      %v3013 = vpop.f32.mrf.mxu0
      %v3014 = vadd.f32 %v2925, %v3013
      %3015 = vmatmul.bf16.gmra.mxu0 %v2577
      %v3016 = vpop.f32.mrf.mxu0
      %v3017 = vadd.f32 %v2928, %v3016
      %v3018 = vpop.f32.mrf.mxu0
      %v3019 = vadd.f32 %v2930, %v3018
      %3020 = vmatmul.bf16.gmra.mxu0 %v2580
      %v3021 = vpop.f32.mrf.mxu0
      %v3022 = vadd.f32 %v2933, %v3021
      %v3023 = vpop.f32.mrf.mxu0
      %v3024 = vadd.f32 %v2935, %v3023
      %3025 = vmatmul.bf16.gmra.mxu0 %v2583
      %v3026 = vpop.f32.mrf.mxu0
      %v3027 = vadd.f32 %v2938, %v3026
      %v3028 = vpop.f32.mrf.mxu0
      %v3029 = vadd.f32 %v2940, %v3028
      %3030 = vmatmul.bf16.gmra.mxu0 %v2586
      %v3031 = vpop.f32.mrf.mxu0
      %v3032 = vadd.f32 %v2943, %v3031
      %v3033 = vpop.f32.mrf.mxu0
      %v3034 = vadd.f32 %v2945, %v3033
      %3035 = vmatmul.bf16.gmra.mxu0 %v2589
      %v3036 = vpop.f32.mrf.mxu0
      %v3037 = vadd.f32 %v2948, %v3036
      %v3038 = vpop.f32.mrf.mxu0
      %v3039 = vadd.f32 %v2950, %v3038
      %3040 = vmatmul.bf16.gmra.mxu0 %v2592
      %v3041 = vpop.f32.mrf.mxu0
      %v3042 = vadd.f32 %v2953, %v3041
      %v3043 = vpop.f32.mrf.mxu0
      %v3044 = vadd.f32 %v2955, %v3043
      %3045 = vmatmul.bf16.gmra.mxu0 %v2595
      %v3046 = vpop.f32.mrf.mxu0
      %v3047 = vadd.f32 %v2958, %v3046
      %v3048 = vpop.f32.mrf.mxu0
      %v3049 = vadd.f32 %v2960, %v3048
      %3050 = vmatmul.bf16.gmra.mxu0 %v2598
      %v3051 = vpop.f32.mrf.mxu0
      %v3052 = vadd.f32 %v2963, %v3051
      %v3053 = vpop.f32.mrf.mxu0
      %v3054 = vadd.f32 %v2965, %v3053
      %3055 = vmatmul.bf16.gmra.mxu0 %v2601
      %v3056 = vpop.f32.mrf.mxu0
      %v3057 = vadd.f32 %v2968, %v3056
      %v3058 = vpop.f32.mrf.mxu0
      %v3059 = vadd.f32 %v2970, %v3058
      %3060 = vdwg.mxu0
      %v3061 = vld [vmem:[#allocation3] sm:$0xff]
      %v3062 = vld [vmem:[#allocation3 + $0x8] sm:$0xff]
      %v3063 = vld [vmem:[#allocation3 + $0x10] sm:$0xff]
      %v3064 = vld [vmem:[#allocation3 + $0x18] sm:$0xff]
      %v3065 = vld [vmem:[#allocation3 + $0x20] sm:$0xff]
      %v3066 = vld [vmem:[#allocation3 + $0x28] sm:$0xff]
      %v3067 = vld [vmem:[#allocation3 + $0x30] sm:$0xff]
      %v3068 = vld [vmem:[#allocation3 + $0x38] sm:$0xff]
      %v3069 = vld [vmem:[#allocation3 + $0x40] sm:$0xff]
      %v3070 = vld [vmem:[#allocation3 + $0x48] sm:$0xff]
      %v3071 = vld [vmem:[#allocation3 + $0x50] sm:$0xff]
      %v3072 = vld [vmem:[#allocation3 + $0x58] sm:$0xff]
      %v3073 = vld [vmem:[#allocation3 + $0x60] sm:$0xff]
      %v3074 = vld [vmem:[#allocation3 + $0x68] sm:$0xff]
      %v3075 = vld [vmem:[#allocation3 + $0x70] sm:$0xff]
      %v3076 = vld [vmem:[#allocation3 + $0x78] sm:$0xff]
      %v3077 = vld [vmem:[#allocation3 + $0x80] sm:$0xff]
      %v3078 = vld [vmem:[#allocation3 + $0x88] sm:$0xff]
      %v3079 = vld [vmem:[#allocation3 + $0x90] sm:$0xff]
      %v3080 = vld [vmem:[#allocation3 + $0x98] sm:$0xff]
      %v3081 = vld [vmem:[#allocation3 + $0xa0] sm:$0xff]
      %v3082 = vld [vmem:[#allocation3 + $0xa8] sm:$0xff]
      %v3083 = vld [vmem:[#allocation3 + $0xb0] sm:$0xff]
      %v3084 = vld [vmem:[#allocation3 + $0xb8] sm:$0xff]
      %v3085 = vld [vmem:[#allocation3 + $0xc0] sm:$0xff]
      %v3086 = vld [vmem:[#allocation3 + $0xc8] sm:$0xff]
      %v3087 = vld [vmem:[#allocation3 + $0xd0] sm:$0xff]
      %v3088 = vld [vmem:[#allocation3 + $0xd8] sm:$0xff]
      %v3089 = vld [vmem:[#allocation3 + $0xe0] sm:$0xff]
      %v3090 = vld [vmem:[#allocation3 + $0xe8] sm:$0xff]
      %v3091 = vld [vmem:[#allocation3 + $0xf0] sm:$0xff]
      %v3092 = vld [vmem:[#allocation3 + $0xf8] sm:$0xff]
      %v3093 = vadd.f32 %v3061, %v2982
      %v3094 = vadd.f32 %v3062, %v2984
      %v3095 = vadd.f32 %v3063, %v2987
      %v3096 = vadd.f32 %v3064, %v2989
      %v3097 = vadd.f32 %v3065, %v2992
      %v3098 = vadd.f32 %v3066, %v2994
      %v3099 = vadd.f32 %v3067, %v2997
      %v3100 = vadd.f32 %v3068, %v2999
      %v3101 = vadd.f32 %v3069, %v3002
      %v3102 = vadd.f32 %v3070, %v3004
      %v3103 = vadd.f32 %v3071, %v3007
      %v3104 = vadd.f32 %v3072, %v3009
      %v3105 = vadd.f32 %v3073, %v3012
      %v3106 = vadd.f32 %v3074, %v3014
      %v3107 = vadd.f32 %v3075, %v3017
      %v3108 = vadd.f32 %v3076, %v3019
      %v3109 = vadd.f32 %v3077, %v3022
      %v3110 = vadd.f32 %v3078, %v3024
      %v3111 = vadd.f32 %v3079, %v3027
      %v3112 = vadd.f32 %v3080, %v3029
      %v3113 = vadd.f32 %v3081, %v3032
      %v3114 = vadd.f32 %v3082, %v3034
      %v3115 = vadd.f32 %v3083, %v3037
      %v3116 = vadd.f32 %v3084, %v3039
      %v3117 = vadd.f32 %v3085, %v3042
      %v3118 = vadd.f32 %v3086, %v3044
      %v3119 = vadd.f32 %v3087, %v3047
      %v3120 = vadd.f32 %v3088, %v3049
      %v3121 = vadd.f32 %v3089, %v3052
      %v3122 = vadd.f32 %v3090, %v3054
      %v3123 = vadd.f32 %v3091, %v3057
      %v3124 = vadd.f32 %v3092, %v3059
      %3125 = vst [vmem:[#allocation3] sm:$0xff] %v3093
      %3126 = vst [vmem:[#allocation3 + $0x8] sm:$0xff] %v3094
      %3127 = vst [vmem:[#allocation3 + $0x10] sm:$0xff] %v3095
      %3128 = vst [vmem:[#allocation3 + $0x18] sm:$0xff] %v3096
      %3129 = vst [vmem:[#allocation3 + $0x20] sm:$0xff] %v3097
      %3130 = vst [vmem:[#allocation3 + $0x28] sm:$0xff] %v3098
      %3131 = vst [vmem:[#allocation3 + $0x30] sm:$0xff] %v3099
      %3132 = vst [vmem:[#allocation3 + $0x38] sm:$0xff] %v3100
      %3133 = vst [vmem:[#allocation3 + $0x40] sm:$0xff] %v3101
      %3134 = vst [vmem:[#allocation3 + $0x48] sm:$0xff] %v3102
      %3135 = vst [vmem:[#allocation3 + $0x50] sm:$0xff] %v3103
      %3136 = vst [vmem:[#allocation3 + $0x58] sm:$0xff] %v3104
      %3137 = vst [vmem:[#allocation3 + $0x60] sm:$0xff] %v3105
      %3138 = vst [vmem:[#allocation3 + $0x68] sm:$0xff] %v3106
      %3139 = vst [vmem:[#allocation3 + $0x70] sm:$0xff] %v3107
      %3140 = vst [vmem:[#allocation3 + $0x78] sm:$0xff] %v3108
      %3141 = vst [vmem:[#allocation3 + $0x80] sm:$0xff] %v3109
      %3142 = vst [vmem:[#allocation3 + $0x88] sm:$0xff] %v3110
      %3143 = vst [vmem:[#allocation3 + $0x90] sm:$0xff] %v3111
      %3144 = vst [vmem:[#allocation3 + $0x98] sm:$0xff] %v3112
      %3145 = vst [vmem:[#allocation3 + $0xa0] sm:$0xff] %v3113
      %3146 = vst [vmem:[#allocation3 + $0xa8] sm:$0xff] %v3114
      %3147 = vst [vmem:[#allocation3 + $0xb0] sm:$0xff] %v3115
      %3148 = vst [vmem:[#allocation3 + $0xb8] sm:$0xff] %v3116
      %3149 = vst [vmem:[#allocation3 + $0xc0] sm:$0xff] %v3117
      %3150 = vst [vmem:[#allocation3 + $0xc8] sm:$0xff] %v3118
      %3151 = vst [vmem:[#allocation3 + $0xd0] sm:$0xff] %v3119
      %3152 = vst [vmem:[#allocation3 + $0xd8] sm:$0xff] %v3120
      %3153 = vst [vmem:[#allocation3 + $0xe0] sm:$0xff] %v3121
      %3154 = vst [vmem:[#allocation3 + $0xe8] sm:$0xff] %v3122
      %3155 = vst [vmem:[#allocation3 + $0xf0] sm:$0xff] %v3123
      %3156 = vst [vmem:[#allocation3 + $0xf8] sm:$0xff] %v3124
      %s3157 = scalar_lea.vmem [#allocation2], 48
      %v3158 = vld [vmem:[%s3157] sm:$0xff]
      %v3159 = vld [vmem:[%s3157 + $0x8] sm:$0xf]
      %v3160 = vld [vmem:[%s3157 + $0xc] sm:$0xff]
      %v3161 = vld [vmem:[%s3157 + $0x14] sm:$0xf]
      %v3162 = vld [vmem:[%s3157 + $0x18] sm:$0xff]
      %v3163 = vld [vmem:[%s3157 + $0x20] sm:$0xf]
      %v3164 = vld [vmem:[%s3157 + $0x24] sm:$0xff]
      %v3165 = vld [vmem:[%s3157 + $0x2c] sm:$0xf]
      %v3166 = vld [vmem:[%s3157 + $0x30] sm:$0xff]
      %v3167 = vld [vmem:[%s3157 + $0x38] sm:$0xf]
      %v3168 = vld [vmem:[%s3157 + $0x3c] sm:$0xff]
      %v3169 = vld [vmem:[%s3157 + $0x44] sm:$0xf]
      %v3170 = vld [vmem:[%s3157 + $0x48] sm:$0xff]
      %v3171 = vld [vmem:[%s3157 + $0x50] sm:$0xf]
      %v3172 = vld [vmem:[%s3157 + $0x54] sm:$0xff]
      %v3173 = vld [vmem:[%s3157 + $0x5c] sm:$0xf]
      %v3174 = vld [vmem:[%s3157 + $0x60] sm:$0xff]
      %v3175 = vld [vmem:[%s3157 + $0x68] sm:$0xf]
      %v3176 = vld [vmem:[%s3157 + $0x6c] sm:$0xff]
      %v3177 = vld [vmem:[%s3157 + $0x74] sm:$0xf]
      %v3178 = vld [vmem:[%s3157 + $0x78] sm:$0xff]
      %v3179 = vld [vmem:[%s3157 + $0x80] sm:$0xf]
      %v3180 = vld [vmem:[%s3157 + $0x84] sm:$0xff]
      %v3181 = vld [vmem:[%s3157 + $0x8c] sm:$0xf]
      %v3182 = vld [vmem:[%s3157 + $0x90] sm:$0xff]
      %v3183 = vld [vmem:[%s3157 + $0x98] sm:$0xf]
      %v3184 = vld [vmem:[%s3157 + $0x9c] sm:$0xff]
      %v3185 = vld [vmem:[%s3157 + $0xa4] sm:$0xf]
      %v3186 = vld [vmem:[%s3157 + $0xa8] sm:$0xff]
      %v3187 = vld [vmem:[%s3157 + $0xb0] sm:$0xf]
      %v3188 = vld [vmem:[%s3157 + $0xb4] sm:$0xff]
      %v3189 = vld [vmem:[%s3157 + $0xbc] sm:$0xf]
      %v3190 = vld [vmem:[%s3157 + $0xc0] sm:$0xff]
      %v3191 = vld [vmem:[%s3157 + $0xc8] sm:$0xf]
      %v3192 = vld [vmem:[%s3157 + $0xcc] sm:$0xff]
      %v3193 = vld [vmem:[%s3157 + $0xd4] sm:$0xf]
      %v3194 = vld [vmem:[%s3157 + $0xd8] sm:$0xff]
      %v3195 = vld [vmem:[%s3157 + $0xe0] sm:$0xf]
      %v3196 = vld [vmem:[%s3157 + $0xe4] sm:$0xff]
      %v3197 = vld [vmem:[%s3157 + $0xec] sm:$0xf]
      %v3198 = vld [vmem:[%s3157 + $0xf0] sm:$0xff]
      %v3199 = vld [vmem:[%s3157 + $0xf8] sm:$0xf]
      %v3200 = vld [vmem:[%s3157 + $0xfc] sm:$0xff]
      %v3201 = vld [vmem:[%s3157 + $0x104] sm:$0xf]
      %v3202 = vld [vmem:[%s3157 + $0x108] sm:$0xff]
      %v3203 = vld [vmem:[%s3157 + $0x110] sm:$0xf]
      %v3204 = vld [vmem:[%s3157 + $0x114] sm:$0xff]
      %v3205 = vld [vmem:[%s3157 + $0x11c] sm:$0xf]
      %v3206 = vld [vmem:[%s3157 + $0x120] sm:$0xff]
      %v3207 = vld [vmem:[%s3157 + $0x128] sm:$0xf]
      %v3208 = vld [vmem:[%s3157 + $0x12c] sm:$0xff]
      %v3209 = vld [vmem:[%s3157 + $0x134] sm:$0xf]
      %v3210 = vld [vmem:[%s3157 + $0x138] sm:$0xff]
      %v3211 = vld [vmem:[%s3157 + $0x140] sm:$0xf]
      %v3212 = vld [vmem:[%s3157 + $0x144] sm:$0xff]
      %v3213 = vld [vmem:[%s3157 + $0x14c] sm:$0xf]
      %v3214 = vld [vmem:[%s3157 + $0x150] sm:$0xff]
      %v3215 = vld [vmem:[%s3157 + $0x158] sm:$0xf]
      %v3216 = vld [vmem:[%s3157 + $0x15c] sm:$0xff]
      %v3217 = vld [vmem:[%s3157 + $0x164] sm:$0xf]
      %v3218 = vld [vmem:[%s3157 + $0x168] sm:$0xff]
      %v3219 = vld [vmem:[%s3157 + $0x170] sm:$0xf]
      %v3220 = vld [vmem:[%s3157 + $0x174] sm:$0xff]
      %v3221 = vld [vmem:[%s3157 + $0x17c] sm:$0xf]
      %s3222 = scalar_lea.vmem %s3, 384
      %v3223 = vld [vmem:[%s3222] sm:$0xf]
      %v3224 = vld [vmem:[%s3222 + $0x4] sm:$0xf]
      %v3225 = vld [vmem:[%s3222 + $0x8] sm:$0xf]
      %v3226 = vld [vmem:[%s3222 + $0xc] sm:$0xf]
      %v3227 = vld [vmem:[%s3222 + $0x10] sm:$0xf]
      %v3228 = vld [vmem:[%s3222 + $0x14] sm:$0xf]
      %v3229 = vld [vmem:[%s3222 + $0x18] sm:$0xf]
      %v3230 = vld [vmem:[%s3222 + $0x1c] sm:$0xf]
      %v3231 = vld [vmem:[%s3222 + $0x20] sm:$0xf]
      %v3232 = vld [vmem:[%s3222 + $0x24] sm:$0xf]
      %v3233 = vld [vmem:[%s3222 + $0x28] sm:$0xf]
      %v3234 = vld [vmem:[%s3222 + $0x2c] sm:$0xf]
      %v3235 = vld [vmem:[%s3222 + $0x30] sm:$0xf]
      %v3236 = vld [vmem:[%s3222 + $0x34] sm:$0xf]
      %v3237 = vld [vmem:[%s3222 + $0x38] sm:$0xf]
      %v3238 = vld [vmem:[%s3222 + $0x3c] sm:$0xf]
      %v3239 = vld [vmem:[%s3222 + $0x40] sm:$0xf]
      %v3240 = vld [vmem:[%s3222 + $0x44] sm:$0xf]
      %v3241 = vld [vmem:[%s3222 + $0x48] sm:$0xf]
      %v3242 = vld [vmem:[%s3222 + $0x4c] sm:$0xf]
      %v3243 = vld [vmem:[%s3222 + $0x50] sm:$0xf]
      %v3244 = vld [vmem:[%s3222 + $0x54] sm:$0xf]
      %v3245 = vld [vmem:[%s3222 + $0x58] sm:$0xf]
      %v3246 = vld [vmem:[%s3222 + $0x5c] sm:$0xf]
      %v3247 = vld [vmem:[%s3222 + $0x60] sm:$0xf]
      %v3248 = vld [vmem:[%s3222 + $0x64] sm:$0xf]
      %v3249 = vld [vmem:[%s3222 + $0x68] sm:$0xf]
      %v3250 = vld [vmem:[%s3222 + $0x6c] sm:$0xf]
      %v3251 = vld [vmem:[%s3222 + $0x70] sm:$0xf]
      %v3252 = vld [vmem:[%s3222 + $0x74] sm:$0xf]
      %v3253 = vld [vmem:[%s3222 + $0x78] sm:$0xf]
      %v3254 = vld [vmem:[%s3222 + $0x7c] sm:$0xf]
      %v3255 = vld [vmem:[%s3222 + $0x80] sm:$0xf]
      %v3256 = vld [vmem:[%s3222 + $0x84] sm:$0xf]
      %v3257 = vld [vmem:[%s3222 + $0x88] sm:$0xf]
      %v3258 = vld [vmem:[%s3222 + $0x8c] sm:$0xf]
      %v3259 = vld [vmem:[%s3222 + $0x90] sm:$0xf]
      %v3260 = vld [vmem:[%s3222 + $0x94] sm:$0xf]
      %v3261 = vld [vmem:[%s3222 + $0x98] sm:$0xf]
      %v3262 = vld [vmem:[%s3222 + $0x9c] sm:$0xf]
      %v3263 = vld [vmem:[%s3222 + $0xa0] sm:$0xf]
      %v3264 = vld [vmem:[%s3222 + $0xa4] sm:$0xf]
      %v3265 = vld [vmem:[%s3222 + $0xa8] sm:$0xf]
      %v3266 = vld [vmem:[%s3222 + $0xac] sm:$0xf]
      %v3267 = vld [vmem:[%s3222 + $0xb0] sm:$0xf]
      %v3268 = vld [vmem:[%s3222 + $0xb4] sm:$0xf]
      %v3269 = vld [vmem:[%s3222 + $0xb8] sm:$0xf]
      %v3270 = vld [vmem:[%s3222 + $0xbc] sm:$0xf]
      %v3335 = vunpack.c.l.b16 %v3158
      %v3336 = vunpack.c.h.b16 %v3158
      %v3337 = vunpack.c.l.b16 %v3159
      %v3338 = vunpack.c.l.b16 %v3160
      %v3339 = vunpack.c.h.b16 %v3160
      %v3340 = vunpack.c.l.b16 %v3161
      %v3341 = vunpack.c.l.b16 %v3162
      %v3342 = vunpack.c.h.b16 %v3162
      %v3343 = vunpack.c.l.b16 %v3163
      %v3344 = vunpack.c.l.b16 %v3164
      %v3345 = vunpack.c.h.b16 %v3164
      %v3346 = vunpack.c.l.b16 %v3165
      %v3347 = vunpack.c.l.b16 %v3166
      %v3348 = vunpack.c.h.b16 %v3166
      %v3349 = vunpack.c.l.b16 %v3167
      %v3350 = vunpack.c.l.b16 %v3168
      %v3351 = vunpack.c.h.b16 %v3168
      %v3352 = vunpack.c.l.b16 %v3169
      %v3353 = vunpack.c.l.b16 %v3170
      %v3354 = vunpack.c.h.b16 %v3170
      %v3355 = vunpack.c.l.b16 %v3171
      %v3356 = vunpack.c.l.b16 %v3172
      %v3357 = vunpack.c.h.b16 %v3172
      %v3358 = vunpack.c.l.b16 %v3173
      %v3359 = vunpack.c.l.b16 %v3174
      %v3360 = vunpack.c.h.b16 %v3174
      %v3361 = vunpack.c.l.b16 %v3175
      %v3362 = vunpack.c.l.b16 %v3176
      %v3363 = vunpack.c.h.b16 %v3176
      %v3364 = vunpack.c.l.b16 %v3177
      %v3365 = vunpack.c.l.b16 %v3178
      %v3366 = vunpack.c.h.b16 %v3178
      %v3367 = vunpack.c.l.b16 %v3179
      %v3368 = vunpack.c.l.b16 %v3180
      %v3369 = vunpack.c.h.b16 %v3180
      %v3370 = vunpack.c.l.b16 %v3181
      %v3371 = vunpack.c.l.b16 %v3182
      %v3372 = vunpack.c.h.b16 %v3182
      %v3373 = vunpack.c.l.b16 %v3183
      %v3374 = vunpack.c.l.b16 %v3184
      %v3375 = vunpack.c.h.b16 %v3184
      %v3376 = vunpack.c.l.b16 %v3185
      %v3377 = vunpack.c.l.b16 %v3186
      %v3378 = vunpack.c.h.b16 %v3186
      %v3379 = vunpack.c.l.b16 %v3187
      %v3380 = vunpack.c.l.b16 %v3188
      %v3381 = vunpack.c.h.b16 %v3188
      %v3382 = vunpack.c.l.b16 %v3189
      %v3383 = vunpack.c.l.b16 %v3190
      %v3384 = vunpack.c.h.b16 %v3190
      %v3385 = vunpack.c.l.b16 %v3191
      %v3386 = vunpack.c.l.b16 %v3192
      %v3387 = vunpack.c.h.b16 %v3192
      %v3388 = vunpack.c.l.b16 %v3193
      %v3389 = vunpack.c.l.b16 %v3194
      %v3390 = vunpack.c.h.b16 %v3194
      %v3391 = vunpack.c.l.b16 %v3195
      %v3392 = vunpack.c.l.b16 %v3196
      %v3393 = vunpack.c.h.b16 %v3196
      %v3394 = vunpack.c.l.b16 %v3197
      %v3395 = vunpack.c.l.b16 %v3198
      %v3396 = vunpack.c.h.b16 %v3198
      %v3397 = vunpack.c.l.b16 %v3199
      %v3398 = vunpack.c.l.b16 %v3200
      %v3399 = vunpack.c.h.b16 %v3200
      %v3400 = vunpack.c.l.b16 %v3201
      %v3401 = vunpack.c.l.b16 %v3202
      %v3402 = vunpack.c.h.b16 %v3202
      %v3403 = vunpack.c.l.b16 %v3203
      %v3404 = vunpack.c.l.b16 %v3204
      %v3405 = vunpack.c.h.b16 %v3204
      %v3406 = vunpack.c.l.b16 %v3205
      %v3407 = vunpack.c.l.b16 %v3206
      %v3408 = vunpack.c.h.b16 %v3206
      %v3409 = vunpack.c.l.b16 %v3207
      %v3410 = vunpack.c.l.b16 %v3208
      %v3411 = vunpack.c.h.b16 %v3208
      %v3412 = vunpack.c.l.b16 %v3209
      %v3413 = vunpack.c.l.b16 %v3210
      %v3414 = vunpack.c.h.b16 %v3210
      %v3415 = vunpack.c.l.b16 %v3211
      %v3416 = vunpack.c.l.b16 %v3212
      %v3417 = vunpack.c.h.b16 %v3212
      %v3418 = vunpack.c.l.b16 %v3213
      %v3419 = vunpack.c.l.b16 %v3214
      %v3420 = vunpack.c.h.b16 %v3214
      %v3421 = vunpack.c.l.b16 %v3215
      %v3422 = vunpack.c.l.b16 %v3216
      %v3423 = vunpack.c.h.b16 %v3216
      %v3424 = vunpack.c.l.b16 %v3217
      %v3425 = vunpack.c.l.b16 %v3218
      %v3426 = vunpack.c.h.b16 %v3218
      %v3427 = vunpack.c.l.b16 %v3219
      %v3428 = vunpack.c.l.b16 %v3220
      %v3429 = vunpack.c.h.b16 %v3220
      %v3430 = vunpack.c.l.b16 %v3221
      %v3431 = vpack.c.b16 %v3338, %v3335
      %v3432 = vpack.c.b16 %v3339, %v3336
      %v3433 = vpack.c.b16 %v3340, %v3337
      %v3434 = vpack.c.b16 %v3344, %v3341
      %v3435 = vpack.c.b16 %v3345, %v3342
      %v3436 = vpack.c.b16 %v3346, %v3343
      %v3437 = vpack.c.b16 %v3350, %v3347
      %v3438 = vpack.c.b16 %v3351, %v3348
      %v3439 = vpack.c.b16 %v3352, %v3349
      %v3440 = vpack.c.b16 %v3356, %v3353
      %v3441 = vpack.c.b16 %v3357, %v3354
      %v3442 = vpack.c.b16 %v3358, %v3355
      %v3443 = vpack.c.b16 %v3362, %v3359
      %v3444 = vpack.c.b16 %v3363, %v3360
      %v3445 = vpack.c.b16 %v3364, %v3361
      %v3446 = vpack.c.b16 %v3368, %v3365
      %v3447 = vpack.c.b16 %v3369, %v3366
      %v3448 = vpack.c.b16 %v3370, %v3367
      %v3449 = vpack.c.b16 %v3374, %v3371
      %v3450 = vpack.c.b16 %v3375, %v3372
      %v3451 = vpack.c.b16 %v3376, %v3373
      %v3452 = vpack.c.b16 %v3380, %v3377
      %v3453 = vpack.c.b16 %v3381, %v3378
      %v3454 = vpack.c.b16 %v3382, %v3379
      %v3455 = vpack.c.b16 %v3386, %v3383
      %v3456 = vpack.c.b16 %v3387, %v3384
      %v3457 = vpack.c.b16 %v3388, %v3385
      %v3458 = vpack.c.b16 %v3392, %v3389
      %v3459 = vpack.c.b16 %v3393, %v3390
      %v3460 = vpack.c.b16 %v3394, %v3391
      %v3461 = vpack.c.b16 %v3398, %v3395
      %v3462 = vpack.c.b16 %v3399, %v3396
      %v3463 = vpack.c.b16 %v3400, %v3397
      %v3464 = vpack.c.b16 %v3404, %v3401
      %v3465 = vpack.c.b16 %v3405, %v3402
      %v3466 = vpack.c.b16 %v3406, %v3403
      %v3467 = vpack.c.b16 %v3410, %v3407
      %v3468 = vpack.c.b16 %v3411, %v3408
      %v3469 = vpack.c.b16 %v3412, %v3409
      %v3470 = vpack.c.b16 %v3416, %v3413
      %v3471 = vpack.c.b16 %v3417, %v3414
      %v3472 = vpack.c.b16 %v3418, %v3415
      %v3473 = vpack.c.b16 %v3422, %v3419
      %v3474 = vpack.c.b16 %v3423, %v3420
      %v3475 = vpack.c.b16 %v3424, %v3421
      %v3476 = vpack.c.b16 %v3428, %v3425
      %v3477 = vpack.c.b16 %v3429, %v3426
      %v3478 = vpack.c.b16 %v3430, %v3427
      %v3575 = vunpack.c.l.b16 %v3223
      %v3576 = vunpack.c.l.b16 %v3224
      %v3577 = vunpack.c.l.b16 %v3225
      %v3578 = vunpack.c.l.b16 %v3226
      %v3579 = vunpack.c.l.b16 %v3227
      %v3580 = vunpack.c.l.b16 %v3228
      %v3581 = vunpack.c.l.b16 %v3229
      %v3582 = vunpack.c.l.b16 %v3230
      %v3583 = vunpack.c.l.b16 %v3231
      %v3584 = vunpack.c.l.b16 %v3232
      %v3585 = vunpack.c.l.b16 %v3233
      %v3586 = vunpack.c.l.b16 %v3234
      %v3587 = vunpack.c.l.b16 %v3235
      %v3588 = vunpack.c.l.b16 %v3236
      %v3589 = vunpack.c.l.b16 %v3237
      %v3590 = vunpack.c.l.b16 %v3238
      %v3591 = vunpack.c.l.b16 %v3239
      %v3592 = vunpack.c.l.b16 %v3240
      %v3593 = vunpack.c.l.b16 %v3241
      %v3594 = vunpack.c.l.b16 %v3242
      %v3595 = vunpack.c.l.b16 %v3243
      %v3596 = vunpack.c.l.b16 %v3244
      %v3597 = vunpack.c.l.b16 %v3245
      %v3598 = vunpack.c.l.b16 %v3246
      %v3599 = vunpack.c.l.b16 %v3247
      %v3600 = vunpack.c.l.b16 %v3248
      %v3601 = vunpack.c.l.b16 %v3249
      %v3602 = vunpack.c.l.b16 %v3250
      %v3603 = vunpack.c.l.b16 %v3251
      %v3604 = vunpack.c.l.b16 %v3252
      %v3605 = vunpack.c.l.b16 %v3253
      %v3606 = vunpack.c.l.b16 %v3254
      %v3607 = vunpack.c.l.b16 %v3255
      %v3608 = vunpack.c.l.b16 %v3256
      %v3609 = vunpack.c.l.b16 %v3257
      %v3610 = vunpack.c.l.b16 %v3258
      %v3611 = vunpack.c.l.b16 %v3259
      %v3612 = vunpack.c.l.b16 %v3260
      %v3613 = vunpack.c.l.b16 %v3261
      %v3614 = vunpack.c.l.b16 %v3262
      %v3615 = vunpack.c.l.b16 %v3263
      %v3616 = vunpack.c.l.b16 %v3264
      %v3617 = vunpack.c.l.b16 %v3265
      %v3618 = vunpack.c.l.b16 %v3266
      %v3619 = vunpack.c.l.b16 %v3267
      %v3620 = vunpack.c.l.b16 %v3268
      %v3621 = vunpack.c.l.b16 %v3269
      %v3622 = vunpack.c.l.b16 %v3270
      %v3623 = vpack.c.b16 %v3576, %v3575
      %v3624 = vpack.c.b16 %v3578, %v3577
      %v3625 = vpack.c.b16 %v3580, %v3579
      %v3626 = vpack.c.b16 %v3582, %v3581
      %v3627 = vpack.c.b16 %v3584, %v3583
      %v3628 = vpack.c.b16 %v3586, %v3585
      %v3629 = vpack.c.b16 %v3588, %v3587
      %v3630 = vpack.c.b16 %v3590, %v3589
      %v3631 = vpack.c.b16 %v3592, %v3591
      %v3632 = vpack.c.b16 %v3594, %v3593
      %v3633 = vpack.c.b16 %v3596, %v3595
      %v3634 = vpack.c.b16 %v3598, %v3597
      %v3635 = vpack.c.b16 %v3600, %v3599
      %v3636 = vpack.c.b16 %v3602, %v3601
      %v3637 = vpack.c.b16 %v3604, %v3603
      %v3638 = vpack.c.b16 %v3606, %v3605
      %v3639 = vpack.c.b16 %v3608, %v3607
      %v3640 = vpack.c.b16 %v3610, %v3609
      %v3641 = vpack.c.b16 %v3612, %v3611
      %v3642 = vpack.c.b16 %v3614, %v3613
      %v3643 = vpack.c.b16 %v3616, %v3615
      %v3644 = vpack.c.b16 %v3618, %v3617
      %v3645 = vpack.c.b16 %v3620, %v3619
      %v3646 = vpack.c.b16 %v3622, %v3621
      %3671 = vmatpush.bf16.msra.mxu0 %v3630
      %3672 = vmatpush.bf16.msra.mxu0 %v3629
      %3673 = vmatpush.bf16.msra.mxu0 %v3628
      %3674 = vmatpush.bf16.msra.mxu0 %v3627
      %3675 = vmatpush.bf16.msra.mxu0 %v3626
      %3676 = vmatpush.bf16.msra.mxu0 %v3625
      %3677 = vmatpush.bf16.msra.mxu0 %v3624
      %3678 = vmatpush.bf16.msra.mxu0 %v3623
      %3679 = vmatmul.bf16.gmra.mxu0 %v3431
      %v3680 = vpop.f32.mrf.mxu0
      %v3681 = vadd.f32 0.0, %v3680
      %v3682 = vpop.f32.mrf.mxu0
      %v3683 = vadd.f32 0.0, %v3682
      %3684 = vmatmul.bf16.gmra.mxu0 %v3434
      %v3685 = vpop.f32.mrf.mxu0
      %v3686 = vadd.f32 0.0, %v3685
      %v3687 = vpop.f32.mrf.mxu0
      %v3688 = vadd.f32 0.0, %v3687
      %3689 = vmatmul.bf16.gmra.mxu0 %v3437
      %v3690 = vpop.f32.mrf.mxu0
      %v3691 = vadd.f32 0.0, %v3690
      %v3692 = vpop.f32.mrf.mxu0
      %v3693 = vadd.f32 0.0, %v3692
      %3694 = vmatmul.bf16.gmra.mxu0 %v3440
      %v3695 = vpop.f32.mrf.mxu0
      %v3696 = vadd.f32 0.0, %v3695
      %v3697 = vpop.f32.mrf.mxu0
      %v3698 = vadd.f32 0.0, %v3697
      %3699 = vmatmul.bf16.gmra.mxu0 %v3443
      %v3700 = vpop.f32.mrf.mxu0
      %v3701 = vadd.f32 0.0, %v3700
      %v3702 = vpop.f32.mrf.mxu0
      %v3703 = vadd.f32 0.0, %v3702
      %3704 = vmatmul.bf16.gmra.mxu0 %v3446
      %v3705 = vpop.f32.mrf.mxu0
      %v3706 = vadd.f32 0.0, %v3705
      %v3707 = vpop.f32.mrf.mxu0
      %v3708 = vadd.f32 0.0, %v3707
      %3709 = vmatmul.bf16.gmra.mxu0 %v3449
      %v3710 = vpop.f32.mrf.mxu0
      %v3711 = vadd.f32 0.0, %v3710
      %v3712 = vpop.f32.mrf.mxu0
      %v3713 = vadd.f32 0.0, %v3712
      %3714 = vmatmul.bf16.gmra.mxu0 %v3452
      %v3715 = vpop.f32.mrf.mxu0
      %v3716 = vadd.f32 0.0, %v3715
      %v3717 = vpop.f32.mrf.mxu0
      %v3718 = vadd.f32 0.0, %v3717
      %3719 = vmatmul.bf16.gmra.mxu0 %v3455
      %v3720 = vpop.f32.mrf.mxu0
      %v3721 = vadd.f32 0.0, %v3720
      %v3722 = vpop.f32.mrf.mxu0
      %v3723 = vadd.f32 0.0, %v3722
      %3724 = vmatmul.bf16.gmra.mxu0 %v3458
      %v3725 = vpop.f32.mrf.mxu0
      %v3726 = vadd.f32 0.0, %v3725
      %v3727 = vpop.f32.mrf.mxu0
      %v3728 = vadd.f32 0.0, %v3727
      %3729 = vmatmul.bf16.gmra.mxu0 %v3461
      %v3730 = vpop.f32.mrf.mxu0
      %v3731 = vadd.f32 0.0, %v3730
      %v3732 = vpop.f32.mrf.mxu0
      %v3733 = vadd.f32 0.0, %v3732
      %3734 = vmatmul.bf16.gmra.mxu0 %v3464
      %v3735 = vpop.f32.mrf.mxu0
      %v3736 = vadd.f32 0.0, %v3735
      %v3737 = vpop.f32.mrf.mxu0
      %v3738 = vadd.f32 0.0, %v3737
      %3739 = vmatmul.bf16.gmra.mxu0 %v3467
      %v3740 = vpop.f32.mrf.mxu0
      %v3741 = vadd.f32 0.0, %v3740
      %v3742 = vpop.f32.mrf.mxu0
      %v3743 = vadd.f32 0.0, %v3742
      %3744 = vmatmul.bf16.gmra.mxu0 %v3470
      %v3745 = vpop.f32.mrf.mxu0
      %v3746 = vadd.f32 0.0, %v3745
      %v3747 = vpop.f32.mrf.mxu0
      %v3748 = vadd.f32 0.0, %v3747
      %3749 = vmatmul.bf16.gmra.mxu0 %v3473
      %v3750 = vpop.f32.mrf.mxu0
      %v3751 = vadd.f32 0.0, %v3750
      %v3752 = vpop.f32.mrf.mxu0
      %v3753 = vadd.f32 0.0, %v3752
      %3754 = vmatmul.bf16.gmra.mxu0 %v3476
      %v3755 = vpop.f32.mrf.mxu0
      %v3756 = vadd.f32 0.0, %v3755
      %v3757 = vpop.f32.mrf.mxu0
      %v3758 = vadd.f32 0.0, %v3757
      %3759 = vdwg.mxu0
      %3760 = vmatpush.bf16.msra.mxu0 %v3638
      %3761 = vmatpush.bf16.msra.mxu0 %v3637
      %3762 = vmatpush.bf16.msra.mxu0 %v3636
      %3763 = vmatpush.bf16.msra.mxu0 %v3635
      %3764 = vmatpush.bf16.msra.mxu0 %v3634
      %3765 = vmatpush.bf16.msra.mxu0 %v3633
      %3766 = vmatpush.bf16.msra.mxu0 %v3632
      %3767 = vmatpush.bf16.msra.mxu0 %v3631
      %3768 = vmatmul.bf16.gmra.mxu0 %v3432
      %v3769 = vpop.f32.mrf.mxu0
      %v3770 = vadd.f32 %v3681, %v3769
      %v3771 = vpop.f32.mrf.mxu0
      %v3772 = vadd.f32 %v3683, %v3771
      %3773 = vmatmul.bf16.gmra.mxu0 %v3435
      %v3774 = vpop.f32.mrf.mxu0
      %v3775 = vadd.f32 %v3686, %v3774
      %v3776 = vpop.f32.mrf.mxu0
      %v3777 = vadd.f32 %v3688, %v3776
      %3778 = vmatmul.bf16.gmra.mxu0 %v3438
      %v3779 = vpop.f32.mrf.mxu0
      %v3780 = vadd.f32 %v3691, %v3779
      %v3781 = vpop.f32.mrf.mxu0
      %v3782 = vadd.f32 %v3693, %v3781
      %3783 = vmatmul.bf16.gmra.mxu0 %v3441
      %v3784 = vpop.f32.mrf.mxu0
      %v3785 = vadd.f32 %v3696, %v3784
      %v3786 = vpop.f32.mrf.mxu0
      %v3787 = vadd.f32 %v3698, %v3786
      %3788 = vmatmul.bf16.gmra.mxu0 %v3444
      %v3789 = vpop.f32.mrf.mxu0
      %v3790 = vadd.f32 %v3701, %v3789
      %v3791 = vpop.f32.mrf.mxu0
      %v3792 = vadd.f32 %v3703, %v3791
      %3793 = vmatmul.bf16.gmra.mxu0 %v3447
      %v3794 = vpop.f32.mrf.mxu0
      %v3795 = vadd.f32 %v3706, %v3794
      %v3796 = vpop.f32.mrf.mxu0
      %v3797 = vadd.f32 %v3708, %v3796
      %3798 = vmatmul.bf16.gmra.mxu0 %v3450
      %v3799 = vpop.f32.mrf.mxu0
      %v3800 = vadd.f32 %v3711, %v3799
      %v3801 = vpop.f32.mrf.mxu0
      %v3802 = vadd.f32 %v3713, %v3801
      %3803 = vmatmul.bf16.gmra.mxu0 %v3453
      %v3804 = vpop.f32.mrf.mxu0
      %v3805 = vadd.f32 %v3716, %v3804
      %v3806 = vpop.f32.mrf.mxu0
      %v3807 = vadd.f32 %v3718, %v3806
      %3808 = vmatmul.bf16.gmra.mxu0 %v3456
      %v3809 = vpop.f32.mrf.mxu0
      %v3810 = vadd.f32 %v3721, %v3809
      %v3811 = vpop.f32.mrf.mxu0
      %v3812 = vadd.f32 %v3723, %v3811
      %3813 = vmatmul.bf16.gmra.mxu0 %v3459
      %v3814 = vpop.f32.mrf.mxu0
      %v3815 = vadd.f32 %v3726, %v3814
      %v3816 = vpop.f32.mrf.mxu0
      %v3817 = vadd.f32 %v3728, %v3816
      %3818 = vmatmul.bf16.gmra.mxu0 %v3462
      %v3819 = vpop.f32.mrf.mxu0
      %v3820 = vadd.f32 %v3731, %v3819
      %v3821 = vpop.f32.mrf.mxu0
      %v3822 = vadd.f32 %v3733, %v3821
      %3823 = vmatmul.bf16.gmra.mxu0 %v3465
      %v3824 = vpop.f32.mrf.mxu0
      %v3825 = vadd.f32 %v3736, %v3824
      %v3826 = vpop.f32.mrf.mxu0
      %v3827 = vadd.f32 %v3738, %v3826
      %3828 = vmatmul.bf16.gmra.mxu0 %v3468
      %v3829 = vpop.f32.mrf.mxu0
      %v3830 = vadd.f32 %v3741, %v3829
      %v3831 = vpop.f32.mrf.mxu0
      %v3832 = vadd.f32 %v3743, %v3831
      %3833 = vmatmul.bf16.gmra.mxu0 %v3471
      %v3834 = vpop.f32.mrf.mxu0
      %v3835 = vadd.f32 %v3746, %v3834
      %v3836 = vpop.f32.mrf.mxu0
      %v3837 = vadd.f32 %v3748, %v3836
      %3838 = vmatmul.bf16.gmra.mxu0 %v3474
      %v3839 = vpop.f32.mrf.mxu0
      %v3840 = vadd.f32 %v3751, %v3839
      %v3841 = vpop.f32.mrf.mxu0
      %v3842 = vadd.f32 %v3753, %v3841
      %3843 = vmatmul.bf16.gmra.mxu0 %v3477
      %v3844 = vpop.f32.mrf.mxu0
      %v3845 = vadd.f32 %v3756, %v3844
      %v3846 = vpop.f32.mrf.mxu0
      %v3847 = vadd.f32 %v3758, %v3846
      %3848 = vdwg.mxu0
      %3849 = vmatpush.bf16.msra.mxu0 %v3646
      %3850 = vmatpush.bf16.msra.mxu0 %v3645
      %3851 = vmatpush.bf16.msra.mxu0 %v3644
      %3852 = vmatpush.bf16.msra.mxu0 %v3643
      %3853 = vmatpush.bf16.msra.mxu0 %v3642
      %3854 = vmatpush.bf16.msra.mxu0 %v3641
      %3855 = vmatpush.bf16.msra.mxu0 %v3640
      %3856 = vmatpush.bf16.msra.mxu0 %v3639
      %3857 = vmatmul.bf16.gmra.mxu0 %v3433
      %v3858 = vpop.f32.mrf.mxu0
      %v3859 = vadd.f32 %v3770, %v3858
      %v3860 = vpop.f32.mrf.mxu0
      %v3861 = vadd.f32 %v3772, %v3860
      %3862 = vmatmul.bf16.gmra.mxu0 %v3436
      %v3863 = vpop.f32.mrf.mxu0
      %v3864 = vadd.f32 %v3775, %v3863
      %v3865 = vpop.f32.mrf.mxu0
      %v3866 = vadd.f32 %v3777, %v3865
      %3867 = vmatmul.bf16.gmra.mxu0 %v3439
      %v3868 = vpop.f32.mrf.mxu0
      %v3869 = vadd.f32 %v3780, %v3868
      %v3870 = vpop.f32.mrf.mxu0
      %v3871 = vadd.f32 %v3782, %v3870
      %3872 = vmatmul.bf16.gmra.mxu0 %v3442
      %v3873 = vpop.f32.mrf.mxu0
      %v3874 = vadd.f32 %v3785, %v3873
      %v3875 = vpop.f32.mrf.mxu0
      %v3876 = vadd.f32 %v3787, %v3875
      %3877 = vmatmul.bf16.gmra.mxu0 %v3445
      %v3878 = vpop.f32.mrf.mxu0
      %v3879 = vadd.f32 %v3790, %v3878
      %v3880 = vpop.f32.mrf.mxu0
      %v3881 = vadd.f32 %v3792, %v3880
      %3882 = vmatmul.bf16.gmra.mxu0 %v3448
      %v3883 = vpop.f32.mrf.mxu0
      %v3884 = vadd.f32 %v3795, %v3883
      %v3885 = vpop.f32.mrf.mxu0
      %v3886 = vadd.f32 %v3797, %v3885
      %3887 = vmatmul.bf16.gmra.mxu0 %v3451
      %v3888 = vpop.f32.mrf.mxu0
      %v3889 = vadd.f32 %v3800, %v3888
      %v3890 = vpop.f32.mrf.mxu0
      %v3891 = vadd.f32 %v3802, %v3890
      %3892 = vmatmul.bf16.gmra.mxu0 %v3454
      %v3893 = vpop.f32.mrf.mxu0
      %v3894 = vadd.f32 %v3805, %v3893
      %v3895 = vpop.f32.mrf.mxu0
      %v3896 = vadd.f32 %v3807, %v3895
      %3897 = vmatmul.bf16.gmra.mxu0 %v3457
      %v3898 = vpop.f32.mrf.mxu0
      %v3899 = vadd.f32 %v3810, %v3898
      %v3900 = vpop.f32.mrf.mxu0
      %v3901 = vadd.f32 %v3812, %v3900
      %3902 = vmatmul.bf16.gmra.mxu0 %v3460
      %v3903 = vpop.f32.mrf.mxu0
      %v3904 = vadd.f32 %v3815, %v3903
      %v3905 = vpop.f32.mrf.mxu0
      %v3906 = vadd.f32 %v3817, %v3905
      %3907 = vmatmul.bf16.gmra.mxu0 %v3463
      %v3908 = vpop.f32.mrf.mxu0
      %v3909 = vadd.f32 %v3820, %v3908
      %v3910 = vpop.f32.mrf.mxu0
      %v3911 = vadd.f32 %v3822, %v3910
      %3912 = vmatmul.bf16.gmra.mxu0 %v3466
      %v3913 = vpop.f32.mrf.mxu0
      %v3914 = vadd.f32 %v3825, %v3913
      %v3915 = vpop.f32.mrf.mxu0
      %v3916 = vadd.f32 %v3827, %v3915
      %3917 = vmatmul.bf16.gmra.mxu0 %v3469
      %v3918 = vpop.f32.mrf.mxu0
      %v3919 = vadd.f32 %v3830, %v3918
      %v3920 = vpop.f32.mrf.mxu0
      %v3921 = vadd.f32 %v3832, %v3920
      %3922 = vmatmul.bf16.gmra.mxu0 %v3472
      %v3923 = vpop.f32.mrf.mxu0
      %v3924 = vadd.f32 %v3835, %v3923
      %v3925 = vpop.f32.mrf.mxu0
      %v3926 = vadd.f32 %v3837, %v3925
      %3927 = vmatmul.bf16.gmra.mxu0 %v3475
      %v3928 = vpop.f32.mrf.mxu0
      %v3929 = vadd.f32 %v3840, %v3928
      %v3930 = vpop.f32.mrf.mxu0
      %v3931 = vadd.f32 %v3842, %v3930
      %3932 = vmatmul.bf16.gmra.mxu0 %v3478
      %v3933 = vpop.f32.mrf.mxu0
      %v3934 = vadd.f32 %v3845, %v3933
      %v3935 = vpop.f32.mrf.mxu0
      %v3936 = vadd.f32 %v3847, %v3935
      %3937 = vdwg.mxu0
      %v3938 = vld [vmem:[#allocation3] sm:$0xff]
      %v3939 = vld [vmem:[#allocation3 + $0x8] sm:$0xff]
      %v3940 = vld [vmem:[#allocation3 + $0x10] sm:$0xff]
      %v3941 = vld [vmem:[#allocation3 + $0x18] sm:$0xff]
      %v3942 = vld [vmem:[#allocation3 + $0x20] sm:$0xff]
      %v3943 = vld [vmem:[#allocation3 + $0x28] sm:$0xff]
      %v3944 = vld [vmem:[#allocation3 + $0x30] sm:$0xff]
      %v3945 = vld [vmem:[#allocation3 + $0x38] sm:$0xff]
      %v3946 = vld [vmem:[#allocation3 + $0x40] sm:$0xff]
      %v3947 = vld [vmem:[#allocation3 + $0x48] sm:$0xff]
      %v3948 = vld [vmem:[#allocation3 + $0x50] sm:$0xff]
      %v3949 = vld [vmem:[#allocation3 + $0x58] sm:$0xff]
      %v3950 = vld [vmem:[#allocation3 + $0x60] sm:$0xff]
      %v3951 = vld [vmem:[#allocation3 + $0x68] sm:$0xff]
      %v3952 = vld [vmem:[#allocation3 + $0x70] sm:$0xff]
      %v3953 = vld [vmem:[#allocation3 + $0x78] sm:$0xff]
      %v3954 = vld [vmem:[#allocation3 + $0x80] sm:$0xff]
      %v3955 = vld [vmem:[#allocation3 + $0x88] sm:$0xff]
      %v3956 = vld [vmem:[#allocation3 + $0x90] sm:$0xff]
      %v3957 = vld [vmem:[#allocation3 + $0x98] sm:$0xff]
      %v3958 = vld [vmem:[#allocation3 + $0xa0] sm:$0xff]
      %v3959 = vld [vmem:[#allocation3 + $0xa8] sm:$0xff]
      %v3960 = vld [vmem:[#allocation3 + $0xb0] sm:$0xff]
      %v3961 = vld [vmem:[#allocation3 + $0xb8] sm:$0xff]
      %v3962 = vld [vmem:[#allocation3 + $0xc0] sm:$0xff]
      %v3963 = vld [vmem:[#allocation3 + $0xc8] sm:$0xff]
      %v3964 = vld [vmem:[#allocation3 + $0xd0] sm:$0xff]
      %v3965 = vld [vmem:[#allocation3 + $0xd8] sm:$0xff]
      %v3966 = vld [vmem:[#allocation3 + $0xe0] sm:$0xff]
      %v3967 = vld [vmem:[#allocation3 + $0xe8] sm:$0xff]
      %v3968 = vld [vmem:[#allocation3 + $0xf0] sm:$0xff]
      %v3969 = vld [vmem:[#allocation3 + $0xf8] sm:$0xff]
      %v3970 = vadd.f32 %v3938, %v3859
      %v3971 = vadd.f32 %v3939, %v3861
      %v3972 = vadd.f32 %v3940, %v3864
      %v3973 = vadd.f32 %v3941, %v3866
      %v3974 = vadd.f32 %v3942, %v3869
      %v3975 = vadd.f32 %v3943, %v3871
      %v3976 = vadd.f32 %v3944, %v3874
      %v3977 = vadd.f32 %v3945, %v3876
      %v3978 = vadd.f32 %v3946, %v3879
      %v3979 = vadd.f32 %v3947, %v3881
      %v3980 = vadd.f32 %v3948, %v3884
      %v3981 = vadd.f32 %v3949, %v3886
      %v3982 = vadd.f32 %v3950, %v3889
      %v3983 = vadd.f32 %v3951, %v3891
      %v3984 = vadd.f32 %v3952, %v3894
      %v3985 = vadd.f32 %v3953, %v3896
      %v3986 = vadd.f32 %v3954, %v3899
      %v3987 = vadd.f32 %v3955, %v3901
      %v3988 = vadd.f32 %v3956, %v3904
      %v3989 = vadd.f32 %v3957, %v3906
      %v3990 = vadd.f32 %v3958, %v3909
      %v3991 = vadd.f32 %v3959, %v3911
      %v3992 = vadd.f32 %v3960, %v3914
      %v3993 = vadd.f32 %v3961, %v3916
      %v3994 = vadd.f32 %v3962, %v3919
      %v3995 = vadd.f32 %v3963, %v3921
      %v3996 = vadd.f32 %v3964, %v3924
      %v3997 = vadd.f32 %v3965, %v3926
      %v3998 = vadd.f32 %v3966, %v3929
      %v3999 = vadd.f32 %v3967, %v3931
      %v4000 = vadd.f32 %v3968, %v3934
      %v4001 = vadd.f32 %v3969, %v3936
      %4002 = vst [vmem:[#allocation3] sm:$0xff] %v3970
      %4003 = vst [vmem:[#allocation3 + $0x8] sm:$0xff] %v3971
      %4004 = vst [vmem:[#allocation3 + $0x10] sm:$0xff] %v3972
      %4005 = vst [vmem:[#allocation3 + $0x18] sm:$0xff] %v3973
      %4006 = vst [vmem:[#allocation3 + $0x20] sm:$0xff] %v3974
      %4007 = vst [vmem:[#allocation3 + $0x28] sm:$0xff] %v3975
      %4008 = vst [vmem:[#allocation3 + $0x30] sm:$0xff] %v3976
      %4009 = vst [vmem:[#allocation3 + $0x38] sm:$0xff] %v3977
      %4010 = vst [vmem:[#allocation3 + $0x40] sm:$0xff] %v3978
      %4011 = vst [vmem:[#allocation3 + $0x48] sm:$0xff] %v3979
      %4012 = vst [vmem:[#allocation3 + $0x50] sm:$0xff] %v3980
      %4013 = vst [vmem:[#allocation3 + $0x58] sm:$0xff] %v3981
      %4014 = vst [vmem:[#allocation3 + $0x60] sm:$0xff] %v3982
      %4015 = vst [vmem:[#allocation3 + $0x68] sm:$0xff] %v3983
      %4016 = vst [vmem:[#allocation3 + $0x70] sm:$0xff] %v3984
      %4017 = vst [vmem:[#allocation3 + $0x78] sm:$0xff] %v3985
      %4018 = vst [vmem:[#allocation3 + $0x80] sm:$0xff] %v3986
      %4019 = vst [vmem:[#allocation3 + $0x88] sm:$0xff] %v3987
      %4020 = vst [vmem:[#allocation3 + $0x90] sm:$0xff] %v3988
      %4021 = vst [vmem:[#allocation3 + $0x98] sm:$0xff] %v3989
      %4022 = vst [vmem:[#allocation3 + $0xa0] sm:$0xff] %v3990
      %4023 = vst [vmem:[#allocation3 + $0xa8] sm:$0xff] %v3991
      %4024 = vst [vmem:[#allocation3 + $0xb0] sm:$0xff] %v3992
      %4025 = vst [vmem:[#allocation3 + $0xb8] sm:$0xff] %v3993
      %4026 = vst [vmem:[#allocation3 + $0xc0] sm:$0xff] %v3994
      %4027 = vst [vmem:[#allocation3 + $0xc8] sm:$0xff] %v3995
      %4028 = vst [vmem:[#allocation3 + $0xd0] sm:$0xff] %v3996
      %4029 = vst [vmem:[#allocation3 + $0xd8] sm:$0xff] %v3997
      %4030 = vst [vmem:[#allocation3 + $0xe0] sm:$0xff] %v3998
      %4031 = vst [vmem:[#allocation3 + $0xe8] sm:$0xff] %v3999
      %4032 = vst [vmem:[#allocation3 + $0xf0] sm:$0xff] %v4000
      %4033 = vst [vmem:[#allocation3 + $0xf8] sm:$0xff] %v4001
      %v4034 = vld [vmem:[#allocation3] sm:$0xff]
      %v4035 = vld [vmem:[#allocation3 + $0x8] sm:$0xff]
      %v4036 = vld [vmem:[#allocation3 + $0x10] sm:$0xff]
      %v4037 = vld [vmem:[#allocation3 + $0x18] sm:$0xff]
      %v4038 = vld [vmem:[#allocation3 + $0x20] sm:$0xff]
      %v4039 = vld [vmem:[#allocation3 + $0x28] sm:$0xff]
      %v4040 = vld [vmem:[#allocation3 + $0x30] sm:$0xff]
      %v4041 = vld [vmem:[#allocation3 + $0x38] sm:$0xff]
      %v4042 = vld [vmem:[#allocation3 + $0x40] sm:$0xff]
      %v4043 = vld [vmem:[#allocation3 + $0x48] sm:$0xff]
      %v4044 = vld [vmem:[#allocation3 + $0x50] sm:$0xff]
      %v4045 = vld [vmem:[#allocation3 + $0x58] sm:$0xff]
      %v4046 = vld [vmem:[#allocation3 + $0x60] sm:$0xff]
      %v4047 = vld [vmem:[#allocation3 + $0x68] sm:$0xff]
      %v4048 = vld [vmem:[#allocation3 + $0x70] sm:$0xff]
      %v4049 = vld [vmem:[#allocation3 + $0x78] sm:$0xff]
      %v4050 = vld [vmem:[#allocation3 + $0x80] sm:$0xff]
      %v4051 = vld [vmem:[#allocation3 + $0x88] sm:$0xff]
      %v4052 = vld [vmem:[#allocation3 + $0x90] sm:$0xff]
      %v4053 = vld [vmem:[#allocation3 + $0x98] sm:$0xff]
      %v4054 = vld [vmem:[#allocation3 + $0xa0] sm:$0xff]
      %v4055 = vld [vmem:[#allocation3 + $0xa8] sm:$0xff]
      %v4056 = vld [vmem:[#allocation3 + $0xb0] sm:$0xff]
      %v4057 = vld [vmem:[#allocation3 + $0xb8] sm:$0xff]
      %v4058 = vld [vmem:[#allocation3 + $0xc0] sm:$0xff]
      %v4059 = vld [vmem:[#allocation3 + $0xc8] sm:$0xff]
      %v4060 = vld [vmem:[#allocation3 + $0xd0] sm:$0xff]
      %v4061 = vld [vmem:[#allocation3 + $0xd8] sm:$0xff]
      %v4062 = vld [vmem:[#allocation3 + $0xe0] sm:$0xff]
      %v4063 = vld [vmem:[#allocation3 + $0xe8] sm:$0xff]
      %v4064 = vld [vmem:[#allocation3 + $0xf0] sm:$0xff]
      %v4065 = vld [vmem:[#allocation3 + $0xf8] sm:$0xff]
      %v4066 = vld [vmem:[%s4] sm:$0x1]
      %v4068 = vperm.slane %v4066, 0
      %v4070 = vadd.f32 %v4034, %v4068
      %v4071 = vadd.f32 %v4035, %v4068
      %v4072 = vadd.f32 %v4036, %v4068
      %v4073 = vadd.f32 %v4037, %v4068
      %v4074 = vadd.f32 %v4038, %v4068
      %v4075 = vadd.f32 %v4039, %v4068
      %v4076 = vadd.f32 %v4040, %v4068
      %v4077 = vadd.f32 %v4041, %v4068
      %v4078 = vadd.f32 %v4042, %v4068
      %v4079 = vadd.f32 %v4043, %v4068
      %v4080 = vadd.f32 %v4044, %v4068
      %v4081 = vadd.f32 %v4045, %v4068
      %v4082 = vadd.f32 %v4046, %v4068
      %v4083 = vadd.f32 %v4047, %v4068
      %v4084 = vadd.f32 %v4048, %v4068
      %v4085 = vadd.f32 %v4049, %v4068
      %v4086 = vadd.f32 %v4050, %v4068
      %v4087 = vadd.f32 %v4051, %v4068
      %v4088 = vadd.f32 %v4052, %v4068
      %v4089 = vadd.f32 %v4053, %v4068
      %v4090 = vadd.f32 %v4054, %v4068
      %v4091 = vadd.f32 %v4055, %v4068
      %v4092 = vadd.f32 %v4056, %v4068
      %v4093 = vadd.f32 %v4057, %v4068
      %v4094 = vadd.f32 %v4058, %v4068
      %v4095 = vadd.f32 %v4059, %v4068
      %v4096 = vadd.f32 %v4060, %v4068
      %v4097 = vadd.f32 %v4061, %v4068
      %v4098 = vadd.f32 %v4062, %v4068
      %v4099 = vadd.f32 %v4063, %v4068
      %v4100 = vadd.f32 %v4064, %v4068
      %v4101 = vadd.f32 %v4065, %v4068
      %v4102 = vpack.c.bf16 %v4070, %v4070
      %v4103 = vpack.c.bf16 %v4071, %v4071
      %v4104 = vpack.c.bf16 %v4072, %v4072
      %v4105 = vpack.c.bf16 %v4073, %v4073
      %v4106 = vpack.c.bf16 %v4074, %v4074
      %v4107 = vpack.c.bf16 %v4075, %v4075
      %v4108 = vpack.c.bf16 %v4076, %v4076
      %v4109 = vpack.c.bf16 %v4077, %v4077
      %v4110 = vpack.c.bf16 %v4078, %v4078
      %v4111 = vpack.c.bf16 %v4079, %v4079
      %v4112 = vpack.c.bf16 %v4080, %v4080
      %v4113 = vpack.c.bf16 %v4081, %v4081
      %v4114 = vpack.c.bf16 %v4082, %v4082
      %v4115 = vpack.c.bf16 %v4083, %v4083
      %v4116 = vpack.c.bf16 %v4084, %v4084
      %v4117 = vpack.c.bf16 %v4085, %v4085
      %v4118 = vpack.c.bf16 %v4086, %v4086
      %v4119 = vpack.c.bf16 %v4087, %v4087
      %v4120 = vpack.c.bf16 %v4088, %v4088
      %v4121 = vpack.c.bf16 %v4089, %v4089
      %v4122 = vpack.c.bf16 %v4090, %v4090
      %v4123 = vpack.c.bf16 %v4091, %v4091
      %v4124 = vpack.c.bf16 %v4092, %v4092
      %v4125 = vpack.c.bf16 %v4093, %v4093
      %v4126 = vpack.c.bf16 %v4094, %v4094
      %v4127 = vpack.c.bf16 %v4095, %v4095
      %v4128 = vpack.c.bf16 %v4096, %v4096
      %v4129 = vpack.c.bf16 %v4097, %v4097
      %v4130 = vpack.c.bf16 %v4098, %v4098
      %v4131 = vpack.c.bf16 %v4099, %v4099
      %v4132 = vpack.c.bf16 %v4100, %v4100
      %v4133 = vpack.c.bf16 %v4101, %v4101
      %4134 = vst [vmem:[%s484] sm:$0xf] %v4102
      %4135 = vst [vmem:[%s484 + $0x4] sm:$0xf] %v4103
      %4136 = vst [vmem:[%s484 + $0x8] sm:$0xf] %v4104
      %4137 = vst [vmem:[%s484 + $0xc] sm:$0xf] %v4105
      %4138 = vst [vmem:[%s484 + $0x10] sm:$0xf] %v4106
      %4139 = vst [vmem:[%s484 + $0x14] sm:$0xf] %v4107
      %4140 = vst [vmem:[%s484 + $0x18] sm:$0xf] %v4108
      %4141 = vst [vmem:[%s484 + $0x1c] sm:$0xf] %v4109
      %4142 = vst [vmem:[%s484 + $0x20] sm:$0xf] %v4110
      %4143 = vst [vmem:[%s484 + $0x24] sm:$0xf] %v4111
      %4144 = vst [vmem:[%s484 + $0x28] sm:$0xf] %v4112
      %4145 = vst [vmem:[%s484 + $0x2c] sm:$0xf] %v4113
      %4146 = vst [vmem:[%s484 + $0x30] sm:$0xf] %v4114
      %4147 = vst [vmem:[%s484 + $0x34] sm:$0xf] %v4115
      %4148 = vst [vmem:[%s484 + $0x38] sm:$0xf] %v4116
      %4149 = vst [vmem:[%s484 + $0x3c] sm:$0xf] %v4117
      %4150 = vst [vmem:[%s484 + $0x40] sm:$0xf] %v4118
      %4151 = vst [vmem:[%s484 + $0x44] sm:$0xf] %v4119
      %4152 = vst [vmem:[%s484 + $0x48] sm:$0xf] %v4120
      %4153 = vst [vmem:[%s484 + $0x4c] sm:$0xf] %v4121
      %4154 = vst [vmem:[%s484 + $0x50] sm:$0xf] %v4122
      %4155 = vst [vmem:[%s484 + $0x54] sm:$0xf] %v4123
      %4156 = vst [vmem:[%s484 + $0x58] sm:$0xf] %v4124
      %4157 = vst [vmem:[%s484 + $0x5c] sm:$0xf] %v4125
      %4158 = vst [vmem:[%s484 + $0x60] sm:$0xf] %v4126
      %4159 = vst [vmem:[%s484 + $0x64] sm:$0xf] %v4127
      %4160 = vst [vmem:[%s484 + $0x68] sm:$0xf] %v4128
      %4161 = vst [vmem:[%s484 + $0x6c] sm:$0xf] %v4129
      %4162 = vst [vmem:[%s484 + $0x70] sm:$0xf] %v4130
      %4163 = vst [vmem:[%s484 + $0x74] sm:$0xf] %v4131
      %4164 = vst [vmem:[%s484 + $0x78] sm:$0xf] %v4132
      %4165 = vst [vmem:[%s484 + $0x7c] sm:$0xf] %v4133
      %v4166 = vadd.f32 %v4070, %v4071
      %v4167 = vadd.f32 %v4166, %v4072
      %v4168 = vadd.f32 %v4167, %v4073
      %v4169 = vadd.f32 %v4168, %v4074
      %v4170 = vadd.f32 %v4169, %v4075
      %v4171 = vadd.f32 %v4170, %v4076
      %v4172 = vadd.f32 %v4171, %v4077
      %v4173 = vadd.f32 %v4172, %v4078
      %v4174 = vadd.f32 %v4173, %v4079
      %v4175 = vadd.f32 %v4174, %v4080
      %v4176 = vadd.f32 %v4175, %v4081
      %v4177 = vadd.f32 %v4176, %v4082
      %v4178 = vadd.f32 %v4177, %v4083
      %v4179 = vadd.f32 %v4178, %v4084
      %v4180 = vadd.f32 %v4179, %v4085
      %v4181 = vadd.f32 %v4180, %v4086
      %v4182 = vadd.f32 %v4181, %v4087
      %v4183 = vadd.f32 %v4182, %v4088
      %v4184 = vadd.f32 %v4183, %v4089
      %v4185 = vadd.f32 %v4184, %v4090
      %v4186 = vadd.f32 %v4185, %v4091
      %v4187 = vadd.f32 %v4186, %v4092
      %v4188 = vadd.f32 %v4187, %v4093
      %v4189 = vadd.f32 %v4188, %v4094
      %v4190 = vadd.f32 %v4189, %v4095
      %v4191 = vadd.f32 %v4190, %v4096
      %v4192 = vadd.f32 %v4191, %v4097
      %v4193 = vadd.f32 %v4192, %v4098
      %v4194 = vadd.f32 %v4193, %v4099
      %v4195 = vadd.f32 %v4194, %v4100
      %v4196 = vadd.f32 %v4195, %v4101
      %v4197 = vrot.slane %v4196, 4
      %v4198 = vadd.f32 %v4196, %v4197
      %v4199 = vrot.slane %v4198, 2
      %v4200 = vadd.f32 %v4198, %v4199
      %v4201 = vrot.slane %v4200, 1
      %v4202 = vadd.f32 %v4200, %v4201
      %v4203 = vmul.f32 %v4070, %v4070
      %v4204 = vmul.f32 %v4071, %v4071
      %v4205 = vmul.f32 %v4072, %v4072
      %v4206 = vmul.f32 %v4073, %v4073
      %v4207 = vmul.f32 %v4074, %v4074
      %v4208 = vmul.f32 %v4075, %v4075
      %v4209 = vmul.f32 %v4076, %v4076
      %v4210 = vmul.f32 %v4077, %v4077
      %v4211 = vmul.f32 %v4078, %v4078
      %v4212 = vmul.f32 %v4079, %v4079
      %v4213 = vmul.f32 %v4080, %v4080
      %v4214 = vmul.f32 %v4081, %v4081
      %v4215 = vmul.f32 %v4082, %v4082
      %v4216 = vmul.f32 %v4083, %v4083
      %v4217 = vmul.f32 %v4084, %v4084
      %v4218 = vmul.f32 %v4085, %v4085
      %v4219 = vmul.f32 %v4086, %v4086
      %v4220 = vmul.f32 %v4087, %v4087
      %v4221 = vmul.f32 %v4088, %v4088
      %v4222 = vmul.f32 %v4089, %v4089
      %v4223 = vmul.f32 %v4090, %v4090
      %v4224 = vmul.f32 %v4091, %v4091
      %v4225 = vmul.f32 %v4092, %v4092
      %v4226 = vmul.f32 %v4093, %v4093
      %v4227 = vmul.f32 %v4094, %v4094
      %v4228 = vmul.f32 %v4095, %v4095
      %v4229 = vmul.f32 %v4096, %v4096
      %v4230 = vmul.f32 %v4097, %v4097
      %v4231 = vmul.f32 %v4098, %v4098
      %v4232 = vmul.f32 %v4099, %v4099
      %v4233 = vmul.f32 %v4100, %v4100
      %v4234 = vmul.f32 %v4101, %v4101
      %v4235 = vadd.f32 %v4203, %v4204
      %v4236 = vadd.f32 %v4235, %v4205
      %v4237 = vadd.f32 %v4236, %v4206
      %v4238 = vadd.f32 %v4237, %v4207
      %v4239 = vadd.f32 %v4238, %v4208
      %v4240 = vadd.f32 %v4239, %v4209
      %v4241 = vadd.f32 %v4240, %v4210
      %v4242 = vadd.f32 %v4241, %v4211
      %v4243 = vadd.f32 %v4242, %v4212
      %v4244 = vadd.f32 %v4243, %v4213
      %v4245 = vadd.f32 %v4244, %v4214
      %v4246 = vadd.f32 %v4245, %v4215
      %v4247 = vadd.f32 %v4246, %v4216
      %v4248 = vadd.f32 %v4247, %v4217
      %v4249 = vadd.f32 %v4248, %v4218
      %v4250 = vadd.f32 %v4249, %v4219
      %v4251 = vadd.f32 %v4250, %v4220
      %v4252 = vadd.f32 %v4251, %v4221
      %v4253 = vadd.f32 %v4252, %v4222
      %v4254 = vadd.f32 %v4253, %v4223
      %v4255 = vadd.f32 %v4254, %v4224
      %v4256 = vadd.f32 %v4255, %v4225
      %v4257 = vadd.f32 %v4256, %v4226
      %v4258 = vadd.f32 %v4257, %v4227
      %v4259 = vadd.f32 %v4258, %v4228
      %v4260 = vadd.f32 %v4259, %v4229
      %v4261 = vadd.f32 %v4260, %v4230
      %v4262 = vadd.f32 %v4261, %v4231
      %v4263 = vadd.f32 %v4262, %v4232
      %v4264 = vadd.f32 %v4263, %v4233
      %v4265 = vadd.f32 %v4264, %v4234
      %v4266 = vrot.slane %v4265, 4
      %v4267 = vadd.f32 %v4265, %v4266
      %v4268 = vrot.slane %v4267, 2
      %v4269 = vadd.f32 %v4267, %v4268
      %v4270 = vrot.slane %v4269, 1
      %v4271 = vadd.f32 %v4269, %v4270
      %vm4272 = vcmask 1040384
      %v4273 = vsel %vm4272, %v4202, %v4271
      %4274 = vst [vmem:[%s492] sm:$0x3] %v4273
      %s4275 = smul.u32 16, %s25
      %p4276 = scmp.lt.s32.totalorder %s24, 1
      %s4277 = scalar_select %p4276, %s24, 1
      %p4278 = scmp.lt.s32.totalorder %s4275, 15
      %s4279 = scalar_select %p4278, %s4275, 15
      %s4280 = smul.addr %s4279, 2
      %s4281 = smul.addr %s4277, 32
      %s4282 = sadd.s32 %s4280, %s4281
      %s4283 = smul.addr %s4282, 4
      %s4284 = scalar_lea.vmem %s7, %s4283
      %p4285 = scmp.lt.s32.totalorder %s24, 1
      %s4286 = scalar_select %p4285, %s24, 1
      %p4287 = scmp.lt.s32.totalorder %s25, 0
      %s4288 = scalar_select %p4287, %s25, 0
      %s4289 = sadd.s32 %s4288, %s4286
      %s4290 = smul.addr %s4289, 2
      %s4291 = scalar_lea.vmem %s8, %s4290
      // Predicated region
      $region53: #{unet_down_block.4} parent=47 // pred_check
        %p4292 = pneg %p236
      $region54: #{unet_down_block.4} parent=47 // pred_check_branch
        %4294 = sbr.rel (%p4292) target = $region56
      $region55: #{unet_down_block.4} parent=47 // pred_region
        %s4295 = smul.u32 16, %s25
      $region56: #{unet_down_block.4} parent=47 // pred_fallthru
        _
      // Predicated region
      $region57: #{unet_down_block.4} parent=47 // pred_check
        %p4296 = pneg %p264
      $region58: #{unet_down_block.4} parent=47 // pred_check_branch
        %4298 = sbr.rel (%p4296) target = $region60
      $region59: #{unet_down_block.4} parent=47 // pred_region
        _
      $region60: #{unet_down_block.4} parent=47 // pred_fallthru
        _
    $region48: #{unet_down_block.4} parent=5 // pred_fallthru
      _
    %p4299 = scmp.le.s32.totalorder 2, %s15
    // Predicated region
    $region61: #{unet_down_block.4} parent=5 // pred_check
      %p4300 = pneg %p4299
    $region62: #{unet_down_block.4} parent=5 // pred_check_branch
      %4302 = sbr.rel (%p4300) target = $region64
    $region63: #{unet_down_block.4} parent=5 // pred_region
      %s4303 = ssub.s32 %s15, 2
      // Predicated region
      $region65: #{unet_down_block.4} parent=63 // pred_check
        %p4304 = pneg %p242
      $region66: #{unet_down_block.4} parent=63 // pred_check_branch
        %4306 = sbr.rel (%p4304) target = $region68
      $region67: #{unet_down_block.4} parent=63 // pred_region
        %s4307 = smul.u32 16, %s27
        %p4308 = scmp.lt.s32.totalorder %s26, 1
        %s4309 = scalar_select %p4308, %s26, 1
        %p4310 = scmp.lt.s32.totalorder %s4307, 15
        %s4311 = scalar_select %p4310, %s4307, 15
        %s4312 = smul.addr %s4311, 2
        %s4313 = smul.addr %s4309, 32
        %s4314 = sadd.s32 %s4312, %s4313
        %s4315 = smul.addr %s4314, 4
        %s4316 = scalar_lea.vmem %s7, %s4315
      $region68: #{unet_down_block.4} parent=63 // pred_fallthru
        _
      // Predicated region
      $region69: #{unet_down_block.4} parent=63 // pred_check
        %p4317 = pneg %p270
      $region70: #{unet_down_block.4} parent=63 // pred_check_branch
        %4319 = sbr.rel (%p4317) target = $region72
      $region71: #{unet_down_block.4} parent=63 // pred_region
        %p4320 = scmp.lt.s32.totalorder %s26, 1
        %s4321 = scalar_select %p4320, %s26, 1
        %p4322 = scmp.lt.s32.totalorder %s27, 0
        %s4323 = scalar_select %p4322, %s27, 0
        %s4324 = sadd.s32 %s4323, %s4321
        %s4325 = smul.addr %s4324, 2
        %s4326 = scalar_lea.vmem %s8, %s4325
      $region72: #{unet_down_block.4} parent=63 // pred_fallthru
        _
    $region64: #{unet_down_block.4} parent=5 // pred_fallthru
      _
  $region6: #{unet_down_block.4} parent=0 // loop_footer
    %s19 = sadd.s32 1, %s15
  $region7: #{unet_down_block.4} parent=0 // loop_footer_branch
    %14 = sbr.rel target = $region3
  $region8: #{unet_down_block.4} parent=0 // loop_exit
    _

// kernel: unet_down_block.3
$region0: #{unet_down_block.3}
  #allocation0 [shape = 'u32[]', space=smem, size = 0x4, offset = 0x4, fixed_abs, tag = 'smem constant byte address 0x4 - core index']
  #allocation1 [shape = 'u32[72,128]{1,0:T(1,128)}', space=vmem, size = 0x9000, scoped, tag = 'internal scratch']
  #allocation2 [shape = 'bf16[18,16,384]{2,1,0:T(8,128)(2,1)}', space=vmem, size = 0x36000, scoped, tag = 'scratch operand']
  #allocation3 [shape = 'f32[256,128]{1,0:T(8,128)}', space=vmem, size = 0x20000, scoped, tag = 'scratch operand']
  %s0 = inlined_call_operand.vmem [shape: bf16[2,16,16,128], index: 0, kind: input, shape index: {}, may-alias: {0,1,2}]
  %s1 = inlined_call_operand.vmem [shape: bf16[2,16,16,128], index: 1, kind: input, shape index: {}, may-alias: {0,1,2}]
  %s2 = inlined_call_operand.vmem [shape: bf16[2,16,16,128], index: 2, kind: input, shape index: {}, may-alias: {0,1,2}]
  %s3 = inlined_call_operand.vmem [shape: bf16[3,384,128], index: 3, kind: input, shape index: {}]
  %s4 = inlined_call_operand.vmem [shape: f32[1,128], index: 4, kind: input, shape index: {}]
  %s5 = inlined_call_operand.vmem [shape: f32[1,128], index: 5, kind: input, shape index: {}]
  %s6 = inlined_call_operand.vmem [shape: f32[1,128], index: 6, kind: input, shape index: {}]
  %s7 = inlined_call_operand.vmem [shape: bf16[2,16,16,128], index: 7, kind: output, shape index: {0}]
  %s8 = inlined_call_operand.vmem [shape: f32[2,1,2,128], index: 8, kind: output, shape index: {1}]
  %9 = xla_tuple %s7, %s8
  %s10 = sld [smem:[#allocation0]]
  $region73: #{unet_down_block.3} parent=0
    _
  %s12 = ssub.s32 1, %s10
  %s13 = scalar_select 0, %s12, %s10
  loop: start=0, step=1, limit=4
  $region2: #{unet_down_block.3} parent=0 // loop_pre_header
    _
  $region3: #{unet_down_block.3} parent=0 // loop_header
    %s15 = sphi 0, %s19
    %p16 = scmp.ge.s32.totalorder %s15, 4
    %s22 = sphi 0, %s34
    %s23 = sphi 0, %s30
    %s24 = sphi 0, %s22
    %s25 = sphi 0, %s23
    %s26 = sphi 0, %s24
    %s27 = sphi 0, %s25
    %s39 = sphi 0, %s41
    %s42 = sphi 0, %s39
    %s43 = sphi 0, %s42
    %s59 = sphi 0, %s43
    %s75 = sphi 0, %s77
    %s78 = sphi 0, %s75
    %s79 = sphi 0, %s78
    %s95 = sphi 0, %s79
    %s111 = sphi 0, %s113
    %s114 = sphi 0, %s111
    %s115 = sphi 0, %s114
    %s131 = sphi 0, %s115
    %s135 = sphi 0, %s135
    %s137 = sphi 0, %s135
    %s138 = sphi 0, %s137
    %s152 = sphi 0, %s138
    %s156 = sphi 0, %s156
    %s158 = sphi 0, %s156
    %s159 = sphi 0, %s158
    %s173 = sphi 0, %s159
    %s177 = sphi 0, %s177
    %s179 = sphi 0, %s177
    %s180 = sphi 0, %s179
    %s194 = sphi 0, %s180
    %s198 = sphi 0, %s198
    %s200 = sphi 0, %s198
    %s201 = sphi 0, %s200
    %s215 = sphi 0, %s201
    %s223 = sphi 0, %s225
    %s226 = sphi 0, %s223
    %s227 = sphi 0, %s226
    %s243 = sphi 0, %s227
    %s251 = sphi 0, %s253
    %s254 = sphi 0, %s251
    %s255 = sphi 0, %s254
    %s271 = sphi 0, %s255
  $region4: #{unet_down_block.3} parent=0 // loop_header_branch
    %18 = sbr.rel (%p16) target = $region8
  $region5: #{unet_down_block.3} parent=0 // loop_body
    %s20 = ssub.s32 %s15, 1
    %s21 = ssub.s32 %s15, 2
    %s28 = sadd.s32 1, %s23
    %p29 = scmp.ge.s32.totalorder %s28, 1
    %s30 = scalar_select %p29, 0, %s28
    %s31 = sadd.s32 1, %s22
    %s32 = scalar_select %p29, %s31, %s22
    %p33 = scmp.ge.s32.totalorder %s32, 2
    %s34 = scalar_select %p33, 0, %s32
    %s35 = ssub.s32 %s22, %s34
    %s36 = ssub.s32 %s23, %s30
    %s37 = sor.u32 %s35, %s36
    %p38 = scmp.eq.s32.totalorder %s37, 0
    %s40 = sadd.s32 %s39, 1
    %s41 = scalar_select %p38, %s39, %s40
    %p44 = pneg %p38
    %p45 = scmp.eq.s32.totalorder %s15, 1
    %p46 = por %p44, %p45
    %p47 = scmp.ne.s32.totalorder %s39, %s42
    %p48 = scmp.eq.s32.totalorder %s15, 0
    %p49 = por %p47, %p48
    %p50 = scmp.ne.s32.totalorder %s39, %s42
    %p51 = scmp.eq.s32.totalorder %s20, 1
    %p52 = por %p50, %p51
    %p53 = scmp.ne.s32.totalorder %s42, %s43
    %p54 = scmp.eq.s32.totalorder %s20, 0
    %p55 = por %p53, %p54
    %p56 = scmp.ne.s32.totalorder %s42, %s43
    %p57 = scmp.eq.s32.totalorder %s21, 1
    %p58 = por %p56, %p57
    %p60 = scmp.ne.s32.totalorder %s43, %s59
    %p61 = scmp.eq.s32.totalorder %s21, 0
    %p62 = por %p60, %p61
    %s63 = smul.u32 %s23, 16
    %s64 = ssub.s32 %s63, 1
    %p65 = scmp.gt.s32.totalorder %s64, 0
    %s66 = scalar_select %p65, %s64, 0
    %s67 = smul.u32 %s30, 16
    %s68 = ssub.s32 %s67, 1
    %p69 = scmp.gt.s32.totalorder %s68, 0
    %s70 = scalar_select %p69, %s68, 0
    %s71 = ssub.s32 %s22, %s34
    %s72 = ssub.s32 %s66, %s70
    %s73 = sor.u32 %s71, %s72
    %p74 = scmp.eq.s32.totalorder %s73, 0
    %s76 = sadd.s32 %s75, 1
    %s77 = scalar_select %p74, %s75, %s76
    %p80 = pneg %p74
    %p81 = scmp.eq.s32.totalorder %s15, 1
    %p82 = por %p80, %p81
    %p83 = scmp.ne.s32.totalorder %s75, %s78
    %p84 = scmp.eq.s32.totalorder %s15, 0
    %p85 = por %p83, %p84
    %p86 = scmp.ne.s32.totalorder %s75, %s78
    %p87 = scmp.eq.s32.totalorder %s20, 1
    %p88 = por %p86, %p87
    %p89 = scmp.ne.s32.totalorder %s78, %s79
    %p90 = scmp.eq.s32.totalorder %s20, 0
    %p91 = por %p89, %p90
    %p92 = scmp.ne.s32.totalorder %s78, %s79
    %p93 = scmp.eq.s32.totalorder %s21, 1
    %p94 = por %p92, %p93
    %p96 = scmp.ne.s32.totalorder %s79, %s95
    %p97 = scmp.eq.s32.totalorder %s21, 0
    %p98 = por %p96, %p97
    %s99 = smul.u32 %s23, 16
    %s100 = sadd.s32 %s99, 16
    %p101 = scmp.lt.s32.totalorder %s100, 15
    %s102 = scalar_select %p101, %s100, 15
    %s103 = smul.u32 %s30, 16
    %s104 = sadd.s32 %s103, 16
    %p105 = scmp.lt.s32.totalorder %s104, 15
    %s106 = scalar_select %p105, %s104, 15
    %s107 = ssub.s32 %s22, %s34
    %s108 = ssub.s32 %s102, %s106
    %s109 = sor.u32 %s107, %s108
    %p110 = scmp.eq.s32.totalorder %s109, 0
    %s112 = sadd.s32 %s111, 1
    %s113 = scalar_select %p110, %s111, %s112
    %p116 = pneg %p110
    %p117 = scmp.eq.s32.totalorder %s15, 1
    %p118 = por %p116, %p117
    %p119 = scmp.ne.s32.totalorder %s111, %s114
    %p120 = scmp.eq.s32.totalorder %s15, 0
    %p121 = por %p119, %p120
    %p122 = scmp.ne.s32.totalorder %s111, %s114
    %p123 = scmp.eq.s32.totalorder %s20, 1
    %p124 = por %p122, %p123
    %p125 = scmp.ne.s32.totalorder %s114, %s115
    %p126 = scmp.eq.s32.totalorder %s20, 0
    %p127 = por %p125, %p126
    %p128 = scmp.ne.s32.totalorder %s114, %s115
    %p129 = scmp.eq.s32.totalorder %s21, 1
    %p130 = por %p128, %p129
    %p132 = scmp.ne.s32.totalorder %s115, %s131
    %p133 = scmp.eq.s32.totalorder %s21, 0
    %p134 = por %p132, %p133
    %s136 = sadd.s32 %s135, 1
    %p139 = scmp.eq.s32.totalorder %s15, 1
    %p140 = scmp.ne.s32.totalorder %s135, %s137
    %p141 = scmp.eq.s32.totalorder %s15, 0
    %p142 = por %p140, %p141
    %p143 = scmp.ne.s32.totalorder %s135, %s137
    %p144 = scmp.eq.s32.totalorder %s20, 1
    %p145 = por %p143, %p144
    %p146 = scmp.ne.s32.totalorder %s137, %s138
    %p147 = scmp.eq.s32.totalorder %s20, 0
    %p148 = por %p146, %p147
    %p149 = scmp.ne.s32.totalorder %s137, %s138
    %p150 = scmp.eq.s32.totalorder %s21, 1
    %p151 = por %p149, %p150
    %p153 = scmp.ne.s32.totalorder %s138, %s152
    %p154 = scmp.eq.s32.totalorder %s21, 0
    %p155 = por %p153, %p154
    %s157 = sadd.s32 %s156, 1
    %p160 = scmp.eq.s32.totalorder %s15, 1
    %p161 = scmp.ne.s32.totalorder %s156, %s158
    %p162 = scmp.eq.s32.totalorder %s15, 0
    %p163 = por %p161, %p162
    %p164 = scmp.ne.s32.totalorder %s156, %s158
    %p165 = scmp.eq.s32.totalorder %s20, 1
    %p166 = por %p164, %p165
    %p167 = scmp.ne.s32.totalorder %s158, %s159
    %p168 = scmp.eq.s32.totalorder %s20, 0
    %p169 = por %p167, %p168
    %p170 = scmp.ne.s32.totalorder %s158, %s159
    %p171 = scmp.eq.s32.totalorder %s21, 1
    %p172 = por %p170, %p171
    %p174 = scmp.ne.s32.totalorder %s159, %s173
    %p175 = scmp.eq.s32.totalorder %s21, 0
    %p176 = por %p174, %p175
    %s178 = sadd.s32 %s177, 1
    %p181 = scmp.eq.s32.totalorder %s15, 1
    %p182 = scmp.ne.s32.totalorder %s177, %s179
    %p183 = scmp.eq.s32.totalorder %s15, 0
    %p184 = por %p182, %p183
    %p185 = scmp.ne.s32.totalorder %s177, %s179
    %p186 = scmp.eq.s32.totalorder %s20, 1
    %p187 = por %p185, %p186
    %p188 = scmp.ne.s32.totalorder %s179, %s180
    %p189 = scmp.eq.s32.totalorder %s20, 0
    %p190 = por %p188, %p189
    %p191 = scmp.ne.s32.totalorder %s179, %s180
    %p192 = scmp.eq.s32.totalorder %s21, 1
    %p193 = por %p191, %p192
    %p195 = scmp.ne.s32.totalorder %s180, %s194
    %p196 = scmp.eq.s32.totalorder %s21, 0
    %p197 = por %p195, %p196
    %s199 = sadd.s32 %s198, 1
    %p202 = scmp.eq.s32.totalorder %s15, 1
    %p203 = scmp.ne.s32.totalorder %s198, %s200
    %p204 = scmp.eq.s32.totalorder %s15, 0
    %p205 = por %p203, %p204
    %p206 = scmp.ne.s32.totalorder %s198, %s200
    %p207 = scmp.eq.s32.totalorder %s20, 1
    %p208 = por %p206, %p207
    %p209 = scmp.ne.s32.totalorder %s200, %s201
    %p210 = scmp.eq.s32.totalorder %s20, 0
    %p211 = por %p209, %p210
    %p212 = scmp.ne.s32.totalorder %s200, %s201
    %p213 = scmp.eq.s32.totalorder %s21, 1
    %p214 = por %p212, %p213
    %p216 = scmp.ne.s32.totalorder %s201, %s215
    %p217 = scmp.eq.s32.totalorder %s21, 0
    %p218 = por %p216, %p217
    %s219 = ssub.s32 %s22, %s34
    %s220 = ssub.s32 %s23, %s30
    %s221 = sor.u32 %s219, %s220
    %p222 = scmp.eq.s32.totalorder %s221, 0
    %s224 = sadd.s32 %s223, 1
    %s225 = scalar_select %p222, %s223, %s224
    %p228 = pneg %p222
    %p229 = scmp.eq.s32.totalorder %s15, 1
    %p230 = por %p228, %p229
    %p231 = scmp.ne.s32.totalorder %s223, %s226
    %p232 = scmp.eq.s32.totalorder %s15, 0
    %p233 = por %p231, %p232
    %p234 = scmp.ne.s32.totalorder %s223, %s226
    %p235 = scmp.eq.s32.totalorder %s20, 1
    %p236 = por %p234, %p235
    %p237 = scmp.ne.s32.totalorder %s226, %s227
    %p238 = scmp.eq.s32.totalorder %s20, 0
    %p239 = por %p237, %p238
    %p240 = scmp.ne.s32.totalorder %s226, %s227
    %p241 = scmp.eq.s32.totalorder %s21, 1
    %p242 = por %p240, %p241
    %p244 = scmp.ne.s32.totalorder %s227, %s243
    %p245 = scmp.eq.s32.totalorder %s21, 0
    %p246 = por %p244, %p245
    %s247 = ssub.s32 %s22, %s34
    %s248 = ssub.s32 %s23, %s30
    %s249 = sor.u32 %s247, %s248
    %p250 = scmp.eq.s32.totalorder %s249, 0
    %s252 = sadd.s32 %s251, 1
    %s253 = scalar_select %p250, %s251, %s252
    %p256 = pneg %p250
    %p257 = scmp.eq.s32.totalorder %s15, 1
    %p258 = por %p256, %p257
    %p259 = scmp.ne.s32.totalorder %s251, %s254
    %p260 = scmp.eq.s32.totalorder %s15, 0
    %p261 = por %p259, %p260
    %p262 = scmp.ne.s32.totalorder %s251, %s254
    %p263 = scmp.eq.s32.totalorder %s20, 1
    %p264 = por %p262, %p263
    %p265 = scmp.ne.s32.totalorder %s254, %s255
    %p266 = scmp.eq.s32.totalorder %s20, 0
    %p267 = por %p265, %p266
    %p268 = scmp.ne.s32.totalorder %s254, %s255
    %p269 = scmp.eq.s32.totalorder %s21, 1
    %p270 = por %p268, %p269
    %p272 = scmp.ne.s32.totalorder %s255, %s271
    %p273 = scmp.eq.s32.totalorder %s21, 0
    %p274 = por %p272, %p273
    %p275 = scmp.le.s32.totalorder 1, %s15
    %p276 = scmp.lt.s32.totalorder %s15, 3
    %p277 = pnand %p275, %p276
    %p278 = pneg %p277
    // Predicated region
    $region9: #{unet_down_block.3} parent=5 // pred_check
      _
    $region10: #{unet_down_block.3} parent=5 // pred_check_branch
      %280 = sbr.rel (%p277) target = $region12
    $region11: #{unet_down_block.3} parent=5 // pred_region
      %s281 = ssub.s32 %s15, 1
      // Predicated region
      $region13: #{unet_down_block.3} parent=11 // pred_check
        %p282 = pneg %p148
      $region14: #{unet_down_block.3} parent=11 // pred_check_branch
        %284 = sbr.rel (%p282) target = $region16
      $region15: #{unet_down_block.3} parent=11 // pred_region
        _
      $region16: #{unet_down_block.3} parent=11 // pred_fallthru
        _
      // Predicated region
      $region17: #{unet_down_block.3} parent=11 // pred_check
        %p285 = pneg %p169
      $region18: #{unet_down_block.3} parent=11 // pred_check_branch
        %287 = sbr.rel (%p285) target = $region20
      $region19: #{unet_down_block.3} parent=11 // pred_region
        _
      $region20: #{unet_down_block.3} parent=11 // pred_fallthru
        _
      // Predicated region
      $region21: #{unet_down_block.3} parent=11 // pred_check
        %p288 = pneg %p190
      $region22: #{unet_down_block.3} parent=11 // pred_check_branch
        %290 = sbr.rel (%p288) target = $region24
      $region23: #{unet_down_block.3} parent=11 // pred_region
        _
      $region24: #{unet_down_block.3} parent=11 // pred_fallthru
        _
      // Predicated region
      $region25: #{unet_down_block.3} parent=11 // pred_check
        %p291 = pneg %p211
      $region26: #{unet_down_block.3} parent=11 // pred_check_branch
        %293 = sbr.rel (%p291) target = $region28
      $region27: #{unet_down_block.3} parent=11 // pred_region
        _
      $region28: #{unet_down_block.3} parent=11 // pred_fallthru
        _
    $region12: #{unet_down_block.3} parent=5 // pred_fallthru
      _
    %p294 = scmp.lt.s32.totalorder %s15, 2
    // Predicated region
    $region29: #{unet_down_block.3} parent=5 // pred_check
      %p295 = pneg %p294
    $region30: #{unet_down_block.3} parent=5 // pred_check_branch
      %297 = sbr.rel (%p295) target = $region32
    $region31: #{unet_down_block.3} parent=5 // pred_region
      // Predicated region
      $region33: #{unet_down_block.3} parent=31 // pred_check
        %p298 = pneg %p49
      $region34: #{unet_down_block.3} parent=31 // pred_check_branch
        %300 = sbr.rel (%p298) target = $region36
      $region35: #{unet_down_block.3} parent=31 // pred_region
        %s301 = smul.u32 16, %s23
        %p302 = scmp.lt.s32.totalorder %s22, 1
        %s303 = scalar_select %p302, %s22, 1
        %p304 = scmp.lt.s32.totalorder %s301, 15
        %s305 = scalar_select %p304, %s301, 15
        %s306 = smul.addr %s305, 2
        %s307 = smul.addr %s303, 32
        %s308 = sadd.s32 %s306, %s307
        %s309 = smul.addr %s308, 4
        %s310 = scalar_lea.vmem %s0, %s309
        %s311 = smul.u32 16, %s23
      $region36: #{unet_down_block.3} parent=31 // pred_fallthru
        _
      // Predicated region
      $region37: #{unet_down_block.3} parent=31 // pred_check
        %p312 = pneg %p85
      $region38: #{unet_down_block.3} parent=31 // pred_check_branch
        %314 = sbr.rel (%p312) target = $region40
      $region39: #{unet_down_block.3} parent=31 // pred_region
        %s315 = smul.u32 %s23, 16
        %s316 = ssub.s32 %s315, 1
        %p317 = scmp.gt.s32.totalorder %s316, 0
        %s318 = scalar_select %p317, %s316, 0
        %p319 = scmp.lt.s32.totalorder %s22, 1
        %s320 = scalar_select %p319, %s22, 1
        %p321 = scmp.lt.s32.totalorder %s318, 15
        %s322 = scalar_select %p321, %s318, 15
        %s323 = smul.addr %s322, 2
        %s324 = smul.addr %s320, 32
        %s325 = sadd.s32 %s323, %s324
        %s326 = smul.addr %s325, 4
        %s327 = scalar_lea.vmem %s1, %s326
        %s328 = smul.u32 %s23, 16
        %s329 = ssub.s32 %s328, 1
        %p330 = scmp.gt.s32.totalorder %s329, 0
        %s331 = scalar_select %p330, %s329, 0
      $region40: #{unet_down_block.3} parent=31 // pred_fallthru
        _
      // Predicated region
      $region41: #{unet_down_block.3} parent=31 // pred_check
        %p332 = pneg %p121
      $region42: #{unet_down_block.3} parent=31 // pred_check_branch
        %334 = sbr.rel (%p332) target = $region44
      $region43: #{unet_down_block.3} parent=31 // pred_region
        %s335 = smul.u32 %s23, 16
        %s336 = sadd.s32 %s335, 16
        %p337 = scmp.lt.s32.totalorder %s336, 15
        %s338 = scalar_select %p337, %s336, 15
        %p339 = scmp.lt.s32.totalorder %s22, 1
        %s340 = scalar_select %p339, %s22, 1
        %p341 = scmp.lt.s32.totalorder %s338, 15
        %s342 = scalar_select %p341, %s338, 15
        %s343 = smul.addr %s342, 2
        %s344 = smul.addr %s340, 32
        %s345 = sadd.s32 %s343, %s344
        %s346 = smul.addr %s345, 4
        %s347 = scalar_lea.vmem %s2, %s346
        %s348 = smul.u32 %s23, 16
        %s349 = sadd.s32 %s348, 16
        %p350 = scmp.lt.s32.totalorder %s349, 15
        %s351 = scalar_select %p350, %s349, 15
      $region44: #{unet_down_block.3} parent=31 // pred_fallthru
        _
    $region32: #{unet_down_block.3} parent=5 // pred_fallthru
      _
    %p352 = scmp.le.s32.totalorder 1, %s15
    %p353 = scmp.lt.s32.totalorder %s15, 3
    %p354 = pnand %p352, %p353
    %p355 = pneg %p354
    // Predicated region
    $region45: #{unet_down_block.3} parent=5 // pred_check
      _
    $region46: #{unet_down_block.3} parent=5 // pred_check_branch
      %357 = sbr.rel (%p354) target = $region48
    $region47: #{unet_down_block.3} parent=5 // pred_region
      %s358 = ssub.s32 %s15, 1
      %s359 = smul.u32 16, %s25
      %p360 = scmp.lt.s32.totalorder %s24, 1
      %s361 = scalar_select %p360, %s24, 1
      %p362 = scmp.lt.s32.totalorder %s359, 15
      %s363 = scalar_select %p362, %s359, 15
      %s364 = smul.addr %s363, 2
      %s365 = smul.addr %s361, 32
      %s366 = sadd.s32 %s364, %s365
      %s367 = smul.addr %s366, 4
      %s368 = scalar_lea.vmem %s0, %s367
      %p369 = pneg %p55
      %p370 = pneg %p52
      %s371 = smul.u32 %s25, 16
      %s372 = ssub.s32 %s371, 1
      %p373 = scmp.gt.s32.totalorder %s372, 0
      %s374 = scalar_select %p373, %s372, 0
      %p375 = scmp.lt.s32.totalorder %s24, 1
      %s376 = scalar_select %p375, %s24, 1
      %p377 = scmp.lt.s32.totalorder %s374, 15
      %s378 = scalar_select %p377, %s374, 15
      %s379 = smul.addr %s378, 2
      %s380 = smul.addr %s376, 32
      %s381 = sadd.s32 %s379, %s380
      %s382 = smul.addr %s381, 4
      %s383 = scalar_lea.vmem %s1, %s382
      %p384 = pneg %p91
      %p385 = pneg %p88
      %s386 = smul.u32 %s25, 16
      %s387 = sadd.s32 %s386, 16
      %p388 = scmp.lt.s32.totalorder %s387, 15
      %s389 = scalar_select %p388, %s387, 15
      %p390 = scmp.lt.s32.totalorder %s24, 1
      %s391 = scalar_select %p390, %s24, 1
      %p392 = scmp.lt.s32.totalorder %s389, 15
      %s393 = scalar_select %p392, %s389, 15
      %s394 = smul.addr %s393, 2
      %s395 = smul.addr %s391, 32
      %s396 = sadd.s32 %s394, %s395
      %s397 = smul.addr %s396, 4
      %s398 = scalar_lea.vmem %s2, %s397
      %p399 = pneg %p127
      %p400 = pneg %p124
      %p401 = pneg %p148
      %p402 = pneg %p145
      %p403 = pneg %p169
      %p404 = pneg %p166
      %p405 = pneg %p190
      %p406 = pneg %p187
      %p407 = pneg %p211
      %p408 = pneg %p208
      %p409 = pneg %p239
      %p410 = pneg %p236
      %s411 = smul.u32 16, %s25
      %p412 = scmp.lt.s32.totalorder %s24, 1
      %s413 = scalar_select %p412, %s24, 1
      %p414 = scmp.lt.s32.totalorder %s411, 15
      %s415 = scalar_select %p414, %s411, 15
      %s416 = smul.addr %s415, 2
      %s417 = smul.addr %s413, 32
      %s418 = sadd.s32 %s416, %s417
      %s419 = smul.addr %s418, 4
      %s420 = scalar_lea.vmem %s7, %s419
      %p421 = pneg %p267
      %p422 = pneg %p264
      %p423 = scmp.lt.s32.totalorder %s24, 1
      %s424 = scalar_select %p423, %s24, 1
      %p425 = scmp.lt.s32.totalorder %s25, 0
      %s426 = scalar_select %p425, %s25, 0
      %s427 = sadd.s32 %s426, %s424
      %s428 = smul.addr %s427, 2
      %s429 = scalar_lea.vmem %s8, %s428
      %s430 = smul.u32 16, %s25
      %p431 = scmp.lt.s32.totalorder %s24, 1
      %s432 = scalar_select %p431, %s24, 1
      %p433 = scmp.lt.s32.totalorder %s430, 15
      %s434 = scalar_select %p433, %s430, 15
      %s435 = smul.addr %s434, 2
      %s436 = smul.addr %s432, 32
      %s437 = sadd.s32 %s435, %s436
      %s438 = smul.addr %s437, 4
      %s439 = scalar_lea.vmem %s0, %s438
      %s440 = smul.u32 16, %s25
      %s441 = smul.u32 %s25, 16
      %s442 = ssub.s32 %s441, 1
      %p443 = scmp.gt.s32.totalorder %s442, 0
      %s444 = scalar_select %p443, %s442, 0
      %p445 = scmp.lt.s32.totalorder %s24, 1
      %s446 = scalar_select %p445, %s24, 1
      %p447 = scmp.lt.s32.totalorder %s444, 15
      %s448 = scalar_select %p447, %s444, 15
      %s449 = smul.addr %s448, 2
      %s450 = smul.addr %s446, 32
      %s451 = sadd.s32 %s449, %s450
      %s452 = smul.addr %s451, 4
      %s453 = scalar_lea.vmem %s1, %s452
      %s454 = smul.u32 %s25, 16
      %s455 = ssub.s32 %s454, 1
      %p456 = scmp.gt.s32.totalorder %s455, 0
      %s457 = scalar_select %p456, %s455, 0
      %s458 = smul.u32 %s25, 16
      %s459 = sadd.s32 %s458, 16
      %p460 = scmp.lt.s32.totalorder %s459, 15
      %s461 = scalar_select %p460, %s459, 15
      %p462 = scmp.lt.s32.totalorder %s24, 1
      %s463 = scalar_select %p462, %s24, 1
      %p464 = scmp.lt.s32.totalorder %s461, 15
      %s465 = scalar_select %p464, %s461, 15
      %s466 = smul.addr %s465, 2
      %s467 = smul.addr %s463, 32
      %s468 = sadd.s32 %s466, %s467
      %s469 = smul.addr %s468, 4
      %s470 = scalar_lea.vmem %s2, %s469
      %s471 = smul.u32 %s25, 16
      %s472 = sadd.s32 %s471, 16
      %p473 = scmp.lt.s32.totalorder %s472, 15
      %s474 = scalar_select %p473, %s472, 15
      %s475 = smul.u32 16, %s25
      %p476 = scmp.lt.s32.totalorder %s24, 1
      %s477 = scalar_select %p476, %s24, 1
      %p478 = scmp.lt.s32.totalorder %s475, 15
      %s479 = scalar_select %p478, %s475, 15
      %s480 = smul.addr %s479, 2
      %s481 = smul.addr %s477, 32
      %s482 = sadd.s32 %s480, %s481
      %s483 = smul.addr %s482, 4
      %s484 = scalar_lea.vmem %s7, %s483
      %s485 = smul.u32 16, %s25
      %p486 = scmp.lt.s32.totalorder %s24, 1
      %s487 = scalar_select %p486, %s24, 1
      %p488 = scmp.lt.s32.totalorder %s25, 0
      %s489 = scalar_select %p488, %s25, 0
      %s490 = sadd.s32 %s489, %s487
      %s491 = smul.addr %s490, 2
      %s492 = scalar_lea.vmem %s8, %s491
      %v494 = vld [vmem:[%s439] sm:$0xf]
      %v495 = vld [vmem:[%s439 + $0x4] sm:$0xf]
      %v496 = vld [vmem:[%s439 + $0x8] sm:$0xf]
      %v497 = vld [vmem:[%s439 + $0xc] sm:$0xf]
      %v498 = vld [vmem:[%s439 + $0x10] sm:$0xf]
      %v499 = vld [vmem:[%s439 + $0x14] sm:$0xf]
      %v500 = vld [vmem:[%s439 + $0x18] sm:$0xf]
      %v501 = vld [vmem:[%s439 + $0x1c] sm:$0xf]
      %v502 = vld [vmem:[%s439 + $0x20] sm:$0xf]
      %v503 = vld [vmem:[%s439 + $0x24] sm:$0xf]
      %v504 = vld [vmem:[%s439 + $0x28] sm:$0xf]
      %v505 = vld [vmem:[%s439 + $0x2c] sm:$0xf]
      %v506 = vld [vmem:[%s439 + $0x30] sm:$0xf]
      %v507 = vld [vmem:[%s439 + $0x34] sm:$0xf]
      %v508 = vld [vmem:[%s439 + $0x38] sm:$0xf]
      %v509 = vld [vmem:[%s439 + $0x3c] sm:$0xf]
      %v510 = vld [vmem:[%s439 + $0x40] sm:$0xf]
      %v511 = vld [vmem:[%s439 + $0x44] sm:$0xf]
      %v512 = vld [vmem:[%s439 + $0x48] sm:$0xf]
      %v513 = vld [vmem:[%s439 + $0x4c] sm:$0xf]
      %v514 = vld [vmem:[%s439 + $0x50] sm:$0xf]
      %v515 = vld [vmem:[%s439 + $0x54] sm:$0xf]
      %v516 = vld [vmem:[%s439 + $0x58] sm:$0xf]
      %v517 = vld [vmem:[%s439 + $0x5c] sm:$0xf]
      %v518 = vld [vmem:[%s439 + $0x60] sm:$0xf]
      %v519 = vld [vmem:[%s439 + $0x64] sm:$0xf]
      %v520 = vld [vmem:[%s439 + $0x68] sm:$0xf]
      %v521 = vld [vmem:[%s439 + $0x6c] sm:$0xf]
      %v522 = vld [vmem:[%s439 + $0x70] sm:$0xf]
      %v523 = vld [vmem:[%s439 + $0x74] sm:$0xf]
      %v524 = vld [vmem:[%s439 + $0x78] sm:$0xf]
      %v525 = vld [vmem:[%s439 + $0x7c] sm:$0xf]
      %s526 = scalar_lea.vmem [#allocation2], 24
      %527 = vst [vmem:[%s526 + $0x4] sm:$0xf] %v494
      %528 = vst [vmem:[%s526 + $0x10] sm:$0xf] %v495
      %529 = vst [vmem:[%s526 + $0x1c] sm:$0xf] %v496
      %530 = vst [vmem:[%s526 + $0x28] sm:$0xf] %v497
      %531 = vst [vmem:[%s526 + $0x34] sm:$0xf] %v498
      %532 = vst [vmem:[%s526 + $0x40] sm:$0xf] %v499
      %533 = vst [vmem:[%s526 + $0x4c] sm:$0xf] %v500
      %534 = vst [vmem:[%s526 + $0x58] sm:$0xf] %v501
      %535 = vst [vmem:[%s526 + $0x64] sm:$0xf] %v502
      %536 = vst [vmem:[%s526 + $0x70] sm:$0xf] %v503
      %537 = vst [vmem:[%s526 + $0x7c] sm:$0xf] %v504
      %538 = vst [vmem:[%s526 + $0x88] sm:$0xf] %v505
      %539 = vst [vmem:[%s526 + $0x94] sm:$0xf] %v506
      %540 = vst [vmem:[%s526 + $0xa0] sm:$0xf] %v507
      %541 = vst [vmem:[%s526 + $0xac] sm:$0xf] %v508
      %542 = vst [vmem:[%s526 + $0xb8] sm:$0xf] %v509
      %543 = vst [vmem:[%s526 + $0xc4] sm:$0xf] %v510
      %544 = vst [vmem:[%s526 + $0xd0] sm:$0xf] %v511
      %545 = vst [vmem:[%s526 + $0xdc] sm:$0xf] %v512
      %546 = vst [vmem:[%s526 + $0xe8] sm:$0xf] %v513
      %547 = vst [vmem:[%s526 + $0xf4] sm:$0xf] %v514
      %548 = vst [vmem:[%s526 + $0x100] sm:$0xf] %v515
      %549 = vst [vmem:[%s526 + $0x10c] sm:$0xf] %v516
      %550 = vst [vmem:[%s526 + $0x118] sm:$0xf] %v517
      %551 = vst [vmem:[%s526 + $0x124] sm:$0xf] %v518
      %552 = vst [vmem:[%s526 + $0x130] sm:$0xf] %v519
      %553 = vst [vmem:[%s526 + $0x13c] sm:$0xf] %v520
      %554 = vst [vmem:[%s526 + $0x148] sm:$0xf] %v521
      %555 = vst [vmem:[%s526 + $0x154] sm:$0xf] %v522
      %556 = vst [vmem:[%s526 + $0x160] sm:$0xf] %v523
      %557 = vst [vmem:[%s526 + $0x16c] sm:$0xf] %v524
      %558 = vst [vmem:[%s526 + $0x178] sm:$0xf] %v525
      %v559 = vld [vmem:[%s453] sm:$0xf]
      %v560 = vld [vmem:[%s453 + $0x4] sm:$0xf]
      %561 = vst [vmem:[#allocation2 + $0x4] sm:$0xf] %v559
      %562 = vst [vmem:[#allocation2 + $0x10] sm:$0xf] %v560
      %v563 = vld [vmem:[%s470] sm:$0xf]
      %v564 = vld [vmem:[%s470 + $0x4] sm:$0xf]
      %s565 = scalar_lea.vmem [#allocation2], 408
      %566 = vst [vmem:[%s565 + $0x4] sm:$0xf] %v563
      %567 = vst [vmem:[%s565 + $0x10] sm:$0xf] %v564
      %p568 = scmp.eq.s32.totalorder %s25, 0
      // Predicated region
      $region49: #{unet_down_block.3} parent=47 // pred_check
        %p569 = pneg %p568
      $region50: #{unet_down_block.3} parent=47 // pred_check_branch
        %571 = sbr.rel (%p569) target = $region52
      $region51: #{unet_down_block.3} parent=47 // pred_region
        %572 = vst [vmem:[#allocation2 + $0x4] sm:$0xf] 0
        %573 = vst [vmem:[#allocation2 + $0x10] sm:$0xf] 0
        %574 = vst [vmem:[%s565 + $0x4] sm:$0xf] 0
        %575 = vst [vmem:[%s565 + $0x10] sm:$0xf] 0
      $region52: #{unet_down_block.3} parent=47 // pred_fallthru
        _
      %v576 = vld [vmem:[#allocation2 + $0x4] sm:$0xf]
      %v577 = vld [vmem:[#allocation2 + $0x10] sm:$0xf]
      %v578 = vld [vmem:[#allocation2 + $0x1c] sm:$0xf]
      %v579 = vld [vmem:[#allocation2 + $0x28] sm:$0xf]
      %v580 = vld [vmem:[#allocation2 + $0x34] sm:$0xf]
      %v581 = vld [vmem:[#allocation2 + $0x40] sm:$0xf]
      %v582 = vld [vmem:[#allocation2 + $0x4c] sm:$0xf]
      %v583 = vld [vmem:[#allocation2 + $0x58] sm:$0xf]
      %v584 = vld [vmem:[#allocation2 + $0x64] sm:$0xf]
      %v585 = vld [vmem:[#allocation2 + $0x70] sm:$0xf]
      %v586 = vld [vmem:[#allocation2 + $0x7c] sm:$0xf]
      %v587 = vld [vmem:[#allocation2 + $0x88] sm:$0xf]
      %v588 = vld [vmem:[#allocation2 + $0x94] sm:$0xf]
      %v589 = vld [vmem:[#allocation2 + $0xa0] sm:$0xf]
      %v590 = vld [vmem:[#allocation2 + $0xac] sm:$0xf]
      %v591 = vld [vmem:[#allocation2 + $0xb8] sm:$0xf]
      %v592 = vld [vmem:[#allocation2 + $0xc4] sm:$0xf]
      %v593 = vld [vmem:[#allocation2 + $0xd0] sm:$0xf]
      %v594 = vld [vmem:[#allocation2 + $0xdc] sm:$0xf]
      %v595 = vld [vmem:[#allocation2 + $0xe8] sm:$0xf]
      %v596 = vld [vmem:[#allocation2 + $0xf4] sm:$0xf]
      %v597 = vld [vmem:[#allocation2 + $0x100] sm:$0xf]
      %v598 = vld [vmem:[#allocation2 + $0x10c] sm:$0xf]
      %v599 = vld [vmem:[#allocation2 + $0x118] sm:$0xf]
      %v600 = vld [vmem:[#allocation2 + $0x124] sm:$0xf]
      %v601 = vld [vmem:[#allocation2 + $0x130] sm:$0xf]
      %v602 = vld [vmem:[#allocation2 + $0x13c] sm:$0xf]
      %v603 = vld [vmem:[#allocation2 + $0x148] sm:$0xf]
      %v604 = vld [vmem:[#allocation2 + $0x154] sm:$0xf]
      %v605 = vld [vmem:[#allocation2 + $0x160] sm:$0xf]
      %v606 = vld [vmem:[#allocation2 + $0x16c] sm:$0xf]
      %v607 = vld [vmem:[#allocation2 + $0x178] sm:$0xf]
      %v608 = vld [vmem:[#allocation2 + $0x184] sm:$0xf]
      %v609 = vld [vmem:[#allocation2 + $0x190] sm:$0xf]
      %v610 = vld [vmem:[#allocation2 + $0x19c] sm:$0xf]
      %v611 = vld [vmem:[#allocation2 + $0x1a8] sm:$0xf]
      %v648 = vunpack.c.l.b16 %v576
      %v649 = vunpack.c.l.b16 %v577
      %v650 = vunpack.c.l.b16 %v578
      %v651 = vunpack.c.l.b16 %v579
      %v652 = vunpack.c.l.b16 %v580
      %v653 = vunpack.c.l.b16 %v581
      %v654 = vunpack.c.l.b16 %v582
      %v655 = vunpack.c.l.b16 %v583
      %v656 = vunpack.c.l.b16 %v584
      %v657 = vunpack.c.l.b16 %v585
      %v658 = vunpack.c.l.b16 %v586
      %v659 = vunpack.c.l.b16 %v587
      %v660 = vunpack.c.l.b16 %v588
      %v661 = vunpack.c.l.b16 %v589
      %v662 = vunpack.c.l.b16 %v590
      %v663 = vunpack.c.l.b16 %v591
      %v664 = vunpack.c.l.b16 %v592
      %v665 = vunpack.c.l.b16 %v593
      %v666 = vunpack.c.l.b16 %v594
      %v667 = vunpack.c.l.b16 %v595
      %v668 = vunpack.c.l.b16 %v596
      %v669 = vunpack.c.l.b16 %v597
      %v670 = vunpack.c.l.b16 %v598
      %v671 = vunpack.c.l.b16 %v599
      %v672 = vunpack.c.l.b16 %v600
      %v673 = vunpack.c.l.b16 %v601
      %v674 = vunpack.c.l.b16 %v602
      %v675 = vunpack.c.l.b16 %v603
      %v676 = vunpack.c.l.b16 %v604
      %v677 = vunpack.c.l.b16 %v605
      %v678 = vunpack.c.l.b16 %v606
      %v679 = vunpack.c.l.b16 %v607
      %v680 = vunpack.c.l.b16 %v608
      %v681 = vunpack.c.l.b16 %v609
      %v682 = vunpack.c.l.b16 %v610
      %v683 = vunpack.c.l.b16 %v611
      %v684 = vpack.c.b16 %v649, %v648
      %v685 = vpack.c.b16 %v651, %v650
      %v686 = vpack.c.b16 %v653, %v652
      %v687 = vpack.c.b16 %v655, %v654
      %v688 = vpack.c.b16 %v657, %v656
      %v689 = vpack.c.b16 %v659, %v658
      %v690 = vpack.c.b16 %v661, %v660
      %v691 = vpack.c.b16 %v663, %v662
      %v692 = vpack.c.b16 %v665, %v664
      %v693 = vpack.c.b16 %v667, %v666
      %v694 = vpack.c.b16 %v669, %v668
      %v695 = vpack.c.b16 %v671, %v670
      %v696 = vpack.c.b16 %v673, %v672
      %v697 = vpack.c.b16 %v675, %v674
      %v698 = vpack.c.b16 %v677, %v676
      %v699 = vpack.c.b16 %v679, %v678
      %v700 = vpack.c.b16 %v681, %v680
      %v701 = vpack.c.b16 %v683, %v682
      %v703 = vshrl.u32 %v684, 16
      %v705 = vrot.slane %v703, 7
      %v706 = vshll.u32 %v684, 16
      %v708 = vor.u32 %v705, %v706
      %v710 = vshrl.u32 %v685, 16
      %v712 = vrot.slane %v710, 7
      %v713 = vshll.u32 %v685, 16
      %v715 = vor.u32 %v712, %v713
      %v717 = vshrl.u32 %v686, 16
      %v719 = vrot.slane %v717, 7
      %v720 = vshll.u32 %v686, 16
      %v722 = vor.u32 %v719, %v720
      %v724 = vshrl.u32 %v687, 16
      %v726 = vrot.slane %v724, 7
      %v727 = vshll.u32 %v687, 16
      %v729 = vor.u32 %v726, %v727
      %v731 = vshrl.u32 %v688, 16
      %v733 = vrot.slane %v731, 7
      %v734 = vshll.u32 %v688, 16
      %v736 = vor.u32 %v733, %v734
      %v738 = vshrl.u32 %v689, 16
      %v740 = vrot.slane %v738, 7
      %v741 = vshll.u32 %v689, 16
      %v743 = vor.u32 %v740, %v741
      %v745 = vshrl.u32 %v690, 16
      %v747 = vrot.slane %v745, 7
      %v748 = vshll.u32 %v690, 16
      %v750 = vor.u32 %v747, %v748
      %v752 = vshrl.u32 %v691, 16
      %v754 = vrot.slane %v752, 7
      %v755 = vshll.u32 %v691, 16
      %v757 = vor.u32 %v754, %v755
      %v759 = vshrl.u32 %v692, 16
      %v761 = vrot.slane %v759, 7
      %v762 = vshll.u32 %v692, 16
      %v764 = vor.u32 %v761, %v762
      %v766 = vshrl.u32 %v693, 16
      %v768 = vrot.slane %v766, 7
      %v769 = vshll.u32 %v693, 16
      %v771 = vor.u32 %v768, %v769
      %v773 = vshrl.u32 %v694, 16
      %v775 = vrot.slane %v773, 7
      %v776 = vshll.u32 %v694, 16
      %v778 = vor.u32 %v775, %v776
      %v780 = vshrl.u32 %v695, 16
      %v782 = vrot.slane %v780, 7
      %v783 = vshll.u32 %v695, 16
      %v785 = vor.u32 %v782, %v783
      %v787 = vshrl.u32 %v696, 16
      %v789 = vrot.slane %v787, 7
      %v790 = vshll.u32 %v696, 16
      %v792 = vor.u32 %v789, %v790
      %v794 = vshrl.u32 %v697, 16
      %v796 = vrot.slane %v794, 7
      %v797 = vshll.u32 %v697, 16
      %v799 = vor.u32 %v796, %v797
      %v801 = vshrl.u32 %v698, 16
      %v803 = vrot.slane %v801, 7
      %v804 = vshll.u32 %v698, 16
      %v806 = vor.u32 %v803, %v804
      %v808 = vshrl.u32 %v699, 16
      %v810 = vrot.slane %v808, 7
      %v811 = vshll.u32 %v699, 16
      %v813 = vor.u32 %v810, %v811
      %v815 = vshrl.u32 %v700, 16
      %v817 = vrot.slane %v815, 7
      %v818 = vshll.u32 %v700, 16
      %v820 = vor.u32 %v817, %v818
      %v822 = vshrl.u32 %v701, 16
      %v824 = vrot.slane %v822, 7
      %v825 = vshll.u32 %v701, 16
      %v827 = vor.u32 %v824, %v825
      %vm846 = vcmask 1040384
      %vm847 = vsmask.f32 256
      %vm848 = vmand %vm846, %vm847
      %v849 = vsel %vm848, 0, %v708
      %v850 = vsel %vm848, 0, %v715
      %v851 = vsel %vm848, 0, %v722
      %v852 = vsel %vm848, 0, %v729
      %v853 = vsel %vm848, 0, %v736
      %v854 = vsel %vm848, 0, %v743
      %v855 = vsel %vm848, 0, %v750
      %v856 = vsel %vm848, 0, %v757
      %v857 = vsel %vm848, 0, %v764
      %v858 = vsel %vm848, 0, %v771
      %v859 = vsel %vm848, 0, %v778
      %v860 = vsel %vm848, 0, %v785
      %v861 = vsel %vm848, 0, %v792
      %v862 = vsel %vm848, 0, %v799
      %v863 = vsel %vm848, 0, %v806
      %v864 = vsel %vm848, 0, %v813
      %v865 = vsel %vm848, 0, %v820
      %v866 = vsel %vm848, 0, %v827
      %v885 = vunpack.c.l.b16 %v849
      %v886 = vunpack.c.h.b16 %v849
      %v887 = vunpack.c.l.b16 %v850
      %v888 = vunpack.c.h.b16 %v850
      %v889 = vunpack.c.l.b16 %v851
      %v890 = vunpack.c.h.b16 %v851
      %v891 = vunpack.c.l.b16 %v852
      %v892 = vunpack.c.h.b16 %v852
      %v893 = vunpack.c.l.b16 %v853
      %v894 = vunpack.c.h.b16 %v853
      %v895 = vunpack.c.l.b16 %v854
      %v896 = vunpack.c.h.b16 %v854
      %v897 = vunpack.c.l.b16 %v855
      %v898 = vunpack.c.h.b16 %v855
      %v899 = vunpack.c.l.b16 %v856
      %v900 = vunpack.c.h.b16 %v856
      %v901 = vunpack.c.l.b16 %v857
      %v902 = vunpack.c.h.b16 %v857
      %v903 = vunpack.c.l.b16 %v858
      %v904 = vunpack.c.h.b16 %v858
      %v905 = vunpack.c.l.b16 %v859
      %v906 = vunpack.c.h.b16 %v859
      %v907 = vunpack.c.l.b16 %v860
      %v908 = vunpack.c.h.b16 %v860
      %v909 = vunpack.c.l.b16 %v861
      %v910 = vunpack.c.h.b16 %v861
      %v911 = vunpack.c.l.b16 %v862
      %v912 = vunpack.c.h.b16 %v862
      %v913 = vunpack.c.l.b16 %v863
      %v914 = vunpack.c.h.b16 %v863
      %v915 = vunpack.c.l.b16 %v864
      %v916 = vunpack.c.h.b16 %v864
      %v917 = vunpack.c.l.b16 %v865
      %v918 = vunpack.c.h.b16 %v865
      %v919 = vunpack.c.l.b16 %v866
      %v920 = vunpack.c.h.b16 %v866
      %v921 = vpack.c.b16 %v885, %v885
      %v922 = vpack.c.b16 %v886, %v886
      %v923 = vpack.c.b16 %v887, %v887
      %v924 = vpack.c.b16 %v888, %v888
      %v925 = vpack.c.b16 %v889, %v889
      %v926 = vpack.c.b16 %v890, %v890
      %v927 = vpack.c.b16 %v891, %v891
      %v928 = vpack.c.b16 %v892, %v892
      %v929 = vpack.c.b16 %v893, %v893
      %v930 = vpack.c.b16 %v894, %v894
      %v931 = vpack.c.b16 %v895, %v895
      %v932 = vpack.c.b16 %v896, %v896
      %v933 = vpack.c.b16 %v897, %v897
      %v934 = vpack.c.b16 %v898, %v898
      %v935 = vpack.c.b16 %v899, %v899
      %v936 = vpack.c.b16 %v900, %v900
      %v937 = vpack.c.b16 %v901, %v901
      %v938 = vpack.c.b16 %v902, %v902
      %v939 = vpack.c.b16 %v903, %v903
      %v940 = vpack.c.b16 %v904, %v904
      %v941 = vpack.c.b16 %v905, %v905
      %v942 = vpack.c.b16 %v906, %v906
      %v943 = vpack.c.b16 %v907, %v907
      %v944 = vpack.c.b16 %v908, %v908
      %v945 = vpack.c.b16 %v909, %v909
      %v946 = vpack.c.b16 %v910, %v910
      %v947 = vpack.c.b16 %v911, %v911
      %v948 = vpack.c.b16 %v912, %v912
      %v949 = vpack.c.b16 %v913, %v913
      %v950 = vpack.c.b16 %v914, %v914
      %v951 = vpack.c.b16 %v915, %v915
      %v952 = vpack.c.b16 %v916, %v916
      %v953 = vpack.c.b16 %v917, %v917
      %v954 = vpack.c.b16 %v918, %v918
      %v955 = vpack.c.b16 %v919, %v919
      %v956 = vpack.c.b16 %v920, %v920
      %993 = vst [vmem:[#allocation2] sm:$0xf] %v921
      %994 = vst [vmem:[#allocation2 + $0xc] sm:$0xf] %v922
      %995 = vst [vmem:[#allocation2 + $0x18] sm:$0xf] %v923
      %996 = vst [vmem:[#allocation2 + $0x24] sm:$0xf] %v924
      %997 = vst [vmem:[#allocation2 + $0x30] sm:$0xf] %v925
      %998 = vst [vmem:[#allocation2 + $0x3c] sm:$0xf] %v926
      %999 = vst [vmem:[#allocation2 + $0x48] sm:$0xf] %v927
      %1000 = vst [vmem:[#allocation2 + $0x54] sm:$0xf] %v928
      %1001 = vst [vmem:[#allocation2 + $0x60] sm:$0xf] %v929
      %1002 = vst [vmem:[#allocation2 + $0x6c] sm:$0xf] %v930
      %1003 = vst [vmem:[#allocation2 + $0x78] sm:$0xf] %v931
      %1004 = vst [vmem:[#allocation2 + $0x84] sm:$0xf] %v932
      %1005 = vst [vmem:[#allocation2 + $0x90] sm:$0xf] %v933
      %1006 = vst [vmem:[#allocation2 + $0x9c] sm:$0xf] %v934
      %1007 = vst [vmem:[#allocation2 + $0xa8] sm:$0xf] %v935
      %1008 = vst [vmem:[#allocation2 + $0xb4] sm:$0xf] %v936
      %1009 = vst [vmem:[#allocation2 + $0xc0] sm:$0xf] %v937
      %1010 = vst [vmem:[#allocation2 + $0xcc] sm:$0xf] %v938
      %1011 = vst [vmem:[#allocation2 + $0xd8] sm:$0xf] %v939
      %1012 = vst [vmem:[#allocation2 + $0xe4] sm:$0xf] %v940
      %1013 = vst [vmem:[#allocation2 + $0xf0] sm:$0xf] %v941
      %1014 = vst [vmem:[#allocation2 + $0xfc] sm:$0xf] %v942
      %1015 = vst [vmem:[#allocation2 + $0x108] sm:$0xf] %v943
      %1016 = vst [vmem:[#allocation2 + $0x114] sm:$0xf] %v944
      %1017 = vst [vmem:[#allocation2 + $0x120] sm:$0xf] %v945
      %1018 = vst [vmem:[#allocation2 + $0x12c] sm:$0xf] %v946
      %1019 = vst [vmem:[#allocation2 + $0x138] sm:$0xf] %v947
      %1020 = vst [vmem:[#allocation2 + $0x144] sm:$0xf] %v948
      %1021 = vst [vmem:[#allocation2 + $0x150] sm:$0xf] %v949
      %1022 = vst [vmem:[#allocation2 + $0x15c] sm:$0xf] %v950
      %1023 = vst [vmem:[#allocation2 + $0x168] sm:$0xf] %v951
      %1024 = vst [vmem:[#allocation2 + $0x174] sm:$0xf] %v952
      %1025 = vst [vmem:[#allocation2 + $0x180] sm:$0xf] %v953
      %1026 = vst [vmem:[#allocation2 + $0x18c] sm:$0xf] %v954
      %1027 = vst [vmem:[#allocation2 + $0x198] sm:$0xf] %v955
      %1028 = vst [vmem:[#allocation2 + $0x1a4] sm:$0xf] %v956
      %v1029 = vrot.slane %v706, 1
      %v1030 = vor.u32 %v703, %v1029
      %v1031 = vrot.slane %v713, 1
      %v1032 = vor.u32 %v710, %v1031
      %v1033 = vrot.slane %v720, 1
      %v1034 = vor.u32 %v717, %v1033
      %v1035 = vrot.slane %v727, 1
      %v1036 = vor.u32 %v724, %v1035
      %v1037 = vrot.slane %v734, 1
      %v1038 = vor.u32 %v731, %v1037
      %v1039 = vrot.slane %v741, 1
      %v1040 = vor.u32 %v738, %v1039
      %v1041 = vrot.slane %v748, 1
      %v1042 = vor.u32 %v745, %v1041
      %v1043 = vrot.slane %v755, 1
      %v1044 = vor.u32 %v752, %v1043
      %v1045 = vrot.slane %v762, 1
      %v1046 = vor.u32 %v759, %v1045
      %v1047 = vrot.slane %v769, 1
      %v1048 = vor.u32 %v766, %v1047
      %v1049 = vrot.slane %v776, 1
      %v1050 = vor.u32 %v773, %v1049
      %v1051 = vrot.slane %v783, 1
      %v1052 = vor.u32 %v780, %v1051
      %v1053 = vrot.slane %v790, 1
      %v1054 = vor.u32 %v787, %v1053
      %v1055 = vrot.slane %v797, 1
      %v1056 = vor.u32 %v794, %v1055
      %v1057 = vrot.slane %v804, 1
      %v1058 = vor.u32 %v801, %v1057
      %v1059 = vrot.slane %v811, 1
      %v1060 = vor.u32 %v808, %v1059
      %v1061 = vrot.slane %v818, 1
      %v1062 = vor.u32 %v815, %v1061
      %v1063 = vrot.slane %v825, 1
      %v1064 = vor.u32 %v822, %v1063
      %vm1083 = vcmask 1047552
      %vm1084 = vsmask.f32 7424
      %vm1085 = vmand %vm1083, %vm1084
      %v1086 = vsel %vm1085, %v1030, 0
      %v1087 = vsel %vm1085, %v1032, 0
      %v1088 = vsel %vm1085, %v1034, 0
      %v1089 = vsel %vm1085, %v1036, 0
      %v1090 = vsel %vm1085, %v1038, 0
      %v1091 = vsel %vm1085, %v1040, 0
      %v1092 = vsel %vm1085, %v1042, 0
      %v1093 = vsel %vm1085, %v1044, 0
      %v1094 = vsel %vm1085, %v1046, 0
      %v1095 = vsel %vm1085, %v1048, 0
      %v1096 = vsel %vm1085, %v1050, 0
      %v1097 = vsel %vm1085, %v1052, 0
      %v1098 = vsel %vm1085, %v1054, 0
      %v1099 = vsel %vm1085, %v1056, 0
      %v1100 = vsel %vm1085, %v1058, 0
      %v1101 = vsel %vm1085, %v1060, 0
      %v1102 = vsel %vm1085, %v1062, 0
      %v1103 = vsel %vm1085, %v1064, 0
      %v1122 = vunpack.c.l.b16 %v1086
      %v1123 = vunpack.c.h.b16 %v1086
      %v1124 = vunpack.c.l.b16 %v1087
      %v1125 = vunpack.c.h.b16 %v1087
      %v1126 = vunpack.c.l.b16 %v1088
      %v1127 = vunpack.c.h.b16 %v1088
      %v1128 = vunpack.c.l.b16 %v1089
      %v1129 = vunpack.c.h.b16 %v1089
      %v1130 = vunpack.c.l.b16 %v1090
      %v1131 = vunpack.c.h.b16 %v1090
      %v1132 = vunpack.c.l.b16 %v1091
      %v1133 = vunpack.c.h.b16 %v1091
      %v1134 = vunpack.c.l.b16 %v1092
      %v1135 = vunpack.c.h.b16 %v1092
      %v1136 = vunpack.c.l.b16 %v1093
      %v1137 = vunpack.c.h.b16 %v1093
      %v1138 = vunpack.c.l.b16 %v1094
      %v1139 = vunpack.c.h.b16 %v1094
      %v1140 = vunpack.c.l.b16 %v1095
      %v1141 = vunpack.c.h.b16 %v1095
      %v1142 = vunpack.c.l.b16 %v1096
      %v1143 = vunpack.c.h.b16 %v1096
      %v1144 = vunpack.c.l.b16 %v1097
      %v1145 = vunpack.c.h.b16 %v1097
      %v1146 = vunpack.c.l.b16 %v1098
      %v1147 = vunpack.c.h.b16 %v1098
      %v1148 = vunpack.c.l.b16 %v1099
      %v1149 = vunpack.c.h.b16 %v1099
      %v1150 = vunpack.c.l.b16 %v1100
      %v1151 = vunpack.c.h.b16 %v1100
      %v1152 = vunpack.c.l.b16 %v1101
      %v1153 = vunpack.c.h.b16 %v1101
      %v1154 = vunpack.c.l.b16 %v1102
      %v1155 = vunpack.c.h.b16 %v1102
      %v1156 = vunpack.c.l.b16 %v1103
      %v1157 = vunpack.c.h.b16 %v1103
      %v1158 = vpack.c.b16 %v1122, %v1122
      %v1159 = vpack.c.b16 %v1123, %v1123
      %v1160 = vpack.c.b16 %v1124, %v1124
      %v1161 = vpack.c.b16 %v1125, %v1125
      %v1162 = vpack.c.b16 %v1126, %v1126
      %v1163 = vpack.c.b16 %v1127, %v1127
      %v1164 = vpack.c.b16 %v1128, %v1128
      %v1165 = vpack.c.b16 %v1129, %v1129
      %v1166 = vpack.c.b16 %v1130, %v1130
      %v1167 = vpack.c.b16 %v1131, %v1131
      %v1168 = vpack.c.b16 %v1132, %v1132
      %v1169 = vpack.c.b16 %v1133, %v1133
      %v1170 = vpack.c.b16 %v1134, %v1134
      %v1171 = vpack.c.b16 %v1135, %v1135
      %v1172 = vpack.c.b16 %v1136, %v1136
      %v1173 = vpack.c.b16 %v1137, %v1137
      %v1174 = vpack.c.b16 %v1138, %v1138
      %v1175 = vpack.c.b16 %v1139, %v1139
      %v1176 = vpack.c.b16 %v1140, %v1140
      %v1177 = vpack.c.b16 %v1141, %v1141
      %v1178 = vpack.c.b16 %v1142, %v1142
      %v1179 = vpack.c.b16 %v1143, %v1143
      %v1180 = vpack.c.b16 %v1144, %v1144
      %v1181 = vpack.c.b16 %v1145, %v1145
      %v1182 = vpack.c.b16 %v1146, %v1146
      %v1183 = vpack.c.b16 %v1147, %v1147
      %v1184 = vpack.c.b16 %v1148, %v1148
      %v1185 = vpack.c.b16 %v1149, %v1149
      %v1186 = vpack.c.b16 %v1150, %v1150
      %v1187 = vpack.c.b16 %v1151, %v1151
      %v1188 = vpack.c.b16 %v1152, %v1152
      %v1189 = vpack.c.b16 %v1153, %v1153
      %v1190 = vpack.c.b16 %v1154, %v1154
      %v1191 = vpack.c.b16 %v1155, %v1155
      %v1192 = vpack.c.b16 %v1156, %v1156
      %v1193 = vpack.c.b16 %v1157, %v1157
      %1230 = vst [vmem:[#allocation2 + $0x8] sm:$0xf] %v1158
      %1231 = vst [vmem:[#allocation2 + $0x14] sm:$0xf] %v1159
      %1232 = vst [vmem:[#allocation2 + $0x20] sm:$0xf] %v1160
      %1233 = vst [vmem:[#allocation2 + $0x2c] sm:$0xf] %v1161
      %1234 = vst [vmem:[#allocation2 + $0x38] sm:$0xf] %v1162
      %1235 = vst [vmem:[#allocation2 + $0x44] sm:$0xf] %v1163
      %1236 = vst [vmem:[#allocation2 + $0x50] sm:$0xf] %v1164
      %1237 = vst [vmem:[#allocation2 + $0x5c] sm:$0xf] %v1165
      %1238 = vst [vmem:[#allocation2 + $0x68] sm:$0xf] %v1166
      %1239 = vst [vmem:[#allocation2 + $0x74] sm:$0xf] %v1167
      %1240 = vst [vmem:[#allocation2 + $0x80] sm:$0xf] %v1168
      %1241 = vst [vmem:[#allocation2 + $0x8c] sm:$0xf] %v1169
      %1242 = vst [vmem:[#allocation2 + $0x98] sm:$0xf] %v1170
      %1243 = vst [vmem:[#allocation2 + $0xa4] sm:$0xf] %v1171
      %1244 = vst [vmem:[#allocation2 + $0xb0] sm:$0xf] %v1172
      %1245 = vst [vmem:[#allocation2 + $0xbc] sm:$0xf] %v1173
      %1246 = vst [vmem:[#allocation2 + $0xc8] sm:$0xf] %v1174
      %1247 = vst [vmem:[#allocation2 + $0xd4] sm:$0xf] %v1175
      %1248 = vst [vmem:[#allocation2 + $0xe0] sm:$0xf] %v1176
      %1249 = vst [vmem:[#allocation2 + $0xec] sm:$0xf] %v1177
      %1250 = vst [vmem:[#allocation2 + $0xf8] sm:$0xf] %v1178
      %1251 = vst [vmem:[#allocation2 + $0x104] sm:$0xf] %v1179
      %1252 = vst [vmem:[#allocation2 + $0x110] sm:$0xf] %v1180
      %1253 = vst [vmem:[#allocation2 + $0x11c] sm:$0xf] %v1181
      %1254 = vst [vmem:[#allocation2 + $0x128] sm:$0xf] %v1182
      %1255 = vst [vmem:[#allocation2 + $0x134] sm:$0xf] %v1183
      %1256 = vst [vmem:[#allocation2 + $0x140] sm:$0xf] %v1184
      %1257 = vst [vmem:[#allocation2 + $0x14c] sm:$0xf] %v1185
      %1258 = vst [vmem:[#allocation2 + $0x158] sm:$0xf] %v1186
      %1259 = vst [vmem:[#allocation2 + $0x164] sm:$0xf] %v1187
      %1260 = vst [vmem:[#allocation2 + $0x170] sm:$0xf] %v1188
      %1261 = vst [vmem:[#allocation2 + $0x17c] sm:$0xf] %v1189
      %1262 = vst [vmem:[#allocation2 + $0x188] sm:$0xf] %v1190
      %1263 = vst [vmem:[#allocation2 + $0x194] sm:$0xf] %v1191
      %1264 = vst [vmem:[#allocation2 + $0x1a0] sm:$0xf] %v1192
      %1265 = vst [vmem:[#allocation2 + $0x1ac] sm:$0xf] %v1193
      %v1266 = vld [vmem:[#allocation2] sm:$0xff]
      %v1267 = vld [vmem:[#allocation2 + $0x8] sm:$0xf]
      %v1268 = vld [vmem:[#allocation2 + $0xc] sm:$0xff]
      %v1269 = vld [vmem:[#allocation2 + $0x14] sm:$0xf]
      %v1270 = vld [vmem:[#allocation2 + $0x18] sm:$0xff]
      %v1271 = vld [vmem:[#allocation2 + $0x20] sm:$0xf]
      %v1272 = vld [vmem:[#allocation2 + $0x24] sm:$0xff]
      %v1273 = vld [vmem:[#allocation2 + $0x2c] sm:$0xf]
      %v1274 = vld [vmem:[#allocation2 + $0x30] sm:$0xff]
      %v1275 = vld [vmem:[#allocation2 + $0x38] sm:$0xf]
      %v1276 = vld [vmem:[#allocation2 + $0x3c] sm:$0xff]
      %v1277 = vld [vmem:[#allocation2 + $0x44] sm:$0xf]
      %v1278 = vld [vmem:[#allocation2 + $0x48] sm:$0xff]
      %v1279 = vld [vmem:[#allocation2 + $0x50] sm:$0xf]
      %v1280 = vld [vmem:[#allocation2 + $0x54] sm:$0xff]
      %v1281 = vld [vmem:[#allocation2 + $0x5c] sm:$0xf]
      %v1282 = vld [vmem:[#allocation2 + $0x60] sm:$0xff]
      %v1283 = vld [vmem:[#allocation2 + $0x68] sm:$0xf]
      %v1284 = vld [vmem:[#allocation2 + $0x6c] sm:$0xff]
      %v1285 = vld [vmem:[#allocation2 + $0x74] sm:$0xf]
      %v1286 = vld [vmem:[#allocation2 + $0x78] sm:$0xff]
      %v1287 = vld [vmem:[#allocation2 + $0x80] sm:$0xf]
      %v1288 = vld [vmem:[#allocation2 + $0x84] sm:$0xff]
      %v1289 = vld [vmem:[#allocation2 + $0x8c] sm:$0xf]
      %v1290 = vld [vmem:[#allocation2 + $0x90] sm:$0xff]
      %v1291 = vld [vmem:[#allocation2 + $0x98] sm:$0xf]
      %v1292 = vld [vmem:[#allocation2 + $0x9c] sm:$0xff]
      %v1293 = vld [vmem:[#allocation2 + $0xa4] sm:$0xf]
      %v1294 = vld [vmem:[#allocation2 + $0xa8] sm:$0xff]
      %v1295 = vld [vmem:[#allocation2 + $0xb0] sm:$0xf]
      %v1296 = vld [vmem:[#allocation2 + $0xb4] sm:$0xff]
      %v1297 = vld [vmem:[#allocation2 + $0xbc] sm:$0xf]
      %v1298 = vld [vmem:[#allocation2 + $0xc0] sm:$0xff]
      %v1299 = vld [vmem:[#allocation2 + $0xc8] sm:$0xf]
      %v1300 = vld [vmem:[#allocation2 + $0xcc] sm:$0xff]
      %v1301 = vld [vmem:[#allocation2 + $0xd4] sm:$0xf]
      %v1302 = vld [vmem:[#allocation2 + $0xd8] sm:$0xff]
      %v1303 = vld [vmem:[#allocation2 + $0xe0] sm:$0xf]
      %v1304 = vld [vmem:[#allocation2 + $0xe4] sm:$0xff]
      %v1305 = vld [vmem:[#allocation2 + $0xec] sm:$0xf]
      %v1306 = vld [vmem:[#allocation2 + $0xf0] sm:$0xff]
      %v1307 = vld [vmem:[#allocation2 + $0xf8] sm:$0xf]
      %v1308 = vld [vmem:[#allocation2 + $0xfc] sm:$0xff]
      %v1309 = vld [vmem:[#allocation2 + $0x104] sm:$0xf]
      %v1310 = vld [vmem:[#allocation2 + $0x108] sm:$0xff]
      %v1311 = vld [vmem:[#allocation2 + $0x110] sm:$0xf]
      %v1312 = vld [vmem:[#allocation2 + $0x114] sm:$0xff]
      %v1313 = vld [vmem:[#allocation2 + $0x11c] sm:$0xf]
      %v1314 = vld [vmem:[#allocation2 + $0x120] sm:$0xff]
      %v1315 = vld [vmem:[#allocation2 + $0x128] sm:$0xf]
      %v1316 = vld [vmem:[#allocation2 + $0x12c] sm:$0xff]
      %v1317 = vld [vmem:[#allocation2 + $0x134] sm:$0xf]
      %v1318 = vld [vmem:[#allocation2 + $0x138] sm:$0xff]
      %v1319 = vld [vmem:[#allocation2 + $0x140] sm:$0xf]
      %v1320 = vld [vmem:[#allocation2 + $0x144] sm:$0xff]
      %v1321 = vld [vmem:[#allocation2 + $0x14c] sm:$0xf]
      %v1322 = vld [vmem:[#allocation2 + $0x150] sm:$0xff]
      %v1323 = vld [vmem:[#allocation2 + $0x158] sm:$0xf]
      %v1324 = vld [vmem:[#allocation2 + $0x15c] sm:$0xff]
      %v1325 = vld [vmem:[#allocation2 + $0x164] sm:$0xf]
      %v1326 = vld [vmem:[#allocation2 + $0x168] sm:$0xff]
      %v1327 = vld [vmem:[#allocation2 + $0x170] sm:$0xf]
      %v1328 = vld [vmem:[#allocation2 + $0x174] sm:$0xff]
      %v1329 = vld [vmem:[#allocation2 + $0x17c] sm:$0xf]
      %v1330 = vld [vmem:[%s3] sm:$0xf]
      %v1331 = vld [vmem:[%s3 + $0x4] sm:$0xf]
      %v1332 = vld [vmem:[%s3 + $0x8] sm:$0xf]
      %v1333 = vld [vmem:[%s3 + $0xc] sm:$0xf]
      %v1334 = vld [vmem:[%s3 + $0x10] sm:$0xf]
      %v1335 = vld [vmem:[%s3 + $0x14] sm:$0xf]
      %v1336 = vld [vmem:[%s3 + $0x18] sm:$0xf]
      %v1337 = vld [vmem:[%s3 + $0x1c] sm:$0xf]
      %v1338 = vld [vmem:[%s3 + $0x20] sm:$0xf]
      %v1339 = vld [vmem:[%s3 + $0x24] sm:$0xf]
      %v1340 = vld [vmem:[%s3 + $0x28] sm:$0xf]
      %v1341 = vld [vmem:[%s3 + $0x2c] sm:$0xf]
      %v1342 = vld [vmem:[%s3 + $0x30] sm:$0xf]
      %v1343 = vld [vmem:[%s3 + $0x34] sm:$0xf]
      %v1344 = vld [vmem:[%s3 + $0x38] sm:$0xf]
      %v1345 = vld [vmem:[%s3 + $0x3c] sm:$0xf]
      %v1346 = vld [vmem:[%s3 + $0x40] sm:$0xf]
      %v1347 = vld [vmem:[%s3 + $0x44] sm:$0xf]
      %v1348 = vld [vmem:[%s3 + $0x48] sm:$0xf]
      %v1349 = vld [vmem:[%s3 + $0x4c] sm:$0xf]
      %v1350 = vld [vmem:[%s3 + $0x50] sm:$0xf]
      %v1351 = vld [vmem:[%s3 + $0x54] sm:$0xf]
      %v1352 = vld [vmem:[%s3 + $0x58] sm:$0xf]
      %v1353 = vld [vmem:[%s3 + $0x5c] sm:$0xf]
      %v1354 = vld [vmem:[%s3 + $0x60] sm:$0xf]
      %v1355 = vld [vmem:[%s3 + $0x64] sm:$0xf]
      %v1356 = vld [vmem:[%s3 + $0x68] sm:$0xf]
      %v1357 = vld [vmem:[%s3 + $0x6c] sm:$0xf]
      %v1358 = vld [vmem:[%s3 + $0x70] sm:$0xf]
      %v1359 = vld [vmem:[%s3 + $0x74] sm:$0xf]
      %v1360 = vld [vmem:[%s3 + $0x78] sm:$0xf]
      %v1361 = vld [vmem:[%s3 + $0x7c] sm:$0xf]
      %v1362 = vld [vmem:[%s3 + $0x80] sm:$0xf]
      %v1363 = vld [vmem:[%s3 + $0x84] sm:$0xf]
      %v1364 = vld [vmem:[%s3 + $0x88] sm:$0xf]
      %v1365 = vld [vmem:[%s3 + $0x8c] sm:$0xf]
      %v1366 = vld [vmem:[%s3 + $0x90] sm:$0xf]
      %v1367 = vld [vmem:[%s3 + $0x94] sm:$0xf]
      %v1368 = vld [vmem:[%s3 + $0x98] sm:$0xf]
      %v1369 = vld [vmem:[%s3 + $0x9c] sm:$0xf]
      %v1370 = vld [vmem:[%s3 + $0xa0] sm:$0xf]
      %v1371 = vld [vmem:[%s3 + $0xa4] sm:$0xf]
      %v1372 = vld [vmem:[%s3 + $0xa8] sm:$0xf]
      %v1373 = vld [vmem:[%s3 + $0xac] sm:$0xf]
      %v1374 = vld [vmem:[%s3 + $0xb0] sm:$0xf]
      %v1375 = vld [vmem:[%s3 + $0xb4] sm:$0xf]
      %v1376 = vld [vmem:[%s3 + $0xb8] sm:$0xf]
      %v1377 = vld [vmem:[%s3 + $0xbc] sm:$0xf]
      %v1442 = vunpack.c.l.b16 %v1266
      %v1443 = vunpack.c.h.b16 %v1266
      %v1444 = vunpack.c.l.b16 %v1267
      %v1445 = vunpack.c.l.b16 %v1268
      %v1446 = vunpack.c.h.b16 %v1268
      %v1447 = vunpack.c.l.b16 %v1269
      %v1448 = vunpack.c.l.b16 %v1270
      %v1449 = vunpack.c.h.b16 %v1270
      %v1450 = vunpack.c.l.b16 %v1271
      %v1451 = vunpack.c.l.b16 %v1272
      %v1452 = vunpack.c.h.b16 %v1272
      %v1453 = vunpack.c.l.b16 %v1273
      %v1454 = vunpack.c.l.b16 %v1274
      %v1455 = vunpack.c.h.b16 %v1274
      %v1456 = vunpack.c.l.b16 %v1275
      %v1457 = vunpack.c.l.b16 %v1276
      %v1458 = vunpack.c.h.b16 %v1276
      %v1459 = vunpack.c.l.b16 %v1277
      %v1460 = vunpack.c.l.b16 %v1278
      %v1461 = vunpack.c.h.b16 %v1278
      %v1462 = vunpack.c.l.b16 %v1279
      %v1463 = vunpack.c.l.b16 %v1280
      %v1464 = vunpack.c.h.b16 %v1280
      %v1465 = vunpack.c.l.b16 %v1281
      %v1466 = vunpack.c.l.b16 %v1282
      %v1467 = vunpack.c.h.b16 %v1282
      %v1468 = vunpack.c.l.b16 %v1283
      %v1469 = vunpack.c.l.b16 %v1284
      %v1470 = vunpack.c.h.b16 %v1284
      %v1471 = vunpack.c.l.b16 %v1285
      %v1472 = vunpack.c.l.b16 %v1286
      %v1473 = vunpack.c.h.b16 %v1286
      %v1474 = vunpack.c.l.b16 %v1287
      %v1475 = vunpack.c.l.b16 %v1288
      %v1476 = vunpack.c.h.b16 %v1288
      %v1477 = vunpack.c.l.b16 %v1289
      %v1478 = vunpack.c.l.b16 %v1290
      %v1479 = vunpack.c.h.b16 %v1290
      %v1480 = vunpack.c.l.b16 %v1291
      %v1481 = vunpack.c.l.b16 %v1292
      %v1482 = vunpack.c.h.b16 %v1292
      %v1483 = vunpack.c.l.b16 %v1293
      %v1484 = vunpack.c.l.b16 %v1294
      %v1485 = vunpack.c.h.b16 %v1294
      %v1486 = vunpack.c.l.b16 %v1295
      %v1487 = vunpack.c.l.b16 %v1296
      %v1488 = vunpack.c.h.b16 %v1296
      %v1489 = vunpack.c.l.b16 %v1297
      %v1490 = vunpack.c.l.b16 %v1298
      %v1491 = vunpack.c.h.b16 %v1298
      %v1492 = vunpack.c.l.b16 %v1299
      %v1493 = vunpack.c.l.b16 %v1300
      %v1494 = vunpack.c.h.b16 %v1300
      %v1495 = vunpack.c.l.b16 %v1301
      %v1496 = vunpack.c.l.b16 %v1302
      %v1497 = vunpack.c.h.b16 %v1302
      %v1498 = vunpack.c.l.b16 %v1303
      %v1499 = vunpack.c.l.b16 %v1304
      %v1500 = vunpack.c.h.b16 %v1304
      %v1501 = vunpack.c.l.b16 %v1305
      %v1502 = vunpack.c.l.b16 %v1306
      %v1503 = vunpack.c.h.b16 %v1306
      %v1504 = vunpack.c.l.b16 %v1307
      %v1505 = vunpack.c.l.b16 %v1308
      %v1506 = vunpack.c.h.b16 %v1308
      %v1507 = vunpack.c.l.b16 %v1309
      %v1508 = vunpack.c.l.b16 %v1310
      %v1509 = vunpack.c.h.b16 %v1310
      %v1510 = vunpack.c.l.b16 %v1311
      %v1511 = vunpack.c.l.b16 %v1312
      %v1512 = vunpack.c.h.b16 %v1312
      %v1513 = vunpack.c.l.b16 %v1313
      %v1514 = vunpack.c.l.b16 %v1314
      %v1515 = vunpack.c.h.b16 %v1314
      %v1516 = vunpack.c.l.b16 %v1315
      %v1517 = vunpack.c.l.b16 %v1316
      %v1518 = vunpack.c.h.b16 %v1316
      %v1519 = vunpack.c.l.b16 %v1317
      %v1520 = vunpack.c.l.b16 %v1318
      %v1521 = vunpack.c.h.b16 %v1318
      %v1522 = vunpack.c.l.b16 %v1319
      %v1523 = vunpack.c.l.b16 %v1320
      %v1524 = vunpack.c.h.b16 %v1320
      %v1525 = vunpack.c.l.b16 %v1321
      %v1526 = vunpack.c.l.b16 %v1322
      %v1527 = vunpack.c.h.b16 %v1322
      %v1528 = vunpack.c.l.b16 %v1323
      %v1529 = vunpack.c.l.b16 %v1324
      %v1530 = vunpack.c.h.b16 %v1324
      %v1531 = vunpack.c.l.b16 %v1325
      %v1532 = vunpack.c.l.b16 %v1326
      %v1533 = vunpack.c.h.b16 %v1326
      %v1534 = vunpack.c.l.b16 %v1327
      %v1535 = vunpack.c.l.b16 %v1328
      %v1536 = vunpack.c.h.b16 %v1328
      %v1537 = vunpack.c.l.b16 %v1329
      %v1538 = vpack.c.b16 %v1445, %v1442
      %v1539 = vpack.c.b16 %v1446, %v1443
      %v1540 = vpack.c.b16 %v1447, %v1444
      %v1541 = vpack.c.b16 %v1451, %v1448
      %v1542 = vpack.c.b16 %v1452, %v1449
      %v1543 = vpack.c.b16 %v1453, %v1450
      %v1544 = vpack.c.b16 %v1457, %v1454
      %v1545 = vpack.c.b16 %v1458, %v1455
      %v1546 = vpack.c.b16 %v1459, %v1456
      %v1547 = vpack.c.b16 %v1463, %v1460
      %v1548 = vpack.c.b16 %v1464, %v1461
      %v1549 = vpack.c.b16 %v1465, %v1462
      %v1550 = vpack.c.b16 %v1469, %v1466
      %v1551 = vpack.c.b16 %v1470, %v1467
      %v1552 = vpack.c.b16 %v1471, %v1468
      %v1553 = vpack.c.b16 %v1475, %v1472
      %v1554 = vpack.c.b16 %v1476, %v1473
      %v1555 = vpack.c.b16 %v1477, %v1474
      %v1556 = vpack.c.b16 %v1481, %v1478
      %v1557 = vpack.c.b16 %v1482, %v1479
      %v1558 = vpack.c.b16 %v1483, %v1480
      %v1559 = vpack.c.b16 %v1487, %v1484
      %v1560 = vpack.c.b16 %v1488, %v1485
      %v1561 = vpack.c.b16 %v1489, %v1486
      %v1562 = vpack.c.b16 %v1493, %v1490
      %v1563 = vpack.c.b16 %v1494, %v1491
      %v1564 = vpack.c.b16 %v1495, %v1492
      %v1565 = vpack.c.b16 %v1499, %v1496
      %v1566 = vpack.c.b16 %v1500, %v1497
      %v1567 = vpack.c.b16 %v1501, %v1498
      %v1568 = vpack.c.b16 %v1505, %v1502
      %v1569 = vpack.c.b16 %v1506, %v1503
      %v1570 = vpack.c.b16 %v1507, %v1504
      %v1571 = vpack.c.b16 %v1511, %v1508
      %v1572 = vpack.c.b16 %v1512, %v1509
      %v1573 = vpack.c.b16 %v1513, %v1510
      %v1574 = vpack.c.b16 %v1517, %v1514
      %v1575 = vpack.c.b16 %v1518, %v1515
      %v1576 = vpack.c.b16 %v1519, %v1516
      %v1577 = vpack.c.b16 %v1523, %v1520
      %v1578 = vpack.c.b16 %v1524, %v1521
      %v1579 = vpack.c.b16 %v1525, %v1522
      %v1580 = vpack.c.b16 %v1529, %v1526
      %v1581 = vpack.c.b16 %v1530, %v1527
      %v1582 = vpack.c.b16 %v1531, %v1528
      %v1583 = vpack.c.b16 %v1535, %v1532
      %v1584 = vpack.c.b16 %v1536, %v1533
      %v1585 = vpack.c.b16 %v1537, %v1534
      %v1682 = vunpack.c.l.b16 %v1330
      %v1683 = vunpack.c.l.b16 %v1331
      %v1684 = vunpack.c.l.b16 %v1332
      %v1685 = vunpack.c.l.b16 %v1333
      %v1686 = vunpack.c.l.b16 %v1334
      %v1687 = vunpack.c.l.b16 %v1335
      %v1688 = vunpack.c.l.b16 %v1336
      %v1689 = vunpack.c.l.b16 %v1337
      %v1690 = vunpack.c.l.b16 %v1338
      %v1691 = vunpack.c.l.b16 %v1339
      %v1692 = vunpack.c.l.b16 %v1340
      %v1693 = vunpack.c.l.b16 %v1341
      %v1694 = vunpack.c.l.b16 %v1342
      %v1695 = vunpack.c.l.b16 %v1343
      %v1696 = vunpack.c.l.b16 %v1344
      %v1697 = vunpack.c.l.b16 %v1345
      %v1698 = vunpack.c.l.b16 %v1346
      %v1699 = vunpack.c.l.b16 %v1347
      %v1700 = vunpack.c.l.b16 %v1348
      %v1701 = vunpack.c.l.b16 %v1349
      %v1702 = vunpack.c.l.b16 %v1350
      %v1703 = vunpack.c.l.b16 %v1351
      %v1704 = vunpack.c.l.b16 %v1352
      %v1705 = vunpack.c.l.b16 %v1353
      %v1706 = vunpack.c.l.b16 %v1354
      %v1707 = vunpack.c.l.b16 %v1355
      %v1708 = vunpack.c.l.b16 %v1356
      %v1709 = vunpack.c.l.b16 %v1357
      %v1710 = vunpack.c.l.b16 %v1358
      %v1711 = vunpack.c.l.b16 %v1359
      %v1712 = vunpack.c.l.b16 %v1360
      %v1713 = vunpack.c.l.b16 %v1361
      %v1714 = vunpack.c.l.b16 %v1362
      %v1715 = vunpack.c.l.b16 %v1363
      %v1716 = vunpack.c.l.b16 %v1364
      %v1717 = vunpack.c.l.b16 %v1365
      %v1718 = vunpack.c.l.b16 %v1366
      %v1719 = vunpack.c.l.b16 %v1367
      %v1720 = vunpack.c.l.b16 %v1368
      %v1721 = vunpack.c.l.b16 %v1369
      %v1722 = vunpack.c.l.b16 %v1370
      %v1723 = vunpack.c.l.b16 %v1371
      %v1724 = vunpack.c.l.b16 %v1372
      %v1725 = vunpack.c.l.b16 %v1373
      %v1726 = vunpack.c.l.b16 %v1374
      %v1727 = vunpack.c.l.b16 %v1375
      %v1728 = vunpack.c.l.b16 %v1376
      %v1729 = vunpack.c.l.b16 %v1377
      %v1730 = vpack.c.b16 %v1683, %v1682
      %v1731 = vpack.c.b16 %v1685, %v1684
      %v1732 = vpack.c.b16 %v1687, %v1686
      %v1733 = vpack.c.b16 %v1689, %v1688
      %v1734 = vpack.c.b16 %v1691, %v1690
      %v1735 = vpack.c.b16 %v1693, %v1692
      %v1736 = vpack.c.b16 %v1695, %v1694
      %v1737 = vpack.c.b16 %v1697, %v1696
      %v1738 = vpack.c.b16 %v1699, %v1698
      %v1739 = vpack.c.b16 %v1701, %v1700
      %v1740 = vpack.c.b16 %v1703, %v1702
      %v1741 = vpack.c.b16 %v1705, %v1704
      %v1742 = vpack.c.b16 %v1707, %v1706
      %v1743 = vpack.c.b16 %v1709, %v1708
      %v1744 = vpack.c.b16 %v1711, %v1710
      %v1745 = vpack.c.b16 %v1713, %v1712
      %v1746 = vpack.c.b16 %v1715, %v1714
      %v1747 = vpack.c.b16 %v1717, %v1716
      %v1748 = vpack.c.b16 %v1719, %v1718
      %v1749 = vpack.c.b16 %v1721, %v1720
      %v1750 = vpack.c.b16 %v1723, %v1722
      %v1751 = vpack.c.b16 %v1725, %v1724
      %v1752 = vpack.c.b16 %v1727, %v1726
      %v1753 = vpack.c.b16 %v1729, %v1728
      %1778 = vmatpush.bf16.msra.mxu0 %v1737
      %1779 = vmatpush.bf16.msra.mxu0 %v1736
      %1780 = vmatpush.bf16.msra.mxu0 %v1735
      %1781 = vmatpush.bf16.msra.mxu0 %v1734
      %1782 = vmatpush.bf16.msra.mxu0 %v1733
      %1783 = vmatpush.bf16.msra.mxu0 %v1732
      %1784 = vmatpush.bf16.msra.mxu0 %v1731
      %1785 = vmatpush.bf16.msra.mxu0 %v1730
      %1786 = vmatmul.bf16.gmra.mxu0 %v1538
      %v1787 = vpop.f32.mrf.mxu0
      %v1788 = vadd.f32 0.0, %v1787
      %v1789 = vpop.f32.mrf.mxu0
      %v1790 = vadd.f32 0.0, %v1789
      %1791 = vmatmul.bf16.gmra.mxu0 %v1541
      %v1792 = vpop.f32.mrf.mxu0
      %v1793 = vadd.f32 0.0, %v1792
      %v1794 = vpop.f32.mrf.mxu0
      %v1795 = vadd.f32 0.0, %v1794
      %1796 = vmatmul.bf16.gmra.mxu0 %v1544
      %v1797 = vpop.f32.mrf.mxu0
      %v1798 = vadd.f32 0.0, %v1797
      %v1799 = vpop.f32.mrf.mxu0
      %v1800 = vadd.f32 0.0, %v1799
      %1801 = vmatmul.bf16.gmra.mxu0 %v1547
      %v1802 = vpop.f32.mrf.mxu0
      %v1803 = vadd.f32 0.0, %v1802
      %v1804 = vpop.f32.mrf.mxu0
      %v1805 = vadd.f32 0.0, %v1804
      %1806 = vmatmul.bf16.gmra.mxu0 %v1550
      %v1807 = vpop.f32.mrf.mxu0
      %v1808 = vadd.f32 0.0, %v1807
      %v1809 = vpop.f32.mrf.mxu0
      %v1810 = vadd.f32 0.0, %v1809
      %1811 = vmatmul.bf16.gmra.mxu0 %v1553
      %v1812 = vpop.f32.mrf.mxu0
      %v1813 = vadd.f32 0.0, %v1812
      %v1814 = vpop.f32.mrf.mxu0
      %v1815 = vadd.f32 0.0, %v1814
      %1816 = vmatmul.bf16.gmra.mxu0 %v1556
      %v1817 = vpop.f32.mrf.mxu0
      %v1818 = vadd.f32 0.0, %v1817
      %v1819 = vpop.f32.mrf.mxu0
      %v1820 = vadd.f32 0.0, %v1819
      %1821 = vmatmul.bf16.gmra.mxu0 %v1559
      %v1822 = vpop.f32.mrf.mxu0
      %v1823 = vadd.f32 0.0, %v1822
      %v1824 = vpop.f32.mrf.mxu0
      %v1825 = vadd.f32 0.0, %v1824
      %1826 = vmatmul.bf16.gmra.mxu0 %v1562
      %v1827 = vpop.f32.mrf.mxu0
      %v1828 = vadd.f32 0.0, %v1827
      %v1829 = vpop.f32.mrf.mxu0
      %v1830 = vadd.f32 0.0, %v1829
      %1831 = vmatmul.bf16.gmra.mxu0 %v1565
      %v1832 = vpop.f32.mrf.mxu0
      %v1833 = vadd.f32 0.0, %v1832
      %v1834 = vpop.f32.mrf.mxu0
      %v1835 = vadd.f32 0.0, %v1834
      %1836 = vmatmul.bf16.gmra.mxu0 %v1568
      %v1837 = vpop.f32.mrf.mxu0
      %v1838 = vadd.f32 0.0, %v1837
      %v1839 = vpop.f32.mrf.mxu0
      %v1840 = vadd.f32 0.0, %v1839
      %1841 = vmatmul.bf16.gmra.mxu0 %v1571
      %v1842 = vpop.f32.mrf.mxu0
      %v1843 = vadd.f32 0.0, %v1842
      %v1844 = vpop.f32.mrf.mxu0
      %v1845 = vadd.f32 0.0, %v1844
      %1846 = vmatmul.bf16.gmra.mxu0 %v1574
      %v1847 = vpop.f32.mrf.mxu0
      %v1848 = vadd.f32 0.0, %v1847
      %v1849 = vpop.f32.mrf.mxu0
      %v1850 = vadd.f32 0.0, %v1849
      %1851 = vmatmul.bf16.gmra.mxu0 %v1577
      %v1852 = vpop.f32.mrf.mxu0
      %v1853 = vadd.f32 0.0, %v1852
      %v1854 = vpop.f32.mrf.mxu0
      %v1855 = vadd.f32 0.0, %v1854
      %1856 = vmatmul.bf16.gmra.mxu0 %v1580
      %v1857 = vpop.f32.mrf.mxu0
      %v1858 = vadd.f32 0.0, %v1857
      %v1859 = vpop.f32.mrf.mxu0
      %v1860 = vadd.f32 0.0, %v1859
      %1861 = vmatmul.bf16.gmra.mxu0 %v1583
      %v1862 = vpop.f32.mrf.mxu0
      %v1863 = vadd.f32 0.0, %v1862
      %v1864 = vpop.f32.mrf.mxu0
      %v1865 = vadd.f32 0.0, %v1864
      %1866 = vdwg.mxu0
      %1867 = vmatpush.bf16.msra.mxu0 %v1745
      %1868 = vmatpush.bf16.msra.mxu0 %v1744
      %1869 = vmatpush.bf16.msra.mxu0 %v1743
      %1870 = vmatpush.bf16.msra.mxu0 %v1742
      %1871 = vmatpush.bf16.msra.mxu0 %v1741
      %1872 = vmatpush.bf16.msra.mxu0 %v1740
      %1873 = vmatpush.bf16.msra.mxu0 %v1739
      %1874 = vmatpush.bf16.msra.mxu0 %v1738
      %1875 = vmatmul.bf16.gmra.mxu0 %v1539
      %v1876 = vpop.f32.mrf.mxu0
      %v1877 = vadd.f32 %v1788, %v1876
      %v1878 = vpop.f32.mrf.mxu0
      %v1879 = vadd.f32 %v1790, %v1878
      %1880 = vmatmul.bf16.gmra.mxu0 %v1542
      %v1881 = vpop.f32.mrf.mxu0
      %v1882 = vadd.f32 %v1793, %v1881
      %v1883 = vpop.f32.mrf.mxu0
      %v1884 = vadd.f32 %v1795, %v1883
      %1885 = vmatmul.bf16.gmra.mxu0 %v1545
      %v1886 = vpop.f32.mrf.mxu0
      %v1887 = vadd.f32 %v1798, %v1886
      %v1888 = vpop.f32.mrf.mxu0
      %v1889 = vadd.f32 %v1800, %v1888
      %1890 = vmatmul.bf16.gmra.mxu0 %v1548
      %v1891 = vpop.f32.mrf.mxu0
      %v1892 = vadd.f32 %v1803, %v1891
      %v1893 = vpop.f32.mrf.mxu0
      %v1894 = vadd.f32 %v1805, %v1893
      %1895 = vmatmul.bf16.gmra.mxu0 %v1551
      %v1896 = vpop.f32.mrf.mxu0
      %v1897 = vadd.f32 %v1808, %v1896
      %v1898 = vpop.f32.mrf.mxu0
      %v1899 = vadd.f32 %v1810, %v1898
      %1900 = vmatmul.bf16.gmra.mxu0 %v1554
      %v1901 = vpop.f32.mrf.mxu0
      %v1902 = vadd.f32 %v1813, %v1901
      %v1903 = vpop.f32.mrf.mxu0
      %v1904 = vadd.f32 %v1815, %v1903
      %1905 = vmatmul.bf16.gmra.mxu0 %v1557
      %v1906 = vpop.f32.mrf.mxu0
      %v1907 = vadd.f32 %v1818, %v1906
      %v1908 = vpop.f32.mrf.mxu0
      %v1909 = vadd.f32 %v1820, %v1908
      %1910 = vmatmul.bf16.gmra.mxu0 %v1560
      %v1911 = vpop.f32.mrf.mxu0
      %v1912 = vadd.f32 %v1823, %v1911
      %v1913 = vpop.f32.mrf.mxu0
      %v1914 = vadd.f32 %v1825, %v1913
      %1915 = vmatmul.bf16.gmra.mxu0 %v1563
      %v1916 = vpop.f32.mrf.mxu0
      %v1917 = vadd.f32 %v1828, %v1916
      %v1918 = vpop.f32.mrf.mxu0
      %v1919 = vadd.f32 %v1830, %v1918
      %1920 = vmatmul.bf16.gmra.mxu0 %v1566
      %v1921 = vpop.f32.mrf.mxu0
      %v1922 = vadd.f32 %v1833, %v1921
      %v1923 = vpop.f32.mrf.mxu0
      %v1924 = vadd.f32 %v1835, %v1923
      %1925 = vmatmul.bf16.gmra.mxu0 %v1569
      %v1926 = vpop.f32.mrf.mxu0
      %v1927 = vadd.f32 %v1838, %v1926
      %v1928 = vpop.f32.mrf.mxu0
      %v1929 = vadd.f32 %v1840, %v1928
      %1930 = vmatmul.bf16.gmra.mxu0 %v1572
      %v1931 = vpop.f32.mrf.mxu0
      %v1932 = vadd.f32 %v1843, %v1931
      %v1933 = vpop.f32.mrf.mxu0
      %v1934 = vadd.f32 %v1845, %v1933
      %1935 = vmatmul.bf16.gmra.mxu0 %v1575
      %v1936 = vpop.f32.mrf.mxu0
      %v1937 = vadd.f32 %v1848, %v1936
      %v1938 = vpop.f32.mrf.mxu0
      %v1939 = vadd.f32 %v1850, %v1938
      %1940 = vmatmul.bf16.gmra.mxu0 %v1578
      %v1941 = vpop.f32.mrf.mxu0
      %v1942 = vadd.f32 %v1853, %v1941
      %v1943 = vpop.f32.mrf.mxu0
      %v1944 = vadd.f32 %v1855, %v1943
      %1945 = vmatmul.bf16.gmra.mxu0 %v1581
      %v1946 = vpop.f32.mrf.mxu0
      %v1947 = vadd.f32 %v1858, %v1946
      %v1948 = vpop.f32.mrf.mxu0
      %v1949 = vadd.f32 %v1860, %v1948
      %1950 = vmatmul.bf16.gmra.mxu0 %v1584
      %v1951 = vpop.f32.mrf.mxu0
      %v1952 = vadd.f32 %v1863, %v1951
      %v1953 = vpop.f32.mrf.mxu0
      %v1954 = vadd.f32 %v1865, %v1953
      %1955 = vdwg.mxu0
      %1956 = vmatpush.bf16.msra.mxu0 %v1753
      %1957 = vmatpush.bf16.msra.mxu0 %v1752
      %1958 = vmatpush.bf16.msra.mxu0 %v1751
      %1959 = vmatpush.bf16.msra.mxu0 %v1750
      %1960 = vmatpush.bf16.msra.mxu0 %v1749
      %1961 = vmatpush.bf16.msra.mxu0 %v1748
      %1962 = vmatpush.bf16.msra.mxu0 %v1747
      %1963 = vmatpush.bf16.msra.mxu0 %v1746
      %1964 = vmatmul.bf16.gmra.mxu0 %v1540
      %v1965 = vpop.f32.mrf.mxu0
      %v1966 = vadd.f32 %v1877, %v1965
      %v1967 = vpop.f32.mrf.mxu0
      %v1968 = vadd.f32 %v1879, %v1967
      %1969 = vmatmul.bf16.gmra.mxu0 %v1543
      %v1970 = vpop.f32.mrf.mxu0
      %v1971 = vadd.f32 %v1882, %v1970
      %v1972 = vpop.f32.mrf.mxu0
      %v1973 = vadd.f32 %v1884, %v1972
      %1974 = vmatmul.bf16.gmra.mxu0 %v1546
      %v1975 = vpop.f32.mrf.mxu0
      %v1976 = vadd.f32 %v1887, %v1975
      %v1977 = vpop.f32.mrf.mxu0
      %v1978 = vadd.f32 %v1889, %v1977
      %1979 = vmatmul.bf16.gmra.mxu0 %v1549
      %v1980 = vpop.f32.mrf.mxu0
      %v1981 = vadd.f32 %v1892, %v1980
      %v1982 = vpop.f32.mrf.mxu0
      %v1983 = vadd.f32 %v1894, %v1982
      %1984 = vmatmul.bf16.gmra.mxu0 %v1552
      %v1985 = vpop.f32.mrf.mxu0
      %v1986 = vadd.f32 %v1897, %v1985
      %v1987 = vpop.f32.mrf.mxu0
      %v1988 = vadd.f32 %v1899, %v1987
      %1989 = vmatmul.bf16.gmra.mxu0 %v1555
      %v1990 = vpop.f32.mrf.mxu0
      %v1991 = vadd.f32 %v1902, %v1990
      %v1992 = vpop.f32.mrf.mxu0
      %v1993 = vadd.f32 %v1904, %v1992
      %1994 = vmatmul.bf16.gmra.mxu0 %v1558
      %v1995 = vpop.f32.mrf.mxu0
      %v1996 = vadd.f32 %v1907, %v1995
      %v1997 = vpop.f32.mrf.mxu0
      %v1998 = vadd.f32 %v1909, %v1997
      %1999 = vmatmul.bf16.gmra.mxu0 %v1561
      %v2000 = vpop.f32.mrf.mxu0
      %v2001 = vadd.f32 %v1912, %v2000
      %v2002 = vpop.f32.mrf.mxu0
      %v2003 = vadd.f32 %v1914, %v2002
      %2004 = vmatmul.bf16.gmra.mxu0 %v1564
      %v2005 = vpop.f32.mrf.mxu0
      %v2006 = vadd.f32 %v1917, %v2005
      %v2007 = vpop.f32.mrf.mxu0
      %v2008 = vadd.f32 %v1919, %v2007
      %2009 = vmatmul.bf16.gmra.mxu0 %v1567
      %v2010 = vpop.f32.mrf.mxu0
      %v2011 = vadd.f32 %v1922, %v2010
      %v2012 = vpop.f32.mrf.mxu0
      %v2013 = vadd.f32 %v1924, %v2012
      %2014 = vmatmul.bf16.gmra.mxu0 %v1570
      %v2015 = vpop.f32.mrf.mxu0
      %v2016 = vadd.f32 %v1927, %v2015
      %v2017 = vpop.f32.mrf.mxu0
      %v2018 = vadd.f32 %v1929, %v2017
      %2019 = vmatmul.bf16.gmra.mxu0 %v1573
      %v2020 = vpop.f32.mrf.mxu0
      %v2021 = vadd.f32 %v1932, %v2020
      %v2022 = vpop.f32.mrf.mxu0
      %v2023 = vadd.f32 %v1934, %v2022
      %2024 = vmatmul.bf16.gmra.mxu0 %v1576
      %v2025 = vpop.f32.mrf.mxu0
      %v2026 = vadd.f32 %v1937, %v2025
      %v2027 = vpop.f32.mrf.mxu0
      %v2028 = vadd.f32 %v1939, %v2027
      %2029 = vmatmul.bf16.gmra.mxu0 %v1579
      %v2030 = vpop.f32.mrf.mxu0
      %v2031 = vadd.f32 %v1942, %v2030
      %v2032 = vpop.f32.mrf.mxu0
      %v2033 = vadd.f32 %v1944, %v2032
      %2034 = vmatmul.bf16.gmra.mxu0 %v1582
      %v2035 = vpop.f32.mrf.mxu0
      %v2036 = vadd.f32 %v1947, %v2035
      %v2037 = vpop.f32.mrf.mxu0
      %v2038 = vadd.f32 %v1949, %v2037
      %2039 = vmatmul.bf16.gmra.mxu0 %v1585
      %v2040 = vpop.f32.mrf.mxu0
      %v2041 = vadd.f32 %v1952, %v2040
      %v2042 = vpop.f32.mrf.mxu0
      %v2043 = vadd.f32 %v1954, %v2042
      %2044 = vdwg.mxu0
      %2045 = vst [vmem:[#allocation3] sm:$0xff] %v1966
      %2046 = vst [vmem:[#allocation3 + $0x8] sm:$0xff] %v1968
      %2047 = vst [vmem:[#allocation3 + $0x10] sm:$0xff] %v1971
      %2048 = vst [vmem:[#allocation3 + $0x18] sm:$0xff] %v1973
      %2049 = vst [vmem:[#allocation3 + $0x20] sm:$0xff] %v1976
      %2050 = vst [vmem:[#allocation3 + $0x28] sm:$0xff] %v1978
      %2051 = vst [vmem:[#allocation3 + $0x30] sm:$0xff] %v1981
      %2052 = vst [vmem:[#allocation3 + $0x38] sm:$0xff] %v1983
      %2053 = vst [vmem:[#allocation3 + $0x40] sm:$0xff] %v1986
      %2054 = vst [vmem:[#allocation3 + $0x48] sm:$0xff] %v1988
      %2055 = vst [vmem:[#allocation3 + $0x50] sm:$0xff] %v1991
      %2056 = vst [vmem:[#allocation3 + $0x58] sm:$0xff] %v1993
      %2057 = vst [vmem:[#allocation3 + $0x60] sm:$0xff] %v1996
      %2058 = vst [vmem:[#allocation3 + $0x68] sm:$0xff] %v1998
      %2059 = vst [vmem:[#allocation3 + $0x70] sm:$0xff] %v2001
      %2060 = vst [vmem:[#allocation3 + $0x78] sm:$0xff] %v2003
      %2061 = vst [vmem:[#allocation3 + $0x80] sm:$0xff] %v2006
      %2062 = vst [vmem:[#allocation3 + $0x88] sm:$0xff] %v2008
      %2063 = vst [vmem:[#allocation3 + $0x90] sm:$0xff] %v2011
      %2064 = vst [vmem:[#allocation3 + $0x98] sm:$0xff] %v2013
      %2065 = vst [vmem:[#allocation3 + $0xa0] sm:$0xff] %v2016
      %2066 = vst [vmem:[#allocation3 + $0xa8] sm:$0xff] %v2018
      %2067 = vst [vmem:[#allocation3 + $0xb0] sm:$0xff] %v2021
      %2068 = vst [vmem:[#allocation3 + $0xb8] sm:$0xff] %v2023
      %2069 = vst [vmem:[#allocation3 + $0xc0] sm:$0xff] %v2026
      %2070 = vst [vmem:[#allocation3 + $0xc8] sm:$0xff] %v2028
      %2071 = vst [vmem:[#allocation3 + $0xd0] sm:$0xff] %v2031
      %2072 = vst [vmem:[#allocation3 + $0xd8] sm:$0xff] %v2033
      %2073 = vst [vmem:[#allocation3 + $0xe0] sm:$0xff] %v2036
      %2074 = vst [vmem:[#allocation3 + $0xe8] sm:$0xff] %v2038
      %2075 = vst [vmem:[#allocation3 + $0xf0] sm:$0xff] %v2041
      %2076 = vst [vmem:[#allocation3 + $0xf8] sm:$0xff] %v2043
      %v2077 = vld [vmem:[%s526] sm:$0xff]
      %v2078 = vld [vmem:[%s526 + $0x8] sm:$0xf]
      %v2079 = vld [vmem:[%s526 + $0xc] sm:$0xff]
      %v2080 = vld [vmem:[%s526 + $0x14] sm:$0xf]
      %v2081 = vld [vmem:[%s526 + $0x18] sm:$0xff]
      %v2082 = vld [vmem:[%s526 + $0x20] sm:$0xf]
      %v2083 = vld [vmem:[%s526 + $0x24] sm:$0xff]
      %v2084 = vld [vmem:[%s526 + $0x2c] sm:$0xf]
      %v2085 = vld [vmem:[%s526 + $0x30] sm:$0xff]
      %v2086 = vld [vmem:[%s526 + $0x38] sm:$0xf]
      %v2087 = vld [vmem:[%s526 + $0x3c] sm:$0xff]
      %v2088 = vld [vmem:[%s526 + $0x44] sm:$0xf]
      %v2089 = vld [vmem:[%s526 + $0x48] sm:$0xff]
      %v2090 = vld [vmem:[%s526 + $0x50] sm:$0xf]
      %v2091 = vld [vmem:[%s526 + $0x54] sm:$0xff]
      %v2092 = vld [vmem:[%s526 + $0x5c] sm:$0xf]
      %v2093 = vld [vmem:[%s526 + $0x60] sm:$0xff]
      %v2094 = vld [vmem:[%s526 + $0x68] sm:$0xf]
      %v2095 = vld [vmem:[%s526 + $0x6c] sm:$0xff]
      %v2096 = vld [vmem:[%s526 + $0x74] sm:$0xf]
      %v2097 = vld [vmem:[%s526 + $0x78] sm:$0xff]
      %v2098 = vld [vmem:[%s526 + $0x80] sm:$0xf]
      %v2099 = vld [vmem:[%s526 + $0x84] sm:$0xff]
      %v2100 = vld [vmem:[%s526 + $0x8c] sm:$0xf]
      %v2101 = vld [vmem:[%s526 + $0x90] sm:$0xff]
      %v2102 = vld [vmem:[%s526 + $0x98] sm:$0xf]
      %v2103 = vld [vmem:[%s526 + $0x9c] sm:$0xff]
      %v2104 = vld [vmem:[%s526 + $0xa4] sm:$0xf]
      %v2105 = vld [vmem:[%s526 + $0xa8] sm:$0xff]
      %v2106 = vld [vmem:[%s526 + $0xb0] sm:$0xf]
      %v2107 = vld [vmem:[%s526 + $0xb4] sm:$0xff]
      %v2108 = vld [vmem:[%s526 + $0xbc] sm:$0xf]
      %v2109 = vld [vmem:[%s526 + $0xc0] sm:$0xff]
      %v2110 = vld [vmem:[%s526 + $0xc8] sm:$0xf]
      %v2111 = vld [vmem:[%s526 + $0xcc] sm:$0xff]
      %v2112 = vld [vmem:[%s526 + $0xd4] sm:$0xf]
      %v2113 = vld [vmem:[%s526 + $0xd8] sm:$0xff]
      %v2114 = vld [vmem:[%s526 + $0xe0] sm:$0xf]
      %v2115 = vld [vmem:[%s526 + $0xe4] sm:$0xff]
      %v2116 = vld [vmem:[%s526 + $0xec] sm:$0xf]
      %v2117 = vld [vmem:[%s526 + $0xf0] sm:$0xff]
      %v2118 = vld [vmem:[%s526 + $0xf8] sm:$0xf]
      %v2119 = vld [vmem:[%s526 + $0xfc] sm:$0xff]
      %v2120 = vld [vmem:[%s526 + $0x104] sm:$0xf]
      %v2121 = vld [vmem:[%s526 + $0x108] sm:$0xff]
      %v2122 = vld [vmem:[%s526 + $0x110] sm:$0xf]
      %v2123 = vld [vmem:[%s526 + $0x114] sm:$0xff]
      %v2124 = vld [vmem:[%s526 + $0x11c] sm:$0xf]
      %v2125 = vld [vmem:[%s526 + $0x120] sm:$0xff]
      %v2126 = vld [vmem:[%s526 + $0x128] sm:$0xf]
      %v2127 = vld [vmem:[%s526 + $0x12c] sm:$0xff]
      %v2128 = vld [vmem:[%s526 + $0x134] sm:$0xf]
      %v2129 = vld [vmem:[%s526 + $0x138] sm:$0xff]
      %v2130 = vld [vmem:[%s526 + $0x140] sm:$0xf]
      %v2131 = vld [vmem:[%s526 + $0x144] sm:$0xff]
      %v2132 = vld [vmem:[%s526 + $0x14c] sm:$0xf]
      %v2133 = vld [vmem:[%s526 + $0x150] sm:$0xff]
      %v2134 = vld [vmem:[%s526 + $0x158] sm:$0xf]
      %v2135 = vld [vmem:[%s526 + $0x15c] sm:$0xff]
      %v2136 = vld [vmem:[%s526 + $0x164] sm:$0xf]
      %v2137 = vld [vmem:[%s526 + $0x168] sm:$0xff]
      %v2138 = vld [vmem:[%s526 + $0x170] sm:$0xf]
      %v2139 = vld [vmem:[%s526 + $0x174] sm:$0xff]
      %v2140 = vld [vmem:[%s526 + $0x17c] sm:$0xf]
      %s2141 = scalar_lea.vmem %s3, 192
      %v2142 = vld [vmem:[%s2141] sm:$0xf]
      %v2143 = vld [vmem:[%s2141 + $0x4] sm:$0xf]
      %v2144 = vld [vmem:[%s2141 + $0x8] sm:$0xf]
      %v2145 = vld [vmem:[%s2141 + $0xc] sm:$0xf]
      %v2146 = vld [vmem:[%s2141 + $0x10] sm:$0xf]
      %v2147 = vld [vmem:[%s2141 + $0x14] sm:$0xf]
      %v2148 = vld [vmem:[%s2141 + $0x18] sm:$0xf]
      %v2149 = vld [vmem:[%s2141 + $0x1c] sm:$0xf]
      %v2150 = vld [vmem:[%s2141 + $0x20] sm:$0xf]
      %v2151 = vld [vmem:[%s2141 + $0x24] sm:$0xf]
      %v2152 = vld [vmem:[%s2141 + $0x28] sm:$0xf]
      %v2153 = vld [vmem:[%s2141 + $0x2c] sm:$0xf]
      %v2154 = vld [vmem:[%s2141 + $0x30] sm:$0xf]
      %v2155 = vld [vmem:[%s2141 + $0x34] sm:$0xf]
      %v2156 = vld [vmem:[%s2141 + $0x38] sm:$0xf]
      %v2157 = vld [vmem:[%s2141 + $0x3c] sm:$0xf]
      %v2158 = vld [vmem:[%s2141 + $0x40] sm:$0xf]
      %v2159 = vld [vmem:[%s2141 + $0x44] sm:$0xf]
      %v2160 = vld [vmem:[%s2141 + $0x48] sm:$0xf]
      %v2161 = vld [vmem:[%s2141 + $0x4c] sm:$0xf]
      %v2162 = vld [vmem:[%s2141 + $0x50] sm:$0xf]
      %v2163 = vld [vmem:[%s2141 + $0x54] sm:$0xf]
      %v2164 = vld [vmem:[%s2141 + $0x58] sm:$0xf]
      %v2165 = vld [vmem:[%s2141 + $0x5c] sm:$0xf]
      %v2166 = vld [vmem:[%s2141 + $0x60] sm:$0xf]
      %v2167 = vld [vmem:[%s2141 + $0x64] sm:$0xf]
      %v2168 = vld [vmem:[%s2141 + $0x68] sm:$0xf]
      %v2169 = vld [vmem:[%s2141 + $0x6c] sm:$0xf]
      %v2170 = vld [vmem:[%s2141 + $0x70] sm:$0xf]
      %v2171 = vld [vmem:[%s2141 + $0x74] sm:$0xf]
      %v2172 = vld [vmem:[%s2141 + $0x78] sm:$0xf]
      %v2173 = vld [vmem:[%s2141 + $0x7c] sm:$0xf]
      %v2174 = vld [vmem:[%s2141 + $0x80] sm:$0xf]
      %v2175 = vld [vmem:[%s2141 + $0x84] sm:$0xf]
      %v2176 = vld [vmem:[%s2141 + $0x88] sm:$0xf]
      %v2177 = vld [vmem:[%s2141 + $0x8c] sm:$0xf]
      %v2178 = vld [vmem:[%s2141 + $0x90] sm:$0xf]
      %v2179 = vld [vmem:[%s2141 + $0x94] sm:$0xf]
      %v2180 = vld [vmem:[%s2141 + $0x98] sm:$0xf]
      %v2181 = vld [vmem:[%s2141 + $0x9c] sm:$0xf]
      %v2182 = vld [vmem:[%s2141 + $0xa0] sm:$0xf]
      %v2183 = vld [vmem:[%s2141 + $0xa4] sm:$0xf]
      %v2184 = vld [vmem:[%s2141 + $0xa8] sm:$0xf]
      %v2185 = vld [vmem:[%s2141 + $0xac] sm:$0xf]
      %v2186 = vld [vmem:[%s2141 + $0xb0] sm:$0xf]
      %v2187 = vld [vmem:[%s2141 + $0xb4] sm:$0xf]
      %v2188 = vld [vmem:[%s2141 + $0xb8] sm:$0xf]
      %v2189 = vld [vmem:[%s2141 + $0xbc] sm:$0xf]
      %v2254 = vunpack.c.l.b16 %v2077
      %v2255 = vunpack.c.h.b16 %v2077
      %v2256 = vunpack.c.l.b16 %v2078
      %v2257 = vunpack.c.l.b16 %v2079
      %v2258 = vunpack.c.h.b16 %v2079
      %v2259 = vunpack.c.l.b16 %v2080
      %v2260 = vunpack.c.l.b16 %v2081
      %v2261 = vunpack.c.h.b16 %v2081
      %v2262 = vunpack.c.l.b16 %v2082
      %v2263 = vunpack.c.l.b16 %v2083
      %v2264 = vunpack.c.h.b16 %v2083
      %v2265 = vunpack.c.l.b16 %v2084
      %v2266 = vunpack.c.l.b16 %v2085
      %v2267 = vunpack.c.h.b16 %v2085
      %v2268 = vunpack.c.l.b16 %v2086
      %v2269 = vunpack.c.l.b16 %v2087
      %v2270 = vunpack.c.h.b16 %v2087
      %v2271 = vunpack.c.l.b16 %v2088
      %v2272 = vunpack.c.l.b16 %v2089
      %v2273 = vunpack.c.h.b16 %v2089
      %v2274 = vunpack.c.l.b16 %v2090
      %v2275 = vunpack.c.l.b16 %v2091
      %v2276 = vunpack.c.h.b16 %v2091
      %v2277 = vunpack.c.l.b16 %v2092
      %v2278 = vunpack.c.l.b16 %v2093
      %v2279 = vunpack.c.h.b16 %v2093
      %v2280 = vunpack.c.l.b16 %v2094
      %v2281 = vunpack.c.l.b16 %v2095
      %v2282 = vunpack.c.h.b16 %v2095
      %v2283 = vunpack.c.l.b16 %v2096
      %v2284 = vunpack.c.l.b16 %v2097
      %v2285 = vunpack.c.h.b16 %v2097
      %v2286 = vunpack.c.l.b16 %v2098
      %v2287 = vunpack.c.l.b16 %v2099
      %v2288 = vunpack.c.h.b16 %v2099
      %v2289 = vunpack.c.l.b16 %v2100
      %v2290 = vunpack.c.l.b16 %v2101
      %v2291 = vunpack.c.h.b16 %v2101
      %v2292 = vunpack.c.l.b16 %v2102
      %v2293 = vunpack.c.l.b16 %v2103
      %v2294 = vunpack.c.h.b16 %v2103
      %v2295 = vunpack.c.l.b16 %v2104
      %v2296 = vunpack.c.l.b16 %v2105
      %v2297 = vunpack.c.h.b16 %v2105
      %v2298 = vunpack.c.l.b16 %v2106
      %v2299 = vunpack.c.l.b16 %v2107
      %v2300 = vunpack.c.h.b16 %v2107
      %v2301 = vunpack.c.l.b16 %v2108
      %v2302 = vunpack.c.l.b16 %v2109
      %v2303 = vunpack.c.h.b16 %v2109
      %v2304 = vunpack.c.l.b16 %v2110
      %v2305 = vunpack.c.l.b16 %v2111
      %v2306 = vunpack.c.h.b16 %v2111
      %v2307 = vunpack.c.l.b16 %v2112
      %v2308 = vunpack.c.l.b16 %v2113
      %v2309 = vunpack.c.h.b16 %v2113
      %v2310 = vunpack.c.l.b16 %v2114
      %v2311 = vunpack.c.l.b16 %v2115
      %v2312 = vunpack.c.h.b16 %v2115
      %v2313 = vunpack.c.l.b16 %v2116
      %v2314 = vunpack.c.l.b16 %v2117
      %v2315 = vunpack.c.h.b16 %v2117
      %v2316 = vunpack.c.l.b16 %v2118
      %v2317 = vunpack.c.l.b16 %v2119
      %v2318 = vunpack.c.h.b16 %v2119
      %v2319 = vunpack.c.l.b16 %v2120
      %v2320 = vunpack.c.l.b16 %v2121
      %v2321 = vunpack.c.h.b16 %v2121
      %v2322 = vunpack.c.l.b16 %v2122
      %v2323 = vunpack.c.l.b16 %v2123
      %v2324 = vunpack.c.h.b16 %v2123
      %v2325 = vunpack.c.l.b16 %v2124
      %v2326 = vunpack.c.l.b16 %v2125
      %v2327 = vunpack.c.h.b16 %v2125
      %v2328 = vunpack.c.l.b16 %v2126
      %v2329 = vunpack.c.l.b16 %v2127
      %v2330 = vunpack.c.h.b16 %v2127
      %v2331 = vunpack.c.l.b16 %v2128
      %v2332 = vunpack.c.l.b16 %v2129
      %v2333 = vunpack.c.h.b16 %v2129
      %v2334 = vunpack.c.l.b16 %v2130
      %v2335 = vunpack.c.l.b16 %v2131
      %v2336 = vunpack.c.h.b16 %v2131
      %v2337 = vunpack.c.l.b16 %v2132
      %v2338 = vunpack.c.l.b16 %v2133
      %v2339 = vunpack.c.h.b16 %v2133
      %v2340 = vunpack.c.l.b16 %v2134
      %v2341 = vunpack.c.l.b16 %v2135
      %v2342 = vunpack.c.h.b16 %v2135
      %v2343 = vunpack.c.l.b16 %v2136
      %v2344 = vunpack.c.l.b16 %v2137
      %v2345 = vunpack.c.h.b16 %v2137
      %v2346 = vunpack.c.l.b16 %v2138
      %v2347 = vunpack.c.l.b16 %v2139
      %v2348 = vunpack.c.h.b16 %v2139
      %v2349 = vunpack.c.l.b16 %v2140
      %v2350 = vpack.c.b16 %v2257, %v2254
      %v2351 = vpack.c.b16 %v2258, %v2255
      %v2352 = vpack.c.b16 %v2259, %v2256
      %v2353 = vpack.c.b16 %v2263, %v2260
      %v2354 = vpack.c.b16 %v2264, %v2261
      %v2355 = vpack.c.b16 %v2265, %v2262
      %v2356 = vpack.c.b16 %v2269, %v2266
      %v2357 = vpack.c.b16 %v2270, %v2267
      %v2358 = vpack.c.b16 %v2271, %v2268
      %v2359 = vpack.c.b16 %v2275, %v2272
      %v2360 = vpack.c.b16 %v2276, %v2273
      %v2361 = vpack.c.b16 %v2277, %v2274
      %v2362 = vpack.c.b16 %v2281, %v2278
      %v2363 = vpack.c.b16 %v2282, %v2279
      %v2364 = vpack.c.b16 %v2283, %v2280
      %v2365 = vpack.c.b16 %v2287, %v2284
      %v2366 = vpack.c.b16 %v2288, %v2285
      %v2367 = vpack.c.b16 %v2289, %v2286
      %v2368 = vpack.c.b16 %v2293, %v2290
      %v2369 = vpack.c.b16 %v2294, %v2291
      %v2370 = vpack.c.b16 %v2295, %v2292
      %v2371 = vpack.c.b16 %v2299, %v2296
      %v2372 = vpack.c.b16 %v2300, %v2297
      %v2373 = vpack.c.b16 %v2301, %v2298
      %v2374 = vpack.c.b16 %v2305, %v2302
      %v2375 = vpack.c.b16 %v2306, %v2303
      %v2376 = vpack.c.b16 %v2307, %v2304
      %v2377 = vpack.c.b16 %v2311, %v2308
      %v2378 = vpack.c.b16 %v2312, %v2309
      %v2379 = vpack.c.b16 %v2313, %v2310
      %v2380 = vpack.c.b16 %v2317, %v2314
      %v2381 = vpack.c.b16 %v2318, %v2315
      %v2382 = vpack.c.b16 %v2319, %v2316
      %v2383 = vpack.c.b16 %v2323, %v2320
      %v2384 = vpack.c.b16 %v2324, %v2321
      %v2385 = vpack.c.b16 %v2325, %v2322
      %v2386 = vpack.c.b16 %v2329, %v2326
      %v2387 = vpack.c.b16 %v2330, %v2327
      %v2388 = vpack.c.b16 %v2331, %v2328
      %v2389 = vpack.c.b16 %v2335, %v2332
      %v2390 = vpack.c.b16 %v2336, %v2333
      %v2391 = vpack.c.b16 %v2337, %v2334
      %v2392 = vpack.c.b16 %v2341, %v2338
      %v2393 = vpack.c.b16 %v2342, %v2339
      %v2394 = vpack.c.b16 %v2343, %v2340
      %v2395 = vpack.c.b16 %v2347, %v2344
      %v2396 = vpack.c.b16 %v2348, %v2345
      %v2397 = vpack.c.b16 %v2349, %v2346
      %v2494 = vunpack.c.l.b16 %v2142
      %v2495 = vunpack.c.l.b16 %v2143
      %v2496 = vunpack.c.l.b16 %v2144
      %v2497 = vunpack.c.l.b16 %v2145
      %v2498 = vunpack.c.l.b16 %v2146
      %v2499 = vunpack.c.l.b16 %v2147
      %v2500 = vunpack.c.l.b16 %v2148
      %v2501 = vunpack.c.l.b16 %v2149
      %v2502 = vunpack.c.l.b16 %v2150
      %v2503 = vunpack.c.l.b16 %v2151
      %v2504 = vunpack.c.l.b16 %v2152
      %v2505 = vunpack.c.l.b16 %v2153
      %v2506 = vunpack.c.l.b16 %v2154
      %v2507 = vunpack.c.l.b16 %v2155
      %v2508 = vunpack.c.l.b16 %v2156
      %v2509 = vunpack.c.l.b16 %v2157
      %v2510 = vunpack.c.l.b16 %v2158
      %v2511 = vunpack.c.l.b16 %v2159
      %v2512 = vunpack.c.l.b16 %v2160
      %v2513 = vunpack.c.l.b16 %v2161
      %v2514 = vunpack.c.l.b16 %v2162
      %v2515 = vunpack.c.l.b16 %v2163
      %v2516 = vunpack.c.l.b16 %v2164
      %v2517 = vunpack.c.l.b16 %v2165
      %v2518 = vunpack.c.l.b16 %v2166
      %v2519 = vunpack.c.l.b16 %v2167
      %v2520 = vunpack.c.l.b16 %v2168
      %v2521 = vunpack.c.l.b16 %v2169
      %v2522 = vunpack.c.l.b16 %v2170
      %v2523 = vunpack.c.l.b16 %v2171
      %v2524 = vunpack.c.l.b16 %v2172
      %v2525 = vunpack.c.l.b16 %v2173
      %v2526 = vunpack.c.l.b16 %v2174
      %v2527 = vunpack.c.l.b16 %v2175
      %v2528 = vunpack.c.l.b16 %v2176
      %v2529 = vunpack.c.l.b16 %v2177
      %v2530 = vunpack.c.l.b16 %v2178
      %v2531 = vunpack.c.l.b16 %v2179
      %v2532 = vunpack.c.l.b16 %v2180
      %v2533 = vunpack.c.l.b16 %v2181
      %v2534 = vunpack.c.l.b16 %v2182
      %v2535 = vunpack.c.l.b16 %v2183
      %v2536 = vunpack.c.l.b16 %v2184
      %v2537 = vunpack.c.l.b16 %v2185
      %v2538 = vunpack.c.l.b16 %v2186
      %v2539 = vunpack.c.l.b16 %v2187
      %v2540 = vunpack.c.l.b16 %v2188
      %v2541 = vunpack.c.l.b16 %v2189
      %v2542 = vpack.c.b16 %v2495, %v2494
      %v2543 = vpack.c.b16 %v2497, %v2496
      %v2544 = vpack.c.b16 %v2499, %v2498
      %v2545 = vpack.c.b16 %v2501, %v2500
      %v2546 = vpack.c.b16 %v2503, %v2502
      %v2547 = vpack.c.b16 %v2505, %v2504
      %v2548 = vpack.c.b16 %v2507, %v2506
      %v2549 = vpack.c.b16 %v2509, %v2508
      %v2550 = vpack.c.b16 %v2511, %v2510
      %v2551 = vpack.c.b16 %v2513, %v2512
      %v2552 = vpack.c.b16 %v2515, %v2514
      %v2553 = vpack.c.b16 %v2517, %v2516
      %v2554 = vpack.c.b16 %v2519, %v2518
      %v2555 = vpack.c.b16 %v2521, %v2520
      %v2556 = vpack.c.b16 %v2523, %v2522
      %v2557 = vpack.c.b16 %v2525, %v2524
      %v2558 = vpack.c.b16 %v2527, %v2526
      %v2559 = vpack.c.b16 %v2529, %v2528
      %v2560 = vpack.c.b16 %v2531, %v2530
      %v2561 = vpack.c.b16 %v2533, %v2532
      %v2562 = vpack.c.b16 %v2535, %v2534
      %v2563 = vpack.c.b16 %v2537, %v2536
      %v2564 = vpack.c.b16 %v2539, %v2538
      %v2565 = vpack.c.b16 %v2541, %v2540
      %2590 = vmatpush.bf16.msra.mxu0 %v2549
      %2591 = vmatpush.bf16.msra.mxu0 %v2548
      %2592 = vmatpush.bf16.msra.mxu0 %v2547
      %2593 = vmatpush.bf16.msra.mxu0 %v2546
      %2594 = vmatpush.bf16.msra.mxu0 %v2545
      %2595 = vmatpush.bf16.msra.mxu0 %v2544
      %2596 = vmatpush.bf16.msra.mxu0 %v2543
      %2597 = vmatpush.bf16.msra.mxu0 %v2542
      %2598 = vmatmul.bf16.gmra.mxu0 %v2350
      %v2599 = vpop.f32.mrf.mxu0
      %v2600 = vadd.f32 0.0, %v2599
      %v2601 = vpop.f32.mrf.mxu0
      %v2602 = vadd.f32 0.0, %v2601
      %2603 = vmatmul.bf16.gmra.mxu0 %v2353
      %v2604 = vpop.f32.mrf.mxu0
      %v2605 = vadd.f32 0.0, %v2604
      %v2606 = vpop.f32.mrf.mxu0
      %v2607 = vadd.f32 0.0, %v2606
      %2608 = vmatmul.bf16.gmra.mxu0 %v2356
      %v2609 = vpop.f32.mrf.mxu0
      %v2610 = vadd.f32 0.0, %v2609
      %v2611 = vpop.f32.mrf.mxu0
      %v2612 = vadd.f32 0.0, %v2611
      %2613 = vmatmul.bf16.gmra.mxu0 %v2359
      %v2614 = vpop.f32.mrf.mxu0
      %v2615 = vadd.f32 0.0, %v2614
      %v2616 = vpop.f32.mrf.mxu0
      %v2617 = vadd.f32 0.0, %v2616
      %2618 = vmatmul.bf16.gmra.mxu0 %v2362
      %v2619 = vpop.f32.mrf.mxu0
      %v2620 = vadd.f32 0.0, %v2619
      %v2621 = vpop.f32.mrf.mxu0
      %v2622 = vadd.f32 0.0, %v2621
      %2623 = vmatmul.bf16.gmra.mxu0 %v2365
      %v2624 = vpop.f32.mrf.mxu0
      %v2625 = vadd.f32 0.0, %v2624
      %v2626 = vpop.f32.mrf.mxu0
      %v2627 = vadd.f32 0.0, %v2626
      %2628 = vmatmul.bf16.gmra.mxu0 %v2368
      %v2629 = vpop.f32.mrf.mxu0
      %v2630 = vadd.f32 0.0, %v2629
      %v2631 = vpop.f32.mrf.mxu0
      %v2632 = vadd.f32 0.0, %v2631
      %2633 = vmatmul.bf16.gmra.mxu0 %v2371
      %v2634 = vpop.f32.mrf.mxu0
      %v2635 = vadd.f32 0.0, %v2634
      %v2636 = vpop.f32.mrf.mxu0
      %v2637 = vadd.f32 0.0, %v2636
      %2638 = vmatmul.bf16.gmra.mxu0 %v2374
      %v2639 = vpop.f32.mrf.mxu0
      %v2640 = vadd.f32 0.0, %v2639
      %v2641 = vpop.f32.mrf.mxu0
      %v2642 = vadd.f32 0.0, %v2641
      %2643 = vmatmul.bf16.gmra.mxu0 %v2377
      %v2644 = vpop.f32.mrf.mxu0
      %v2645 = vadd.f32 0.0, %v2644
      %v2646 = vpop.f32.mrf.mxu0
      %v2647 = vadd.f32 0.0, %v2646
      %2648 = vmatmul.bf16.gmra.mxu0 %v2380
      %v2649 = vpop.f32.mrf.mxu0
      %v2650 = vadd.f32 0.0, %v2649
      %v2651 = vpop.f32.mrf.mxu0
      %v2652 = vadd.f32 0.0, %v2651
      %2653 = vmatmul.bf16.gmra.mxu0 %v2383
      %v2654 = vpop.f32.mrf.mxu0
      %v2655 = vadd.f32 0.0, %v2654
      %v2656 = vpop.f32.mrf.mxu0
      %v2657 = vadd.f32 0.0, %v2656
      %2658 = vmatmul.bf16.gmra.mxu0 %v2386
      %v2659 = vpop.f32.mrf.mxu0
      %v2660 = vadd.f32 0.0, %v2659
      %v2661 = vpop.f32.mrf.mxu0
      %v2662 = vadd.f32 0.0, %v2661
      %2663 = vmatmul.bf16.gmra.mxu0 %v2389
      %v2664 = vpop.f32.mrf.mxu0
      %v2665 = vadd.f32 0.0, %v2664
      %v2666 = vpop.f32.mrf.mxu0
      %v2667 = vadd.f32 0.0, %v2666
      %2668 = vmatmul.bf16.gmra.mxu0 %v2392
      %v2669 = vpop.f32.mrf.mxu0
      %v2670 = vadd.f32 0.0, %v2669
      %v2671 = vpop.f32.mrf.mxu0
      %v2672 = vadd.f32 0.0, %v2671
      %2673 = vmatmul.bf16.gmra.mxu0 %v2395
      %v2674 = vpop.f32.mrf.mxu0
      %v2675 = vadd.f32 0.0, %v2674
      %v2676 = vpop.f32.mrf.mxu0
      %v2677 = vadd.f32 0.0, %v2676
      %2678 = vdwg.mxu0
      %2679 = vmatpush.bf16.msra.mxu0 %v2557
      %2680 = vmatpush.bf16.msra.mxu0 %v2556
      %2681 = vmatpush.bf16.msra.mxu0 %v2555
      %2682 = vmatpush.bf16.msra.mxu0 %v2554
      %2683 = vmatpush.bf16.msra.mxu0 %v2553
      %2684 = vmatpush.bf16.msra.mxu0 %v2552
      %2685 = vmatpush.bf16.msra.mxu0 %v2551
      %2686 = vmatpush.bf16.msra.mxu0 %v2550
      %2687 = vmatmul.bf16.gmra.mxu0 %v2351
      %v2688 = vpop.f32.mrf.mxu0
      %v2689 = vadd.f32 %v2600, %v2688
      %v2690 = vpop.f32.mrf.mxu0
      %v2691 = vadd.f32 %v2602, %v2690
      %2692 = vmatmul.bf16.gmra.mxu0 %v2354
      %v2693 = vpop.f32.mrf.mxu0
      %v2694 = vadd.f32 %v2605, %v2693
      %v2695 = vpop.f32.mrf.mxu0
      %v2696 = vadd.f32 %v2607, %v2695
      %2697 = vmatmul.bf16.gmra.mxu0 %v2357
      %v2698 = vpop.f32.mrf.mxu0
      %v2699 = vadd.f32 %v2610, %v2698
      %v2700 = vpop.f32.mrf.mxu0
      %v2701 = vadd.f32 %v2612, %v2700
      %2702 = vmatmul.bf16.gmra.mxu0 %v2360
      %v2703 = vpop.f32.mrf.mxu0
      %v2704 = vadd.f32 %v2615, %v2703
      %v2705 = vpop.f32.mrf.mxu0
      %v2706 = vadd.f32 %v2617, %v2705
      %2707 = vmatmul.bf16.gmra.mxu0 %v2363
      %v2708 = vpop.f32.mrf.mxu0
      %v2709 = vadd.f32 %v2620, %v2708
      %v2710 = vpop.f32.mrf.mxu0
      %v2711 = vadd.f32 %v2622, %v2710
      %2712 = vmatmul.bf16.gmra.mxu0 %v2366
      %v2713 = vpop.f32.mrf.mxu0
      %v2714 = vadd.f32 %v2625, %v2713
      %v2715 = vpop.f32.mrf.mxu0
      %v2716 = vadd.f32 %v2627, %v2715
      %2717 = vmatmul.bf16.gmra.mxu0 %v2369
      %v2718 = vpop.f32.mrf.mxu0
      %v2719 = vadd.f32 %v2630, %v2718
      %v2720 = vpop.f32.mrf.mxu0
      %v2721 = vadd.f32 %v2632, %v2720
      %2722 = vmatmul.bf16.gmra.mxu0 %v2372
      %v2723 = vpop.f32.mrf.mxu0
      %v2724 = vadd.f32 %v2635, %v2723
      %v2725 = vpop.f32.mrf.mxu0
      %v2726 = vadd.f32 %v2637, %v2725
      %2727 = vmatmul.bf16.gmra.mxu0 %v2375
      %v2728 = vpop.f32.mrf.mxu0
      %v2729 = vadd.f32 %v2640, %v2728
      %v2730 = vpop.f32.mrf.mxu0
      %v2731 = vadd.f32 %v2642, %v2730
      %2732 = vmatmul.bf16.gmra.mxu0 %v2378
      %v2733 = vpop.f32.mrf.mxu0
      %v2734 = vadd.f32 %v2645, %v2733
      %v2735 = vpop.f32.mrf.mxu0
      %v2736 = vadd.f32 %v2647, %v2735
      %2737 = vmatmul.bf16.gmra.mxu0 %v2381
      %v2738 = vpop.f32.mrf.mxu0
      %v2739 = vadd.f32 %v2650, %v2738
      %v2740 = vpop.f32.mrf.mxu0
      %v2741 = vadd.f32 %v2652, %v2740
      %2742 = vmatmul.bf16.gmra.mxu0 %v2384
      %v2743 = vpop.f32.mrf.mxu0
      %v2744 = vadd.f32 %v2655, %v2743
      %v2745 = vpop.f32.mrf.mxu0
      %v2746 = vadd.f32 %v2657, %v2745
      %2747 = vmatmul.bf16.gmra.mxu0 %v2387
      %v2748 = vpop.f32.mrf.mxu0
      %v2749 = vadd.f32 %v2660, %v2748
      %v2750 = vpop.f32.mrf.mxu0
      %v2751 = vadd.f32 %v2662, %v2750
      %2752 = vmatmul.bf16.gmra.mxu0 %v2390
      %v2753 = vpop.f32.mrf.mxu0
      %v2754 = vadd.f32 %v2665, %v2753
      %v2755 = vpop.f32.mrf.mxu0
      %v2756 = vadd.f32 %v2667, %v2755
      %2757 = vmatmul.bf16.gmra.mxu0 %v2393
      %v2758 = vpop.f32.mrf.mxu0
      %v2759 = vadd.f32 %v2670, %v2758
      %v2760 = vpop.f32.mrf.mxu0
      %v2761 = vadd.f32 %v2672, %v2760
      %2762 = vmatmul.bf16.gmra.mxu0 %v2396
      %v2763 = vpop.f32.mrf.mxu0
      %v2764 = vadd.f32 %v2675, %v2763
      %v2765 = vpop.f32.mrf.mxu0
      %v2766 = vadd.f32 %v2677, %v2765
      %2767 = vdwg.mxu0
      %2768 = vmatpush.bf16.msra.mxu0 %v2565
      %2769 = vmatpush.bf16.msra.mxu0 %v2564
      %2770 = vmatpush.bf16.msra.mxu0 %v2563
      %2771 = vmatpush.bf16.msra.mxu0 %v2562
      %2772 = vmatpush.bf16.msra.mxu0 %v2561
      %2773 = vmatpush.bf16.msra.mxu0 %v2560
      %2774 = vmatpush.bf16.msra.mxu0 %v2559
      %2775 = vmatpush.bf16.msra.mxu0 %v2558
      %2776 = vmatmul.bf16.gmra.mxu0 %v2352
      %v2777 = vpop.f32.mrf.mxu0
      %v2778 = vadd.f32 %v2689, %v2777
      %v2779 = vpop.f32.mrf.mxu0
      %v2780 = vadd.f32 %v2691, %v2779
      %2781 = vmatmul.bf16.gmra.mxu0 %v2355
      %v2782 = vpop.f32.mrf.mxu0
      %v2783 = vadd.f32 %v2694, %v2782
      %v2784 = vpop.f32.mrf.mxu0
      %v2785 = vadd.f32 %v2696, %v2784
      %2786 = vmatmul.bf16.gmra.mxu0 %v2358
      %v2787 = vpop.f32.mrf.mxu0
      %v2788 = vadd.f32 %v2699, %v2787
      %v2789 = vpop.f32.mrf.mxu0
      %v2790 = vadd.f32 %v2701, %v2789
      %2791 = vmatmul.bf16.gmra.mxu0 %v2361
      %v2792 = vpop.f32.mrf.mxu0
      %v2793 = vadd.f32 %v2704, %v2792
      %v2794 = vpop.f32.mrf.mxu0
      %v2795 = vadd.f32 %v2706, %v2794
      %2796 = vmatmul.bf16.gmra.mxu0 %v2364
      %v2797 = vpop.f32.mrf.mxu0
      %v2798 = vadd.f32 %v2709, %v2797
      %v2799 = vpop.f32.mrf.mxu0
      %v2800 = vadd.f32 %v2711, %v2799
      %2801 = vmatmul.bf16.gmra.mxu0 %v2367
      %v2802 = vpop.f32.mrf.mxu0
      %v2803 = vadd.f32 %v2714, %v2802
      %v2804 = vpop.f32.mrf.mxu0
      %v2805 = vadd.f32 %v2716, %v2804
      %2806 = vmatmul.bf16.gmra.mxu0 %v2370
      %v2807 = vpop.f32.mrf.mxu0
      %v2808 = vadd.f32 %v2719, %v2807
      %v2809 = vpop.f32.mrf.mxu0
      %v2810 = vadd.f32 %v2721, %v2809
      %2811 = vmatmul.bf16.gmra.mxu0 %v2373
      %v2812 = vpop.f32.mrf.mxu0
      %v2813 = vadd.f32 %v2724, %v2812
      %v2814 = vpop.f32.mrf.mxu0
      %v2815 = vadd.f32 %v2726, %v2814
      %2816 = vmatmul.bf16.gmra.mxu0 %v2376
      %v2817 = vpop.f32.mrf.mxu0
      %v2818 = vadd.f32 %v2729, %v2817
      %v2819 = vpop.f32.mrf.mxu0
      %v2820 = vadd.f32 %v2731, %v2819
      %2821 = vmatmul.bf16.gmra.mxu0 %v2379
      %v2822 = vpop.f32.mrf.mxu0
      %v2823 = vadd.f32 %v2734, %v2822
      %v2824 = vpop.f32.mrf.mxu0
      %v2825 = vadd.f32 %v2736, %v2824
      %2826 = vmatmul.bf16.gmra.mxu0 %v2382
      %v2827 = vpop.f32.mrf.mxu0
      %v2828 = vadd.f32 %v2739, %v2827
      %v2829 = vpop.f32.mrf.mxu0
      %v2830 = vadd.f32 %v2741, %v2829
      %2831 = vmatmul.bf16.gmra.mxu0 %v2385
      %v2832 = vpop.f32.mrf.mxu0
      %v2833 = vadd.f32 %v2744, %v2832
      %v2834 = vpop.f32.mrf.mxu0
      %v2835 = vadd.f32 %v2746, %v2834
      %2836 = vmatmul.bf16.gmra.mxu0 %v2388
      %v2837 = vpop.f32.mrf.mxu0
      %v2838 = vadd.f32 %v2749, %v2837
      %v2839 = vpop.f32.mrf.mxu0
      %v2840 = vadd.f32 %v2751, %v2839
      %2841 = vmatmul.bf16.gmra.mxu0 %v2391
      %v2842 = vpop.f32.mrf.mxu0
      %v2843 = vadd.f32 %v2754, %v2842
      %v2844 = vpop.f32.mrf.mxu0
      %v2845 = vadd.f32 %v2756, %v2844
      %2846 = vmatmul.bf16.gmra.mxu0 %v2394
      %v2847 = vpop.f32.mrf.mxu0
      %v2848 = vadd.f32 %v2759, %v2847
      %v2849 = vpop.f32.mrf.mxu0
      %v2850 = vadd.f32 %v2761, %v2849
      %2851 = vmatmul.bf16.gmra.mxu0 %v2397
      %v2852 = vpop.f32.mrf.mxu0
      %v2853 = vadd.f32 %v2764, %v2852
      %v2854 = vpop.f32.mrf.mxu0
      %v2855 = vadd.f32 %v2766, %v2854
      %2856 = vdwg.mxu0
      %v2857 = vld [vmem:[#allocation3] sm:$0xff]
      %v2858 = vld [vmem:[#allocation3 + $0x8] sm:$0xff]
      %v2859 = vld [vmem:[#allocation3 + $0x10] sm:$0xff]
      %v2860 = vld [vmem:[#allocation3 + $0x18] sm:$0xff]
      %v2861 = vld [vmem:[#allocation3 + $0x20] sm:$0xff]
      %v2862 = vld [vmem:[#allocation3 + $0x28] sm:$0xff]
      %v2863 = vld [vmem:[#allocation3 + $0x30] sm:$0xff]
      %v2864 = vld [vmem:[#allocation3 + $0x38] sm:$0xff]
      %v2865 = vld [vmem:[#allocation3 + $0x40] sm:$0xff]
      %v2866 = vld [vmem:[#allocation3 + $0x48] sm:$0xff]
      %v2867 = vld [vmem:[#allocation3 + $0x50] sm:$0xff]
      %v2868 = vld [vmem:[#allocation3 + $0x58] sm:$0xff]
      %v2869 = vld [vmem:[#allocation3 + $0x60] sm:$0xff]
      %v2870 = vld [vmem:[#allocation3 + $0x68] sm:$0xff]
      %v2871 = vld [vmem:[#allocation3 + $0x70] sm:$0xff]
      %v2872 = vld [vmem:[#allocation3 + $0x78] sm:$0xff]
      %v2873 = vld [vmem:[#allocation3 + $0x80] sm:$0xff]
      %v2874 = vld [vmem:[#allocation3 + $0x88] sm:$0xff]
      %v2875 = vld [vmem:[#allocation3 + $0x90] sm:$0xff]
      %v2876 = vld [vmem:[#allocation3 + $0x98] sm:$0xff]
      %v2877 = vld [vmem:[#allocation3 + $0xa0] sm:$0xff]
      %v2878 = vld [vmem:[#allocation3 + $0xa8] sm:$0xff]
      %v2879 = vld [vmem:[#allocation3 + $0xb0] sm:$0xff]
      %v2880 = vld [vmem:[#allocation3 + $0xb8] sm:$0xff]
      %v2881 = vld [vmem:[#allocation3 + $0xc0] sm:$0xff]
      %v2882 = vld [vmem:[#allocation3 + $0xc8] sm:$0xff]
      %v2883 = vld [vmem:[#allocation3 + $0xd0] sm:$0xff]
      %v2884 = vld [vmem:[#allocation3 + $0xd8] sm:$0xff]
      %v2885 = vld [vmem:[#allocation3 + $0xe0] sm:$0xff]
      %v2886 = vld [vmem:[#allocation3 + $0xe8] sm:$0xff]
      %v2887 = vld [vmem:[#allocation3 + $0xf0] sm:$0xff]
      %v2888 = vld [vmem:[#allocation3 + $0xf8] sm:$0xff]
      %v2889 = vadd.f32 %v2857, %v2778
      %v2890 = vadd.f32 %v2858, %v2780
      %v2891 = vadd.f32 %v2859, %v2783
      %v2892 = vadd.f32 %v2860, %v2785
      %v2893 = vadd.f32 %v2861, %v2788
      %v2894 = vadd.f32 %v2862, %v2790
      %v2895 = vadd.f32 %v2863, %v2793
      %v2896 = vadd.f32 %v2864, %v2795
      %v2897 = vadd.f32 %v2865, %v2798
      %v2898 = vadd.f32 %v2866, %v2800
      %v2899 = vadd.f32 %v2867, %v2803
      %v2900 = vadd.f32 %v2868, %v2805
      %v2901 = vadd.f32 %v2869, %v2808
      %v2902 = vadd.f32 %v2870, %v2810
      %v2903 = vadd.f32 %v2871, %v2813
      %v2904 = vadd.f32 %v2872, %v2815
      %v2905 = vadd.f32 %v2873, %v2818
      %v2906 = vadd.f32 %v2874, %v2820
      %v2907 = vadd.f32 %v2875, %v2823
      %v2908 = vadd.f32 %v2876, %v2825
      %v2909 = vadd.f32 %v2877, %v2828
      %v2910 = vadd.f32 %v2878, %v2830
      %v2911 = vadd.f32 %v2879, %v2833
      %v2912 = vadd.f32 %v2880, %v2835
      %v2913 = vadd.f32 %v2881, %v2838
      %v2914 = vadd.f32 %v2882, %v2840
      %v2915 = vadd.f32 %v2883, %v2843
      %v2916 = vadd.f32 %v2884, %v2845
      %v2917 = vadd.f32 %v2885, %v2848
      %v2918 = vadd.f32 %v2886, %v2850
      %v2919 = vadd.f32 %v2887, %v2853
      %v2920 = vadd.f32 %v2888, %v2855
      %2921 = vst [vmem:[#allocation3] sm:$0xff] %v2889
      %2922 = vst [vmem:[#allocation3 + $0x8] sm:$0xff] %v2890
      %2923 = vst [vmem:[#allocation3 + $0x10] sm:$0xff] %v2891
      %2924 = vst [vmem:[#allocation3 + $0x18] sm:$0xff] %v2892
      %2925 = vst [vmem:[#allocation3 + $0x20] sm:$0xff] %v2893
      %2926 = vst [vmem:[#allocation3 + $0x28] sm:$0xff] %v2894
      %2927 = vst [vmem:[#allocation3 + $0x30] sm:$0xff] %v2895
      %2928 = vst [vmem:[#allocation3 + $0x38] sm:$0xff] %v2896
      %2929 = vst [vmem:[#allocation3 + $0x40] sm:$0xff] %v2897
      %2930 = vst [vmem:[#allocation3 + $0x48] sm:$0xff] %v2898
      %2931 = vst [vmem:[#allocation3 + $0x50] sm:$0xff] %v2899
      %2932 = vst [vmem:[#allocation3 + $0x58] sm:$0xff] %v2900
      %2933 = vst [vmem:[#allocation3 + $0x60] sm:$0xff] %v2901
      %2934 = vst [vmem:[#allocation3 + $0x68] sm:$0xff] %v2902
      %2935 = vst [vmem:[#allocation3 + $0x70] sm:$0xff] %v2903
      %2936 = vst [vmem:[#allocation3 + $0x78] sm:$0xff] %v2904
      %2937 = vst [vmem:[#allocation3 + $0x80] sm:$0xff] %v2905
      %2938 = vst [vmem:[#allocation3 + $0x88] sm:$0xff] %v2906
      %2939 = vst [vmem:[#allocation3 + $0x90] sm:$0xff] %v2907
      %2940 = vst [vmem:[#allocation3 + $0x98] sm:$0xff] %v2908
      %2941 = vst [vmem:[#allocation3 + $0xa0] sm:$0xff] %v2909
      %2942 = vst [vmem:[#allocation3 + $0xa8] sm:$0xff] %v2910
      %2943 = vst [vmem:[#allocation3 + $0xb0] sm:$0xff] %v2911
      %2944 = vst [vmem:[#allocation3 + $0xb8] sm:$0xff] %v2912
      %2945 = vst [vmem:[#allocation3 + $0xc0] sm:$0xff] %v2913
      %2946 = vst [vmem:[#allocation3 + $0xc8] sm:$0xff] %v2914
      %2947 = vst [vmem:[#allocation3 + $0xd0] sm:$0xff] %v2915
      %2948 = vst [vmem:[#allocation3 + $0xd8] sm:$0xff] %v2916
      %2949 = vst [vmem:[#allocation3 + $0xe0] sm:$0xff] %v2917
      %2950 = vst [vmem:[#allocation3 + $0xe8] sm:$0xff] %v2918
      %2951 = vst [vmem:[#allocation3 + $0xf0] sm:$0xff] %v2919
      %2952 = vst [vmem:[#allocation3 + $0xf8] sm:$0xff] %v2920
      %s2953 = scalar_lea.vmem [#allocation2], 48
      %v2954 = vld [vmem:[%s2953] sm:$0xff]
      %v2955 = vld [vmem:[%s2953 + $0x8] sm:$0xf]
      %v2956 = vld [vmem:[%s2953 + $0xc] sm:$0xff]
      %v2957 = vld [vmem:[%s2953 + $0x14] sm:$0xf]
      %v2958 = vld [vmem:[%s2953 + $0x18] sm:$0xff]
      %v2959 = vld [vmem:[%s2953 + $0x20] sm:$0xf]
      %v2960 = vld [vmem:[%s2953 + $0x24] sm:$0xff]
      %v2961 = vld [vmem:[%s2953 + $0x2c] sm:$0xf]
      %v2962 = vld [vmem:[%s2953 + $0x30] sm:$0xff]
      %v2963 = vld [vmem:[%s2953 + $0x38] sm:$0xf]
      %v2964 = vld [vmem:[%s2953 + $0x3c] sm:$0xff]
      %v2965 = vld [vmem:[%s2953 + $0x44] sm:$0xf]
      %v2966 = vld [vmem:[%s2953 + $0x48] sm:$0xff]
      %v2967 = vld [vmem:[%s2953 + $0x50] sm:$0xf]
      %v2968 = vld [vmem:[%s2953 + $0x54] sm:$0xff]
      %v2969 = vld [vmem:[%s2953 + $0x5c] sm:$0xf]
      %v2970 = vld [vmem:[%s2953 + $0x60] sm:$0xff]
      %v2971 = vld [vmem:[%s2953 + $0x68] sm:$0xf]
      %v2972 = vld [vmem:[%s2953 + $0x6c] sm:$0xff]
      %v2973 = vld [vmem:[%s2953 + $0x74] sm:$0xf]
      %v2974 = vld [vmem:[%s2953 + $0x78] sm:$0xff]
      %v2975 = vld [vmem:[%s2953 + $0x80] sm:$0xf]
      %v2976 = vld [vmem:[%s2953 + $0x84] sm:$0xff]
      %v2977 = vld [vmem:[%s2953 + $0x8c] sm:$0xf]
      %v2978 = vld [vmem:[%s2953 + $0x90] sm:$0xff]
      %v2979 = vld [vmem:[%s2953 + $0x98] sm:$0xf]
      %v2980 = vld [vmem:[%s2953 + $0x9c] sm:$0xff]
      %v2981 = vld [vmem:[%s2953 + $0xa4] sm:$0xf]
      %v2982 = vld [vmem:[%s2953 + $0xa8] sm:$0xff]
      %v2983 = vld [vmem:[%s2953 + $0xb0] sm:$0xf]
      %v2984 = vld [vmem:[%s2953 + $0xb4] sm:$0xff]
      %v2985 = vld [vmem:[%s2953 + $0xbc] sm:$0xf]
      %v2986 = vld [vmem:[%s2953 + $0xc0] sm:$0xff]
      %v2987 = vld [vmem:[%s2953 + $0xc8] sm:$0xf]
      %v2988 = vld [vmem:[%s2953 + $0xcc] sm:$0xff]
      %v2989 = vld [vmem:[%s2953 + $0xd4] sm:$0xf]
      %v2990 = vld [vmem:[%s2953 + $0xd8] sm:$0xff]
      %v2991 = vld [vmem:[%s2953 + $0xe0] sm:$0xf]
      %v2992 = vld [vmem:[%s2953 + $0xe4] sm:$0xff]
      %v2993 = vld [vmem:[%s2953 + $0xec] sm:$0xf]
      %v2994 = vld [vmem:[%s2953 + $0xf0] sm:$0xff]
      %v2995 = vld [vmem:[%s2953 + $0xf8] sm:$0xf]
      %v2996 = vld [vmem:[%s2953 + $0xfc] sm:$0xff]
      %v2997 = vld [vmem:[%s2953 + $0x104] sm:$0xf]
      %v2998 = vld [vmem:[%s2953 + $0x108] sm:$0xff]
      %v2999 = vld [vmem:[%s2953 + $0x110] sm:$0xf]
      %v3000 = vld [vmem:[%s2953 + $0x114] sm:$0xff]
      %v3001 = vld [vmem:[%s2953 + $0x11c] sm:$0xf]
      %v3002 = vld [vmem:[%s2953 + $0x120] sm:$0xff]
      %v3003 = vld [vmem:[%s2953 + $0x128] sm:$0xf]
      %v3004 = vld [vmem:[%s2953 + $0x12c] sm:$0xff]
      %v3005 = vld [vmem:[%s2953 + $0x134] sm:$0xf]
      %v3006 = vld [vmem:[%s2953 + $0x138] sm:$0xff]
      %v3007 = vld [vmem:[%s2953 + $0x140] sm:$0xf]
      %v3008 = vld [vmem:[%s2953 + $0x144] sm:$0xff]
      %v3009 = vld [vmem:[%s2953 + $0x14c] sm:$0xf]
      %v3010 = vld [vmem:[%s2953 + $0x150] sm:$0xff]
      %v3011 = vld [vmem:[%s2953 + $0x158] sm:$0xf]
      %v3012 = vld [vmem:[%s2953 + $0x15c] sm:$0xff]
      %v3013 = vld [vmem:[%s2953 + $0x164] sm:$0xf]
      %v3014 = vld [vmem:[%s2953 + $0x168] sm:$0xff]
      %v3015 = vld [vmem:[%s2953 + $0x170] sm:$0xf]
      %v3016 = vld [vmem:[%s2953 + $0x174] sm:$0xff]
      %v3017 = vld [vmem:[%s2953 + $0x17c] sm:$0xf]
      %s3018 = scalar_lea.vmem %s3, 384
      %v3019 = vld [vmem:[%s3018] sm:$0xf]
      %v3020 = vld [vmem:[%s3018 + $0x4] sm:$0xf]
      %v3021 = vld [vmem:[%s3018 + $0x8] sm:$0xf]
      %v3022 = vld [vmem:[%s3018 + $0xc] sm:$0xf]
      %v3023 = vld [vmem:[%s3018 + $0x10] sm:$0xf]
      %v3024 = vld [vmem:[%s3018 + $0x14] sm:$0xf]
      %v3025 = vld [vmem:[%s3018 + $0x18] sm:$0xf]
      %v3026 = vld [vmem:[%s3018 + $0x1c] sm:$0xf]
      %v3027 = vld [vmem:[%s3018 + $0x20] sm:$0xf]
      %v3028 = vld [vmem:[%s3018 + $0x24] sm:$0xf]
      %v3029 = vld [vmem:[%s3018 + $0x28] sm:$0xf]
      %v3030 = vld [vmem:[%s3018 + $0x2c] sm:$0xf]
      %v3031 = vld [vmem:[%s3018 + $0x30] sm:$0xf]
      %v3032 = vld [vmem:[%s3018 + $0x34] sm:$0xf]
      %v3033 = vld [vmem:[%s3018 + $0x38] sm:$0xf]
      %v3034 = vld [vmem:[%s3018 + $0x3c] sm:$0xf]
      %v3035 = vld [vmem:[%s3018 + $0x40] sm:$0xf]
      %v3036 = vld [vmem:[%s3018 + $0x44] sm:$0xf]
      %v3037 = vld [vmem:[%s3018 + $0x48] sm:$0xf]
      %v3038 = vld [vmem:[%s3018 + $0x4c] sm:$0xf]
      %v3039 = vld [vmem:[%s3018 + $0x50] sm:$0xf]
      %v3040 = vld [vmem:[%s3018 + $0x54] sm:$0xf]
      %v3041 = vld [vmem:[%s3018 + $0x58] sm:$0xf]
      %v3042 = vld [vmem:[%s3018 + $0x5c] sm:$0xf]
      %v3043 = vld [vmem:[%s3018 + $0x60] sm:$0xf]
      %v3044 = vld [vmem:[%s3018 + $0x64] sm:$0xf]
      %v3045 = vld [vmem:[%s3018 + $0x68] sm:$0xf]
      %v3046 = vld [vmem:[%s3018 + $0x6c] sm:$0xf]
      %v3047 = vld [vmem:[%s3018 + $0x70] sm:$0xf]
      %v3048 = vld [vmem:[%s3018 + $0x74] sm:$0xf]
      %v3049 = vld [vmem:[%s3018 + $0x78] sm:$0xf]
      %v3050 = vld [vmem:[%s3018 + $0x7c] sm:$0xf]
      %v3051 = vld [vmem:[%s3018 + $0x80] sm:$0xf]
      %v3052 = vld [vmem:[%s3018 + $0x84] sm:$0xf]
      %v3053 = vld [vmem:[%s3018 + $0x88] sm:$0xf]
      %v3054 = vld [vmem:[%s3018 + $0x8c] sm:$0xf]
      %v3055 = vld [vmem:[%s3018 + $0x90] sm:$0xf]
      %v3056 = vld [vmem:[%s3018 + $0x94] sm:$0xf]
      %v3057 = vld [vmem:[%s3018 + $0x98] sm:$0xf]
      %v3058 = vld [vmem:[%s3018 + $0x9c] sm:$0xf]
      %v3059 = vld [vmem:[%s3018 + $0xa0] sm:$0xf]
      %v3060 = vld [vmem:[%s3018 + $0xa4] sm:$0xf]
      %v3061 = vld [vmem:[%s3018 + $0xa8] sm:$0xf]
      %v3062 = vld [vmem:[%s3018 + $0xac] sm:$0xf]
      %v3063 = vld [vmem:[%s3018 + $0xb0] sm:$0xf]
      %v3064 = vld [vmem:[%s3018 + $0xb4] sm:$0xf]
      %v3065 = vld [vmem:[%s3018 + $0xb8] sm:$0xf]
      %v3066 = vld [vmem:[%s3018 + $0xbc] sm:$0xf]
      %v3131 = vunpack.c.l.b16 %v2954
      %v3132 = vunpack.c.h.b16 %v2954
      %v3133 = vunpack.c.l.b16 %v2955
      %v3134 = vunpack.c.l.b16 %v2956
      %v3135 = vunpack.c.h.b16 %v2956
      %v3136 = vunpack.c.l.b16 %v2957
      %v3137 = vunpack.c.l.b16 %v2958
      %v3138 = vunpack.c.h.b16 %v2958
      %v3139 = vunpack.c.l.b16 %v2959
      %v3140 = vunpack.c.l.b16 %v2960
      %v3141 = vunpack.c.h.b16 %v2960
      %v3142 = vunpack.c.l.b16 %v2961
      %v3143 = vunpack.c.l.b16 %v2962
      %v3144 = vunpack.c.h.b16 %v2962
      %v3145 = vunpack.c.l.b16 %v2963
      %v3146 = vunpack.c.l.b16 %v2964
      %v3147 = vunpack.c.h.b16 %v2964
      %v3148 = vunpack.c.l.b16 %v2965
      %v3149 = vunpack.c.l.b16 %v2966
      %v3150 = vunpack.c.h.b16 %v2966
      %v3151 = vunpack.c.l.b16 %v2967
      %v3152 = vunpack.c.l.b16 %v2968
      %v3153 = vunpack.c.h.b16 %v2968
      %v3154 = vunpack.c.l.b16 %v2969
      %v3155 = vunpack.c.l.b16 %v2970
      %v3156 = vunpack.c.h.b16 %v2970
      %v3157 = vunpack.c.l.b16 %v2971
      %v3158 = vunpack.c.l.b16 %v2972
      %v3159 = vunpack.c.h.b16 %v2972
      %v3160 = vunpack.c.l.b16 %v2973
      %v3161 = vunpack.c.l.b16 %v2974
      %v3162 = vunpack.c.h.b16 %v2974
      %v3163 = vunpack.c.l.b16 %v2975
      %v3164 = vunpack.c.l.b16 %v2976
      %v3165 = vunpack.c.h.b16 %v2976
      %v3166 = vunpack.c.l.b16 %v2977
      %v3167 = vunpack.c.l.b16 %v2978
      %v3168 = vunpack.c.h.b16 %v2978
      %v3169 = vunpack.c.l.b16 %v2979
      %v3170 = vunpack.c.l.b16 %v2980
      %v3171 = vunpack.c.h.b16 %v2980
      %v3172 = vunpack.c.l.b16 %v2981
      %v3173 = vunpack.c.l.b16 %v2982
      %v3174 = vunpack.c.h.b16 %v2982
      %v3175 = vunpack.c.l.b16 %v2983
      %v3176 = vunpack.c.l.b16 %v2984
      %v3177 = vunpack.c.h.b16 %v2984
      %v3178 = vunpack.c.l.b16 %v2985
      %v3179 = vunpack.c.l.b16 %v2986
      %v3180 = vunpack.c.h.b16 %v2986
      %v3181 = vunpack.c.l.b16 %v2987
      %v3182 = vunpack.c.l.b16 %v2988
      %v3183 = vunpack.c.h.b16 %v2988
      %v3184 = vunpack.c.l.b16 %v2989
      %v3185 = vunpack.c.l.b16 %v2990
      %v3186 = vunpack.c.h.b16 %v2990
      %v3187 = vunpack.c.l.b16 %v2991
      %v3188 = vunpack.c.l.b16 %v2992
      %v3189 = vunpack.c.h.b16 %v2992
      %v3190 = vunpack.c.l.b16 %v2993
      %v3191 = vunpack.c.l.b16 %v2994
      %v3192 = vunpack.c.h.b16 %v2994
      %v3193 = vunpack.c.l.b16 %v2995
      %v3194 = vunpack.c.l.b16 %v2996
      %v3195 = vunpack.c.h.b16 %v2996
      %v3196 = vunpack.c.l.b16 %v2997
      %v3197 = vunpack.c.l.b16 %v2998
      %v3198 = vunpack.c.h.b16 %v2998
      %v3199 = vunpack.c.l.b16 %v2999
      %v3200 = vunpack.c.l.b16 %v3000
      %v3201 = vunpack.c.h.b16 %v3000
      %v3202 = vunpack.c.l.b16 %v3001
      %v3203 = vunpack.c.l.b16 %v3002
      %v3204 = vunpack.c.h.b16 %v3002
      %v3205 = vunpack.c.l.b16 %v3003
      %v3206 = vunpack.c.l.b16 %v3004
      %v3207 = vunpack.c.h.b16 %v3004
      %v3208 = vunpack.c.l.b16 %v3005
      %v3209 = vunpack.c.l.b16 %v3006
      %v3210 = vunpack.c.h.b16 %v3006
      %v3211 = vunpack.c.l.b16 %v3007
      %v3212 = vunpack.c.l.b16 %v3008
      %v3213 = vunpack.c.h.b16 %v3008
      %v3214 = vunpack.c.l.b16 %v3009
      %v3215 = vunpack.c.l.b16 %v3010
      %v3216 = vunpack.c.h.b16 %v3010
      %v3217 = vunpack.c.l.b16 %v3011
      %v3218 = vunpack.c.l.b16 %v3012
      %v3219 = vunpack.c.h.b16 %v3012
      %v3220 = vunpack.c.l.b16 %v3013
      %v3221 = vunpack.c.l.b16 %v3014
      %v3222 = vunpack.c.h.b16 %v3014
      %v3223 = vunpack.c.l.b16 %v3015
      %v3224 = vunpack.c.l.b16 %v3016
      %v3225 = vunpack.c.h.b16 %v3016
      %v3226 = vunpack.c.l.b16 %v3017
      %v3227 = vpack.c.b16 %v3134, %v3131
      %v3228 = vpack.c.b16 %v3135, %v3132
      %v3229 = vpack.c.b16 %v3136, %v3133
      %v3230 = vpack.c.b16 %v3140, %v3137
      %v3231 = vpack.c.b16 %v3141, %v3138
      %v3232 = vpack.c.b16 %v3142, %v3139
      %v3233 = vpack.c.b16 %v3146, %v3143
      %v3234 = vpack.c.b16 %v3147, %v3144
      %v3235 = vpack.c.b16 %v3148, %v3145
      %v3236 = vpack.c.b16 %v3152, %v3149
      %v3237 = vpack.c.b16 %v3153, %v3150
      %v3238 = vpack.c.b16 %v3154, %v3151
      %v3239 = vpack.c.b16 %v3158, %v3155
      %v3240 = vpack.c.b16 %v3159, %v3156
      %v3241 = vpack.c.b16 %v3160, %v3157
      %v3242 = vpack.c.b16 %v3164, %v3161
      %v3243 = vpack.c.b16 %v3165, %v3162
      %v3244 = vpack.c.b16 %v3166, %v3163
      %v3245 = vpack.c.b16 %v3170, %v3167
      %v3246 = vpack.c.b16 %v3171, %v3168
      %v3247 = vpack.c.b16 %v3172, %v3169
      %v3248 = vpack.c.b16 %v3176, %v3173
      %v3249 = vpack.c.b16 %v3177, %v3174
      %v3250 = vpack.c.b16 %v3178, %v3175
      %v3251 = vpack.c.b16 %v3182, %v3179
      %v3252 = vpack.c.b16 %v3183, %v3180
      %v3253 = vpack.c.b16 %v3184, %v3181
      %v3254 = vpack.c.b16 %v3188, %v3185
      %v3255 = vpack.c.b16 %v3189, %v3186
      %v3256 = vpack.c.b16 %v3190, %v3187
      %v3257 = vpack.c.b16 %v3194, %v3191
      %v3258 = vpack.c.b16 %v3195, %v3192
      %v3259 = vpack.c.b16 %v3196, %v3193
      %v3260 = vpack.c.b16 %v3200, %v3197
      %v3261 = vpack.c.b16 %v3201, %v3198
      %v3262 = vpack.c.b16 %v3202, %v3199
      %v3263 = vpack.c.b16 %v3206, %v3203
      %v3264 = vpack.c.b16 %v3207, %v3204
      %v3265 = vpack.c.b16 %v3208, %v3205
      %v3266 = vpack.c.b16 %v3212, %v3209
      %v3267 = vpack.c.b16 %v3213, %v3210
      %v3268 = vpack.c.b16 %v3214, %v3211
      %v3269 = vpack.c.b16 %v3218, %v3215
      %v3270 = vpack.c.b16 %v3219, %v3216
      %v3271 = vpack.c.b16 %v3220, %v3217
      %v3272 = vpack.c.b16 %v3224, %v3221
      %v3273 = vpack.c.b16 %v3225, %v3222
      %v3274 = vpack.c.b16 %v3226, %v3223
      %v3371 = vunpack.c.l.b16 %v3019
      %v3372 = vunpack.c.l.b16 %v3020
      %v3373 = vunpack.c.l.b16 %v3021
      %v3374 = vunpack.c.l.b16 %v3022
      %v3375 = vunpack.c.l.b16 %v3023
      %v3376 = vunpack.c.l.b16 %v3024
      %v3377 = vunpack.c.l.b16 %v3025
      %v3378 = vunpack.c.l.b16 %v3026
      %v3379 = vunpack.c.l.b16 %v3027
      %v3380 = vunpack.c.l.b16 %v3028
      %v3381 = vunpack.c.l.b16 %v3029
      %v3382 = vunpack.c.l.b16 %v3030
      %v3383 = vunpack.c.l.b16 %v3031
      %v3384 = vunpack.c.l.b16 %v3032
      %v3385 = vunpack.c.l.b16 %v3033
      %v3386 = vunpack.c.l.b16 %v3034
      %v3387 = vunpack.c.l.b16 %v3035
      %v3388 = vunpack.c.l.b16 %v3036
      %v3389 = vunpack.c.l.b16 %v3037
      %v3390 = vunpack.c.l.b16 %v3038
      %v3391 = vunpack.c.l.b16 %v3039
      %v3392 = vunpack.c.l.b16 %v3040
      %v3393 = vunpack.c.l.b16 %v3041
      %v3394 = vunpack.c.l.b16 %v3042
      %v3395 = vunpack.c.l.b16 %v3043
      %v3396 = vunpack.c.l.b16 %v3044
      %v3397 = vunpack.c.l.b16 %v3045
      %v3398 = vunpack.c.l.b16 %v3046
      %v3399 = vunpack.c.l.b16 %v3047
      %v3400 = vunpack.c.l.b16 %v3048
      %v3401 = vunpack.c.l.b16 %v3049
      %v3402 = vunpack.c.l.b16 %v3050
      %v3403 = vunpack.c.l.b16 %v3051
      %v3404 = vunpack.c.l.b16 %v3052
      %v3405 = vunpack.c.l.b16 %v3053
      %v3406 = vunpack.c.l.b16 %v3054
      %v3407 = vunpack.c.l.b16 %v3055
      %v3408 = vunpack.c.l.b16 %v3056
      %v3409 = vunpack.c.l.b16 %v3057
      %v3410 = vunpack.c.l.b16 %v3058
      %v3411 = vunpack.c.l.b16 %v3059
      %v3412 = vunpack.c.l.b16 %v3060
      %v3413 = vunpack.c.l.b16 %v3061
      %v3414 = vunpack.c.l.b16 %v3062
      %v3415 = vunpack.c.l.b16 %v3063
      %v3416 = vunpack.c.l.b16 %v3064
      %v3417 = vunpack.c.l.b16 %v3065
      %v3418 = vunpack.c.l.b16 %v3066
      %v3419 = vpack.c.b16 %v3372, %v3371
      %v3420 = vpack.c.b16 %v3374, %v3373
      %v3421 = vpack.c.b16 %v3376, %v3375
      %v3422 = vpack.c.b16 %v3378, %v3377
      %v3423 = vpack.c.b16 %v3380, %v3379
      %v3424 = vpack.c.b16 %v3382, %v3381
      %v3425 = vpack.c.b16 %v3384, %v3383
      %v3426 = vpack.c.b16 %v3386, %v3385
      %v3427 = vpack.c.b16 %v3388, %v3387
      %v3428 = vpack.c.b16 %v3390, %v3389
      %v3429 = vpack.c.b16 %v3392, %v3391
      %v3430 = vpack.c.b16 %v3394, %v3393
      %v3431 = vpack.c.b16 %v3396, %v3395
      %v3432 = vpack.c.b16 %v3398, %v3397
      %v3433 = vpack.c.b16 %v3400, %v3399
      %v3434 = vpack.c.b16 %v3402, %v3401
      %v3435 = vpack.c.b16 %v3404, %v3403
      %v3436 = vpack.c.b16 %v3406, %v3405
      %v3437 = vpack.c.b16 %v3408, %v3407
      %v3438 = vpack.c.b16 %v3410, %v3409
      %v3439 = vpack.c.b16 %v3412, %v3411
      %v3440 = vpack.c.b16 %v3414, %v3413
      %v3441 = vpack.c.b16 %v3416, %v3415
      %v3442 = vpack.c.b16 %v3418, %v3417
      %3467 = vmatpush.bf16.msra.mxu0 %v3426
      %3468 = vmatpush.bf16.msra.mxu0 %v3425
      %3469 = vmatpush.bf16.msra.mxu0 %v3424
      %3470 = vmatpush.bf16.msra.mxu0 %v3423
      %3471 = vmatpush.bf16.msra.mxu0 %v3422
      %3472 = vmatpush.bf16.msra.mxu0 %v3421
      %3473 = vmatpush.bf16.msra.mxu0 %v3420
      %3474 = vmatpush.bf16.msra.mxu0 %v3419
      %3475 = vmatmul.bf16.gmra.mxu0 %v3227
      %v3476 = vpop.f32.mrf.mxu0
      %v3477 = vadd.f32 0.0, %v3476
      %v3478 = vpop.f32.mrf.mxu0
      %v3479 = vadd.f32 0.0, %v3478
      %3480 = vmatmul.bf16.gmra.mxu0 %v3230
      %v3481 = vpop.f32.mrf.mxu0
      %v3482 = vadd.f32 0.0, %v3481
      %v3483 = vpop.f32.mrf.mxu0
      %v3484 = vadd.f32 0.0, %v3483
      %3485 = vmatmul.bf16.gmra.mxu0 %v3233
      %v3486 = vpop.f32.mrf.mxu0
      %v3487 = vadd.f32 0.0, %v3486
      %v3488 = vpop.f32.mrf.mxu0
      %v3489 = vadd.f32 0.0, %v3488
      %3490 = vmatmul.bf16.gmra.mxu0 %v3236
      %v3491 = vpop.f32.mrf.mxu0
      %v3492 = vadd.f32 0.0, %v3491
      %v3493 = vpop.f32.mrf.mxu0
      %v3494 = vadd.f32 0.0, %v3493
      %3495 = vmatmul.bf16.gmra.mxu0 %v3239
      %v3496 = vpop.f32.mrf.mxu0
      %v3497 = vadd.f32 0.0, %v3496
      %v3498 = vpop.f32.mrf.mxu0
      %v3499 = vadd.f32 0.0, %v3498
      %3500 = vmatmul.bf16.gmra.mxu0 %v3242
      %v3501 = vpop.f32.mrf.mxu0
      %v3502 = vadd.f32 0.0, %v3501
      %v3503 = vpop.f32.mrf.mxu0
      %v3504 = vadd.f32 0.0, %v3503
      %3505 = vmatmul.bf16.gmra.mxu0 %v3245
      %v3506 = vpop.f32.mrf.mxu0
      %v3507 = vadd.f32 0.0, %v3506
      %v3508 = vpop.f32.mrf.mxu0
      %v3509 = vadd.f32 0.0, %v3508
      %3510 = vmatmul.bf16.gmra.mxu0 %v3248
      %v3511 = vpop.f32.mrf.mxu0
      %v3512 = vadd.f32 0.0, %v3511
      %v3513 = vpop.f32.mrf.mxu0
      %v3514 = vadd.f32 0.0, %v3513
      %3515 = vmatmul.bf16.gmra.mxu0 %v3251
      %v3516 = vpop.f32.mrf.mxu0
      %v3517 = vadd.f32 0.0, %v3516
      %v3518 = vpop.f32.mrf.mxu0
      %v3519 = vadd.f32 0.0, %v3518
      %3520 = vmatmul.bf16.gmra.mxu0 %v3254
      %v3521 = vpop.f32.mrf.mxu0
      %v3522 = vadd.f32 0.0, %v3521
      %v3523 = vpop.f32.mrf.mxu0
      %v3524 = vadd.f32 0.0, %v3523
      %3525 = vmatmul.bf16.gmra.mxu0 %v3257
      %v3526 = vpop.f32.mrf.mxu0
      %v3527 = vadd.f32 0.0, %v3526
      %v3528 = vpop.f32.mrf.mxu0
      %v3529 = vadd.f32 0.0, %v3528
      %3530 = vmatmul.bf16.gmra.mxu0 %v3260
      %v3531 = vpop.f32.mrf.mxu0
      %v3532 = vadd.f32 0.0, %v3531
      %v3533 = vpop.f32.mrf.mxu0
      %v3534 = vadd.f32 0.0, %v3533
      %3535 = vmatmul.bf16.gmra.mxu0 %v3263
      %v3536 = vpop.f32.mrf.mxu0
      %v3537 = vadd.f32 0.0, %v3536
      %v3538 = vpop.f32.mrf.mxu0
      %v3539 = vadd.f32 0.0, %v3538
      %3540 = vmatmul.bf16.gmra.mxu0 %v3266
      %v3541 = vpop.f32.mrf.mxu0
      %v3542 = vadd.f32 0.0, %v3541
      %v3543 = vpop.f32.mrf.mxu0
      %v3544 = vadd.f32 0.0, %v3543
      %3545 = vmatmul.bf16.gmra.mxu0 %v3269
      %v3546 = vpop.f32.mrf.mxu0
      %v3547 = vadd.f32 0.0, %v3546
      %v3548 = vpop.f32.mrf.mxu0
      %v3549 = vadd.f32 0.0, %v3548
      %3550 = vmatmul.bf16.gmra.mxu0 %v3272
      %v3551 = vpop.f32.mrf.mxu0
      %v3552 = vadd.f32 0.0, %v3551
      %v3553 = vpop.f32.mrf.mxu0
      %v3554 = vadd.f32 0.0, %v3553
      %3555 = vdwg.mxu0
      %3556 = vmatpush.bf16.msra.mxu0 %v3434
      %3557 = vmatpush.bf16.msra.mxu0 %v3433
      %3558 = vmatpush.bf16.msra.mxu0 %v3432
      %3559 = vmatpush.bf16.msra.mxu0 %v3431
      %3560 = vmatpush.bf16.msra.mxu0 %v3430
      %3561 = vmatpush.bf16.msra.mxu0 %v3429
      %3562 = vmatpush.bf16.msra.mxu0 %v3428
      %3563 = vmatpush.bf16.msra.mxu0 %v3427
      %3564 = vmatmul.bf16.gmra.mxu0 %v3228
      %v3565 = vpop.f32.mrf.mxu0
      %v3566 = vadd.f32 %v3477, %v3565
      %v3567 = vpop.f32.mrf.mxu0
      %v3568 = vadd.f32 %v3479, %v3567
      %3569 = vmatmul.bf16.gmra.mxu0 %v3231
      %v3570 = vpop.f32.mrf.mxu0
      %v3571 = vadd.f32 %v3482, %v3570
      %v3572 = vpop.f32.mrf.mxu0
      %v3573 = vadd.f32 %v3484, %v3572
      %3574 = vmatmul.bf16.gmra.mxu0 %v3234
      %v3575 = vpop.f32.mrf.mxu0
      %v3576 = vadd.f32 %v3487, %v3575
      %v3577 = vpop.f32.mrf.mxu0
      %v3578 = vadd.f32 %v3489, %v3577
      %3579 = vmatmul.bf16.gmra.mxu0 %v3237
      %v3580 = vpop.f32.mrf.mxu0
      %v3581 = vadd.f32 %v3492, %v3580
      %v3582 = vpop.f32.mrf.mxu0
      %v3583 = vadd.f32 %v3494, %v3582
      %3584 = vmatmul.bf16.gmra.mxu0 %v3240
      %v3585 = vpop.f32.mrf.mxu0
      %v3586 = vadd.f32 %v3497, %v3585
      %v3587 = vpop.f32.mrf.mxu0
      %v3588 = vadd.f32 %v3499, %v3587
      %3589 = vmatmul.bf16.gmra.mxu0 %v3243
      %v3590 = vpop.f32.mrf.mxu0
      %v3591 = vadd.f32 %v3502, %v3590
      %v3592 = vpop.f32.mrf.mxu0
      %v3593 = vadd.f32 %v3504, %v3592
      %3594 = vmatmul.bf16.gmra.mxu0 %v3246
      %v3595 = vpop.f32.mrf.mxu0
      %v3596 = vadd.f32 %v3507, %v3595
      %v3597 = vpop.f32.mrf.mxu0
      %v3598 = vadd.f32 %v3509, %v3597
      %3599 = vmatmul.bf16.gmra.mxu0 %v3249
      %v3600 = vpop.f32.mrf.mxu0
      %v3601 = vadd.f32 %v3512, %v3600
      %v3602 = vpop.f32.mrf.mxu0
      %v3603 = vadd.f32 %v3514, %v3602
      %3604 = vmatmul.bf16.gmra.mxu0 %v3252
      %v3605 = vpop.f32.mrf.mxu0
      %v3606 = vadd.f32 %v3517, %v3605
      %v3607 = vpop.f32.mrf.mxu0
      %v3608 = vadd.f32 %v3519, %v3607
      %3609 = vmatmul.bf16.gmra.mxu0 %v3255
      %v3610 = vpop.f32.mrf.mxu0
      %v3611 = vadd.f32 %v3522, %v3610
      %v3612 = vpop.f32.mrf.mxu0
      %v3613 = vadd.f32 %v3524, %v3612
      %3614 = vmatmul.bf16.gmra.mxu0 %v3258
      %v3615 = vpop.f32.mrf.mxu0
      %v3616 = vadd.f32 %v3527, %v3615
      %v3617 = vpop.f32.mrf.mxu0
      %v3618 = vadd.f32 %v3529, %v3617
      %3619 = vmatmul.bf16.gmra.mxu0 %v3261
      %v3620 = vpop.f32.mrf.mxu0
      %v3621 = vadd.f32 %v3532, %v3620
      %v3622 = vpop.f32.mrf.mxu0
      %v3623 = vadd.f32 %v3534, %v3622
      %3624 = vmatmul.bf16.gmra.mxu0 %v3264
      %v3625 = vpop.f32.mrf.mxu0
      %v3626 = vadd.f32 %v3537, %v3625
      %v3627 = vpop.f32.mrf.mxu0
      %v3628 = vadd.f32 %v3539, %v3627
      %3629 = vmatmul.bf16.gmra.mxu0 %v3267
      %v3630 = vpop.f32.mrf.mxu0
      %v3631 = vadd.f32 %v3542, %v3630
      %v3632 = vpop.f32.mrf.mxu0
      %v3633 = vadd.f32 %v3544, %v3632
      %3634 = vmatmul.bf16.gmra.mxu0 %v3270
      %v3635 = vpop.f32.mrf.mxu0
      %v3636 = vadd.f32 %v3547, %v3635
      %v3637 = vpop.f32.mrf.mxu0
      %v3638 = vadd.f32 %v3549, %v3637
      %3639 = vmatmul.bf16.gmra.mxu0 %v3273
      %v3640 = vpop.f32.mrf.mxu0
      %v3641 = vadd.f32 %v3552, %v3640
      %v3642 = vpop.f32.mrf.mxu0
      %v3643 = vadd.f32 %v3554, %v3642
      %3644 = vdwg.mxu0
      %3645 = vmatpush.bf16.msra.mxu0 %v3442
      %3646 = vmatpush.bf16.msra.mxu0 %v3441
      %3647 = vmatpush.bf16.msra.mxu0 %v3440
      %3648 = vmatpush.bf16.msra.mxu0 %v3439
      %3649 = vmatpush.bf16.msra.mxu0 %v3438
      %3650 = vmatpush.bf16.msra.mxu0 %v3437
      %3651 = vmatpush.bf16.msra.mxu0 %v3436
      %3652 = vmatpush.bf16.msra.mxu0 %v3435
      %3653 = vmatmul.bf16.gmra.mxu0 %v3229
      %v3654 = vpop.f32.mrf.mxu0
      %v3655 = vadd.f32 %v3566, %v3654
      %v3656 = vpop.f32.mrf.mxu0
      %v3657 = vadd.f32 %v3568, %v3656
      %3658 = vmatmul.bf16.gmra.mxu0 %v3232
      %v3659 = vpop.f32.mrf.mxu0
      %v3660 = vadd.f32 %v3571, %v3659
      %v3661 = vpop.f32.mrf.mxu0
      %v3662 = vadd.f32 %v3573, %v3661
      %3663 = vmatmul.bf16.gmra.mxu0 %v3235
      %v3664 = vpop.f32.mrf.mxu0
      %v3665 = vadd.f32 %v3576, %v3664
      %v3666 = vpop.f32.mrf.mxu0
      %v3667 = vadd.f32 %v3578, %v3666
      %3668 = vmatmul.bf16.gmra.mxu0 %v3238
      %v3669 = vpop.f32.mrf.mxu0
      %v3670 = vadd.f32 %v3581, %v3669
      %v3671 = vpop.f32.mrf.mxu0
      %v3672 = vadd.f32 %v3583, %v3671
      %3673 = vmatmul.bf16.gmra.mxu0 %v3241
      %v3674 = vpop.f32.mrf.mxu0
      %v3675 = vadd.f32 %v3586, %v3674
      %v3676 = vpop.f32.mrf.mxu0
      %v3677 = vadd.f32 %v3588, %v3676
      %3678 = vmatmul.bf16.gmra.mxu0 %v3244
      %v3679 = vpop.f32.mrf.mxu0
      %v3680 = vadd.f32 %v3591, %v3679
      %v3681 = vpop.f32.mrf.mxu0
      %v3682 = vadd.f32 %v3593, %v3681
      %3683 = vmatmul.bf16.gmra.mxu0 %v3247
      %v3684 = vpop.f32.mrf.mxu0
      %v3685 = vadd.f32 %v3596, %v3684
      %v3686 = vpop.f32.mrf.mxu0
      %v3687 = vadd.f32 %v3598, %v3686
      %3688 = vmatmul.bf16.gmra.mxu0 %v3250
      %v3689 = vpop.f32.mrf.mxu0
      %v3690 = vadd.f32 %v3601, %v3689
      %v3691 = vpop.f32.mrf.mxu0
      %v3692 = vadd.f32 %v3603, %v3691
      %3693 = vmatmul.bf16.gmra.mxu0 %v3253
      %v3694 = vpop.f32.mrf.mxu0
      %v3695 = vadd.f32 %v3606, %v3694
      %v3696 = vpop.f32.mrf.mxu0
      %v3697 = vadd.f32 %v3608, %v3696
      %3698 = vmatmul.bf16.gmra.mxu0 %v3256
      %v3699 = vpop.f32.mrf.mxu0
      %v3700 = vadd.f32 %v3611, %v3699
      %v3701 = vpop.f32.mrf.mxu0
      %v3702 = vadd.f32 %v3613, %v3701
      %3703 = vmatmul.bf16.gmra.mxu0 %v3259
      %v3704 = vpop.f32.mrf.mxu0
      %v3705 = vadd.f32 %v3616, %v3704
      %v3706 = vpop.f32.mrf.mxu0
      %v3707 = vadd.f32 %v3618, %v3706
      %3708 = vmatmul.bf16.gmra.mxu0 %v3262
      %v3709 = vpop.f32.mrf.mxu0
      %v3710 = vadd.f32 %v3621, %v3709
      %v3711 = vpop.f32.mrf.mxu0
      %v3712 = vadd.f32 %v3623, %v3711
      %3713 = vmatmul.bf16.gmra.mxu0 %v3265
      %v3714 = vpop.f32.mrf.mxu0
      %v3715 = vadd.f32 %v3626, %v3714
      %v3716 = vpop.f32.mrf.mxu0
      %v3717 = vadd.f32 %v3628, %v3716
      %3718 = vmatmul.bf16.gmra.mxu0 %v3268
      %v3719 = vpop.f32.mrf.mxu0
      %v3720 = vadd.f32 %v3631, %v3719
      %v3721 = vpop.f32.mrf.mxu0
      %v3722 = vadd.f32 %v3633, %v3721
      %3723 = vmatmul.bf16.gmra.mxu0 %v3271
      %v3724 = vpop.f32.mrf.mxu0
      %v3725 = vadd.f32 %v3636, %v3724
      %v3726 = vpop.f32.mrf.mxu0
      %v3727 = vadd.f32 %v3638, %v3726
      %3728 = vmatmul.bf16.gmra.mxu0 %v3274
      %v3729 = vpop.f32.mrf.mxu0
      %v3730 = vadd.f32 %v3641, %v3729
      %v3731 = vpop.f32.mrf.mxu0
      %v3732 = vadd.f32 %v3643, %v3731
      %3733 = vdwg.mxu0
      %v3734 = vld [vmem:[#allocation3] sm:$0xff]
      %v3735 = vld [vmem:[#allocation3 + $0x8] sm:$0xff]
      %v3736 = vld [vmem:[#allocation3 + $0x10] sm:$0xff]
      %v3737 = vld [vmem:[#allocation3 + $0x18] sm:$0xff]
      %v3738 = vld [vmem:[#allocation3 + $0x20] sm:$0xff]
      %v3739 = vld [vmem:[#allocation3 + $0x28] sm:$0xff]
      %v3740 = vld [vmem:[#allocation3 + $0x30] sm:$0xff]
      %v3741 = vld [vmem:[#allocation3 + $0x38] sm:$0xff]
      %v3742 = vld [vmem:[#allocation3 + $0x40] sm:$0xff]
      %v3743 = vld [vmem:[#allocation3 + $0x48] sm:$0xff]
      %v3744 = vld [vmem:[#allocation3 + $0x50] sm:$0xff]
      %v3745 = vld [vmem:[#allocation3 + $0x58] sm:$0xff]
      %v3746 = vld [vmem:[#allocation3 + $0x60] sm:$0xff]
      %v3747 = vld [vmem:[#allocation3 + $0x68] sm:$0xff]
      %v3748 = vld [vmem:[#allocation3 + $0x70] sm:$0xff]
      %v3749 = vld [vmem:[#allocation3 + $0x78] sm:$0xff]
      %v3750 = vld [vmem:[#allocation3 + $0x80] sm:$0xff]
      %v3751 = vld [vmem:[#allocation3 + $0x88] sm:$0xff]
      %v3752 = vld [vmem:[#allocation3 + $0x90] sm:$0xff]
      %v3753 = vld [vmem:[#allocation3 + $0x98] sm:$0xff]
      %v3754 = vld [vmem:[#allocation3 + $0xa0] sm:$0xff]
      %v3755 = vld [vmem:[#allocation3 + $0xa8] sm:$0xff]
      %v3756 = vld [vmem:[#allocation3 + $0xb0] sm:$0xff]
      %v3757 = vld [vmem:[#allocation3 + $0xb8] sm:$0xff]
      %v3758 = vld [vmem:[#allocation3 + $0xc0] sm:$0xff]
      %v3759 = vld [vmem:[#allocation3 + $0xc8] sm:$0xff]
      %v3760 = vld [vmem:[#allocation3 + $0xd0] sm:$0xff]
      %v3761 = vld [vmem:[#allocation3 + $0xd8] sm:$0xff]
      %v3762 = vld [vmem:[#allocation3 + $0xe0] sm:$0xff]
      %v3763 = vld [vmem:[#allocation3 + $0xe8] sm:$0xff]
      %v3764 = vld [vmem:[#allocation3 + $0xf0] sm:$0xff]
      %v3765 = vld [vmem:[#allocation3 + $0xf8] sm:$0xff]
      %v3766 = vadd.f32 %v3734, %v3655
      %v3767 = vadd.f32 %v3735, %v3657
      %v3768 = vadd.f32 %v3736, %v3660
      %v3769 = vadd.f32 %v3737, %v3662
      %v3770 = vadd.f32 %v3738, %v3665
      %v3771 = vadd.f32 %v3739, %v3667
      %v3772 = vadd.f32 %v3740, %v3670
      %v3773 = vadd.f32 %v3741, %v3672
      %v3774 = vadd.f32 %v3742, %v3675
      %v3775 = vadd.f32 %v3743, %v3677
      %v3776 = vadd.f32 %v3744, %v3680
      %v3777 = vadd.f32 %v3745, %v3682
      %v3778 = vadd.f32 %v3746, %v3685
      %v3779 = vadd.f32 %v3747, %v3687
      %v3780 = vadd.f32 %v3748, %v3690
      %v3781 = vadd.f32 %v3749, %v3692
      %v3782 = vadd.f32 %v3750, %v3695
      %v3783 = vadd.f32 %v3751, %v3697
      %v3784 = vadd.f32 %v3752, %v3700
      %v3785 = vadd.f32 %v3753, %v3702
      %v3786 = vadd.f32 %v3754, %v3705
      %v3787 = vadd.f32 %v3755, %v3707
      %v3788 = vadd.f32 %v3756, %v3710
      %v3789 = vadd.f32 %v3757, %v3712
      %v3790 = vadd.f32 %v3758, %v3715
      %v3791 = vadd.f32 %v3759, %v3717
      %v3792 = vadd.f32 %v3760, %v3720
      %v3793 = vadd.f32 %v3761, %v3722
      %v3794 = vadd.f32 %v3762, %v3725
      %v3795 = vadd.f32 %v3763, %v3727
      %v3796 = vadd.f32 %v3764, %v3730
      %v3797 = vadd.f32 %v3765, %v3732
      %3798 = vst [vmem:[#allocation3] sm:$0xff] %v3766
      %3799 = vst [vmem:[#allocation3 + $0x8] sm:$0xff] %v3767
      %3800 = vst [vmem:[#allocation3 + $0x10] sm:$0xff] %v3768
      %3801 = vst [vmem:[#allocation3 + $0x18] sm:$0xff] %v3769
      %3802 = vst [vmem:[#allocation3 + $0x20] sm:$0xff] %v3770
      %3803 = vst [vmem:[#allocation3 + $0x28] sm:$0xff] %v3771
      %3804 = vst [vmem:[#allocation3 + $0x30] sm:$0xff] %v3772
      %3805 = vst [vmem:[#allocation3 + $0x38] sm:$0xff] %v3773
      %3806 = vst [vmem:[#allocation3 + $0x40] sm:$0xff] %v3774
      %3807 = vst [vmem:[#allocation3 + $0x48] sm:$0xff] %v3775
      %3808 = vst [vmem:[#allocation3 + $0x50] sm:$0xff] %v3776
      %3809 = vst [vmem:[#allocation3 + $0x58] sm:$0xff] %v3777
      %3810 = vst [vmem:[#allocation3 + $0x60] sm:$0xff] %v3778
      %3811 = vst [vmem:[#allocation3 + $0x68] sm:$0xff] %v3779
      %3812 = vst [vmem:[#allocation3 + $0x70] sm:$0xff] %v3780
      %3813 = vst [vmem:[#allocation3 + $0x78] sm:$0xff] %v3781
      %3814 = vst [vmem:[#allocation3 + $0x80] sm:$0xff] %v3782
      %3815 = vst [vmem:[#allocation3 + $0x88] sm:$0xff] %v3783
      %3816 = vst [vmem:[#allocation3 + $0x90] sm:$0xff] %v3784
      %3817 = vst [vmem:[#allocation3 + $0x98] sm:$0xff] %v3785
      %3818 = vst [vmem:[#allocation3 + $0xa0] sm:$0xff] %v3786
      %3819 = vst [vmem:[#allocation3 + $0xa8] sm:$0xff] %v3787
      %3820 = vst [vmem:[#allocation3 + $0xb0] sm:$0xff] %v3788
      %3821 = vst [vmem:[#allocation3 + $0xb8] sm:$0xff] %v3789
      %3822 = vst [vmem:[#allocation3 + $0xc0] sm:$0xff] %v3790
      %3823 = vst [vmem:[#allocation3 + $0xc8] sm:$0xff] %v3791
      %3824 = vst [vmem:[#allocation3 + $0xd0] sm:$0xff] %v3792
      %3825 = vst [vmem:[#allocation3 + $0xd8] sm:$0xff] %v3793
      %3826 = vst [vmem:[#allocation3 + $0xe0] sm:$0xff] %v3794
      %3827 = vst [vmem:[#allocation3 + $0xe8] sm:$0xff] %v3795
      %3828 = vst [vmem:[#allocation3 + $0xf0] sm:$0xff] %v3796
      %3829 = vst [vmem:[#allocation3 + $0xf8] sm:$0xff] %v3797
      %v3830 = vld [vmem:[#allocation3] sm:$0xff]
      %v3831 = vld [vmem:[#allocation3 + $0x8] sm:$0xff]
      %v3832 = vld [vmem:[#allocation3 + $0x10] sm:$0xff]
      %v3833 = vld [vmem:[#allocation3 + $0x18] sm:$0xff]
      %v3834 = vld [vmem:[#allocation3 + $0x20] sm:$0xff]
      %v3835 = vld [vmem:[#allocation3 + $0x28] sm:$0xff]
      %v3836 = vld [vmem:[#allocation3 + $0x30] sm:$0xff]
      %v3837 = vld [vmem:[#allocation3 + $0x38] sm:$0xff]
      %v3838 = vld [vmem:[#allocation3 + $0x40] sm:$0xff]
      %v3839 = vld [vmem:[#allocation3 + $0x48] sm:$0xff]
      %v3840 = vld [vmem:[#allocation3 + $0x50] sm:$0xff]
      %v3841 = vld [vmem:[#allocation3 + $0x58] sm:$0xff]
      %v3842 = vld [vmem:[#allocation3 + $0x60] sm:$0xff]
      %v3843 = vld [vmem:[#allocation3 + $0x68] sm:$0xff]
      %v3844 = vld [vmem:[#allocation3 + $0x70] sm:$0xff]
      %v3845 = vld [vmem:[#allocation3 + $0x78] sm:$0xff]
      %v3846 = vld [vmem:[#allocation3 + $0x80] sm:$0xff]
      %v3847 = vld [vmem:[#allocation3 + $0x88] sm:$0xff]
      %v3848 = vld [vmem:[#allocation3 + $0x90] sm:$0xff]
      %v3849 = vld [vmem:[#allocation3 + $0x98] sm:$0xff]
      %v3850 = vld [vmem:[#allocation3 + $0xa0] sm:$0xff]
      %v3851 = vld [vmem:[#allocation3 + $0xa8] sm:$0xff]
      %v3852 = vld [vmem:[#allocation3 + $0xb0] sm:$0xff]
      %v3853 = vld [vmem:[#allocation3 + $0xb8] sm:$0xff]
      %v3854 = vld [vmem:[#allocation3 + $0xc0] sm:$0xff]
      %v3855 = vld [vmem:[#allocation3 + $0xc8] sm:$0xff]
      %v3856 = vld [vmem:[#allocation3 + $0xd0] sm:$0xff]
      %v3857 = vld [vmem:[#allocation3 + $0xd8] sm:$0xff]
      %v3858 = vld [vmem:[#allocation3 + $0xe0] sm:$0xff]
      %v3859 = vld [vmem:[#allocation3 + $0xe8] sm:$0xff]
      %v3860 = vld [vmem:[#allocation3 + $0xf0] sm:$0xff]
      %v3861 = vld [vmem:[#allocation3 + $0xf8] sm:$0xff]
      %v3862 = vld [vmem:[%s4] sm:$0x1]
      %v3864 = vperm.slane %v3862, 0
      %v3866 = vadd.f32 %v3830, %v3864
      %v3867 = vadd.f32 %v3831, %v3864
      %v3868 = vadd.f32 %v3832, %v3864
      %v3869 = vadd.f32 %v3833, %v3864
      %v3870 = vadd.f32 %v3834, %v3864
      %v3871 = vadd.f32 %v3835, %v3864
      %v3872 = vadd.f32 %v3836, %v3864
      %v3873 = vadd.f32 %v3837, %v3864
      %v3874 = vadd.f32 %v3838, %v3864
      %v3875 = vadd.f32 %v3839, %v3864
      %v3876 = vadd.f32 %v3840, %v3864
      %v3877 = vadd.f32 %v3841, %v3864
      %v3878 = vadd.f32 %v3842, %v3864
      %v3879 = vadd.f32 %v3843, %v3864
      %v3880 = vadd.f32 %v3844, %v3864
      %v3881 = vadd.f32 %v3845, %v3864
      %v3882 = vadd.f32 %v3846, %v3864
      %v3883 = vadd.f32 %v3847, %v3864
      %v3884 = vadd.f32 %v3848, %v3864
      %v3885 = vadd.f32 %v3849, %v3864
      %v3886 = vadd.f32 %v3850, %v3864
      %v3887 = vadd.f32 %v3851, %v3864
      %v3888 = vadd.f32 %v3852, %v3864
      %v3889 = vadd.f32 %v3853, %v3864
      %v3890 = vadd.f32 %v3854, %v3864
      %v3891 = vadd.f32 %v3855, %v3864
      %v3892 = vadd.f32 %v3856, %v3864
      %v3893 = vadd.f32 %v3857, %v3864
      %v3894 = vadd.f32 %v3858, %v3864
      %v3895 = vadd.f32 %v3859, %v3864
      %v3896 = vadd.f32 %v3860, %v3864
      %v3897 = vadd.f32 %v3861, %v3864
      %v3898 = vpack.c.bf16 %v3866, %v3866
      %v3899 = vpack.c.bf16 %v3867, %v3867
      %v3900 = vpack.c.bf16 %v3868, %v3868
      %v3901 = vpack.c.bf16 %v3869, %v3869
      %v3902 = vpack.c.bf16 %v3870, %v3870
      %v3903 = vpack.c.bf16 %v3871, %v3871
      %v3904 = vpack.c.bf16 %v3872, %v3872
      %v3905 = vpack.c.bf16 %v3873, %v3873
      %v3906 = vpack.c.bf16 %v3874, %v3874
      %v3907 = vpack.c.bf16 %v3875, %v3875
      %v3908 = vpack.c.bf16 %v3876, %v3876
      %v3909 = vpack.c.bf16 %v3877, %v3877
      %v3910 = vpack.c.bf16 %v3878, %v3878
      %v3911 = vpack.c.bf16 %v3879, %v3879
      %v3912 = vpack.c.bf16 %v3880, %v3880
      %v3913 = vpack.c.bf16 %v3881, %v3881
      %v3914 = vpack.c.bf16 %v3882, %v3882
      %v3915 = vpack.c.bf16 %v3883, %v3883
      %v3916 = vpack.c.bf16 %v3884, %v3884
      %v3917 = vpack.c.bf16 %v3885, %v3885
      %v3918 = vpack.c.bf16 %v3886, %v3886
      %v3919 = vpack.c.bf16 %v3887, %v3887
      %v3920 = vpack.c.bf16 %v3888, %v3888
      %v3921 = vpack.c.bf16 %v3889, %v3889
      %v3922 = vpack.c.bf16 %v3890, %v3890
      %v3923 = vpack.c.bf16 %v3891, %v3891
      %v3924 = vpack.c.bf16 %v3892, %v3892
      %v3925 = vpack.c.bf16 %v3893, %v3893
      %v3926 = vpack.c.bf16 %v3894, %v3894
      %v3927 = vpack.c.bf16 %v3895, %v3895
      %v3928 = vpack.c.bf16 %v3896, %v3896
      %v3929 = vpack.c.bf16 %v3897, %v3897
      %3930 = vst [vmem:[%s484] sm:$0xf] %v3898
      %3931 = vst [vmem:[%s484 + $0x4] sm:$0xf] %v3899
      %3932 = vst [vmem:[%s484 + $0x8] sm:$0xf] %v3900
      %3933 = vst [vmem:[%s484 + $0xc] sm:$0xf] %v3901
      %3934 = vst [vmem:[%s484 + $0x10] sm:$0xf] %v3902
      %3935 = vst [vmem:[%s484 + $0x14] sm:$0xf] %v3903
      %3936 = vst [vmem:[%s484 + $0x18] sm:$0xf] %v3904
      %3937 = vst [vmem:[%s484 + $0x1c] sm:$0xf] %v3905
      %3938 = vst [vmem:[%s484 + $0x20] sm:$0xf] %v3906
      %3939 = vst [vmem:[%s484 + $0x24] sm:$0xf] %v3907
      %3940 = vst [vmem:[%s484 + $0x28] sm:$0xf] %v3908
      %3941 = vst [vmem:[%s484 + $0x2c] sm:$0xf] %v3909
      %3942 = vst [vmem:[%s484 + $0x30] sm:$0xf] %v3910
      %3943 = vst [vmem:[%s484 + $0x34] sm:$0xf] %v3911
      %3944 = vst [vmem:[%s484 + $0x38] sm:$0xf] %v3912
      %3945 = vst [vmem:[%s484 + $0x3c] sm:$0xf] %v3913
      %3946 = vst [vmem:[%s484 + $0x40] sm:$0xf] %v3914
      %3947 = vst [vmem:[%s484 + $0x44] sm:$0xf] %v3915
      %3948 = vst [vmem:[%s484 + $0x48] sm:$0xf] %v3916
      %3949 = vst [vmem:[%s484 + $0x4c] sm:$0xf] %v3917
      %3950 = vst [vmem:[%s484 + $0x50] sm:$0xf] %v3918
      %3951 = vst [vmem:[%s484 + $0x54] sm:$0xf] %v3919
      %3952 = vst [vmem:[%s484 + $0x58] sm:$0xf] %v3920
      %3953 = vst [vmem:[%s484 + $0x5c] sm:$0xf] %v3921
      %3954 = vst [vmem:[%s484 + $0x60] sm:$0xf] %v3922
      %3955 = vst [vmem:[%s484 + $0x64] sm:$0xf] %v3923
      %3956 = vst [vmem:[%s484 + $0x68] sm:$0xf] %v3924
      %3957 = vst [vmem:[%s484 + $0x6c] sm:$0xf] %v3925
      %3958 = vst [vmem:[%s484 + $0x70] sm:$0xf] %v3926
      %3959 = vst [vmem:[%s484 + $0x74] sm:$0xf] %v3927
      %3960 = vst [vmem:[%s484 + $0x78] sm:$0xf] %v3928
      %3961 = vst [vmem:[%s484 + $0x7c] sm:$0xf] %v3929
      %v3962 = vadd.f32 %v3866, %v3867
      %v3963 = vadd.f32 %v3962, %v3868
      %v3964 = vadd.f32 %v3963, %v3869
      %v3965 = vadd.f32 %v3964, %v3870
      %v3966 = vadd.f32 %v3965, %v3871
      %v3967 = vadd.f32 %v3966, %v3872
      %v3968 = vadd.f32 %v3967, %v3873
      %v3969 = vadd.f32 %v3968, %v3874
      %v3970 = vadd.f32 %v3969, %v3875
      %v3971 = vadd.f32 %v3970, %v3876
      %v3972 = vadd.f32 %v3971, %v3877
      %v3973 = vadd.f32 %v3972, %v3878
      %v3974 = vadd.f32 %v3973, %v3879
      %v3975 = vadd.f32 %v3974, %v3880
      %v3976 = vadd.f32 %v3975, %v3881
      %v3977 = vadd.f32 %v3976, %v3882
      %v3978 = vadd.f32 %v3977, %v3883
      %v3979 = vadd.f32 %v3978, %v3884
      %v3980 = vadd.f32 %v3979, %v3885
      %v3981 = vadd.f32 %v3980, %v3886
      %v3982 = vadd.f32 %v3981, %v3887
      %v3983 = vadd.f32 %v3982, %v3888
      %v3984 = vadd.f32 %v3983, %v3889
      %v3985 = vadd.f32 %v3984, %v3890
      %v3986 = vadd.f32 %v3985, %v3891
      %v3987 = vadd.f32 %v3986, %v3892
      %v3988 = vadd.f32 %v3987, %v3893
      %v3989 = vadd.f32 %v3988, %v3894
      %v3990 = vadd.f32 %v3989, %v3895
      %v3991 = vadd.f32 %v3990, %v3896
      %v3992 = vadd.f32 %v3991, %v3897
      %v3993 = vrot.slane %v3992, 4
      %v3994 = vadd.f32 %v3992, %v3993
      %v3995 = vrot.slane %v3994, 2
      %v3996 = vadd.f32 %v3994, %v3995
      %v3997 = vrot.slane %v3996, 1
      %v3998 = vadd.f32 %v3996, %v3997
      %v3999 = vmul.f32 %v3866, %v3866
      %v4000 = vmul.f32 %v3867, %v3867
      %v4001 = vmul.f32 %v3868, %v3868
      %v4002 = vmul.f32 %v3869, %v3869
      %v4003 = vmul.f32 %v3870, %v3870
      %v4004 = vmul.f32 %v3871, %v3871
      %v4005 = vmul.f32 %v3872, %v3872
      %v4006 = vmul.f32 %v3873, %v3873
      %v4007 = vmul.f32 %v3874, %v3874
      %v4008 = vmul.f32 %v3875, %v3875
      %v4009 = vmul.f32 %v3876, %v3876
      %v4010 = vmul.f32 %v3877, %v3877
      %v4011 = vmul.f32 %v3878, %v3878
      %v4012 = vmul.f32 %v3879, %v3879
      %v4013 = vmul.f32 %v3880, %v3880
      %v4014 = vmul.f32 %v3881, %v3881
      %v4015 = vmul.f32 %v3882, %v3882
      %v4016 = vmul.f32 %v3883, %v3883
      %v4017 = vmul.f32 %v3884, %v3884
      %v4018 = vmul.f32 %v3885, %v3885
      %v4019 = vmul.f32 %v3886, %v3886
      %v4020 = vmul.f32 %v3887, %v3887
      %v4021 = vmul.f32 %v3888, %v3888
      %v4022 = vmul.f32 %v3889, %v3889
      %v4023 = vmul.f32 %v3890, %v3890
      %v4024 = vmul.f32 %v3891, %v3891
      %v4025 = vmul.f32 %v3892, %v3892
      %v4026 = vmul.f32 %v3893, %v3893
      %v4027 = vmul.f32 %v3894, %v3894
      %v4028 = vmul.f32 %v3895, %v3895
      %v4029 = vmul.f32 %v3896, %v3896
      %v4030 = vmul.f32 %v3897, %v3897
      %v4031 = vadd.f32 %v3999, %v4000
      %v4032 = vadd.f32 %v4031, %v4001
      %v4033 = vadd.f32 %v4032, %v4002
      %v4034 = vadd.f32 %v4033, %v4003
      %v4035 = vadd.f32 %v4034, %v4004
      %v4036 = vadd.f32 %v4035, %v4005
      %v4037 = vadd.f32 %v4036, %v4006
      %v4038 = vadd.f32 %v4037, %v4007
      %v4039 = vadd.f32 %v4038, %v4008
      %v4040 = vadd.f32 %v4039, %v4009
      %v4041 = vadd.f32 %v4040, %v4010
      %v4042 = vadd.f32 %v4041, %v4011
      %v4043 = vadd.f32 %v4042, %v4012
      %v4044 = vadd.f32 %v4043, %v4013
      %v4045 = vadd.f32 %v4044, %v4014
      %v4046 = vadd.f32 %v4045, %v4015
      %v4047 = vadd.f32 %v4046, %v4016
      %v4048 = vadd.f32 %v4047, %v4017
      %v4049 = vadd.f32 %v4048, %v4018
      %v4050 = vadd.f32 %v4049, %v4019
      %v4051 = vadd.f32 %v4050, %v4020
      %v4052 = vadd.f32 %v4051, %v4021
      %v4053 = vadd.f32 %v4052, %v4022
      %v4054 = vadd.f32 %v4053, %v4023
      %v4055 = vadd.f32 %v4054, %v4024
      %v4056 = vadd.f32 %v4055, %v4025
      %v4057 = vadd.f32 %v4056, %v4026
      %v4058 = vadd.f32 %v4057, %v4027
      %v4059 = vadd.f32 %v4058, %v4028
      %v4060 = vadd.f32 %v4059, %v4029
      %v4061 = vadd.f32 %v4060, %v4030
      %v4062 = vrot.slane %v4061, 4
      %v4063 = vadd.f32 %v4061, %v4062
      %v4064 = vrot.slane %v4063, 2
      %v4065 = vadd.f32 %v4063, %v4064
      %v4066 = vrot.slane %v4065, 1
      %v4067 = vadd.f32 %v4065, %v4066
      %vm4068 = vcmask 1040384
      %v4069 = vsel %vm4068, %v3998, %v4067
      %4070 = vst [vmem:[%s492] sm:$0x3] %v4069
      %s4071 = smul.u32 16, %s25
      %p4072 = scmp.lt.s32.totalorder %s24, 1
      %s4073 = scalar_select %p4072, %s24, 1
      %p4074 = scmp.lt.s32.totalorder %s4071, 15
      %s4075 = scalar_select %p4074, %s4071, 15
      %s4076 = smul.addr %s4075, 2
      %s4077 = smul.addr %s4073, 32
      %s4078 = sadd.s32 %s4076, %s4077
      %s4079 = smul.addr %s4078, 4
      %s4080 = scalar_lea.vmem %s7, %s4079
      %p4081 = scmp.lt.s32.totalorder %s24, 1
      %s4082 = scalar_select %p4081, %s24, 1
      %p4083 = scmp.lt.s32.totalorder %s25, 0
      %s4084 = scalar_select %p4083, %s25, 0
      %s4085 = sadd.s32 %s4084, %s4082
      %s4086 = smul.addr %s4085, 2
      %s4087 = scalar_lea.vmem %s8, %s4086
      // Predicated region
      $region53: #{unet_down_block.3} parent=47 // pred_check
        %p4088 = pneg %p236
      $region54: #{unet_down_block.3} parent=47 // pred_check_branch
        %4090 = sbr.rel (%p4088) target = $region56
      $region55: #{unet_down_block.3} parent=47 // pred_region
        %s4091 = smul.u32 16, %s25
      $region56: #{unet_down_block.3} parent=47 // pred_fallthru
        _
      // Predicated region
      $region57: #{unet_down_block.3} parent=47 // pred_check
        %p4092 = pneg %p264
      $region58: #{unet_down_block.3} parent=47 // pred_check_branch
        %4094 = sbr.rel (%p4092) target = $region60
      $region59: #{unet_down_block.3} parent=47 // pred_region
        _
      $region60: #{unet_down_block.3} parent=47 // pred_fallthru
        _
    $region48: #{unet_down_block.3} parent=5 // pred_fallthru
      _
    %p4095 = scmp.le.s32.totalorder 2, %s15
    // Predicated region
    $region61: #{unet_down_block.3} parent=5 // pred_check
      %p4096 = pneg %p4095
    $region62: #{unet_down_block.3} parent=5 // pred_check_branch
      %4098 = sbr.rel (%p4096) target = $region64
    $region63: #{unet_down_block.3} parent=5 // pred_region
      %s4099 = ssub.s32 %s15, 2
      // Predicated region
      $region65: #{unet_down_block.3} parent=63 // pred_check
        %p4100 = pneg %p242
      $region66: #{unet_down_block.3} parent=63 // pred_check_branch
        %4102 = sbr.rel (%p4100) target = $region68
      $region67: #{unet_down_block.3} parent=63 // pred_region
        %s4103 = smul.u32 16, %s27
        %p4104 = scmp.lt.s32.totalorder %s26, 1
        %s4105 = scalar_select %p4104, %s26, 1
        %p4106 = scmp.lt.s32.totalorder %s4103, 15
        %s4107 = scalar_select %p4106, %s4103, 15
        %s4108 = smul.addr %s4107, 2
        %s4109 = smul.addr %s4105, 32
        %s4110 = sadd.s32 %s4108, %s4109
        %s4111 = smul.addr %s4110, 4
        %s4112 = scalar_lea.vmem %s7, %s4111
      $region68: #{unet_down_block.3} parent=63 // pred_fallthru
        _
      // Predicated region
      $region69: #{unet_down_block.3} parent=63 // pred_check
        %p4113 = pneg %p270
      $region70: #{unet_down_block.3} parent=63 // pred_check_branch
        %4115 = sbr.rel (%p4113) target = $region72
      $region71: #{unet_down_block.3} parent=63 // pred_region
        %p4116 = scmp.lt.s32.totalorder %s26, 1
        %s4117 = scalar_select %p4116, %s26, 1
        %p4118 = scmp.lt.s32.totalorder %s27, 0
        %s4119 = scalar_select %p4118, %s27, 0
        %s4120 = sadd.s32 %s4119, %s4117
        %s4121 = smul.addr %s4120, 2
        %s4122 = scalar_lea.vmem %s8, %s4121
      $region72: #{unet_down_block.3} parent=63 // pred_fallthru
        _
    $region64: #{unet_down_block.3} parent=5 // pred_fallthru
      _
  $region6: #{unet_down_block.3} parent=0 // loop_footer
    %s19 = sadd.s32 1, %s15
  $region7: #{unet_down_block.3} parent=0 // loop_footer_branch
    %14 = sbr.rel target = $region3
  $region8: #{unet_down_block.3} parent=0 // loop_exit
    _

</llo_original>
